<compile_context>
chip_gen: v7x
topology: tpu7x:2x2x1
jax: 0.10.0
libtpu: 0.0.40
codegen_flags: <defaults>
</compile_context>

<pallas_src>
import itertools
import numpy as np
import jax
import jax.numpy as jnp
from jax.experimental import pallas as pl
from jax.experimental.pallas import tpu as pltpu

EPS = 1e-5


# --------------------------------------------------------------------------------------
# helpers
# --------------------------------------------------------------------------------------

def _choose_group(Bw, N):
    """Windows per grid step for the window-level kernels.

    Prefer >=2 grid steps (megacore / two-TC friendliness) and keep the flattened
    (G*N, C) blocks 8-row (sublane) aligned.
    """
    for cand in (32, 16, 8, 4, 2, 1):
        if Bw % cand == 0 and Bw // cand >= 2 and (cand * N) % 8 == 0:
            return cand
    return Bw


# --------------------------------------------------------------------------------------
# Pallas kernels
# --------------------------------------------------------------------------------------

def dw_ffn_block(x, wdw, bdw, w1, b1, w2, b2, wqk=None, bqk=None):
    """Fused residual dw-conv + ConvMlp (+ optional qkvs 1x1 ConvBN tail).

    u = x + DWConvBN(x);  z = u + PW2(ReLU(PW1(u)));  optionally feat = z @ Wqkv + bqkv.
    One grid step per image; BN scales pre-folded; matmul weights are bf16.
    x: (B, H, W, C) f32 -> z: (B, H, W, C) f32 [, feat: (B, H, W, Cqk) f32].
    """
    B, H, W, C = x.shape
    K = wdw.shape[0]
    p = (K - 1) // 2
    xp = jnp.pad(x, ((0, 0), (p, p), (p, p), (0, 0)))
    Hp, Wp = H + 2 * p, W + 2 * p
    Ch = w1.shape[1]
    w3 = wdw.reshape(K * K, 1, C).astype(jnp.float32)
    b3 = bdw.reshape(1, 1, C).astype(jnp.float32)
    b1r = b1.reshape(1, Ch).astype(jnp.float32)
    b2r = b2.reshape(1, C).astype(jnp.float32)
    with_qkv = wqk is not None
    if with_qkv:
        Cqk = wqk.shape[1]
        bqkr = bqk.reshape(1, Cqk).astype(jnp.float32)

    def kernel(*refs):
        if with_qkv:
            (xp_ref, wd_ref, bd_ref, w1_ref, b1_ref, w2_ref, b2_ref,
             wq_ref, bq_ref, oz_ref, of_ref) = refs
        else:
            (xp_ref, wd_ref, bd_ref, w1_ref, b1_ref, w2_ref, b2_ref, oz_ref) = refs
        # depthwise KxK, stride 1, 'same' zero padding
        acc = jnp.zeros((H, W, C), jnp.float32)
        for dy in range(K):
            for dx in range(K):
                acc = acc + xp_ref[0, dy:dy + H, dx:dx + W, :] * wd_ref[dy * K + dx]
        u = xp_ref[0, p:p + H, p:p + W, :] + acc + bd_ref[...]          # dw residual
        uf = u.reshape(H * W, C)
        h = jnp.dot(uf.astype(jnp.bfloat16), w1_ref[...],
                    preferred_element_type=jnp.float32) + b1_ref[...]
        h = jnp.maximum(h, 0.0)
        z = uf + jnp.dot(h.astype(jnp.bfloat16), w2_ref[...],
                         preferred_element_type=jnp.float32) + b2_ref[...]
        oz_ref[0] = z
        if with_qkv:
            of_ref[0] = jnp.dot(z.astype(jnp.bfloat16), wq_ref[...],
                                preferred_element_type=jnp.float32) + bq_ref[...]

    in_specs = [
        pl.BlockSpec((1, Hp, Wp, C), lambda b: (b, 0, 0, 0)),
        pl.BlockSpec((K * K, 1, C), lambda b: (0, 0, 0)),
        pl.BlockSpec((1, 1, C), lambda b: (0, 0, 0)),
        pl.BlockSpec((C, Ch), lambda b: (0, 0)),
        pl.BlockSpec((1, Ch), lambda b: (0, 0)),
        pl.BlockSpec((Ch, C), lambda b: (0, 0)),
        pl.BlockSpec((1, C), lambda b: (0, 0)),
    ]
    inputs = [xp, w3, b3, w1, b1r, w2, b2r]
    out_shape = jax.ShapeDtypeStruct((B, H * W, C), jnp.float32)
    out_specs = pl.BlockSpec((1, H * W, C), lambda b: (b, 0, 0))
    if with_qkv:
        in_specs += [pl.BlockSpec((C, Cqk), lambda b: (0, 0)),
                     pl.BlockSpec((1, Cqk), lambda b: (0, 0))]
        inputs += [wqk, bqkr]
        out_shape = (out_shape, jax.ShapeDtypeStruct((B, H * W, Cqk), jnp.float32))
        out_specs = (out_specs, pl.BlockSpec((1, H * W, Cqk), lambda b: (b, 0, 0)))

    res = pl.pallas_call(
        kernel,
        out_shape=out_shape,
        grid=(B,),
        in_specs=in_specs,
        out_specs=out_specs,
        compiler_params=pltpu.CompilerParams(dimension_semantics=("parallel",)),
    )(*inputs)
    if with_qkv:
        z, feat = res
        return z.reshape(B, H, W, C), feat.reshape(B, H, W, Cqk)
    return res.reshape(B, H, W, C)


def dw_pair(qf, xw, wq, bq, wv, bv):
    """Two per-window depthwise 'same' convs fused in one kernel.

    q = DWConvBN(qf) (BN scale and attention scale pre-folded); v = fused per-head mix
    depthwise conv over all channels of xw.  qf: (Bw, R, R, Cq); xw: (Bw, R, R, C).
    Returns q4: (Bw, R, R, Cq), v4: (Bw, R, R, C), both f32.
    """
    Bw, R, _, Cq = qf.shape
    C = xw.shape[-1]
    Kq = wq.shape[0]
    pq = (Kq - 1) // 2
    Kv = wv.shape[0]
    pv = (Kv - 1) // 2
    qp = jnp.pad(qf, ((0, 0), (pq, pq), (pq, pq), (0, 0)))
    xp = jnp.pad(xw, ((0, 0), (pv, pv), (pv, pv), (0, 0)))
    Rq, Rv = R + 2 * pq, R + 2 * pv
    N = R * R
    G = _choose_group(Bw, N)
    wq3 = wq.reshape(Kq * Kq, 1, Cq).astype(jnp.float32)
    bq3 = bq.reshape(1, 1, 1, Cq).astype(jnp.float32)
    wv3 = wv.reshape(Kv * Kv, 1, C).astype(jnp.float32)
    bv3 = bv.reshape(1, 1, 1, C).astype(jnp.float32)

    def kernel(qp_ref, xp_ref, wq_ref, bq_ref, wv_ref, bv_ref, oq_ref, ov_ref):
        qa = jnp.zeros((G, R, R, Cq), jnp.float32)
        for dy in range(Kq):
            for dx in range(Kq):
                qa = qa + qp_ref[:, dy:dy + R, dx:dx + R, :] * wq_ref[dy * Kq + dx]
        oq_ref[...] = qa + bq_ref[...]
        va = jnp.zeros((G, R, R, C), jnp.float32)
        for dy in range(Kv):
            for dx in range(Kv):
                va = va + xp_ref[:, dy:dy + R, dx:dx + R, :] * wv_ref[dy * Kv + dx]
        ov_ref[...] = va + bv_ref[...]

    return pl.pallas_call(
        kernel,
        out_shape=(jax.ShapeDtypeStruct((Bw, R, R, Cq), jnp.float32),
                   jax.ShapeDtypeStruct((Bw, R, R, C), jnp.float32)),
        grid=(Bw // G,),
        in_specs=[
            pl.BlockSpec((G, Rq, Rq, Cq), lambda i: (i, 0, 0, 0)),
            pl.BlockSpec((G, Rv, Rv, C), lambda i: (i, 0, 0, 0)),
            pl.BlockSpec((Kq * Kq, 1, Cq), lambda i: (0, 0, 0)),
            pl.BlockSpec((1, 1, 1, Cq), lambda i: (0, 0, 0, 0)),
            pl.BlockSpec((Kv * Kv, 1, C), lambda i: (0, 0, 0)),
            pl.BlockSpec((1, 1, 1, C), lambda i: (0, 0, 0, 0)),
        ],
        out_specs=(pl.BlockSpec((G, R, R, Cq), lambda i: (i, 0, 0, 0)),
                   pl.BlockSpec((G, R, R, C), lambda i: (i, 0, 0, 0))),
        compiler_params=pltpu.CompilerParams(dimension_semantics=("parallel",)),
    )(qp, xp, wq3, bq3, wv3, bv3)


def attn_proj(q, k, v, bias, wp, bp, res):
    """Fused: attn = softmax(q@k^T + bias); out = ReLU(attn@v); y = out@Wproj + bproj + residual.

    q, k: (Bw, N, Cq) (q already carries the 1/sqrt(key_dim) scale); v: (Bw, N, C);
    bias: (N, N); wp: (C, C) bf16; bp: (C,); res: (Bw*N, C).  Returns (Bw*N, C) f32.
    Processes G windows per grid step so the proj matmul sees a dense (G*N, C) slab.
    """
    Bw, N, Cq = q.shape
    C = v.shape[2]
    G = _choose_group(Bw, N)
    GN = G * N
    bp2 = bp.reshape(1, C).astype(jnp.float32)

    def kernel(q_ref, k_ref, v_ref, b_ref, wp_ref, bp_ref, r_ref, o_ref):
        qb = q_ref[...].astype(jnp.bfloat16)
        kb = k_ref[...].astype(jnp.bfloat16)
        attn = jnp.einsum('gnc,gmc->gnm', qb, kb, preferred_element_type=jnp.float32)
        attn = attn + b_ref[...]
        attn = attn - jnp.max(attn, axis=-1, keepdims=True)
        pexp = jnp.exp(attn)
        pexp = pexp * pl.reciprocal(jnp.sum(pexp, axis=-1, keepdims=True), approx=True)
        out = jnp.einsum('gnm,gmc->gnc', pexp.astype(jnp.bfloat16),
                         v_ref[...].astype(jnp.bfloat16),
                         preferred_element_type=jnp.float32)
        out = jnp.maximum(out, 0.0).reshape(GN, C)      # ReLU precedes proj ConvBN (torch Sequential)
        y = jnp.dot(out.astype(jnp.bfloat16), wp_ref[...],
                    preferred_element_type=jnp.float32)
        o_ref[...] = y + bp_ref[...] + r_ref[...]

    return pl.pallas_call(
        kernel,
        out_shape=jax.ShapeDtypeStruct((Bw * N, C), jnp.float32),
        grid=(Bw // G,),
        in_specs=[
            pl.BlockSpec((G, N, Cq), lambda i: (i, 0, 0)),
            pl.BlockSpec((G, N, Cq), lambda i: (i, 0, 0)),
            pl.BlockSpec((G, N, C), lambda i: (i, 0, 0)),
            pl.BlockSpec((N, N), lambda i: (0, 0)),
            pl.BlockSpec((C, C), lambda i: (0, 0)),
            pl.BlockSpec((1, C), lambda i: (0, 0)),
            pl.BlockSpec((GN, C), lambda i: (i, 0)),
        ],
        out_specs=pl.BlockSpec((GN, C), lambda i: (i, 0)),
        compiler_params=pltpu.CompilerParams(dimension_semantics=("parallel",)),
    )(q, k, v, bias, wp, bp2, res)


# --------------------------------------------------------------------------------------
# Module forward (thin JAX glue around the kernels above)
# --------------------------------------------------------------------------------------

def cascaded_group_attention(xw, fqw, fkw, pm):
    """CascadedGroupAttention (this mixvit variant) on NHWC windows.

    xw: (Bw, R, R, C) post-ffn0 windows; fqw/fkw: (Bw, R, R, C//4) precomputed qkvs features.
    Returns xw + attention(xw) (mixer residual fused into the attn/proj kernel)."""
    Bw, R1, R2, C = xw.shape
    N = R1 * R2
    Cq = fqw.shape[-1]
    q4, v4 = dw_pair(fqw, xw, pm['dws_w'], pm['dws_b'], pm['mix_w'], pm['mix_b'])
    y = attn_proj(q4.reshape(Bw, N, Cq), fkw.reshape(Bw, N, Cq), v4.reshape(Bw, N, C),
                  pm['attn_bias'], pm['proj_w'], pm['proj_b'], xw.reshape(Bw * N, C))
    return y.reshape(Bw, R1, R2, C)


def local_window_attention_residual(x, feat, pm, cfg):
    """Returns x + LocalWindowAttention(x) on NHWC x, with feat = qkvs ConvBN(x) precomputed
    on the full (unpadded) map by the preceding fused kernel."""
    B, H, W, C = x.shape
    Cq = C // 4
    wr = cfg['window_resolution']
    if H <= wr and W <= wr:
        return cascaded_group_attention(x, feat[..., :Cq], feat[..., Cq:], pm)

    pad_b = (wr - H % wr) % wr
    pad_r = (wr - W % wr) % wr
    pH, pW = H + pad_b, W + pad_r
    if pad_b or pad_r:
        xp = jnp.pad(x, ((0, 0), (0, pad_b), (0, pad_r), (0, 0)))
        # In torch the zero-padded pixels go *through* the qkvs ConvBN, so their feature value
        # is the folded BN shift (bias).  Fill the pad region of the precomputed feat with it.
        bq = pm['qkv_b'][:Cq].reshape(1, 1, 1, Cq).astype(jnp.float32)
        bk = pm['qkv_b'][Cq:].reshape(1, 1, 1, Cq).astype(jnp.float32)
        fq_full = jnp.broadcast_to(bq, (B, pH, pW, Cq)).at[:, :H, :W, :].set(feat[..., :Cq])
        fk_full = jnp.broadcast_to(bk, (B, pH, pW, Cq)).at[:, :H, :W, :].set(feat[..., Cq:])
    else:
        xp = x
        fq_full = feat[..., :Cq]
        fk_full = feat[..., Cq:]
    nH, nW = pH // wr, pW // wr

    def to_windows(t):
        c = t.shape[-1]
        return (t.reshape(B, nH, wr, nW, wr, c).transpose(0, 1, 3, 2, 4, 5)
                .reshape(B * nH * nW, wr, wr, c))

    yw = cascaded_group_attention(to_windows(xp), to_windows(fq_full), to_windows(fk_full), pm)
    y = (yw.reshape(B, nH, nW, wr, wr, C).transpose(0, 1, 3, 2, 4, 5).reshape(B, pH, pW, C))
    if pad_b or pad_r:
        y = y[:, :H, :W, :]
    return y


def efficientvit_block(x_nchw, fp, cfg):
    """EfficientVitBlock forward. Input/output NCHW (PyTorch convention)."""
    x = jnp.transpose(x_nchw.astype(jnp.float32), (0, 2, 3, 1))        # NCHW -> NHWC
    pm = fp['mixer']
    # x + dw0(x); then + ffn0; qkvs 1x1 ConvBN fused into the same kernel
    z, feat = dw_ffn_block(x, *fp['dw_ffn0'], wqk=pm['qkv_w'], bqk=pm['qkv_b'])
    x = local_window_attention_residual(z, feat, pm, cfg)              # + mixer
    x = dw_ffn_block(x, *fp['dw_ffn1'])                                # + dw1; then + ffn1
    return jnp.transpose(x, (0, 3, 1, 2))                              # NHWC -> NCHW


# --------------------------------------------------------------------------------------
# Deterministic parameter construction (shapes follow the PyTorch module __init__)
# --------------------------------------------------------------------------------------

def _make_pw(key, cin, cout):
    k = jax.random.split(key, 5)
    w = jax.random.normal(k[0], (cin, cout), jnp.float32) / np.sqrt(cin)
    gamma = 1.0 + 0.1 * jax.random.normal(k[1], (cout,), jnp.float32)
    beta = 0.1 * jax.random.normal(k[2], (cout,), jnp.float32)
    mean = 0.1 * jax.random.normal(k[3], (cout,), jnp.float32)
    var = jax.random.uniform(k[4], (cout,), jnp.float32, minval=0.5, maxval=1.5)
    scale = gamma / jnp.sqrt(var + EPS)
    return dict(w=w, scale=scale, shift=beta - mean * scale)


def _make_dw(key, c, ksz):
    k = jax.random.split(key, 5)
    w = jax.random.normal(k[0], (ksz, ksz, c), jnp.float32) / float(ksz)
    gamma = 1.0 + 0.1 * jax.random.normal(k[1], (c,), jnp.float32)
    beta = 0.1 * jax.random.normal(k[2], (c,), jnp.float32)
    mean = 0.1 * jax.random.normal(k[3], (c,), jnp.float32)
    var = jax.random.uniform(k[4], (c,), jnp.float32, minval=0.5, maxval=1.5)
    scale = gamma / jnp.sqrt(var + EPS)
    return dict(w=w, scale=scale, shift=beta - mean * scale)


def _attention_bias_table(key, num_heads, R):
    # replicate the attention_bias_idxs construction; only head 0's bias is used in forward
    points = list(itertools.product(range(R), range(R)))
    N = len(points)
    offsets = {}
    idxs = []
    for p1 in points:
        for p2 in points:
            off = (abs(p1[0] - p2[0]), abs(p1[1] - p2[1]))
            if off not in offsets:
                offsets[off] = len(offsets)
            idxs.append(offsets[off])
    idxs = np.asarray(idxs, dtype=np.int32).reshape(N, N)
    biases = 0.1 * jax.random.normal(key, (num_heads, len(offsets)), jnp.float32)
    return biases[0][idxs]                                             # (N, N)


def init_params(key, cfg):
    dim = cfg['dim']
    nh = cfg['num_heads']
    kernels = cfg['kernels']
    d = cfg['attn_ratio'] * cfg['key_dim']
    assert dim // nh == d, "dim must equal num_heads * attn_ratio * key_dim"
    wr = min(cfg['window_resolution'], cfg['resolution'])
    ks = jax.random.split(key, 10 + nh)
    mix = []
    for h in range(nh):
        kw, kb = jax.random.split(ks[10 + h])
        mix.append(dict(
            w=jax.random.normal(kw, (kernels[h], kernels[h], d), jnp.float32) / float(kernels[h]),
            b=0.1 * jax.random.normal(kb, (d,), jnp.float32),
        ))
    return dict(
        dw0=_make_dw(ks[0], dim, 3),
        ffn0=dict(pw1=_make_pw(ks[1], dim, 2 * dim), pw2=_make_pw(ks[2], 2 * dim, dim)),
        mixer=dict(
            qkvs=_make_pw(ks[3], dim, dim // 2),
            dws=_make_dw(ks[4], dim // 4, max(kernels)),
            mix=mix,
            proj=_make_pw(ks[5], dim, dim),
            attn_bias=_attention_bias_table(ks[6], nh, wr),
        ),
        dw1=_make_dw(ks[7], dim, 3),
        ffn1=dict(pw1=_make_pw(ks[8], dim, 2 * dim), pw2=_make_pw(ks[9], 2 * dim, dim)),
    )


def fold_params(raw, cfg):
    """Fold BN scales into conv weights (eval-mode), the attention scale into the dws ConvBN,
    fuse the per-head mix depthwise filters into one filter, and cast MXU weights to bf16."""
    alpha = float(cfg['key_dim']) ** -0.5
    kernels = cfg['kernels']
    Kmax = max(kernels)
    nh = cfg['num_heads']

    def fold_pw(p):            # 1x1 ConvBN -> bf16 matmul weight + f32 bias
        return (p['w'] * p['scale'][None, :]).astype(jnp.bfloat16), p['shift'].astype(jnp.float32)

    def fold_dw(p, extra=1.0):  # depthwise ConvBN -> f32 filter + f32 bias
        return ((p['w'] * p['scale'][None, None, :] * extra).astype(jnp.float32),
                (p['shift'] * extra).astype(jnp.float32))

    qkv_w, qkv_b = fold_pw(raw['mixer']['qkvs'])
    dws_w, dws_b = fold_dw(raw['mixer']['dws'], extra=alpha)   # folds q *= key_dim**-0.5
    proj_w, proj_b = fold_pw(raw['mixer']['proj'])

    # Fuse the per-head mix depthwise convs (zero-pad smaller kernels to Kmax; identical math
    # for 'same' padding) into a single (Kmax, Kmax, C) filter + (C,) bias.
    mw, mb = [], []
    for h in range(nh):
        kh = kernels[h]
        off = (Kmax - kh) // 2
        wh = jnp.pad(raw['mixer']['mix'][h]['w'],
                     ((off, Kmax - kh - off), (off, Kmax - kh - off), (0, 0)))
        mw.append(wh)
        mb.append(raw['mixer']['mix'][h]['b'])
    mix_w = jnp.concatenate(mw, axis=-1).astype(jnp.float32)
    mix_b = jnp.concatenate(mb, axis=0).astype(jnp.float32)

    dw0_w, dw0_b = fold_dw(raw['dw0'])
    dw1_w, dw1_b = fold_dw(raw['dw1'])
    f0w1, f0b1 = fold_pw(raw['ffn0']['pw1'])
    f0w2, f0b2 = fold_pw(raw['ffn0']['pw2'])
    f1w1, f1b1 = fold_pw(raw['ffn1']['pw1'])
    f1w2, f1b2 = fold_pw(raw['ffn1']['pw2'])

    return dict(
        dw_ffn0=(dw0_w, dw0_b, f0w1, f0b1, f0w2, f0b2),
        dw_ffn1=(dw1_w, dw1_b, f1w1, f1b1, f1w2, f1b2),
        mixer=dict(qkv_w=qkv_w, qkv_b=qkv_b, dws_w=dws_w, dws_b=dws_b,
                   mix_w=mix_w, mix_b=mix_b, proj_w=proj_w, proj_b=proj_b,
                   attn_bias=raw['mixer']['attn_bias'].astype(jnp.float32)),
    )


# --------------------------------------------------------------------------------------

if __name__ == "__main__":
    cfg = dict(dim=16, key_dim=4, num_heads=4, attn_ratio=1,
               resolution=8, window_resolution=4, kernels=[5, 5, 5, 3])

    key = jax.random.PRNGKey(0)
    kx, kp = jax.random.split(key)
    x = jax.random.normal(kx, (2, cfg['dim'], cfg['resolution'], cfg['resolution']), jnp.float32)
    raw = init_params(kp, cfg)
    params = fold_params(raw, cfg)

    fwd = jax.jit(lambda a: efficientvit_block(a, params, cfg))
    y = fwd(x)
    jax.block_until_ready(y)
    assert y.shape == x.shape and y.dtype == jnp.float32
    assert bool(jnp.all(jnp.isfinite(y)))
    print("KERNEL_OK")
</pallas_src>

<mosaic_0001>
module attributes {stable_mosaic.version = 11 : i64} {
  func.func @kernel(%arg0: i32, %arg1: memref<1x10x10x16xf32, #tpu.memory_space<vmem>>, %arg2: memref<9x1x16xf32, #tpu.memory_space<vmem>>, %arg3: memref<1x1x16xf32, #tpu.memory_space<vmem>>, %arg4: memref<16x32xbf16, #tpu.memory_space<vmem>>, %arg5: memref<1x32xf32, #tpu.memory_space<vmem>>, %arg6: memref<32x16xbf16, #tpu.memory_space<vmem>>, %arg7: memref<1x16xf32, #tpu.memory_space<vmem>>, %arg8: memref<16x8xbf16, #tpu.memory_space<vmem>>, %arg9: memref<1x8xf32, #tpu.memory_space<vmem>>, %arg10: memref<1x64x16xf32, #tpu.memory_space<vmem>>, %arg11: memref<1x64x8xf32, #tpu.memory_space<vmem>>) attributes {dimension_semantics = [#tpu.dimension_semantics<parallel>], iteration_bounds = array<i64: 2>, scalar_prefetch = 0 : i64, scratch_operands = 0 : i64, tpu.core_type = #tpu.core_type<tc>, window_params = [{transform_indices = @transform_0, window_bounds = array<i64: 1, 10, 10, 16>}, {pipeline_mode = #tpu.pipeline_mode<synchronous>, transform_indices = @transform_1, window_bounds = array<i64: 9, 1, 16>}, {pipeline_mode = #tpu.pipeline_mode<synchronous>, transform_indices = @transform_2, window_bounds = array<i64: 1, 1, 16>}, {pipeline_mode = #tpu.pipeline_mode<synchronous>, transform_indices = @transform_3, window_bounds = array<i64: 16, 32>}, {pipeline_mode = #tpu.pipeline_mode<synchronous>, transform_indices = @transform_4, window_bounds = array<i64: 1, 32>}, {pipeline_mode = #tpu.pipeline_mode<synchronous>, transform_indices = @transform_5, window_bounds = array<i64: 32, 16>}, {pipeline_mode = #tpu.pipeline_mode<synchronous>, transform_indices = @transform_6, window_bounds = array<i64: 1, 16>}, {pipeline_mode = #tpu.pipeline_mode<synchronous>, transform_indices = @transform_7, window_bounds = array<i64: 16, 8>}, {pipeline_mode = #tpu.pipeline_mode<synchronous>, transform_indices = @transform_8, window_bounds = array<i64: 1, 8>}, {transform_indices = @transform_9, window_bounds = array<i64: 1, 64, 16>}, {transform_indices = @transform_10, window_bounds = array<i64: 1, 64, 8>}]} {
    %cst = arith.constant 0.000000e+00 : f32
    %0 = vector.broadcast %cst : f32 to vector<8x8x16xf32>
    %c0 = arith.constant 0 : index
    %c0_0 = arith.constant 0 : index
    %c0_1 = arith.constant 0 : index
    %c0_2 = arith.constant 0 : index
    %1 = vector.load %arg1[%c0, %c0_0, %c0_1, %c0_2] : memref<1x10x10x16xf32, #tpu.memory_space<vmem>>, vector<1x8x8x16xf32>
    %2 = vector.shape_cast %1 : vector<1x8x8x16xf32> to vector<8x8x16xf32>
    %c0_3 = arith.constant 0 : index
    %c0_4 = arith.constant 0 : index
    %c0_5 = arith.constant 0 : index
    %3 = vector.load %arg2[%c0_3, %c0_4, %c0_5] : memref<9x1x16xf32, #tpu.memory_space<vmem>>, vector<1x1x16xf32>
    %4 = vector.shape_cast %3 : vector<1x1x16xf32> to vector<1x16xf32>
    %5 = vector.shape_cast %4 : vector<1x16xf32> to vector<1x1x16xf32>
    %6 = vector.broadcast %5 : vector<1x1x16xf32> to vector<8x8x16xf32>
    %7 = arith.mulf %2, %6 : vector<8x8x16xf32>
    %8 = arith.addf %0, %7 : vector<8x8x16xf32>
    %c0_6 = arith.constant 0 : index
    %c0_7 = arith.constant 0 : index
    %c1 = arith.constant 1 : index
    %c0_8 = arith.constant 0 : index
    %9 = vector.load %arg1[%c0_6, %c0_7, %c1, %c0_8] : memref<1x10x10x16xf32, #tpu.memory_space<vmem>>, vector<1x8x8x16xf32>
    %10 = vector.shape_cast %9 : vector<1x8x8x16xf32> to vector<8x8x16xf32>
    %c1_9 = arith.constant 1 : index
    %c0_10 = arith.constant 0 : index
    %c0_11 = arith.constant 0 : index
    %11 = vector.load %arg2[%c1_9, %c0_10, %c0_11] : memref<9x1x16xf32, #tpu.memory_space<vmem>>, vector<1x1x16xf32>
    %12 = vector.shape_cast %11 : vector<1x1x16xf32> to vector<1x16xf32>
    %13 = vector.shape_cast %12 : vector<1x16xf32> to vector<1x1x16xf32>
    %14 = vector.broadcast %13 : vector<1x1x16xf32> to vector<8x8x16xf32>
    %15 = arith.mulf %10, %14 : vector<8x8x16xf32>
    %16 = arith.addf %8, %15 : vector<8x8x16xf32>
    %c0_12 = arith.constant 0 : index
    %c0_13 = arith.constant 0 : index
    %c2 = arith.constant 2 : index
    %c0_14 = arith.constant 0 : index
    %17 = vector.load %arg1[%c0_12, %c0_13, %c2, %c0_14] : memref<1x10x10x16xf32, #tpu.memory_space<vmem>>, vector<1x8x8x16xf32>
    %18 = vector.shape_cast %17 : vector<1x8x8x16xf32> to vector<8x8x16xf32>
    %c2_15 = arith.constant 2 : index
    %c0_16 = arith.constant 0 : index
    %c0_17 = arith.constant 0 : index
    %19 = vector.load %arg2[%c2_15, %c0_16, %c0_17] : memref<9x1x16xf32, #tpu.memory_space<vmem>>, vector<1x1x16xf32>
    %20 = vector.shape_cast %19 : vector<1x1x16xf32> to vector<1x16xf32>
    %21 = vector.shape_cast %20 : vector<1x16xf32> to vector<1x1x16xf32>
    %22 = vector.broadcast %21 : vector<1x1x16xf32> to vector<8x8x16xf32>
    %23 = arith.mulf %18, %22 : vector<8x8x16xf32>
    %24 = arith.addf %16, %23 : vector<8x8x16xf32>
    %c0_18 = arith.constant 0 : index
    %c1_19 = arith.constant 1 : index
    %c0_20 = arith.constant 0 : index
    %c0_21 = arith.constant 0 : index
    %25 = vector.load %arg1[%c0_18, %c1_19, %c0_20, %c0_21] : memref<1x10x10x16xf32, #tpu.memory_space<vmem>>, vector<1x8x8x16xf32>
    %26 = vector.shape_cast %25 : vector<1x8x8x16xf32> to vector<8x8x16xf32>
    %c3 = arith.constant 3 : index
    %c0_22 = arith.constant 0 : index
    %c0_23 = arith.constant 0 : index
    %27 = vector.load %arg2[%c3, %c0_22, %c0_23] : memref<9x1x16xf32, #tpu.memory_space<vmem>>, vector<1x1x16xf32>
    %28 = vector.shape_cast %27 : vector<1x1x16xf32> to vector<1x16xf32>
    %29 = vector.shape_cast %28 : vector<1x16xf32> to vector<1x1x16xf32>
    %30 = vector.broadcast %29 : vector<1x1x16xf32> to vector<8x8x16xf32>
    %31 = arith.mulf %26, %30 : vector<8x8x16xf32>
    %32 = arith.addf %24, %31 : vector<8x8x16xf32>
    %c0_24 = arith.constant 0 : index
    %c1_25 = arith.constant 1 : index
    %c1_26 = arith.constant 1 : index
    %c0_27 = arith.constant 0 : index
    %33 = vector.load %arg1[%c0_24, %c1_25, %c1_26, %c0_27] : memref<1x10x10x16xf32, #tpu.memory_space<vmem>>, vector<1x8x8x16xf32>
    %34 = vector.shape_cast %33 : vector<1x8x8x16xf32> to vector<8x8x16xf32>
    %c4 = arith.constant 4 : index
    %c0_28 = arith.constant 0 : index
    %c0_29 = arith.constant 0 : index
    %35 = vector.load %arg2[%c4, %c0_28, %c0_29] : memref<9x1x16xf32, #tpu.memory_space<vmem>>, vector<1x1x16xf32>
    %36 = vector.shape_cast %35 : vector<1x1x16xf32> to vector<1x16xf32>
    %37 = vector.shape_cast %36 : vector<1x16xf32> to vector<1x1x16xf32>
    %38 = vector.broadcast %37 : vector<1x1x16xf32> to vector<8x8x16xf32>
    %39 = arith.mulf %34, %38 : vector<8x8x16xf32>
    %40 = arith.addf %32, %39 : vector<8x8x16xf32>
    %c0_30 = arith.constant 0 : index
    %c1_31 = arith.constant 1 : index
    %c2_32 = arith.constant 2 : index
    %c0_33 = arith.constant 0 : index
    %41 = vector.load %arg1[%c0_30, %c1_31, %c2_32, %c0_33] : memref<1x10x10x16xf32, #tpu.memory_space<vmem>>, vector<1x8x8x16xf32>
    %42 = vector.shape_cast %41 : vector<1x8x8x16xf32> to vector<8x8x16xf32>
    %c5 = arith.constant 5 : index
    %c0_34 = arith.constant 0 : index
    %c0_35 = arith.constant 0 : index
    %43 = vector.load %arg2[%c5, %c0_34, %c0_35] : memref<9x1x16xf32, #tpu.memory_space<vmem>>, vector<1x1x16xf32>
    %44 = vector.shape_cast %43 : vector<1x1x16xf32> to vector<1x16xf32>
    %45 = vector.shape_cast %44 : vector<1x16xf32> to vector<1x1x16xf32>
    %46 = vector.broadcast %45 : vector<1x1x16xf32> to vector<8x8x16xf32>
    %47 = arith.mulf %42, %46 : vector<8x8x16xf32>
    %48 = arith.addf %40, %47 : vector<8x8x16xf32>
    %c0_36 = arith.constant 0 : index
    %c2_37 = arith.constant 2 : index
    %c0_38 = arith.constant 0 : index
    %c0_39 = arith.constant 0 : index
    %49 = vector.load %arg1[%c0_36, %c2_37, %c0_38, %c0_39] : memref<1x10x10x16xf32, #tpu.memory_space<vmem>>, vector<1x8x8x16xf32>
    %50 = vector.shape_cast %49 : vector<1x8x8x16xf32> to vector<8x8x16xf32>
    %c6 = arith.constant 6 : index
    %c0_40 = arith.constant 0 : index
    %c0_41 = arith.constant 0 : index
    %51 = vector.load %arg2[%c6, %c0_40, %c0_41] : memref<9x1x16xf32, #tpu.memory_space<vmem>>, vector<1x1x16xf32>
    %52 = vector.shape_cast %51 : vector<1x1x16xf32> to vector<1x16xf32>
    %53 = vector.shape_cast %52 : vector<1x16xf32> to vector<1x1x16xf32>
    %54 = vector.broadcast %53 : vector<1x1x16xf32> to vector<8x8x16xf32>
    %55 = arith.mulf %50, %54 : vector<8x8x16xf32>
    %56 = arith.addf %48, %55 : vector<8x8x16xf32>
    %c0_42 = arith.constant 0 : index
    %c2_43 = arith.constant 2 : index
    %c1_44 = arith.constant 1 : index
    %c0_45 = arith.constant 0 : index
    %57 = vector.load %arg1[%c0_42, %c2_43, %c1_44, %c0_45] : memref<1x10x10x16xf32, #tpu.memory_space<vmem>>, vector<1x8x8x16xf32>
    %58 = vector.shape_cast %57 : vector<1x8x8x16xf32> to vector<8x8x16xf32>
    %c7 = arith.constant 7 : index
    %c0_46 = arith.constant 0 : index
    %c0_47 = arith.constant 0 : index
    %59 = vector.load %arg2[%c7, %c0_46, %c0_47] : memref<9x1x16xf32, #tpu.memory_space<vmem>>, vector<1x1x16xf32>
    %60 = vector.shape_cast %59 : vector<1x1x16xf32> to vector<1x16xf32>
    %61 = vector.shape_cast %60 : vector<1x16xf32> to vector<1x1x16xf32>
    %62 = vector.broadcast %61 : vector<1x1x16xf32> to vector<8x8x16xf32>
    %63 = arith.mulf %58, %62 : vector<8x8x16xf32>
    %64 = arith.addf %56, %63 : vector<8x8x16xf32>
    %c0_48 = arith.constant 0 : index
    %c2_49 = arith.constant 2 : index
    %c2_50 = arith.constant 2 : index
    %c0_51 = arith.constant 0 : index
    %65 = vector.load %arg1[%c0_48, %c2_49, %c2_50, %c0_51] : memref<1x10x10x16xf32, #tpu.memory_space<vmem>>, vector<1x8x8x16xf32>
    %66 = vector.shape_cast %65 : vector<1x8x8x16xf32> to vector<8x8x16xf32>
    %c8 = arith.constant 8 : index
    %c0_52 = arith.constant 0 : index
    %c0_53 = arith.constant 0 : index
    %67 = vector.load %arg2[%c8, %c0_52, %c0_53] : memref<9x1x16xf32, #tpu.memory_space<vmem>>, vector<1x1x16xf32>
    %68 = vector.shape_cast %67 : vector<1x1x16xf32> to vector<1x16xf32>
    %69 = vector.shape_cast %68 : vector<1x16xf32> to vector<1x1x16xf32>
    %70 = vector.broadcast %69 : vector<1x1x16xf32> to vector<8x8x16xf32>
    %71 = arith.mulf %66, %70 : vector<8x8x16xf32>
    %72 = arith.addf %64, %71 : vector<8x8x16xf32>
    %c0_54 = arith.constant 0 : index
    %c1_55 = arith.constant 1 : index
    %c1_56 = arith.constant 1 : index
    %c0_57 = arith.constant 0 : index
    %73 = vector.load %arg1[%c0_54, %c1_55, %c1_56, %c0_57] : memref<1x10x10x16xf32, #tpu.memory_space<vmem>>, vector<1x8x8x16xf32>
    %74 = vector.shape_cast %73 : vector<1x8x8x16xf32> to vector<8x8x16xf32>
    %75 = arith.addf %74, %72 : vector<8x8x16xf32>
    %c0_58 = arith.constant 0 : index
    %c0_59 = arith.constant 0 : index
    %c0_60 = arith.constant 0 : index
    %76 = vector.load %arg3[%c0_58, %c0_59, %c0_60] : memref<1x1x16xf32, #tpu.memory_space<vmem>>, vector<1x1x16xf32>
    %77 = vector.broadcast %76 : vector<1x1x16xf32> to vector<8x8x16xf32>
    %78 = arith.addf %75, %77 : vector<8x8x16xf32>
    %79 = vector.shape_cast %78 : vector<8x8x16xf32> to vector<64x16xf32>
    %80 = arith.truncf %79 : vector<64x16xf32> to vector<64x16xbf16>
    %c0_61 = arith.constant 0 : index
    %c0_62 = arith.constant 0 : index
    %81 = vector.load %arg4[%c0_61, %c0_62] : memref<16x32xbf16, #tpu.memory_space<vmem>>, vector<16x32xbf16>
    %cst_63 = arith.constant dense<0.000000e+00> : vector<64x32xf32>
    %82 = tpu.matmul %80, %81, %cst_63 {dimension_numbers = #tpu.dot_dimension_numbers<[1], [0], [0], [1], [0, 0, 1, 1], [], []>} : vector<64x16xbf16>, vector<16x32xbf16>, vector<64x32xf32> -> vector<64x32xf32>
    %c0_64 = arith.constant 0 : index
    %c0_65 = arith.constant 0 : index
    %83 = vector.load %arg5[%c0_64, %c0_65] : memref<1x32xf32, #tpu.memory_space<vmem>>, vector<1x32xf32>
    %84 = vector.broadcast %83 : vector<1x32xf32> to vector<64x32xf32>
    %85 = arith.addf %82, %84 : vector<64x32xf32>
    %cst_66 = arith.constant 0.000000e+00 : f32
    %86 = vector.broadcast %cst_66 : f32 to vector<64x32xf32>
    %87 = arith.maximumf %85, %86 : vector<64x32xf32>
    %88 = arith.truncf %87 : vector<64x32xf32> to vector<64x32xbf16>
    %c0_67 = arith.constant 0 : index
    %c0_68 = arith.constant 0 : index
    %89 = vector.load %arg6[%c0_67, %c0_68] : memref<32x16xbf16, #tpu.memory_space<vmem>>, vector<32x16xbf16>
    %cst_69 = arith.constant dense<0.000000e+00> : vector<64x16xf32>
    %90 = tpu.matmul %88, %89, %cst_69 {dimension_numbers = #tpu.dot_dimension_numbers<[1], [0], [0], [1], [0, 0, 1, 1], [], []>} : vector<64x32xbf16>, vector<32x16xbf16>, vector<64x16xf32> -> vector<64x16xf32>
    %91 = arith.addf %79, %90 : vector<64x16xf32>
    %c0_70 = arith.constant 0 : index
    %c0_71 = arith.constant 0 : index
    %92 = vector.load %arg7[%c0_70, %c0_71] : memref<1x16xf32, #tpu.memory_space<vmem>>, vector<1x16xf32>
    %93 = vector.broadcast %92 : vector<1x16xf32> to vector<64x16xf32>
    %94 = arith.addf %91, %93 : vector<64x16xf32>
    %c0_72 = arith.constant 0 : index
    %c0_73 = arith.constant 0 : index
    %c0_74 = arith.constant 0 : index
    %95 = vector.load %arg10[%c0_72, %c0_73, %c0_74] : memref<1x64x16xf32, #tpu.memory_space<vmem>>, vector<1x64x16xf32>
    %96 = vector.shape_cast %95 : vector<1x64x16xf32> to vector<64x16xf32>
    %97 = vector.shape_cast %94 : vector<64x16xf32> to vector<1x64x16xf32>
    tpu.vector_store %arg10[%c0_72, %c0_73, %c0_74], %97 {strides = array<i32>} : memref<1x64x16xf32, #tpu.memory_space<vmem>>, vector<1x64x16xf32>,
    %98 = arith.truncf %94 : vector<64x16xf32> to vector<64x16xbf16>
    %c0_75 = arith.constant 0 : index
    %c0_76 = arith.constant 0 : index
    %99 = vector.load %arg8[%c0_75, %c0_76] : memref<16x8xbf16, #tpu.memory_space<vmem>>, vector<16x8xbf16>
    %cst_77 = arith.constant dense<0.000000e+00> : vector<64x8xf32>
    %100 = tpu.matmul %98, %99, %cst_77 {dimension_numbers = #tpu.dot_dimension_numbers<[1], [0], [0], [1], [0, 0, 1, 1], [], []>} : vector<64x16xbf16>, vector<16x8xbf16>, vector<64x8xf32> -> vector<64x8xf32>
    %c0_78 = arith.constant 0 : index
    %c0_79 = arith.constant 0 : index
    %101 = vector.load %arg9[%c0_78, %c0_79] : memref<1x8xf32, #tpu.memory_space<vmem>>, vector<1x8xf32>
    %102 = vector.broadcast %101 : vector<1x8xf32> to vector<64x8xf32>
    %103 = arith.addf %100, %102 : vector<64x8xf32>
    %c0_80 = arith.constant 0 : index
    %c0_81 = arith.constant 0 : index
    %c0_82 = arith.constant 0 : index
    %104 = vector.load %arg11[%c0_80, %c0_81, %c0_82] : memref<1x64x8xf32, #tpu.memory_space<vmem>>, vector<1x64x8xf32>
    %105 = vector.shape_cast %104 : vector<1x64x8xf32> to vector<64x8xf32>
    %106 = vector.shape_cast %103 : vector<64x8xf32> to vector<1x64x8xf32>
    tpu.vector_store %arg11[%c0_80, %c0_81, %c0_82], %106 {strides = array<i32>} : memref<1x64x8xf32, #tpu.memory_space<vmem>>, vector<1x64x8xf32>,
    return
  }
  func.func @transform_0(%arg0: i32) -> (i32, i32, i32, i32) {
    %c0_i32 = arith.constant 0 : i32
    %c0_i32_0 = arith.constant 0 : i32
    %c0_i32_1 = arith.constant 0 : i32
    %c0_i32_2 = arith.constant 0 : i32
    return %arg0, %c0_i32, %c0_i32_0, %c0_i32_1 : i32, i32, i32, i32
  }
  func.func @transform_1(%arg0: i32) -> (i32, i32, i32) {
    %c0_i32 = arith.constant 0 : i32
    %c0_i32_0 = arith.constant 0 : i32
    %c0_i32_1 = arith.constant 0 : i32
    %c0_i32_2 = arith.constant 0 : i32
    return %c0_i32, %c0_i32_0, %c0_i32_1 : i32, i32, i32
  }
  func.func @transform_2(%arg0: i32) -> (i32, i32, i32) {
    %c0_i32 = arith.constant 0 : i32
    %c0_i32_0 = arith.constant 0 : i32
    %c0_i32_1 = arith.constant 0 : i32
    %c0_i32_2 = arith.constant 0 : i32
    return %c0_i32, %c0_i32_0, %c0_i32_1 : i32, i32, i32
  }
  func.func @transform_3(%arg0: i32) -> (i32, i32) {
    %c0_i32 = arith.constant 0 : i32
    %c0_i32_0 = arith.constant 0 : i32
    %c0_i32_1 = arith.constant 0 : i32
    return %c0_i32, %c0_i32_0 : i32, i32
  }
  func.func @transform_4(%arg0: i32) -> (i32, i32) {
    %c0_i32 = arith.constant 0 : i32
    %c0_i32_0 = arith.constant 0 : i32
    %c0_i32_1 = arith.constant 0 : i32
    return %c0_i32, %c0_i32_0 : i32, i32
  }
  func.func @transform_5(%arg0: i32) -> (i32, i32) {
    %c0_i32 = arith.constant 0 : i32
    %c0_i32_0 = arith.constant 0 : i32
    %c0_i32_1 = arith.constant 0 : i32
    return %c0_i32, %c0_i32_0 : i32, i32
  }
  func.func @transform_6(%arg0: i32) -> (i32, i32) {
    %c0_i32 = arith.constant 0 : i32
    %c0_i32_0 = arith.constant 0 : i32
    %c0_i32_1 = arith.constant 0 : i32
    return %c0_i32, %c0_i32_0 : i32, i32
  }
  func.func @transform_7(%arg0: i32) -> (i32, i32) {
    %c0_i32 = arith.constant 0 : i32
    %c0_i32_0 = arith.constant 0 : i32
    %c0_i32_1 = arith.constant 0 : i32
    return %c0_i32, %c0_i32_0 : i32, i32
  }
  func.func @transform_8(%arg0: i32) -> (i32, i32) {
    %c0_i32 = arith.constant 0 : i32
    %c0_i32_0 = arith.constant 0 : i32
    %c0_i32_1 = arith.constant 0 : i32
    return %c0_i32, %c0_i32_0 : i32, i32
  }
  func.func @transform_9(%arg0: i32) -> (i32, i32, i32) {
    %c0_i32 = arith.constant 0 : i32
    %c0_i32_0 = arith.constant 0 : i32
    %c0_i32_1 = arith.constant 0 : i32
    return %arg0, %c0_i32, %c0_i32_0 : i32, i32, i32
  }
  func.func @transform_10(%arg0: i32) -> (i32, i32, i32) {
    %c0_i32 = arith.constant 0 : i32
    %c0_i32_0 = arith.constant 0 : i32
    %c0_i32_1 = arith.constant 0 : i32
    return %arg0, %c0_i32, %c0_i32_0 : i32, i32, i32
  }
}

module attributes {stable_mosaic.version = 11 : i64} {
  func.func @kernel(%arg0: i32, %arg1: memref<4x8x8x4xf32, #tpu.memory_space<vmem>>, %arg2: memref<4x8x8x16xf32, #tpu.memory_space<vmem>>, %arg3: memref<25x1x4xf32, #tpu.memory_space<vmem>>, %arg4: memref<1x1x1x4xf32, #tpu.memory_space<vmem>>, %arg5: memref<25x1x16xf32, #tpu.memory_space<vmem>>, %arg6: memref<1x1x1x16xf32, #tpu.memory_space<vmem>>, %arg7: memref<4x4x4x4xf32, #tpu.memory_space<vmem>>, %arg8: memref<4x4x4x16xf32, #tpu.memory_space<vmem>>) attributes {dimension_semantics = [#tpu.dimension_semantics<parallel>], iteration_bounds = array<i64: 2>, scalar_prefetch = 0 : i64, scratch_operands = 0 : i64, tpu.core_type = #tpu.core_type<tc>, window_params = [{transform_indices = @transform_0, window_bounds = array<i64: 4, 8, 8, 4>}, {transform_indices = @transform_1, window_bounds = array<i64: 4, 8, 8, 16>}, {pipeline_mode = #tpu.pipeline_mode<synchronous>, transform_indices = @transform_2, window_bounds = array<i64: 25, 1, 4>}, {pipeline_mode = #tpu.pipeline_mode<synchronous>, transform_indices = @transform_3, window_bounds = array<i64: 1, 1, 1, 4>}, {pipeline_mode = #tpu.pipeline_mode<synchronous>, transform_indices = @transform_4, window_bounds = array<i64: 25, 1, 16>}, {pipeline_mode = #tpu.pipeline_mode<synchronous>, transform_indices = @transform_5, window_bounds = array<i64: 1, 1, 1, 16>}, {transform_indices = @transform_6, window_bounds = array<i64: 4, 4, 4, 4>}, {transform_indices = @transform_7, window_bounds = array<i64: 4, 4, 4, 16>}]} {
    %cst = arith.constant 0.000000e+00 : f32
    %0 = vector.broadcast %cst : f32 to vector<4x4x4x4xf32>
    %c0 = arith.constant 0 : index
    %c0_0 = arith.constant 0 : index
    %c0_1 = arith.constant 0 : index
    %c0_2 = arith.constant 0 : index
    %1 = vector.load %arg1[%c0, %c0_0, %c0_1, %c0_2] : memref<4x8x8x4xf32, #tpu.memory_space<vmem>>, vector<4x4x4x4xf32>
    %c0_3 = arith.constant 0 : index
    %c0_4 = arith.constant 0 : index
    %c0_5 = arith.constant 0 : index
    %2 = vector.load %arg3[%c0_3, %c0_4, %c0_5] : memref<25x1x4xf32, #tpu.memory_space<vmem>>, vector<1x1x4xf32>
    %3 = vector.shape_cast %2 : vector<1x1x4xf32> to vector<1x4xf32>
    %4 = vector.shape_cast %3 : vector<1x4xf32> to vector<1x1x1x4xf32>
    %5 = vector.broadcast %4 : vector<1x1x1x4xf32> to vector<4x4x4x4xf32>
    %6 = arith.mulf %1, %5 : vector<4x4x4x4xf32>
    %7 = arith.addf %0, %6 : vector<4x4x4x4xf32>
    %c0_6 = arith.constant 0 : index
    %c0_7 = arith.constant 0 : index
    %c1 = arith.constant 1 : index
    %c0_8 = arith.constant 0 : index
    %8 = vector.load %arg1[%c0_6, %c0_7, %c1, %c0_8] : memref<4x8x8x4xf32, #tpu.memory_space<vmem>>, vector<4x4x4x4xf32>
    %c1_9 = arith.constant 1 : index
    %c0_10 = arith.constant 0 : index
    %c0_11 = arith.constant 0 : index
    %9 = vector.load %arg3[%c1_9, %c0_10, %c0_11] : memref<25x1x4xf32, #tpu.memory_space<vmem>>, vector<1x1x4xf32>
    %10 = vector.shape_cast %9 : vector<1x1x4xf32> to vector<1x4xf32>
    %11 = vector.shape_cast %10 : vector<1x4xf32> to vector<1x1x1x4xf32>
    %12 = vector.broadcast %11 : vector<1x1x1x4xf32> to vector<4x4x4x4xf32>
    %13 = arith.mulf %8, %12 : vector<4x4x4x4xf32>
    %14 = arith.addf %7, %13 : vector<4x4x4x4xf32>
    %c0_12 = arith.constant 0 : index
    %c0_13 = arith.constant 0 : index
    %c2 = arith.constant 2 : index
    %c0_14 = arith.constant 0 : index
    %15 = vector.load %arg1[%c0_12, %c0_13, %c2, %c0_14] : memref<4x8x8x4xf32, #tpu.memory_space<vmem>>, vector<4x4x4x4xf32>
    %c2_15 = arith.constant 2 : index
    %c0_16 = arith.constant 0 : index
    %c0_17 = arith.constant 0 : index
    %16 = vector.load %arg3[%c2_15, %c0_16, %c0_17] : memref<25x1x4xf32, #tpu.memory_space<vmem>>, vector<1x1x4xf32>
    %17 = vector.shape_cast %16 : vector<1x1x4xf32> to vector<1x4xf32>
    %18 = vector.shape_cast %17 : vector<1x4xf32> to vector<1x1x1x4xf32>
    %19 = vector.broadcast %18 : vector<1x1x1x4xf32> to vector<4x4x4x4xf32>
    %20 = arith.mulf %15, %19 : vector<4x4x4x4xf32>
    %21 = arith.addf %14, %20 : vector<4x4x4x4xf32>
    %c0_18 = arith.constant 0 : index
    %c0_19 = arith.constant 0 : index
    %c3 = arith.constant 3 : index
    %c0_20 = arith.constant 0 : index
    %22 = vector.load %arg1[%c0_18, %c0_19, %c3, %c0_20] : memref<4x8x8x4xf32, #tpu.memory_space<vmem>>, vector<4x4x4x4xf32>
    %c3_21 = arith.constant 3 : index
    %c0_22 = arith.constant 0 : index
    %c0_23 = arith.constant 0 : index
    %23 = vector.load %arg3[%c3_21, %c0_22, %c0_23] : memref<25x1x4xf32, #tpu.memory_space<vmem>>, vector<1x1x4xf32>
    %24 = vector.shape_cast %23 : vector<1x1x4xf32> to vector<1x4xf32>
    %25 = vector.shape_cast %24 : vector<1x4xf32> to vector<1x1x1x4xf32>
    %26 = vector.broadcast %25 : vector<1x1x1x4xf32> to vector<4x4x4x4xf32>
    %27 = arith.mulf %22, %26 : vector<4x4x4x4xf32>
    %28 = arith.addf %21, %27 : vector<4x4x4x4xf32>
    %c0_24 = arith.constant 0 : index
    %c0_25 = arith.constant 0 : index
    %c4 = arith.constant 4 : index
    %c0_26 = arith.constant 0 : index
    %29 = vector.load %arg1[%c0_24, %c0_25, %c4, %c0_26] : memref<4x8x8x4xf32, #tpu.memory_space<vmem>>, vector<4x4x4x4xf32>
    %c4_27 = arith.constant 4 : index
    %c0_28 = arith.constant 0 : index
    %c0_29 = arith.constant 0 : index
    %30 = vector.load %arg3[%c4_27, %c0_28, %c0_29] : memref<25x1x4xf32, #tpu.memory_space<vmem>>, vector<1x1x4xf32>
    %31 = vector.shape_cast %30 : vector<1x1x4xf32> to vector<1x4xf32>
    %32 = vector.shape_cast %31 : vector<1x4xf32> to vector<1x1x1x4xf32>
    %33 = vector.broadcast %32 : vector<1x1x1x4xf32> to vector<4x4x4x4xf32>
    %34 = arith.mulf %29, %33 : vector<4x4x4x4xf32>
    %35 = arith.addf %28, %34 : vector<4x4x4x4xf32>
    %c0_30 = arith.constant 0 : index
    %c1_31 = arith.constant 1 : index
    %c0_32 = arith.constant 0 : index
    %c0_33 = arith.constant 0 : index
    %36 = vector.load %arg1[%c0_30, %c1_31, %c0_32, %c0_33] : memref<4x8x8x4xf32, #tpu.memory_space<vmem>>, vector<4x4x4x4xf32>
    %c5 = arith.constant 5 : index
    %c0_34 = arith.constant 0 : index
    %c0_35 = arith.constant 0 : index
    %37 = vector.load %arg3[%c5, %c0_34, %c0_35] : memref<25x1x4xf32, #tpu.memory_space<vmem>>, vector<1x1x4xf32>
    %38 = vector.shape_cast %37 : vector<1x1x4xf32> to vector<1x4xf32>
    %39 = vector.shape_cast %38 : vector<1x4xf32> to vector<1x1x1x4xf32>
    %40 = vector.broadcast %39 : vector<1x1x1x4xf32> to vector<4x4x4x4xf32>
    %41 = arith.mulf %36, %40 : vector<4x4x4x4xf32>
    %42 = arith.addf %35, %41 : vector<4x4x4x4xf32>
    %c0_36 = arith.constant 0 : index
    %c1_37 = arith.constant 1 : index
    %c1_38 = arith.constant 1 : index
    %c0_39 = arith.constant 0 : index
    %43 = vector.load %arg1[%c0_36, %c1_37, %c1_38, %c0_39] : memref<4x8x8x4xf32, #tpu.memory_space<vmem>>, vector<4x4x4x4xf32>
    %c6 = arith.constant 6 : index
    %c0_40 = arith.constant 0 : index
    %c0_41 = arith.constant 0 : index
    %44 = vector.load %arg3[%c6, %c0_40, %c0_41] : memref<25x1x4xf32, #tpu.memory_space<vmem>>, vector<1x1x4xf32>
    %45 = vector.shape_cast %44 : vector<1x1x4xf32> to vector<1x4xf32>
    %46 = vector.shape_cast %45 : vector<1x4xf32> to vector<1x1x1x4xf32>
    %47 = vector.broadcast %46 : vector<1x1x1x4xf32> to vector<4x4x4x4xf32>
    %48 = arith.mulf %43, %47 : vector<4x4x4x4xf32>
    %49 = arith.addf %42, %48 : vector<4x4x4x4xf32>
    %c0_42 = arith.constant 0 : index
    %c1_43 = arith.constant 1 : index
    %c2_44 = arith.constant 2 : index
    %c0_45 = arith.constant 0 : index
    %50 = vector.load %arg1[%c0_42, %c1_43, %c2_44, %c0_45] : memref<4x8x8x4xf32, #tpu.memory_space<vmem>>, vector<4x4x4x4xf32>
    %c7 = arith.constant 7 : index
    %c0_46 = arith.constant 0 : index
    %c0_47 = arith.constant 0 : index
    %51 = vector.load %arg3[%c7, %c0_46, %c0_47] : memref<25x1x4xf32, #tpu.memory_space<vmem>>, vector<1x1x4xf32>
    %52 = vector.shape_cast %51 : vector<1x1x4xf32> to vector<1x4xf32>
    %53 = vector.shape_cast %52 : vector<1x4xf32> to vector<1x1x1x4xf32>
    %54 = vector.broadcast %53 : vector<1x1x1x4xf32> to vector<4x4x4x4xf32>
    %55 = arith.mulf %50, %54 : vector<4x4x4x4xf32>
    %56 = arith.addf %49, %55 : vector<4x4x4x4xf32>
    %c0_48 = arith.constant 0 : index
    %c1_49 = arith.constant 1 : index
    %c3_50 = arith.constant 3 : index
    %c0_51 = arith.constant 0 : index
    %57 = vector.load %arg1[%c0_48, %c1_49, %c3_50, %c0_51] : memref<4x8x8x4xf32, #tpu.memory_space<vmem>>, vector<4x4x4x4xf32>
    %c8 = arith.constant 8 : index
    %c0_52 = arith.constant 0 : index
    %c0_53 = arith.constant 0 : index
    %58 = vector.load %arg3[%c8, %c0_52, %c0_53] : memref<25x1x4xf32, #tpu.memory_space<vmem>>, vector<1x1x4xf32>
    %59 = vector.shape_cast %58 : vector<1x1x4xf32> to vector<1x4xf32>
    %60 = vector.shape_cast %59 : vector<1x4xf32> to vector<1x1x1x4xf32>
    %61 = vector.broadcast %60 : vector<1x1x1x4xf32> to vector<4x4x4x4xf32>
    %62 = arith.mulf %57, %61 : vector<4x4x4x4xf32>
    %63 = arith.addf %56, %62 : vector<4x4x4x4xf32>
    %c0_54 = arith.constant 0 : index
    %c1_55 = arith.constant 1 : index
    %c4_56 = arith.constant 4 : index
    %c0_57 = arith.constant 0 : index
    %64 = vector.load %arg1[%c0_54, %c1_55, %c4_56, %c0_57] : memref<4x8x8x4xf32, #tpu.memory_space<vmem>>, vector<4x4x4x4xf32>
    %c9 = arith.constant 9 : index
    %c0_58 = arith.constant 0 : index
    %c0_59 = arith.constant 0 : index
    %65 = vector.load %arg3[%c9, %c0_58, %c0_59] : memref<25x1x4xf32, #tpu.memory_space<vmem>>, vector<1x1x4xf32>
    %66 = vector.shape_cast %65 : vector<1x1x4xf32> to vector<1x4xf32>
    %67 = vector.shape_cast %66 : vector<1x4xf32> to vector<1x1x1x4xf32>
    %68 = vector.broadcast %67 : vector<1x1x1x4xf32> to vector<4x4x4x4xf32>
    %69 = arith.mulf %64, %68 : vector<4x4x4x4xf32>
    %70 = arith.addf %63, %69 : vector<4x4x4x4xf32>
    %c0_60 = arith.constant 0 : index
    %c2_61 = arith.constant 2 : index
    %c0_62 = arith.constant 0 : index
    %c0_63 = arith.constant 0 : index
    %71 = vector.load %arg1[%c0_60, %c2_61, %c0_62, %c0_63] : memref<4x8x8x4xf32, #tpu.memory_space<vmem>>, vector<4x4x4x4xf32>
    %c10 = arith.constant 10 : index
    %c0_64 = arith.constant 0 : index
    %c0_65 = arith.constant 0 : index
    %72 = vector.load %arg3[%c10, %c0_64, %c0_65] : memref<25x1x4xf32, #tpu.memory_space<vmem>>, vector<1x1x4xf32>
    %73 = vector.shape_cast %72 : vector<1x1x4xf32> to vector<1x4xf32>
    %74 = vector.shape_cast %73 : vector<1x4xf32> to vector<1x1x1x4xf32>
    %75 = vector.broadcast %74 : vector<1x1x1x4xf32> to vector<4x4x4x4xf32>
    %76 = arith.mulf %71, %75 : vector<4x4x4x4xf32>
    %77 = arith.addf %70, %76 : vector<4x4x4x4xf32>
    %c0_66 = arith.constant 0 : index
    %c2_67 = arith.constant 2 : index
    %c1_68 = arith.constant 1 : index
    %c0_69 = arith.constant 0 : index
    %78 = vector.load %arg1[%c0_66, %c2_67, %c1_68, %c0_69] : memref<4x8x8x4xf32, #tpu.memory_space<vmem>>, vector<4x4x4x4xf32>
    %c11 = arith.constant 11 : index
    %c0_70 = arith.constant 0 : index
    %c0_71 = arith.constant 0 : index
    %79 = vector.load %arg3[%c11, %c0_70, %c0_71] : memref<25x1x4xf32, #tpu.memory_space<vmem>>, vector<1x1x4xf32>
    %80 = vector.shape_cast %79 : vector<1x1x4xf32> to vector<1x4xf32>
    %81 = vector.shape_cast %80 : vector<1x4xf32> to vector<1x1x1x4xf32>
    %82 = vector.broadcast %81 : vector<1x1x1x4xf32> to vector<4x4x4x4xf32>
    %83 = arith.mulf %78, %82 : vector<4x4x4x4xf32>
    %84 = arith.addf %77, %83 : vector<4x4x4x4xf32>
    %c0_72 = arith.constant 0 : index
    %c2_73 = arith.constant 2 : index
    %c2_74 = arith.constant 2 : index
    %c0_75 = arith.constant 0 : index
    %85 = vector.load %arg1[%c0_72, %c2_73, %c2_74, %c0_75] : memref<4x8x8x4xf32, #tpu.memory_space<vmem>>, vector<4x4x4x4xf32>
    %c12 = arith.constant 12 : index
    %c0_76 = arith.constant 0 : index
    %c0_77 = arith.constant 0 : index
    %86 = vector.load %arg3[%c12, %c0_76, %c0_77] : memref<25x1x4xf32, #tpu.memory_space<vmem>>, vector<1x1x4xf32>
    %87 = vector.shape_cast %86 : vector<1x1x4xf32> to vector<1x4xf32>
    %88 = vector.shape_cast %87 : vector<1x4xf32> to vector<1x1x1x4xf32>
    %89 = vector.broadcast %88 : vector<1x1x1x4xf32> to vector<4x4x4x4xf32>
    %90 = arith.mulf %85, %89 : vector<4x4x4x4xf32>
    %91 = arith.addf %84, %90 : vector<4x4x4x4xf32>
    %c0_78 = arith.constant 0 : index
    %c2_79 = arith.constant 2 : index
    %c3_80 = arith.constant 3 : index
    %c0_81 = arith.constant 0 : index
    %92 = vector.load %arg1[%c0_78, %c2_79, %c3_80, %c0_81] : memref<4x8x8x4xf32, #tpu.memory_space<vmem>>, vector<4x4x4x4xf32>
    %c13 = arith.constant 13 : index
    %c0_82 = arith.constant 0 : index
    %c0_83 = arith.constant 0 : index
    %93 = vector.load %arg3[%c13, %c0_82, %c0_83] : memref<25x1x4xf32, #tpu.memory_space<vmem>>, vector<1x1x4xf32>
    %94 = vector.shape_cast %93 : vector<1x1x4xf32> to vector<1x4xf32>
    %95 = vector.shape_cast %94 : vector<1x4xf32> to vector<1x1x1x4xf32>
    %96 = vector.broadcast %95 : vector<1x1x1x4xf32> to vector<4x4x4x4xf32>
    %97 = arith.mulf %92, %96 : vector<4x4x4x4xf32>
    %98 = arith.addf %91, %97 : vector<4x4x4x4xf32>
    %c0_84 = arith.constant 0 : index
    %c2_85 = arith.constant 2 : index
    %c4_86 = arith.constant 4 : index
    %c0_87 = arith.constant 0 : index
    %99 = vector.load %arg1[%c0_84, %c2_85, %c4_86, %c0_87] : memref<4x8x8x4xf32, #tpu.memory_space<vmem>>, vector<4x4x4x4xf32>
    %c14 = arith.constant 14 : index
    %c0_88 = arith.constant 0 : index
    %c0_89 = arith.constant 0 : index
    %100 = vector.load %arg3[%c14, %c0_88, %c0_89] : memref<25x1x4xf32, #tpu.memory_space<vmem>>, vector<1x1x4xf32>
    %101 = vector.shape_cast %100 : vector<1x1x4xf32> to vector<1x4xf32>
    %102 = vector.shape_cast %101 : vector<1x4xf32> to vector<1x1x1x4xf32>
    %103 = vector.broadcast %102 : vector<1x1x1x4xf32> to vector<4x4x4x4xf32>
    %104 = arith.mulf %99, %103 : vector<4x4x4x4xf32>
    %105 = arith.addf %98, %104 : vector<4x4x4x4xf32>
    %c0_90 = arith.constant 0 : index
    %c3_91 = arith.constant 3 : index
    %c0_92 = arith.constant 0 : index
    %c0_93 = arith.constant 0 : index
    %106 = vector.load %arg1[%c0_90, %c3_91, %c0_92, %c0_93] : memref<4x8x8x4xf32, #tpu.memory_space<vmem>>, vector<4x4x4x4xf32>
    %c15 = arith.constant 15 : index
    %c0_94 = arith.constant 0 : index
    %c0_95 = arith.constant 0 : index
    %107 = vector.load %arg3[%c15, %c0_94, %c0_95] : memref<25x1x4xf32, #tpu.memory_space<vmem>>, vector<1x1x4xf32>
    %108 = vector.shape_cast %107 : vector<1x1x4xf32> to vector<1x4xf32>
    %109 = vector.shape_cast %108 : vector<1x4xf32> to vector<1x1x1x4xf32>
    %110 = vector.broadcast %109 : vector<1x1x1x4xf32> to vector<4x4x4x4xf32>
    %111 = arith.mulf %106, %110 : vector<4x4x4x4xf32>
    %112 = arith.addf %105, %111 : vector<4x4x4x4xf32>
    %c0_96 = arith.constant 0 : index
    %c3_97 = arith.constant 3 : index
    %c1_98 = arith.constant 1 : index
    %c0_99 = arith.constant 0 : index
    %113 = vector.load %arg1[%c0_96, %c3_97, %c1_98, %c0_99] : memref<4x8x8x4xf32, #tpu.memory_space<vmem>>, vector<4x4x4x4xf32>
    %c16 = arith.constant 16 : index
    %c0_100 = arith.constant 0 : index
    %c0_101 = arith.constant 0 : index
    %114 = vector.load %arg3[%c16, %c0_100, %c0_101] : memref<25x1x4xf32, #tpu.memory_space<vmem>>, vector<1x1x4xf32>
    %115 = vector.shape_cast %114 : vector<1x1x4xf32> to vector<1x4xf32>
    %116 = vector.shape_cast %115 : vector<1x4xf32> to vector<1x1x1x4xf32>
    %117 = vector.broadcast %116 : vector<1x1x1x4xf32> to vector<4x4x4x4xf32>
    %118 = arith.mulf %113, %117 : vector<4x4x4x4xf32>
    %119 = arith.addf %112, %118 : vector<4x4x4x4xf32>
    %c0_102 = arith.constant 0 : index
    %c3_103 = arith.constant 3 : index
    %c2_104 = arith.constant 2 : index
    %c0_105 = arith.constant 0 : index
    %120 = vector.load %arg1[%c0_102, %c3_103, %c2_104, %c0_105] : memref<4x8x8x4xf32, #tpu.memory_space<vmem>>, vector<4x4x4x4xf32>
    %c17 = arith.constant 17 : index
    %c0_106 = arith.constant 0 : index
    %c0_107 = arith.constant 0 : index
    %121 = vector.load %arg3[%c17, %c0_106, %c0_107] : memref<25x1x4xf32, #tpu.memory_space<vmem>>, vector<1x1x4xf32>
    %122 = vector.shape_cast %121 : vector<1x1x4xf32> to vector<1x4xf32>
    %123 = vector.shape_cast %122 : vector<1x4xf32> to vector<1x1x1x4xf32>
    %124 = vector.broadcast %123 : vector<1x1x1x4xf32> to vector<4x4x4x4xf32>
    %125 = arith.mulf %120, %124 : vector<4x4x4x4xf32>
    %126 = arith.addf %119, %125 : vector<4x4x4x4xf32>
    %c0_108 = arith.constant 0 : index
    %c3_109 = arith.constant 3 : index
    %c3_110 = arith.constant 3 : index
    %c0_111 = arith.constant 0 : index
    %127 = vector.load %arg1[%c0_108, %c3_109, %c3_110, %c0_111] : memref<4x8x8x4xf32, #tpu.memory_space<vmem>>, vector<4x4x4x4xf32>
    %c18 = arith.constant 18 : index
    %c0_112 = arith.constant 0 : index
    %c0_113 = arith.constant 0 : index
    %128 = vector.load %arg3[%c18, %c0_112, %c0_113] : memref<25x1x4xf32, #tpu.memory_space<vmem>>, vector<1x1x4xf32>
    %129 = vector.shape_cast %128 : vector<1x1x4xf32> to vector<1x4xf32>
    %130 = vector.shape_cast %129 : vector<1x4xf32> to vector<1x1x1x4xf32>
    %131 = vector.broadcast %130 : vector<1x1x1x4xf32> to vector<4x4x4x4xf32>
    %132 = arith.mulf %127, %131 : vector<4x4x4x4xf32>
    %133 = arith.addf %126, %132 : vector<4x4x4x4xf32>
    %c0_114 = arith.constant 0 : index
    %c3_115 = arith.constant 3 : index
    %c4_116 = arith.constant 4 : index
    %c0_117 = arith.constant 0 : index
    %134 = vector.load %arg1[%c0_114, %c3_115, %c4_116, %c0_117] : memref<4x8x8x4xf32, #tpu.memory_space<vmem>>, vector<4x4x4x4xf32>
    %c19 = arith.constant 19 : index
    %c0_118 = arith.constant 0 : index
    %c0_119 = arith.constant 0 : index
    %135 = vector.load %arg3[%c19, %c0_118, %c0_119] : memref<25x1x4xf32, #tpu.memory_space<vmem>>, vector<1x1x4xf32>
    %136 = vector.shape_cast %135 : vector<1x1x4xf32> to vector<1x4xf32>
    %137 = vector.shape_cast %136 : vector<1x4xf32> to vector<1x1x1x4xf32>
    %138 = vector.broadcast %137 : vector<1x1x1x4xf32> to vector<4x4x4x4xf32>
    %139 = arith.mulf %134, %138 : vector<4x4x4x4xf32>
    %140 = arith.addf %133, %139 : vector<4x4x4x4xf32>
    %c0_120 = arith.constant 0 : index
    %c4_121 = arith.constant 4 : index
    %c0_122 = arith.constant 0 : index
    %c0_123 = arith.constant 0 : index
    %141 = vector.load %arg1[%c0_120, %c4_121, %c0_122, %c0_123] : memref<4x8x8x4xf32, #tpu.memory_space<vmem>>, vector<4x4x4x4xf32>
    %c20 = arith.constant 20 : index
    %c0_124 = arith.constant 0 : index
    %c0_125 = arith.constant 0 : index
    %142 = vector.load %arg3[%c20, %c0_124, %c0_125] : memref<25x1x4xf32, #tpu.memory_space<vmem>>, vector<1x1x4xf32>
    %143 = vector.shape_cast %142 : vector<1x1x4xf32> to vector<1x4xf32>
    %144 = vector.shape_cast %143 : vector<1x4xf32> to vector<1x1x1x4xf32>
    %145 = vector.broadcast %144 : vector<1x1x1x4xf32> to vector<4x4x4x4xf32>
    %146 = arith.mulf %141, %145 : vector<4x4x4x4xf32>
    %147 = arith.addf %140, %146 : vector<4x4x4x4xf32>
    %c0_126 = arith.constant 0 : index
    %c4_127 = arith.constant 4 : index
    %c1_128 = arith.constant 1 : index
    %c0_129 = arith.constant 0 : index
    %148 = vector.load %arg1[%c0_126, %c4_127, %c1_128, %c0_129] : memref<4x8x8x4xf32, #tpu.memory_space<vmem>>, vector<4x4x4x4xf32>
    %c21 = arith.constant 21 : index
    %c0_130 = arith.constant 0 : index
    %c0_131 = arith.constant 0 : index
    %149 = vector.load %arg3[%c21, %c0_130, %c0_131] : memref<25x1x4xf32, #tpu.memory_space<vmem>>, vector<1x1x4xf32>
    %150 = vector.shape_cast %149 : vector<1x1x4xf32> to vector<1x4xf32>
    %151 = vector.shape_cast %150 : vector<1x4xf32> to vector<1x1x1x4xf32>
    %152 = vector.broadcast %151 : vector<1x1x1x4xf32> to vector<4x4x4x4xf32>
    %153 = arith.mulf %148, %152 : vector<4x4x4x4xf32>
    %154 = arith.addf %147, %153 : vector<4x4x4x4xf32>
    %c0_132 = arith.constant 0 : index
    %c4_133 = arith.constant 4 : index
    %c2_134 = arith.constant 2 : index
    %c0_135 = arith.constant 0 : index
    %155 = vector.load %arg1[%c0_132, %c4_133, %c2_134, %c0_135] : memref<4x8x8x4xf32, #tpu.memory_space<vmem>>, vector<4x4x4x4xf32>
    %c22 = arith.constant 22 : index
    %c0_136 = arith.constant 0 : index
    %c0_137 = arith.constant 0 : index
    %156 = vector.load %arg3[%c22, %c0_136, %c0_137] : memref<25x1x4xf32, #tpu.memory_space<vmem>>, vector<1x1x4xf32>
    %157 = vector.shape_cast %156 : vector<1x1x4xf32> to vector<1x4xf32>
    %158 = vector.shape_cast %157 : vector<1x4xf32> to vector<1x1x1x4xf32>
    %159 = vector.broadcast %158 : vector<1x1x1x4xf32> to vector<4x4x4x4xf32>
    %160 = arith.mulf %155, %159 : vector<4x4x4x4xf32>
    %161 = arith.addf %154, %160 : vector<4x4x4x4xf32>
    %c0_138 = arith.constant 0 : index
    %c4_139 = arith.constant 4 : index
    %c3_140 = arith.constant 3 : index
    %c0_141 = arith.constant 0 : index
    %162 = vector.load %arg1[%c0_138, %c4_139, %c3_140, %c0_141] : memref<4x8x8x4xf32, #tpu.memory_space<vmem>>, vector<4x4x4x4xf32>
    %c23 = arith.constant 23 : index
    %c0_142 = arith.constant 0 : index
    %c0_143 = arith.constant 0 : index
    %163 = vector.load %arg3[%c23, %c0_142, %c0_143] : memref<25x1x4xf32, #tpu.memory_space<vmem>>, vector<1x1x4xf32>
    %164 = vector.shape_cast %163 : vector<1x1x4xf32> to vector<1x4xf32>
    %165 = vector.shape_cast %164 : vector<1x4xf32> to vector<1x1x1x4xf32>
    %166 = vector.broadcast %165 : vector<1x1x1x4xf32> to vector<4x4x4x4xf32>
    %167 = arith.mulf %162, %166 : vector<4x4x4x4xf32>
    %168 = arith.addf %161, %167 : vector<4x4x4x4xf32>
    %c0_144 = arith.constant 0 : index
    %c4_145 = arith.constant 4 : index
    %c4_146 = arith.constant 4 : index
    %c0_147 = arith.constant 0 : index
    %169 = vector.load %arg1[%c0_144, %c4_145, %c4_146, %c0_147] : memref<4x8x8x4xf32, #tpu.memory_space<vmem>>, vector<4x4x4x4xf32>
    %c24 = arith.constant 24 : index
    %c0_148 = arith.constant 0 : index
    %c0_149 = arith.constant 0 : index
    %170 = vector.load %arg3[%c24, %c0_148, %c0_149] : memref<25x1x4xf32, #tpu.memory_space<vmem>>, vector<1x1x4xf32>
    %171 = vector.shape_cast %170 : vector<1x1x4xf32> to vector<1x4xf32>
    %172 = vector.shape_cast %171 : vector<1x4xf32> to vector<1x1x1x4xf32>
    %173 = vector.broadcast %172 : vector<1x1x1x4xf32> to vector<4x4x4x4xf32>
    %174 = arith.mulf %169, %173 : vector<4x4x4x4xf32>
    %175 = arith.addf %168, %174 : vector<4x4x4x4xf32>
    %c0_150 = arith.constant 0 : index
    %c0_151 = arith.constant 0 : index
    %c0_152 = arith.constant 0 : index
    %c0_153 = arith.constant 0 : index
    %176 = vector.load %arg4[%c0_150, %c0_151, %c0_152, %c0_153] : memref<1x1x1x4xf32, #tpu.memory_space<vmem>>, vector<1x1x1x4xf32>
    %177 = vector.broadcast %176 : vector<1x1x1x4xf32> to vector<4x4x4x4xf32>
    %178 = arith.addf %175, %177 : vector<4x4x4x4xf32>
    %c0_154 = arith.constant 0 : index
    %c0_155 = arith.constant 0 : index
    %c0_156 = arith.constant 0 : index
    %c0_157 = arith.constant 0 : index
    %179 = vector.load %arg7[%c0_154, %c0_155, %c0_156, %c0_157] : memref<4x4x4x4xf32, #tpu.memory_space<vmem>>, vector<4x4x4x4xf32>
    tpu.vector_store %arg7[%c0_154, %c0_155, %c0_156, %c0_157], %178 {strides = array<i32>} : memref<4x4x4x4xf32, #tpu.memory_space<vmem>>, vector<4x4x4x4xf32>,
    %cst_158 = arith.constant 0.000000e+00 : f32
    %180 = vector.broadcast %cst_158 : f32 to vector<4x4x4x16xf32>
    %c0_159 = arith.constant 0 : index
    %c0_160 = arith.constant 0 : index
    %c0_161 = arith.constant 0 : index
    %c0_162 = arith.constant 0 : index
    %181 = vector.load %arg2[%c0_159, %c0_160, %c0_161, %c0_162] : memref<4x8x8x16xf32, #tpu.memory_space<vmem>>, vector<4x4x4x16xf32>
    %c0_163 = arith.constant 0 : index
    %c0_164 = arith.constant 0 : index
    %c0_165 = arith.constant 0 : index
    %182 = vector.load %arg5[%c0_163, %c0_164, %c0_165] : memref<25x1x16xf32, #tpu.memory_space<vmem>>, vector<1x1x16xf32>
    %183 = vector.shape_cast %182 : vector<1x1x16xf32> to vector<1x16xf32>
    %184 = vector.shape_cast %183 : vector<1x16xf32> to vector<1x1x1x16xf32>
    %185 = vector.broadcast %184 : vector<1x1x1x16xf32> to vector<4x4x4x16xf32>
    %186 = arith.mulf %181, %185 : vector<4x4x4x16xf32>
    %187 = arith.addf %180, %186 : vector<4x4x4x16xf32>
    %c0_166 = arith.constant 0 : index
    %c0_167 = arith.constant 0 : index
    %c1_168 = arith.constant 1 : index
    %c0_169 = arith.constant 0 : index
    %188 = vector.load %arg2[%c0_166, %c0_167, %c1_168, %c0_169] : memref<4x8x8x16xf32, #tpu.memory_space<vmem>>, vector<4x4x4x16xf32>
    %c1_170 = arith.constant 1 : index
    %c0_171 = arith.constant 0 : index
    %c0_172 = arith.constant 0 : index
    %189 = vector.load %arg5[%c1_170, %c0_171, %c0_172] : memref<25x1x16xf32, #tpu.memory_space<vmem>>, vector<1x1x16xf32>
    %190 = vector.shape_cast %189 : vector<1x1x16xf32> to vector<1x16xf32>
    %191 = vector.shape_cast %190 : vector<1x16xf32> to vector<1x1x1x16xf32>
    %192 = vector.broadcast %191 : vector<1x1x1x16xf32> to vector<4x4x4x16xf32>
    %193 = arith.mulf %188, %192 : vector<4x4x4x16xf32>
    %194 = arith.addf %187, %193 : vector<4x4x4x16xf32>
    %c0_173 = arith.constant 0 : index
    %c0_174 = arith.constant 0 : index
    %c2_175 = arith.constant 2 : index
    %c0_176 = arith.constant 0 : index
    %195 = vector.load %arg2[%c0_173, %c0_174, %c2_175, %c0_176] : memref<4x8x8x16xf32, #tpu.memory_space<vmem>>, vector<4x4x4x16xf32>
    %c2_177 = arith.constant 2 : index
    %c0_178 = arith.constant 0 : index
    %c0_179 = arith.constant 0 : index
    %196 = vector.load %arg5[%c2_177, %c0_178, %c0_179] : memref<25x1x16xf32, #tpu.memory_space<vmem>>, vector<1x1x16xf32>
    %197 = vector.shape_cast %196 : vector<1x1x16xf32> to vector<1x16xf32>
    %198 = vector.shape_cast %197 : vector<1x16xf32> to vector<1x1x1x16xf32>
    %199 = vector.broadcast %198 : vector<1x1x1x16xf32> to vector<4x4x4x16xf32>
    %200 = arith.mulf %195, %199 : vector<4x4x4x16xf32>
    %201 = arith.addf %194, %200 : vector<4x4x4x16xf32>
    %c0_180 = arith.constant 0 : index
    %c0_181 = arith.constant 0 : index
    %c3_182 = arith.constant 3 : index
    %c0_183 = arith.constant 0 : index
    %202 = vector.load %arg2[%c0_180, %c0_181, %c3_182, %c0_183] : memref<4x8x8x16xf32, #tpu.memory_space<vmem>>, vector<4x4x4x16xf32>
    %c3_184 = arith.constant 3 : index
    %c0_185 = arith.constant 0 : index
    %c0_186 = arith.constant 0 : index
    %203 = vector.load %arg5[%c3_184, %c0_185, %c0_186] : memref<25x1x16xf32, #tpu.memory_space<vmem>>, vector<1x1x16xf32>
    %204 = vector.shape_cast %203 : vector<1x1x16xf32> to vector<1x16xf32>
    %205 = vector.shape_cast %204 : vector<1x16xf32> to vector<1x1x1x16xf32>
    %206 = vector.broadcast %205 : vector<1x1x1x16xf32> to vector<4x4x4x16xf32>
    %207 = arith.mulf %202, %206 : vector<4x4x4x16xf32>
    %208 = arith.addf %201, %207 : vector<4x4x4x16xf32>
    %c0_187 = arith.constant 0 : index
    %c0_188 = arith.constant 0 : index
    %c4_189 = arith.constant 4 : index
    %c0_190 = arith.constant 0 : index
    %209 = vector.load %arg2[%c0_187, %c0_188, %c4_189, %c0_190] : memref<4x8x8x16xf32, #tpu.memory_space<vmem>>, vector<4x4x4x16xf32>
    %c4_191 = arith.constant 4 : index
    %c0_192 = arith.constant 0 : index
    %c0_193 = arith.constant 0 : index
    %210 = vector.load %arg5[%c4_191, %c0_192, %c0_193] : memref<25x1x16xf32, #tpu.memory_space<vmem>>, vector<1x1x16xf32>
    %211 = vector.shape_cast %210 : vector<1x1x16xf32> to vector<1x16xf32>
    %212 = vector.shape_cast %211 : vector<1x16xf32> to vector<1x1x1x16xf32>
    %213 = vector.broadcast %212 : vector<1x1x1x16xf32> to vector<4x4x4x16xf32>
    %214 = arith.mulf %209, %213 : vector<4x4x4x16xf32>
    %215 = arith.addf %208, %214 : vector<4x4x4x16xf32>
    %c0_194 = arith.constant 0 : index
    %c1_195 = arith.constant 1 : index
    %c0_196 = arith.constant 0 : index
    %c0_197 = arith.constant 0 : index
    %216 = vector.load %arg2[%c0_194, %c1_195, %c0_196, %c0_197] : memref<4x8x8x16xf32, #tpu.memory_space<vmem>>, vector<4x4x4x16xf32>
    %c5_198 = arith.constant 5 : index
    %c0_199 = arith.constant 0 : index
    %c0_200 = arith.constant 0 : index
    %217 = vector.load %arg5[%c5_198, %c0_199, %c0_200] : memref<25x1x16xf32, #tpu.memory_space<vmem>>, vector<1x1x16xf32>
    %218 = vector.shape_cast %217 : vector<1x1x16xf32> to vector<1x16xf32>
    %219 = vector.shape_cast %218 : vector<1x16xf32> to vector<1x1x1x16xf32>
    %220 = vector.broadcast %219 : vector<1x1x1x16xf32> to vector<4x4x4x16xf32>
    %221 = arith.mulf %216, %220 : vector<4x4x4x16xf32>
    %222 = arith.addf %215, %221 : vector<4x4x4x16xf32>
    %c0_201 = arith.constant 0 : index
    %c1_202 = arith.constant 1 : index
    %c1_203 = arith.constant 1 : index
    %c0_204 = arith.constant 0 : index
    %223 = vector.load %arg2[%c0_201, %c1_202, %c1_203, %c0_204] : memref<4x8x8x16xf32, #tpu.memory_space<vmem>>, vector<4x4x4x16xf32>
    %c6_205 = arith.constant 6 : index
    %c0_206 = arith.constant 0 : index
    %c0_207 = arith.constant 0 : index
    %224 = vector.load %arg5[%c6_205, %c0_206, %c0_207] : memref<25x1x16xf32, #tpu.memory_space<vmem>>, vector<1x1x16xf32>
    %225 = vector.shape_cast %224 : vector<1x1x16xf32> to vector<1x16xf32>
    %226 = vector.shape_cast %225 : vector<1x16xf32> to vector<1x1x1x16xf32>
    %227 = vector.broadcast %226 : vector<1x1x1x16xf32> to vector<4x4x4x16xf32>
    %228 = arith.mulf %223, %227 : vector<4x4x4x16xf32>
    %229 = arith.addf %222, %228 : vector<4x4x4x16xf32>
    %c0_208 = arith.constant 0 : index
    %c1_209 = arith.constant 1 : index
    %c2_210 = arith.constant 2 : index
    %c0_211 = arith.constant 0 : index
    %230 = vector.load %arg2[%c0_208, %c1_209, %c2_210, %c0_211] : memref<4x8x8x16xf32, #tpu.memory_space<vmem>>, vector<4x4x4x16xf32>
    %c7_212 = arith.constant 7 : index
    %c0_213 = arith.constant 0 : index
    %c0_214 = arith.constant 0 : index
    %231 = vector.load %arg5[%c7_212, %c0_213, %c0_214] : memref<25x1x16xf32, #tpu.memory_space<vmem>>, vector<1x1x16xf32>
    %232 = vector.shape_cast %231 : vector<1x1x16xf32> to vector<1x16xf32>
    %233 = vector.shape_cast %232 : vector<1x16xf32> to vector<1x1x1x16xf32>
    %234 = vector.broadcast %233 : vector<1x1x1x16xf32> to vector<4x4x4x16xf32>
    %235 = arith.mulf %230, %234 : vector<4x4x4x16xf32>
    %236 = arith.addf %229, %235 : vector<4x4x4x16xf32>
    %c0_215 = arith.constant 0 : index
    %c1_216 = arith.constant 1 : index
    %c3_217 = arith.constant 3 : index
    %c0_218 = arith.constant 0 : index
    %237 = vector.load %arg2[%c0_215, %c1_216, %c3_217, %c0_218] : memref<4x8x8x16xf32, #tpu.memory_space<vmem>>, vector<4x4x4x16xf32>
    %c8_219 = arith.constant 8 : index
    %c0_220 = arith.constant 0 : index
    %c0_221 = arith.constant 0 : index
    %238 = vector.load %arg5[%c8_219, %c0_220, %c0_221] : memref<25x1x16xf32, #tpu.memory_space<vmem>>, vector<1x1x16xf32>
    %239 = vector.shape_cast %238 : vector<1x1x16xf32> to vector<1x16xf32>
    %240 = vector.shape_cast %239 : vector<1x16xf32> to vector<1x1x1x16xf32>
    %241 = vector.broadcast %240 : vector<1x1x1x16xf32> to vector<4x4x4x16xf32>
    %242 = arith.mulf %237, %241 : vector<4x4x4x16xf32>
    %243 = arith.addf %236, %242 : vector<4x4x4x16xf32>
    %c0_222 = arith.constant 0 : index
    %c1_223 = arith.constant 1 : index
    %c4_224 = arith.constant 4 : index
    %c0_225 = arith.constant 0 : index
    %244 = vector.load %arg2[%c0_222, %c1_223, %c4_224, %c0_225] : memref<4x8x8x16xf32, #tpu.memory_space<vmem>>, vector<4x4x4x16xf32>
    %c9_226 = arith.constant 9 : index
    %c0_227 = arith.constant 0 : index
    %c0_228 = arith.constant 0 : index
    %245 = vector.load %arg5[%c9_226, %c0_227, %c0_228] : memref<25x1x16xf32, #tpu.memory_space<vmem>>, vector<1x1x16xf32>
    %246 = vector.shape_cast %245 : vector<1x1x16xf32> to vector<1x16xf32>
    %247 = vector.shape_cast %246 : vector<1x16xf32> to vector<1x1x1x16xf32>
    %248 = vector.broadcast %247 : vector<1x1x1x16xf32> to vector<4x4x4x16xf32>
    %249 = arith.mulf %244, %248 : vector<4x4x4x16xf32>
    %250 = arith.addf %243, %249 : vector<4x4x4x16xf32>
    %c0_229 = arith.constant 0 : index
    %c2_230 = arith.constant 2 : index
    %c0_231 = arith.constant 0 : index
    %c0_232 = arith.constant 0 : index
    %251 = vector.load %arg2[%c0_229, %c2_230, %c0_231, %c0_232] : memref<4x8x8x16xf32, #tpu.memory_space<vmem>>, vector<4x4x4x16xf32>
    %c10_233 = arith.constant 10 : index
    %c0_234 = arith.constant 0 : index
    %c0_235 = arith.constant 0 : index
    %252 = vector.load %arg5[%c10_233, %c0_234, %c0_235] : memref<25x1x16xf32, #tpu.memory_space<vmem>>, vector<1x1x16xf32>
    %253 = vector.shape_cast %252 : vector<1x1x16xf32> to vector<1x16xf32>
    %254 = vector.shape_cast %253 : vector<1x16xf32> to vector<1x1x1x16xf32>
    %255 = vector.broadcast %254 : vector<1x1x1x16xf32> to vector<4x4x4x16xf32>
    %256 = arith.mulf %251, %255 : vector<4x4x4x16xf32>
    %257 = arith.addf %250, %256 : vector<4x4x4x16xf32>
    %c0_236 = arith.constant 0 : index
    %c2_237 = arith.constant 2 : index
    %c1_238 = arith.constant 1 : index
    %c0_239 = arith.constant 0 : index
    %258 = vector.load %arg2[%c0_236, %c2_237, %c1_238, %c0_239] : memref<4x8x8x16xf32, #tpu.memory_space<vmem>>, vector<4x4x4x16xf32>
    %c11_240 = arith.constant 11 : index
    %c0_241 = arith.constant 0 : index
    %c0_242 = arith.constant 0 : index
    %259 = vector.load %arg5[%c11_240, %c0_241, %c0_242] : memref<25x1x16xf32, #tpu.memory_space<vmem>>, vector<1x1x16xf32>
    %260 = vector.shape_cast %259 : vector<1x1x16xf32> to vector<1x16xf32>
    %261 = vector.shape_cast %260 : vector<1x16xf32> to vector<1x1x1x16xf32>
    %262 = vector.broadcast %261 : vector<1x1x1x16xf32> to vector<4x4x4x16xf32>
    %263 = arith.mulf %258, %262 : vector<4x4x4x16xf32>
    %264 = arith.addf %257, %263 : vector<4x4x4x16xf32>
    %c0_243 = arith.constant 0 : index
    %c2_244 = arith.constant 2 : index
    %c2_245 = arith.constant 2 : index
    %c0_246 = arith.constant 0 : index
    %265 = vector.load %arg2[%c0_243, %c2_244, %c2_245, %c0_246] : memref<4x8x8x16xf32, #tpu.memory_space<vmem>>, vector<4x4x4x16xf32>
    %c12_247 = arith.constant 12 : index
    %c0_248 = arith.constant 0 : index
    %c0_249 = arith.constant 0 : index
    %266 = vector.load %arg5[%c12_247, %c0_248, %c0_249] : memref<25x1x16xf32, #tpu.memory_space<vmem>>, vector<1x1x16xf32>
    %267 = vector.shape_cast %266 : vector<1x1x16xf32> to vector<1x16xf32>
    %268 = vector.shape_cast %267 : vector<1x16xf32> to vector<1x1x1x16xf32>
    %269 = vector.broadcast %268 : vector<1x1x1x16xf32> to vector<4x4x4x16xf32>
    %270 = arith.mulf %265, %269 : vector<4x4x4x16xf32>
    %271 = arith.addf %264, %270 : vector<4x4x4x16xf32>
    %c0_250 = arith.constant 0 : index
    %c2_251 = arith.constant 2 : index
    %c3_252 = arith.constant 3 : index
    %c0_253 = arith.constant 0 : index
    %272 = vector.load %arg2[%c0_250, %c2_251, %c3_252, %c0_253] : memref<4x8x8x16xf32, #tpu.memory_space<vmem>>, vector<4x4x4x16xf32>
    %c13_254 = arith.constant 13 : index
    %c0_255 = arith.constant 0 : index
    %c0_256 = arith.constant 0 : index
    %273 = vector.load %arg5[%c13_254, %c0_255, %c0_256] : memref<25x1x16xf32, #tpu.memory_space<vmem>>, vector<1x1x16xf32>
    %274 = vector.shape_cast %273 : vector<1x1x16xf32> to vector<1x16xf32>
    %275 = vector.shape_cast %274 : vector<1x16xf32> to vector<1x1x1x16xf32>
    %276 = vector.broadcast %275 : vector<1x1x1x16xf32> to vector<4x4x4x16xf32>
    %277 = arith.mulf %272, %276 : vector<4x4x4x16xf32>
    %278 = arith.addf %271, %277 : vector<4x4x4x16xf32>
    %c0_257 = arith.constant 0 : index
    %c2_258 = arith.constant 2 : index
    %c4_259 = arith.constant 4 : index
    %c0_260 = arith.constant 0 : index
    %279 = vector.load %arg2[%c0_257, %c2_258, %c4_259, %c0_260] : memref<4x8x8x16xf32, #tpu.memory_space<vmem>>, vector<4x4x4x16xf32>
    %c14_261 = arith.constant 14 : index
    %c0_262 = arith.constant 0 : index
    %c0_263 = arith.constant 0 : index
    %280 = vector.load %arg5[%c14_261, %c0_262, %c0_263] : memref<25x1x16xf32, #tpu.memory_space<vmem>>, vector<1x1x16xf32>
    %281 = vector.shape_cast %280 : vector<1x1x16xf32> to vector<1x16xf32>
    %282 = vector.shape_cast %281 : vector<1x16xf32> to vector<1x1x1x16xf32>
    %283 = vector.broadcast %282 : vector<1x1x1x16xf32> to vector<4x4x4x16xf32>
    %284 = arith.mulf %279, %283 : vector<4x4x4x16xf32>
    %285 = arith.addf %278, %284 : vector<4x4x4x16xf32>
    %c0_264 = arith.constant 0 : index
    %c3_265 = arith.constant 3 : index
    %c0_266 = arith.constant 0 : index
    %c0_267 = arith.constant 0 : index
    %286 = vector.load %arg2[%c0_264, %c3_265, %c0_266, %c0_267] : memref<4x8x8x16xf32, #tpu.memory_space<vmem>>, vector<4x4x4x16xf32>
    %c15_268 = arith.constant 15 : index
    %c0_269 = arith.constant 0 : index
    %c0_270 = arith.constant 0 : index
    %287 = vector.load %arg5[%c15_268, %c0_269, %c0_270] : memref<25x1x16xf32, #tpu.memory_space<vmem>>, vector<1x1x16xf32>
    %288 = vector.shape_cast %287 : vector<1x1x16xf32> to vector<1x16xf32>
    %289 = vector.shape_cast %288 : vector<1x16xf32> to vector<1x1x1x16xf32>
    %290 = vector.broadcast %289 : vector<1x1x1x16xf32> to vector<4x4x4x16xf32>
    %291 = arith.mulf %286, %290 : vector<4x4x4x16xf32>
    %292 = arith.addf %285, %291 : vector<4x4x4x16xf32>
    %c0_271 = arith.constant 0 : index
    %c3_272 = arith.constant 3 : index
    %c1_273 = arith.constant 1 : index
    %c0_274 = arith.constant 0 : index
    %293 = vector.load %arg2[%c0_271, %c3_272, %c1_273, %c0_274] : memref<4x8x8x16xf32, #tpu.memory_space<vmem>>, vector<4x4x4x16xf32>
    %c16_275 = arith.constant 16 : index
    %c0_276 = arith.constant 0 : index
    %c0_277 = arith.constant 0 : index
    %294 = vector.load %arg5[%c16_275, %c0_276, %c0_277] : memref<25x1x16xf32, #tpu.memory_space<vmem>>, vector<1x1x16xf32>
    %295 = vector.shape_cast %294 : vector<1x1x16xf32> to vector<1x16xf32>
    %296 = vector.shape_cast %295 : vector<1x16xf32> to vector<1x1x1x16xf32>
    %297 = vector.broadcast %296 : vector<1x1x1x16xf32> to vector<4x4x4x16xf32>
    %298 = arith.mulf %293, %297 : vector<4x4x4x16xf32>
    %299 = arith.addf %292, %298 : vector<4x4x4x16xf32>
    %c0_278 = arith.constant 0 : index
    %c3_279 = arith.constant 3 : index
    %c2_280 = arith.constant 2 : index
    %c0_281 = arith.constant 0 : index
    %300 = vector.load %arg2[%c0_278, %c3_279, %c2_280, %c0_281] : memref<4x8x8x16xf32, #tpu.memory_space<vmem>>, vector<4x4x4x16xf32>
    %c17_282 = arith.constant 17 : index
    %c0_283 = arith.constant 0 : index
    %c0_284 = arith.constant 0 : index
    %301 = vector.load %arg5[%c17_282, %c0_283, %c0_284] : memref<25x1x16xf32, #tpu.memory_space<vmem>>, vector<1x1x16xf32>
    %302 = vector.shape_cast %301 : vector<1x1x16xf32> to vector<1x16xf32>
    %303 = vector.shape_cast %302 : vector<1x16xf32> to vector<1x1x1x16xf32>
    %304 = vector.broadcast %303 : vector<1x1x1x16xf32> to vector<4x4x4x16xf32>
    %305 = arith.mulf %300, %304 : vector<4x4x4x16xf32>
    %306 = arith.addf %299, %305 : vector<4x4x4x16xf32>
    %c0_285 = arith.constant 0 : index
    %c3_286 = arith.constant 3 : index
    %c3_287 = arith.constant 3 : index
    %c0_288 = arith.constant 0 : index
    %307 = vector.load %arg2[%c0_285, %c3_286, %c3_287, %c0_288] : memref<4x8x8x16xf32, #tpu.memory_space<vmem>>, vector<4x4x4x16xf32>
    %c18_289 = arith.constant 18 : index
    %c0_290 = arith.constant 0 : index
    %c0_291 = arith.constant 0 : index
    %308 = vector.load %arg5[%c18_289, %c0_290, %c0_291] : memref<25x1x16xf32, #tpu.memory_space<vmem>>, vector<1x1x16xf32>
    %309 = vector.shape_cast %308 : vector<1x1x16xf32> to vector<1x16xf32>
    %310 = vector.shape_cast %309 : vector<1x16xf32> to vector<1x1x1x16xf32>
    %311 = vector.broadcast %310 : vector<1x1x1x16xf32> to vector<4x4x4x16xf32>
    %312 = arith.mulf %307, %311 : vector<4x4x4x16xf32>
    %313 = arith.addf %306, %312 : vector<4x4x4x16xf32>
    %c0_292 = arith.constant 0 : index
    %c3_293 = arith.constant 3 : index
    %c4_294 = arith.constant 4 : index
    %c0_295 = arith.constant 0 : index
    %314 = vector.load %arg2[%c0_292, %c3_293, %c4_294, %c0_295] : memref<4x8x8x16xf32, #tpu.memory_space<vmem>>, vector<4x4x4x16xf32>
    %c19_296 = arith.constant 19 : index
    %c0_297 = arith.constant 0 : index
    %c0_298 = arith.constant 0 : index
    %315 = vector.load %arg5[%c19_296, %c0_297, %c0_298] : memref<25x1x16xf32, #tpu.memory_space<vmem>>, vector<1x1x16xf32>
    %316 = vector.shape_cast %315 : vector<1x1x16xf32> to vector<1x16xf32>
    %317 = vector.shape_cast %316 : vector<1x16xf32> to vector<1x1x1x16xf32>
    %318 = vector.broadcast %317 : vector<1x1x1x16xf32> to vector<4x4x4x16xf32>
    %319 = arith.mulf %314, %318 : vector<4x4x4x16xf32>
    %320 = arith.addf %313, %319 : vector<4x4x4x16xf32>
    %c0_299 = arith.constant 0 : index
    %c4_300 = arith.constant 4 : index
    %c0_301 = arith.constant 0 : index
    %c0_302 = arith.constant 0 : index
    %321 = vector.load %arg2[%c0_299, %c4_300, %c0_301, %c0_302] : memref<4x8x8x16xf32, #tpu.memory_space<vmem>>, vector<4x4x4x16xf32>
    %c20_303 = arith.constant 20 : index
    %c0_304 = arith.constant 0 : index
    %c0_305 = arith.constant 0 : index
    %322 = vector.load %arg5[%c20_303, %c0_304, %c0_305] : memref<25x1x16xf32, #tpu.memory_space<vmem>>, vector<1x1x16xf32>
    %323 = vector.shape_cast %322 : vector<1x1x16xf32> to vector<1x16xf32>
    %324 = vector.shape_cast %323 : vector<1x16xf32> to vector<1x1x1x16xf32>
    %325 = vector.broadcast %324 : vector<1x1x1x16xf32> to vector<4x4x4x16xf32>
    %326 = arith.mulf %321, %325 : vector<4x4x4x16xf32>
    %327 = arith.addf %320, %326 : vector<4x4x4x16xf32>
    %c0_306 = arith.constant 0 : index
    %c4_307 = arith.constant 4 : index
    %c1_308 = arith.constant 1 : index
    %c0_309 = arith.constant 0 : index
    %328 = vector.load %arg2[%c0_306, %c4_307, %c1_308, %c0_309] : memref<4x8x8x16xf32, #tpu.memory_space<vmem>>, vector<4x4x4x16xf32>
    %c21_310 = arith.constant 21 : index
    %c0_311 = arith.constant 0 : index
    %c0_312 = arith.constant 0 : index
    %329 = vector.load %arg5[%c21_310, %c0_311, %c0_312] : memref<25x1x16xf32, #tpu.memory_space<vmem>>, vector<1x1x16xf32>
    %330 = vector.shape_cast %329 : vector<1x1x16xf32> to vector<1x16xf32>
    %331 = vector.shape_cast %330 : vector<1x16xf32> to vector<1x1x1x16xf32>
    %332 = vector.broadcast %331 : vector<1x1x1x16xf32> to vector<4x4x4x16xf32>
    %333 = arith.mulf %328, %332 : vector<4x4x4x16xf32>
    %334 = arith.addf %327, %333 : vector<4x4x4x16xf32>
    %c0_313 = arith.constant 0 : index
    %c4_314 = arith.constant 4 : index
    %c2_315 = arith.constant 2 : index
    %c0_316 = arith.constant 0 : index
    %335 = vector.load %arg2[%c0_313, %c4_314, %c2_315, %c0_316] : memref<4x8x8x16xf32, #tpu.memory_space<vmem>>, vector<4x4x4x16xf32>
    %c22_317 = arith.constant 22 : index
    %c0_318 = arith.constant 0 : index
    %c0_319 = arith.constant 0 : index
    %336 = vector.load %arg5[%c22_317, %c0_318, %c0_319] : memref<25x1x16xf32, #tpu.memory_space<vmem>>, vector<1x1x16xf32>
    %337 = vector.shape_cast %336 : vector<1x1x16xf32> to vector<1x16xf32>
    %338 = vector.shape_cast %337 : vector<1x16xf32> to vector<1x1x1x16xf32>
    %339 = vector.broadcast %338 : vector<1x1x1x16xf32> to vector<4x4x4x16xf32>
    %340 = arith.mulf %335, %339 : vector<4x4x4x16xf32>
    %341 = arith.addf %334, %340 : vector<4x4x4x16xf32>
    %c0_320 = arith.constant 0 : index
    %c4_321 = arith.constant 4 : index
    %c3_322 = arith.constant 3 : index
    %c0_323 = arith.constant 0 : index
    %342 = vector.load %arg2[%c0_320, %c4_321, %c3_322, %c0_323] : memref<4x8x8x16xf32, #tpu.memory_space<vmem>>, vector<4x4x4x16xf32>
    %c23_324 = arith.constant 23 : index
    %c0_325 = arith.constant 0 : index
    %c0_326 = arith.constant 0 : index
    %343 = vector.load %arg5[%c23_324, %c0_325, %c0_326] : memref<25x1x16xf32, #tpu.memory_space<vmem>>, vector<1x1x16xf32>
    %344 = vector.shape_cast %343 : vector<1x1x16xf32> to vector<1x16xf32>
    %345 = vector.shape_cast %344 : vector<1x16xf32> to vector<1x1x1x16xf32>
    %346 = vector.broadcast %345 : vector<1x1x1x16xf32> to vector<4x4x4x16xf32>
    %347 = arith.mulf %342, %346 : vector<4x4x4x16xf32>
    %348 = arith.addf %341, %347 : vector<4x4x4x16xf32>
    %c0_327 = arith.constant 0 : index
    %c4_328 = arith.constant 4 : index
    %c4_329 = arith.constant 4 : index
    %c0_330 = arith.constant 0 : index
    %349 = vector.load %arg2[%c0_327, %c4_328, %c4_329, %c0_330] : memref<4x8x8x16xf32, #tpu.memory_space<vmem>>, vector<4x4x4x16xf32>
    %c24_331 = arith.constant 24 : index
    %c0_332 = arith.constant 0 : index
    %c0_333 = arith.constant 0 : index
    %350 = vector.load %arg5[%c24_331, %c0_332, %c0_333] : memref<25x1x16xf32, #tpu.memory_space<vmem>>, vector<1x1x16xf32>
    %351 = vector.shape_cast %350 : vector<1x1x16xf32> to vector<1x16xf32>
    %352 = vector.shape_cast %351 : vector<1x16xf32> to vector<1x1x1x16xf32>
    %353 = vector.broadcast %352 : vector<1x1x1x16xf32> to vector<4x4x4x16xf32>
    %354 = arith.mulf %349, %353 : vector<4x4x4x16xf32>
    %355 = arith.addf %348, %354 : vector<4x4x4x16xf32>
    %c0_334 = arith.constant 0 : index
    %c0_335 = arith.constant 0 : index
    %c0_336 = arith.constant 0 : index
    %c0_337 = arith.constant 0 : index
    %356 = vector.load %arg6[%c0_334, %c0_335, %c0_336, %c0_337] : memref<1x1x1x16xf32, #tpu.memory_space<vmem>>, vector<1x1x1x16xf32>
    %357 = vector.broadcast %356 : vector<1x1x1x16xf32> to vector<4x4x4x16xf32>
    %358 = arith.addf %355, %357 : vector<4x4x4x16xf32>
    %c0_338 = arith.constant 0 : index
    %c0_339 = arith.constant 0 : index
    %c0_340 = arith.constant 0 : index
    %c0_341 = arith.constant 0 : index
    %359 = vector.load %arg8[%c0_338, %c0_339, %c0_340, %c0_341] : memref<4x4x4x16xf32, #tpu.memory_space<vmem>>, vector<4x4x4x16xf32>
    tpu.vector_store %arg8[%c0_338, %c0_339, %c0_340, %c0_341], %358 {strides = array<i32>} : memref<4x4x4x16xf32, #tpu.memory_space<vmem>>, vector<4x4x4x16xf32>,
    return
  }
  func.func @transform_0(%arg0: i32) -> (i32, i32, i32, i32) {
    %c0_i32 = arith.constant 0 : i32
    %c0_i32_0 = arith.constant 0 : i32
    %c0_i32_1 = arith.constant 0 : i32
    %c0_i32_2 = arith.constant 0 : i32
    return %arg0, %c0_i32, %c0_i32_0, %c0_i32_1 : i32, i32, i32, i32
  }
  func.func @transform_1(%arg0: i32) -> (i32, i32, i32, i32) {
    %c0_i32 = arith.constant 0 : i32
    %c0_i32_0 = arith.constant 0 : i32
    %c0_i32_1 = arith.constant 0 : i32
    %c0_i32_2 = arith.constant 0 : i32
    return %arg0, %c0_i32, %c0_i32_0, %c0_i32_1 : i32, i32, i32, i32
  }
  func.func @transform_2(%arg0: i32) -> (i32, i32, i32) {
    %c0_i32 = arith.constant 0 : i32
    %c0_i32_0 = arith.constant 0 : i32
    %c0_i32_1 = arith.constant 0 : i32
    %c0_i32_2 = arith.constant 0 : i32
    return %c0_i32, %c0_i32_0, %c0_i32_1 : i32, i32, i32
  }
  func.func @transform_3(%arg0: i32) -> (i32, i32, i32, i32) {
    %c0_i32 = arith.constant 0 : i32
    %c0_i32_0 = arith.constant 0 : i32
    %c0_i32_1 = arith.constant 0 : i32
    %c0_i32_2 = arith.constant 0 : i32
    %c0_i32_3 = arith.constant 0 : i32
    return %c0_i32, %c0_i32_0, %c0_i32_1, %c0_i32_2 : i32, i32, i32, i32
  }
  func.func @transform_4(%arg0: i32) -> (i32, i32, i32) {
    %c0_i32 = arith.constant 0 : i32
    %c0_i32_0 = arith.constant 0 : i32
    %c0_i32_1 = arith.constant 0 : i32
    %c0_i32_2 = arith.constant 0 : i32
    return %c0_i32, %c0_i32_0, %c0_i32_1 : i32, i32, i32
  }
  func.func @transform_5(%arg0: i32) -> (i32, i32, i32, i32) {
    %c0_i32 = arith.constant 0 : i32
    %c0_i32_0 = arith.constant 0 : i32
    %c0_i32_1 = arith.constant 0 : i32
    %c0_i32_2 = arith.constant 0 : i32
    %c0_i32_3 = arith.constant 0 : i32
    return %c0_i32, %c0_i32_0, %c0_i32_1, %c0_i32_2 : i32, i32, i32, i32
  }
  func.func @transform_6(%arg0: i32) -> (i32, i32, i32, i32) {
    %c0_i32 = arith.constant 0 : i32
    %c0_i32_0 = arith.constant 0 : i32
    %c0_i32_1 = arith.constant 0 : i32
    %c0_i32_2 = arith.constant 0 : i32
    return %arg0, %c0_i32, %c0_i32_0, %c0_i32_1 : i32, i32, i32, i32
  }
  func.func @transform_7(%arg0: i32) -> (i32, i32, i32, i32) {
    %c0_i32 = arith.constant 0 : i32
    %c0_i32_0 = arith.constant 0 : i32
    %c0_i32_1 = arith.constant 0 : i32
    %c0_i32_2 = arith.constant 0 : i32
    return %arg0, %c0_i32, %c0_i32_0, %c0_i32_1 : i32, i32, i32, i32
  }
}

module attributes {stable_mosaic.version = 11 : i64} {
  func.func @kernel(%arg0: i32, %arg1: memref<4x16x4xf32, #tpu.memory_space<vmem>>, %arg2: memref<4x16x4xf32, #tpu.memory_space<vmem>>, %arg3: memref<4x16x16xf32, #tpu.memory_space<vmem>>, %arg4: memref<16x16xf32, #tpu.memory_space<vmem>>, %arg5: memref<16x16xbf16, #tpu.memory_space<vmem>>, %arg6: memref<1x16xf32, #tpu.memory_space<vmem>>, %arg7: memref<64x16xf32, #tpu.memory_space<vmem>>, %arg8: memref<64x16xf32, #tpu.memory_space<vmem>>) attributes {dimension_semantics = [#tpu.dimension_semantics<parallel>], iteration_bounds = array<i64: 2>, scalar_prefetch = 0 : i64, scratch_operands = 0 : i64, tpu.core_type = #tpu.core_type<tc>, window_params = [{transform_indices = @transform_0, window_bounds = array<i64: 4, 16, 4>}, {transform_indices = @transform_1, window_bounds = array<i64: 4, 16, 4>}, {transform_indices = @transform_2, window_bounds = array<i64: 4, 16, 16>}, {pipeline_mode = #tpu.pipeline_mode<synchronous>, transform_indices = @transform_3, window_bounds = array<i64: 16, 16>}, {pipeline_mode = #tpu.pipeline_mode<synchronous>, transform_indices = @transform_4, window_bounds = array<i64: 16, 16>}, {pipeline_mode = #tpu.pipeline_mode<synchronous>, transform_indices = @transform_5, window_bounds = array<i64: 1, 16>}, {transform_indices = @transform_6, window_bounds = array<i64: 64, 16>}, {transform_indices = @transform_7, window_bounds = array<i64: 64, 16>}]} {
    %c0 = arith.constant 0 : index
    %c0_0 = arith.constant 0 : index
    %c0_1 = arith.constant 0 : index
    %0 = vector.load %arg1[%c0, %c0_0, %c0_1] : memref<4x16x4xf32, #tpu.memory_space<vmem>>, vector<4x16x4xf32>
    %1 = arith.truncf %0 : vector<4x16x4xf32> to vector<4x16x4xbf16>
    %c0_2 = arith.constant 0 : index
    %c0_3 = arith.constant 0 : index
    %c0_4 = arith.constant 0 : index
    %2 = vector.load %arg2[%c0_2, %c0_3, %c0_4] : memref<4x16x4xf32, #tpu.memory_space<vmem>>, vector<4x16x4xf32>
    %3 = arith.truncf %2 : vector<4x16x4xf32> to vector<4x16x4xbf16>
    "tpu.trace_start"() <{level = 10 : i32, message = "gnc,gmc->gnm"}> : () -> ()
    %cst = arith.constant dense<0.000000e+00> : vector<4x16x16xf32>
    %4 = tpu.matmul %1, %3, %cst {dimension_numbers = #tpu.dot_dimension_numbers<[2], [2], [1], [1], [0, 0, 0, 1, 1, 1], [0], [0]>} : vector<4x16x4xbf16>, vector<4x16x4xbf16>, vector<4x16x16xf32> -> vector<4x16x16xf32>
    "tpu.trace_stop"() : () -> ()
    %c0_5 = arith.constant 0 : index
    %c0_6 = arith.constant 0 : index
    %5 = vector.load %arg4[%c0_5, %c0_6] : memref<16x16xf32, #tpu.memory_space<vmem>>, vector<16x16xf32>
    %6 = vector.shape_cast %5 : vector<16x16xf32> to vector<1x16x16xf32>
    %7 = vector.broadcast %6 : vector<1x16x16xf32> to vector<4x16x16xf32>
    %8 = arith.addf %4, %7 : vector<4x16x16xf32>
    %cst_7 = arith.constant dense<0xFF800000> : vector<4x16xf32>
    %9 = vector.multi_reduction <maximumf>, %8, %cst_7 [2] : vector<4x16x16xf32> to vector<4x16xf32>
    %10 = vector.shape_cast %9 : vector<4x16xf32> to vector<4x16x1xf32>
    %11 = vector.broadcast %10 : vector<4x16x1xf32> to vector<4x16x16xf32>
    %12 = arith.subf %8, %11 : vector<4x16x16xf32>
    %13 = math.exp %12 : vector<4x16x16xf32>
    %cst_8 = arith.constant dense<0.000000e+00> : vector<4x16xf32>
    %14 = vector.multi_reduction <add>, %13, %cst_8 [2] : vector<4x16x16xf32> to vector<4x16xf32>
    %15 = vector.shape_cast %14 : vector<4x16xf32> to vector<4x16x1xf32>
    %16 = tpu.reciprocal %15 {approx = true} : vector<4x16x1xf32> -> vector<4x16x1xf32>
    %17 = vector.broadcast %16 : vector<4x16x1xf32> to vector<4x16x16xf32>
    %18 = arith.mulf %13, %17 : vector<4x16x16xf32>
    %19 = arith.truncf %18 : vector<4x16x16xf32> to vector<4x16x16xbf16>
    %c0_9 = arith.constant 0 : index
    %c0_10 = arith.constant 0 : index
    %c0_11 = arith.constant 0 : index
    %20 = vector.load %arg3[%c0_9, %c0_10, %c0_11] : memref<4x16x16xf32, #tpu.memory_space<vmem>>, vector<4x16x16xf32>
    %21 = arith.truncf %20 : vector<4x16x16xf32> to vector<4x16x16xbf16>
    "tpu.trace_start"() <{level = 10 : i32, message = "gnm,gmc->gnc"}> : () -> ()
    %cst_12 = arith.constant dense<0.000000e+00> : vector<4x16x16xf32>
    %22 = tpu.matmul %19, %21, %cst_12 {dimension_numbers = #tpu.dot_dimension_numbers<[2], [1], [1], [2], [0, 0, 0, 1, 1, 2], [0], [0]>} : vector<4x16x16xbf16>, vector<4x16x16xbf16>, vector<4x16x16xf32> -> vector<4x16x16xf32>
    "tpu.trace_stop"() : () -> ()
    %cst_13 = arith.constant 0.000000e+00 : f32
    %23 = vector.broadcast %cst_13 : f32 to vector<4x16x16xf32>
    %24 = arith.maximumf %22, %23 : vector<4x16x16xf32>
    %25 = vector.shape_cast %24 : vector<4x16x16xf32> to vector<64x16xf32>
    %26 = arith.truncf %25 : vector<64x16xf32> to vector<64x16xbf16>
    %c0_14 = arith.constant 0 : index
    %c0_15 = arith.constant 0 : index
    %27 = vector.load %arg5[%c0_14, %c0_15] : memref<16x16xbf16, #tpu.memory_space<vmem>>, vector<16x16xbf16>
    %cst_16 = arith.constant dense<0.000000e+00> : vector<64x16xf32>
    %28 = tpu.matmul %26, %27, %cst_16 {dimension_numbers = #tpu.dot_dimension_numbers<[1], [0], [0], [1], [0, 0, 1, 1], [], []>} : vector<64x16xbf16>, vector<16x16xbf16>, vector<64x16xf32> -> vector<64x16xf32>
    %c0_17 = arith.constant 0 : index
    %c0_18 = arith.constant 0 : index
    %29 = vector.load %arg6[%c0_17, %c0_18] : memref<1x16xf32, #tpu.memory_space<vmem>>, vector<1x16xf32>
    %30 = vector.broadcast %29 : vector<1x16xf32> to vector<64x16xf32>
    %31 = arith.addf %28, %30 : vector<64x16xf32>
    %c0_19 = arith.constant 0 : index
    %c0_20 = arith.constant 0 : index
    %32 = vector.load %arg7[%c0_19, %c0_20] : memref<64x16xf32, #tpu.memory_space<vmem>>, vector<64x16xf32>
    %33 = arith.addf %31, %32 : vector<64x16xf32>
    %c0_21 = arith.constant 0 : index
    %c0_22 = arith.constant 0 : index
    %34 = vector.load %arg8[%c0_21, %c0_22] : memref<64x16xf32, #tpu.memory_space<vmem>>, vector<64x16xf32>
    tpu.vector_store %arg8[%c0_21, %c0_22], %33 {strides = array<i32>} : memref<64x16xf32, #tpu.memory_space<vmem>>, vector<64x16xf32>,
    return
  }
  func.func @transform_0(%arg0: i32) -> (i32, i32, i32) {
    %c0_i32 = arith.constant 0 : i32
    %c0_i32_0 = arith.constant 0 : i32
    %c0_i32_1 = arith.constant 0 : i32
    return %arg0, %c0_i32, %c0_i32_0 : i32, i32, i32
  }
  func.func @transform_1(%arg0: i32) -> (i32, i32, i32) {
    %c0_i32 = arith.constant 0 : i32
    %c0_i32_0 = arith.constant 0 : i32
    %c0_i32_1 = arith.constant 0 : i32
    return %arg0, %c0_i32, %c0_i32_0 : i32, i32, i32
  }
  func.func @transform_2(%arg0: i32) -> (i32, i32, i32) {
    %c0_i32 = arith.constant 0 : i32
    %c0_i32_0 = arith.constant 0 : i32
    %c0_i32_1 = arith.constant 0 : i32
    return %arg0, %c0_i32, %c0_i32_0 : i32, i32, i32
  }
  func.func @transform_3(%arg0: i32) -> (i32, i32) {
    %c0_i32 = arith.constant 0 : i32
    %c0_i32_0 = arith.constant 0 : i32
    %c0_i32_1 = arith.constant 0 : i32
    return %c0_i32, %c0_i32_0 : i32, i32
  }
  func.func @transform_4(%arg0: i32) -> (i32, i32) {
    %c0_i32 = arith.constant 0 : i32
    %c0_i32_0 = arith.constant 0 : i32
    %c0_i32_1 = arith.constant 0 : i32
    return %c0_i32, %c0_i32_0 : i32, i32
  }
  func.func @transform_5(%arg0: i32) -> (i32, i32) {
    %c0_i32 = arith.constant 0 : i32
    %c0_i32_0 = arith.constant 0 : i32
    %c0_i32_1 = arith.constant 0 : i32
    return %c0_i32, %c0_i32_0 : i32, i32
  }
  func.func @transform_6(%arg0: i32) -> (i32, i32) {
    %c0_i32 = arith.constant 0 : i32
    %c0_i32_0 = arith.constant 0 : i32
    return %arg0, %c0_i32 : i32, i32
  }
  func.func @transform_7(%arg0: i32) -> (i32, i32) {
    %c0_i32 = arith.constant 0 : i32
    %c0_i32_0 = arith.constant 0 : i32
    return %arg0, %c0_i32 : i32, i32
  }
}

module attributes {stable_mosaic.version = 11 : i64} {
  func.func @kernel(%arg0: i32, %arg1: memref<1x10x10x16xf32, #tpu.memory_space<vmem>>, %arg2: memref<9x1x16xf32, #tpu.memory_space<vmem>>, %arg3: memref<1x1x16xf32, #tpu.memory_space<vmem>>, %arg4: memref<16x32xbf16, #tpu.memory_space<vmem>>, %arg5: memref<1x32xf32, #tpu.memory_space<vmem>>, %arg6: memref<32x16xbf16, #tpu.memory_space<vmem>>, %arg7: memref<1x16xf32, #tpu.memory_space<vmem>>, %arg8: memref<1x64x16xf32, #tpu.memory_space<vmem>>) attributes {dimension_semantics = [#tpu.dimension_semantics<parallel>], iteration_bounds = array<i64: 2>, scalar_prefetch = 0 : i64, scratch_operands = 0 : i64, tpu.core_type = #tpu.core_type<tc>, window_params = [{transform_indices = @transform_0, window_bounds = array<i64: 1, 10, 10, 16>}, {pipeline_mode = #tpu.pipeline_mode<synchronous>, transform_indices = @transform_1, window_bounds = array<i64: 9, 1, 16>}, {pipeline_mode = #tpu.pipeline_mode<synchronous>, transform_indices = @transform_2, window_bounds = array<i64: 1, 1, 16>}, {pipeline_mode = #tpu.pipeline_mode<synchronous>, transform_indices = @transform_3, window_bounds = array<i64: 16, 32>}, {pipeline_mode = #tpu.pipeline_mode<synchronous>, transform_indices = @transform_4, window_bounds = array<i64: 1, 32>}, {pipeline_mode = #tpu.pipeline_mode<synchronous>, transform_indices = @transform_5, window_bounds = array<i64: 32, 16>}, {pipeline_mode = #tpu.pipeline_mode<synchronous>, transform_indices = @transform_6, window_bounds = array<i64: 1, 16>}, {transform_indices = @transform_7, window_bounds = array<i64: 1, 64, 16>}]} {
    %cst = arith.constant 0.000000e+00 : f32
    %0 = vector.broadcast %cst : f32 to vector<8x8x16xf32>
    %c0 = arith.constant 0 : index
    %c0_0 = arith.constant 0 : index
    %c0_1 = arith.constant 0 : index
    %c0_2 = arith.constant 0 : index
    %1 = vector.load %arg1[%c0, %c0_0, %c0_1, %c0_2] : memref<1x10x10x16xf32, #tpu.memory_space<vmem>>, vector<1x8x8x16xf32>
    %2 = vector.shape_cast %1 : vector<1x8x8x16xf32> to vector<8x8x16xf32>
    %c0_3 = arith.constant 0 : index
    %c0_4 = arith.constant 0 : index
    %c0_5 = arith.constant 0 : index
    %3 = vector.load %arg2[%c0_3, %c0_4, %c0_5] : memref<9x1x16xf32, #tpu.memory_space<vmem>>, vector<1x1x16xf32>
    %4 = vector.shape_cast %3 : vector<1x1x16xf32> to vector<1x16xf32>
    %5 = vector.shape_cast %4 : vector<1x16xf32> to vector<1x1x16xf32>
    %6 = vector.broadcast %5 : vector<1x1x16xf32> to vector<8x8x16xf32>
    %7 = arith.mulf %2, %6 : vector<8x8x16xf32>
    %8 = arith.addf %0, %7 : vector<8x8x16xf32>
    %c0_6 = arith.constant 0 : index
    %c0_7 = arith.constant 0 : index
    %c1 = arith.constant 1 : index
    %c0_8 = arith.constant 0 : index
    %9 = vector.load %arg1[%c0_6, %c0_7, %c1, %c0_8] : memref<1x10x10x16xf32, #tpu.memory_space<vmem>>, vector<1x8x8x16xf32>
    %10 = vector.shape_cast %9 : vector<1x8x8x16xf32> to vector<8x8x16xf32>
    %c1_9 = arith.constant 1 : index
    %c0_10 = arith.constant 0 : index
    %c0_11 = arith.constant 0 : index
    %11 = vector.load %arg2[%c1_9, %c0_10, %c0_11] : memref<9x1x16xf32, #tpu.memory_space<vmem>>, vector<1x1x16xf32>
    %12 = vector.shape_cast %11 : vector<1x1x16xf32> to vector<1x16xf32>
    %13 = vector.shape_cast %12 : vector<1x16xf32> to vector<1x1x16xf32>
    %14 = vector.broadcast %13 : vector<1x1x16xf32> to vector<8x8x16xf32>
    %15 = arith.mulf %10, %14 : vector<8x8x16xf32>
    %16 = arith.addf %8, %15 : vector<8x8x16xf32>
    %c0_12 = arith.constant 0 : index
    %c0_13 = arith.constant 0 : index
    %c2 = arith.constant 2 : index
    %c0_14 = arith.constant 0 : index
    %17 = vector.load %arg1[%c0_12, %c0_13, %c2, %c0_14] : memref<1x10x10x16xf32, #tpu.memory_space<vmem>>, vector<1x8x8x16xf32>
    %18 = vector.shape_cast %17 : vector<1x8x8x16xf32> to vector<8x8x16xf32>
    %c2_15 = arith.constant 2 : index
    %c0_16 = arith.constant 0 : index
    %c0_17 = arith.constant 0 : index
    %19 = vector.load %arg2[%c2_15, %c0_16, %c0_17] : memref<9x1x16xf32, #tpu.memory_space<vmem>>, vector<1x1x16xf32>
    %20 = vector.shape_cast %19 : vector<1x1x16xf32> to vector<1x16xf32>
    %21 = vector.shape_cast %20 : vector<1x16xf32> to vector<1x1x16xf32>
    %22 = vector.broadcast %21 : vector<1x1x16xf32> to vector<8x8x16xf32>
    %23 = arith.mulf %18, %22 : vector<8x8x16xf32>
    %24 = arith.addf %16, %23 : vector<8x8x16xf32>
    %c0_18 = arith.constant 0 : index
    %c1_19 = arith.constant 1 : index
    %c0_20 = arith.constant 0 : index
    %c0_21 = arith.constant 0 : index
    %25 = vector.load %arg1[%c0_18, %c1_19, %c0_20, %c0_21] : memref<1x10x10x16xf32, #tpu.memory_space<vmem>>, vector<1x8x8x16xf32>
    %26 = vector.shape_cast %25 : vector<1x8x8x16xf32> to vector<8x8x16xf32>
    %c3 = arith.constant 3 : index
    %c0_22 = arith.constant 0 : index
    %c0_23 = arith.constant 0 : index
    %27 = vector.load %arg2[%c3, %c0_22, %c0_23] : memref<9x1x16xf32, #tpu.memory_space<vmem>>, vector<1x1x16xf32>
    %28 = vector.shape_cast %27 : vector<1x1x16xf32> to vector<1x16xf32>
    %29 = vector.shape_cast %28 : vector<1x16xf32> to vector<1x1x16xf32>
    %30 = vector.broadcast %29 : vector<1x1x16xf32> to vector<8x8x16xf32>
    %31 = arith.mulf %26, %30 : vector<8x8x16xf32>
    %32 = arith.addf %24, %31 : vector<8x8x16xf32>
    %c0_24 = arith.constant 0 : index
    %c1_25 = arith.constant 1 : index
    %c1_26 = arith.constant 1 : index
    %c0_27 = arith.constant 0 : index
    %33 = vector.load %arg1[%c0_24, %c1_25, %c1_26, %c0_27] : memref<1x10x10x16xf32, #tpu.memory_space<vmem>>, vector<1x8x8x16xf32>
    %34 = vector.shape_cast %33 : vector<1x8x8x16xf32> to vector<8x8x16xf32>
    %c4 = arith.constant 4 : index
    %c0_28 = arith.constant 0 : index
    %c0_29 = arith.constant 0 : index
    %35 = vector.load %arg2[%c4, %c0_28, %c0_29] : memref<9x1x16xf32, #tpu.memory_space<vmem>>, vector<1x1x16xf32>
    %36 = vector.shape_cast %35 : vector<1x1x16xf32> to vector<1x16xf32>
    %37 = vector.shape_cast %36 : vector<1x16xf32> to vector<1x1x16xf32>
    %38 = vector.broadcast %37 : vector<1x1x16xf32> to vector<8x8x16xf32>
    %39 = arith.mulf %34, %38 : vector<8x8x16xf32>
    %40 = arith.addf %32, %39 : vector<8x8x16xf32>
    %c0_30 = arith.constant 0 : index
    %c1_31 = arith.constant 1 : index
    %c2_32 = arith.constant 2 : index
    %c0_33 = arith.constant 0 : index
    %41 = vector.load %arg1[%c0_30, %c1_31, %c2_32, %c0_33] : memref<1x10x10x16xf32, #tpu.memory_space<vmem>>, vector<1x8x8x16xf32>
    %42 = vector.shape_cast %41 : vector<1x8x8x16xf32> to vector<8x8x16xf32>
    %c5 = arith.constant 5 : index
    %c0_34 = arith.constant 0 : index
    %c0_35 = arith.constant 0 : index
    %43 = vector.load %arg2[%c5, %c0_34, %c0_35] : memref<9x1x16xf32, #tpu.memory_space<vmem>>, vector<1x1x16xf32>
    %44 = vector.shape_cast %43 : vector<1x1x16xf32> to vector<1x16xf32>
    %45 = vector.shape_cast %44 : vector<1x16xf32> to vector<1x1x16xf32>
    %46 = vector.broadcast %45 : vector<1x1x16xf32> to vector<8x8x16xf32>
    %47 = arith.mulf %42, %46 : vector<8x8x16xf32>
    %48 = arith.addf %40, %47 : vector<8x8x16xf32>
    %c0_36 = arith.constant 0 : index
    %c2_37 = arith.constant 2 : index
    %c0_38 = arith.constant 0 : index
    %c0_39 = arith.constant 0 : index
    %49 = vector.load %arg1[%c0_36, %c2_37, %c0_38, %c0_39] : memref<1x10x10x16xf32, #tpu.memory_space<vmem>>, vector<1x8x8x16xf32>
    %50 = vector.shape_cast %49 : vector<1x8x8x16xf32> to vector<8x8x16xf32>
    %c6 = arith.constant 6 : index
    %c0_40 = arith.constant 0 : index
    %c0_41 = arith.constant 0 : index
    %51 = vector.load %arg2[%c6, %c0_40, %c0_41] : memref<9x1x16xf32, #tpu.memory_space<vmem>>, vector<1x1x16xf32>
    %52 = vector.shape_cast %51 : vector<1x1x16xf32> to vector<1x16xf32>
    %53 = vector.shape_cast %52 : vector<1x16xf32> to vector<1x1x16xf32>
    %54 = vector.broadcast %53 : vector<1x1x16xf32> to vector<8x8x16xf32>
    %55 = arith.mulf %50, %54 : vector<8x8x16xf32>
    %56 = arith.addf %48, %55 : vector<8x8x16xf32>
    %c0_42 = arith.constant 0 : index
    %c2_43 = arith.constant 2 : index
    %c1_44 = arith.constant 1 : index
    %c0_45 = arith.constant 0 : index
    %57 = vector.load %arg1[%c0_42, %c2_43, %c1_44, %c0_45] : memref<1x10x10x16xf32, #tpu.memory_space<vmem>>, vector<1x8x8x16xf32>
    %58 = vector.shape_cast %57 : vector<1x8x8x16xf32> to vector<8x8x16xf32>
    %c7 = arith.constant 7 : index
    %c0_46 = arith.constant 0 : index
    %c0_47 = arith.constant 0 : index
    %59 = vector.load %arg2[%c7, %c0_46, %c0_47] : memref<9x1x16xf32, #tpu.memory_space<vmem>>, vector<1x1x16xf32>
    %60 = vector.shape_cast %59 : vector<1x1x16xf32> to vector<1x16xf32>
    %61 = vector.shape_cast %60 : vector<1x16xf32> to vector<1x1x16xf32>
    %62 = vector.broadcast %61 : vector<1x1x16xf32> to vector<8x8x16xf32>
    %63 = arith.mulf %58, %62 : vector<8x8x16xf32>
    %64 = arith.addf %56, %63 : vector<8x8x16xf32>
    %c0_48 = arith.constant 0 : index
    %c2_49 = arith.constant 2 : index
    %c2_50 = arith.constant 2 : index
    %c0_51 = arith.constant 0 : index
    %65 = vector.load %arg1[%c0_48, %c2_49, %c2_50, %c0_51] : memref<1x10x10x16xf32, #tpu.memory_space<vmem>>, vector<1x8x8x16xf32>
    %66 = vector.shape_cast %65 : vector<1x8x8x16xf32> to vector<8x8x16xf32>
    %c8 = arith.constant 8 : index
    %c0_52 = arith.constant 0 : index
    %c0_53 = arith.constant 0 : index
    %67 = vector.load %arg2[%c8, %c0_52, %c0_53] : memref<9x1x16xf32, #tpu.memory_space<vmem>>, vector<1x1x16xf32>
    %68 = vector.shape_cast %67 : vector<1x1x16xf32> to vector<1x16xf32>
    %69 = vector.shape_cast %68 : vector<1x16xf32> to vector<1x1x16xf32>
    %70 = vector.broadcast %69 : vector<1x1x16xf32> to vector<8x8x16xf32>
    %71 = arith.mulf %66, %70 : vector<8x8x16xf32>
    %72 = arith.addf %64, %71 : vector<8x8x16xf32>
    %c0_54 = arith.constant 0 : index
    %c1_55 = arith.constant 1 : index
    %c1_56 = arith.constant 1 : index
    %c0_57 = arith.constant 0 : index
    %73 = vector.load %arg1[%c0_54, %c1_55, %c1_56, %c0_57] : memref<1x10x10x16xf32, #tpu.memory_space<vmem>>, vector<1x8x8x16xf32>
    %74 = vector.shape_cast %73 : vector<1x8x8x16xf32> to vector<8x8x16xf32>
    %75 = arith.addf %74, %72 : vector<8x8x16xf32>
    %c0_58 = arith.constant 0 : index
    %c0_59 = arith.constant 0 : index
    %c0_60 = arith.constant 0 : index
    %76 = vector.load %arg3[%c0_58, %c0_59, %c0_60] : memref<1x1x16xf32, #tpu.memory_space<vmem>>, vector<1x1x16xf32>
    %77 = vector.broadcast %76 : vector<1x1x16xf32> to vector<8x8x16xf32>
    %78 = arith.addf %75, %77 : vector<8x8x16xf32>
    %79 = vector.shape_cast %78 : vector<8x8x16xf32> to vector<64x16xf32>
    %80 = arith.truncf %79 : vector<64x16xf32> to vector<64x16xbf16>
    %c0_61 = arith.constant 0 : index
    %c0_62 = arith.constant 0 : index
    %81 = vector.load %arg4[%c0_61, %c0_62] : memref<16x32xbf16, #tpu.memory_space<vmem>>, vector<16x32xbf16>
    %cst_63 = arith.constant dense<0.000000e+00> : vector<64x32xf32>
    %82 = tpu.matmul %80, %81, %cst_63 {dimension_numbers = #tpu.dot_dimension_numbers<[1], [0], [0], [1], [0, 0, 1, 1], [], []>} : vector<64x16xbf16>, vector<16x32xbf16>, vector<64x32xf32> -> vector<64x32xf32>
    %c0_64 = arith.constant 0 : index
    %c0_65 = arith.constant 0 : index
    %83 = vector.load %arg5[%c0_64, %c0_65] : memref<1x32xf32, #tpu.memory_space<vmem>>, vector<1x32xf32>
    %84 = vector.broadcast %83 : vector<1x32xf32> to vector<64x32xf32>
    %85 = arith.addf %82, %84 : vector<64x32xf32>
    %cst_66 = arith.constant 0.000000e+00 : f32
    %86 = vector.broadcast %cst_66 : f32 to vector<64x32xf32>
    %87 = arith.maximumf %85, %86 : vector<64x32xf32>
    %88 = arith.truncf %87 : vector<64x32xf32> to vector<64x32xbf16>
    %c0_67 = arith.constant 0 : index
    %c0_68 = arith.constant 0 : index
    %89 = vector.load %arg6[%c0_67, %c0_68] : memref<32x16xbf16, #tpu.memory_space<vmem>>, vector<32x16xbf16>
    %cst_69 = arith.constant dense<0.000000e+00> : vector<64x16xf32>
    %90 = tpu.matmul %88, %89, %cst_69 {dimension_numbers = #tpu.dot_dimension_numbers<[1], [0], [0], [1], [0, 0, 1, 1], [], []>} : vector<64x32xbf16>, vector<32x16xbf16>, vector<64x16xf32> -> vector<64x16xf32>
    %91 = arith.addf %79, %90 : vector<64x16xf32>
    %c0_70 = arith.constant 0 : index
    %c0_71 = arith.constant 0 : index
    %92 = vector.load %arg7[%c0_70, %c0_71] : memref<1x16xf32, #tpu.memory_space<vmem>>, vector<1x16xf32>
    %93 = vector.broadcast %92 : vector<1x16xf32> to vector<64x16xf32>
    %94 = arith.addf %91, %93 : vector<64x16xf32>
    %c0_72 = arith.constant 0 : index
    %c0_73 = arith.constant 0 : index
    %c0_74 = arith.constant 0 : index
    %95 = vector.load %arg8[%c0_72, %c0_73, %c0_74] : memref<1x64x16xf32, #tpu.memory_space<vmem>>, vector<1x64x16xf32>
    %96 = vector.shape_cast %95 : vector<1x64x16xf32> to vector<64x16xf32>
    %97 = vector.shape_cast %94 : vector<64x16xf32> to vector<1x64x16xf32>
    tpu.vector_store %arg8[%c0_72, %c0_73, %c0_74], %97 {strides = array<i32>} : memref<1x64x16xf32, #tpu.memory_space<vmem>>, vector<1x64x16xf32>,
    return
  }
  func.func @transform_0(%arg0: i32) -> (i32, i32, i32, i32) {
    %c0_i32 = arith.constant 0 : i32
    %c0_i32_0 = arith.constant 0 : i32
    %c0_i32_1 = arith.constant 0 : i32
    %c0_i32_2 = arith.constant 0 : i32
    return %arg0, %c0_i32, %c0_i32_0, %c0_i32_1 : i32, i32, i32, i32
  }
  func.func @transform_1(%arg0: i32) -> (i32, i32, i32) {
    %c0_i32 = arith.constant 0 : i32
    %c0_i32_0 = arith.constant 0 : i32
    %c0_i32_1 = arith.constant 0 : i32
    %c0_i32_2 = arith.constant 0 : i32
    return %c0_i32, %c0_i32_0, %c0_i32_1 : i32, i32, i32
  }
  func.func @transform_2(%arg0: i32) -> (i32, i32, i32) {
    %c0_i32 = arith.constant 0 : i32
    %c0_i32_0 = arith.constant 0 : i32
    %c0_i32_1 = arith.constant 0 : i32
    %c0_i32_2 = arith.constant 0 : i32
    return %c0_i32, %c0_i32_0, %c0_i32_1 : i32, i32, i32
  }
  func.func @transform_3(%arg0: i32) -> (i32, i32) {
    %c0_i32 = arith.constant 0 : i32
    %c0_i32_0 = arith.constant 0 : i32
    %c0_i32_1 = arith.constant 0 : i32
    return %c0_i32, %c0_i32_0 : i32, i32
  }
  func.func @transform_4(%arg0: i32) -> (i32, i32) {
    %c0_i32 = arith.constant 0 : i32
    %c0_i32_0 = arith.constant 0 : i32
    %c0_i32_1 = arith.constant 0 : i32
    return %c0_i32, %c0_i32_0 : i32, i32
  }
  func.func @transform_5(%arg0: i32) -> (i32, i32) {
    %c0_i32 = arith.constant 0 : i32
    %c0_i32_0 = arith.constant 0 : i32
    %c0_i32_1 = arith.constant 0 : i32
    return %c0_i32, %c0_i32_0 : i32, i32
  }
  func.func @transform_6(%arg0: i32) -> (i32, i32) {
    %c0_i32 = arith.constant 0 : i32
    %c0_i32_0 = arith.constant 0 : i32
    %c0_i32_1 = arith.constant 0 : i32
    return %c0_i32, %c0_i32_0 : i32, i32
  }
  func.func @transform_7(%arg0: i32) -> (i32, i32, i32) {
    %c0_i32 = arith.constant 0 : i32
    %c0_i32_0 = arith.constant 0 : i32
    %c0_i32_1 = arith.constant 0 : i32
    return %arg0, %c0_i32, %c0_i32_0 : i32, i32, i32
  }
}

</mosaic_0001>

<llo_original>
// kernel: _lambda_.4
$region0: #{_lambda_.4}
  #allocation0 [shape = 'u32[]', space=smem, size = 0x4, offset = 0x4, fixed_abs, tag = 'smem constant byte address 0x4 - core index']
  #allocation1 [shape = 'u32[144,128]{1,0:T(1,128)}', space=vmem, size = 0x12000, scoped, tag = 'internal scratch']
  %s0 = inlined_call_operand.vmem [shape: f32[2,10,10,16], index: 0, kind: input, shape index: {}]
  %s1 = inlined_call_operand.vmem [shape: f32[9,1,16], index: 1, kind: input, shape index: {}]
  %s2 = inlined_call_operand.vmem [shape: f32[1,1,16], index: 2, kind: input, shape index: {}]
  %s3 = inlined_call_operand.vmem [shape: bf16[16,32], index: 3, kind: input, shape index: {}]
  %s4 = inlined_call_operand.vmem [shape: f32[1,32], index: 4, kind: input, shape index: {}]
  %s5 = inlined_call_operand.vmem [shape: bf16[32,16], index: 5, kind: input, shape index: {}]
  %s6 = inlined_call_operand.vmem [shape: f32[1,16], index: 6, kind: input, shape index: {}]
  %s7 = inlined_call_operand.vmem [shape: bf16[16,8], index: 7, kind: input, shape index: {}]
  %s8 = inlined_call_operand.vmem [shape: f32[1,8], index: 8, kind: input, shape index: {}]
  %s9 = inlined_call_operand.vmem [shape: f32[2,64,16], index: 9, kind: output, shape index: {0}]
  %s10 = inlined_call_operand.vmem [shape: f32[2,64,8], index: 10, kind: output, shape index: {1}]
  %11 = xla_tuple %s9, %s10
  %s12 = sld [smem:[#allocation0]]
  $region77: #{_lambda_.4} parent=0
    _
  %s14 = ssub.s32 1, %s12
  %s15 = scalar_select 0, %s14, %s12
  loop: start=0, step=1, limit=4
  $region2: #{_lambda_.4} parent=0 // loop_pre_header
    _
  $region3: #{_lambda_.4} parent=0 // loop_header
    %s17 = sphi 0, %s21
    %p18 = scmp.ge.s32.totalorder %s17, 4
    %s27 = sphi 0, %s29
    %s30 = sphi 0, %s27
    %s31 = sphi 0, %s30
    %s47 = sphi 0, %s31
    %s51 = sphi 0, %s51
    %s53 = sphi 0, %s51
    %s54 = sphi 0, %s53
    %s68 = sphi 0, %s54
    %s72 = sphi 0, %s72
    %s74 = sphi 0, %s72
    %s75 = sphi 0, %s74
    %s89 = sphi 0, %s75
    %s93 = sphi 0, %s93
    %s95 = sphi 0, %s93
    %s96 = sphi 0, %s95
    %s110 = sphi 0, %s96
    %s114 = sphi 0, %s114
    %s116 = sphi 0, %s114
    %s117 = sphi 0, %s116
    %s131 = sphi 0, %s117
    %s135 = sphi 0, %s135
    %s137 = sphi 0, %s135
    %s138 = sphi 0, %s137
    %s152 = sphi 0, %s138
    %s156 = sphi 0, %s156
    %s158 = sphi 0, %s156
    %s159 = sphi 0, %s158
    %s173 = sphi 0, %s159
    %s177 = sphi 0, %s177
    %s179 = sphi 0, %s177
    %s180 = sphi 0, %s179
    %s194 = sphi 0, %s180
    %s198 = sphi 0, %s198
    %s200 = sphi 0, %s198
    %s201 = sphi 0, %s200
    %s215 = sphi 0, %s201
    %s221 = sphi 0, %s223
    %s224 = sphi 0, %s221
    %s225 = sphi 0, %s224
    %s241 = sphi 0, %s225
    %s247 = sphi 0, %s249
    %s250 = sphi 0, %s247
    %s251 = sphi 0, %s250
    %s267 = sphi 0, %s251
  $region4: #{_lambda_.4} parent=0 // loop_header_branch
    %20 = sbr.rel (%p18) target = $region8
  $region5: #{_lambda_.4} parent=0 // loop_body
    %s22 = ssub.s32 %s17, 1
    %s23 = ssub.s32 %s17, 2
    %s24 = sadd.s32 %s17, 1
    %s25 = ssub.s32 %s17, %s24
    %p26 = scmp.eq.s32.totalorder %s25, 0
    %s28 = sadd.s32 %s27, 1
    %s29 = scalar_select %p26, %s27, %s28
    %p32 = pneg %p26
    %p33 = scmp.eq.s32.totalorder %s17, 1
    %p34 = por %p32, %p33
    %p35 = scmp.ne.s32.totalorder %s27, %s30
    %p36 = scmp.eq.s32.totalorder %s17, 0
    %p37 = por %p35, %p36
    %p38 = scmp.ne.s32.totalorder %s27, %s30
    %p39 = scmp.eq.s32.totalorder %s22, 1
    %p40 = por %p38, %p39
    %p41 = scmp.ne.s32.totalorder %s30, %s31
    %p42 = scmp.eq.s32.totalorder %s22, 0
    %p43 = por %p41, %p42
    %p44 = scmp.ne.s32.totalorder %s30, %s31
    %p45 = scmp.eq.s32.totalorder %s23, 1
    %p46 = por %p44, %p45
    %p48 = scmp.ne.s32.totalorder %s31, %s47
    %p49 = scmp.eq.s32.totalorder %s23, 0
    %p50 = por %p48, %p49
    %s52 = sadd.s32 %s51, 1
    %p55 = scmp.eq.s32.totalorder %s17, 1
    %p56 = scmp.ne.s32.totalorder %s51, %s53
    %p57 = scmp.eq.s32.totalorder %s17, 0
    %p58 = por %p56, %p57
    %p59 = scmp.ne.s32.totalorder %s51, %s53
    %p60 = scmp.eq.s32.totalorder %s22, 1
    %p61 = por %p59, %p60
    %p62 = scmp.ne.s32.totalorder %s53, %s54
    %p63 = scmp.eq.s32.totalorder %s22, 0
    %p64 = por %p62, %p63
    %p65 = scmp.ne.s32.totalorder %s53, %s54
    %p66 = scmp.eq.s32.totalorder %s23, 1
    %p67 = por %p65, %p66
    %p69 = scmp.ne.s32.totalorder %s54, %s68
    %p70 = scmp.eq.s32.totalorder %s23, 0
    %p71 = por %p69, %p70
    %s73 = sadd.s32 %s72, 1
    %p76 = scmp.eq.s32.totalorder %s17, 1
    %p77 = scmp.ne.s32.totalorder %s72, %s74
    %p78 = scmp.eq.s32.totalorder %s17, 0
    %p79 = por %p77, %p78
    %p80 = scmp.ne.s32.totalorder %s72, %s74
    %p81 = scmp.eq.s32.totalorder %s22, 1
    %p82 = por %p80, %p81
    %p83 = scmp.ne.s32.totalorder %s74, %s75
    %p84 = scmp.eq.s32.totalorder %s22, 0
    %p85 = por %p83, %p84
    %p86 = scmp.ne.s32.totalorder %s74, %s75
    %p87 = scmp.eq.s32.totalorder %s23, 1
    %p88 = por %p86, %p87
    %p90 = scmp.ne.s32.totalorder %s75, %s89
    %p91 = scmp.eq.s32.totalorder %s23, 0
    %p92 = por %p90, %p91
    %s94 = sadd.s32 %s93, 1
    %p97 = scmp.eq.s32.totalorder %s17, 1
    %p98 = scmp.ne.s32.totalorder %s93, %s95
    %p99 = scmp.eq.s32.totalorder %s17, 0
    %p100 = por %p98, %p99
    %p101 = scmp.ne.s32.totalorder %s93, %s95
    %p102 = scmp.eq.s32.totalorder %s22, 1
    %p103 = por %p101, %p102
    %p104 = scmp.ne.s32.totalorder %s95, %s96
    %p105 = scmp.eq.s32.totalorder %s22, 0
    %p106 = por %p104, %p105
    %p107 = scmp.ne.s32.totalorder %s95, %s96
    %p108 = scmp.eq.s32.totalorder %s23, 1
    %p109 = por %p107, %p108
    %p111 = scmp.ne.s32.totalorder %s96, %s110
    %p112 = scmp.eq.s32.totalorder %s23, 0
    %p113 = por %p111, %p112
    %s115 = sadd.s32 %s114, 1
    %p118 = scmp.eq.s32.totalorder %s17, 1
    %p119 = scmp.ne.s32.totalorder %s114, %s116
    %p120 = scmp.eq.s32.totalorder %s17, 0
    %p121 = por %p119, %p120
    %p122 = scmp.ne.s32.totalorder %s114, %s116
    %p123 = scmp.eq.s32.totalorder %s22, 1
    %p124 = por %p122, %p123
    %p125 = scmp.ne.s32.totalorder %s116, %s117
    %p126 = scmp.eq.s32.totalorder %s22, 0
    %p127 = por %p125, %p126
    %p128 = scmp.ne.s32.totalorder %s116, %s117
    %p129 = scmp.eq.s32.totalorder %s23, 1
    %p130 = por %p128, %p129
    %p132 = scmp.ne.s32.totalorder %s117, %s131
    %p133 = scmp.eq.s32.totalorder %s23, 0
    %p134 = por %p132, %p133
    %s136 = sadd.s32 %s135, 1
    %p139 = scmp.eq.s32.totalorder %s17, 1
    %p140 = scmp.ne.s32.totalorder %s135, %s137
    %p141 = scmp.eq.s32.totalorder %s17, 0
    %p142 = por %p140, %p141
    %p143 = scmp.ne.s32.totalorder %s135, %s137
    %p144 = scmp.eq.s32.totalorder %s22, 1
    %p145 = por %p143, %p144
    %p146 = scmp.ne.s32.totalorder %s137, %s138
    %p147 = scmp.eq.s32.totalorder %s22, 0
    %p148 = por %p146, %p147
    %p149 = scmp.ne.s32.totalorder %s137, %s138
    %p150 = scmp.eq.s32.totalorder %s23, 1
    %p151 = por %p149, %p150
    %p153 = scmp.ne.s32.totalorder %s138, %s152
    %p154 = scmp.eq.s32.totalorder %s23, 0
    %p155 = por %p153, %p154
    %s157 = sadd.s32 %s156, 1
    %p160 = scmp.eq.s32.totalorder %s17, 1
    %p161 = scmp.ne.s32.totalorder %s156, %s158
    %p162 = scmp.eq.s32.totalorder %s17, 0
    %p163 = por %p161, %p162
    %p164 = scmp.ne.s32.totalorder %s156, %s158
    %p165 = scmp.eq.s32.totalorder %s22, 1
    %p166 = por %p164, %p165
    %p167 = scmp.ne.s32.totalorder %s158, %s159
    %p168 = scmp.eq.s32.totalorder %s22, 0
    %p169 = por %p167, %p168
    %p170 = scmp.ne.s32.totalorder %s158, %s159
    %p171 = scmp.eq.s32.totalorder %s23, 1
    %p172 = por %p170, %p171
    %p174 = scmp.ne.s32.totalorder %s159, %s173
    %p175 = scmp.eq.s32.totalorder %s23, 0
    %p176 = por %p174, %p175
    %s178 = sadd.s32 %s177, 1
    %p181 = scmp.eq.s32.totalorder %s17, 1
    %p182 = scmp.ne.s32.totalorder %s177, %s179
    %p183 = scmp.eq.s32.totalorder %s17, 0
    %p184 = por %p182, %p183
    %p185 = scmp.ne.s32.totalorder %s177, %s179
    %p186 = scmp.eq.s32.totalorder %s22, 1
    %p187 = por %p185, %p186
    %p188 = scmp.ne.s32.totalorder %s179, %s180
    %p189 = scmp.eq.s32.totalorder %s22, 0
    %p190 = por %p188, %p189
    %p191 = scmp.ne.s32.totalorder %s179, %s180
    %p192 = scmp.eq.s32.totalorder %s23, 1
    %p193 = por %p191, %p192
    %p195 = scmp.ne.s32.totalorder %s180, %s194
    %p196 = scmp.eq.s32.totalorder %s23, 0
    %p197 = por %p195, %p196
    %s199 = sadd.s32 %s198, 1
    %p202 = scmp.eq.s32.totalorder %s17, 1
    %p203 = scmp.ne.s32.totalorder %s198, %s200
    %p204 = scmp.eq.s32.totalorder %s17, 0
    %p205 = por %p203, %p204
    %p206 = scmp.ne.s32.totalorder %s198, %s200
    %p207 = scmp.eq.s32.totalorder %s22, 1
    %p208 = por %p206, %p207
    %p209 = scmp.ne.s32.totalorder %s200, %s201
    %p210 = scmp.eq.s32.totalorder %s22, 0
    %p211 = por %p209, %p210
    %p212 = scmp.ne.s32.totalorder %s200, %s201
    %p213 = scmp.eq.s32.totalorder %s23, 1
    %p214 = por %p212, %p213
    %p216 = scmp.ne.s32.totalorder %s201, %s215
    %p217 = scmp.eq.s32.totalorder %s23, 0
    %p218 = por %p216, %p217
    %s219 = ssub.s32 %s17, %s24
    %p220 = scmp.eq.s32.totalorder %s219, 0
    %s222 = sadd.s32 %s221, 1
    %s223 = scalar_select %p220, %s221, %s222
    %p226 = pneg %p220
    %p227 = scmp.eq.s32.totalorder %s17, 1
    %p228 = por %p226, %p227
    %p229 = scmp.ne.s32.totalorder %s221, %s224
    %p230 = scmp.eq.s32.totalorder %s17, 0
    %p231 = por %p229, %p230
    %p232 = scmp.ne.s32.totalorder %s221, %s224
    %p233 = scmp.eq.s32.totalorder %s22, 1
    %p234 = por %p232, %p233
    %p235 = scmp.ne.s32.totalorder %s224, %s225
    %p236 = scmp.eq.s32.totalorder %s22, 0
    %p237 = por %p235, %p236
    %p238 = scmp.ne.s32.totalorder %s224, %s225
    %p239 = scmp.eq.s32.totalorder %s23, 1
    %p240 = por %p238, %p239
    %p242 = scmp.ne.s32.totalorder %s225, %s241
    %p243 = scmp.eq.s32.totalorder %s23, 0
    %p244 = por %p242, %p243
    %s245 = ssub.s32 %s17, %s24
    %p246 = scmp.eq.s32.totalorder %s245, 0
    %s248 = sadd.s32 %s247, 1
    %s249 = scalar_select %p246, %s247, %s248
    %p252 = pneg %p246
    %p253 = scmp.eq.s32.totalorder %s17, 1
    %p254 = por %p252, %p253
    %p255 = scmp.ne.s32.totalorder %s247, %s250
    %p256 = scmp.eq.s32.totalorder %s17, 0
    %p257 = por %p255, %p256
    %p258 = scmp.ne.s32.totalorder %s247, %s250
    %p259 = scmp.eq.s32.totalorder %s22, 1
    %p260 = por %p258, %p259
    %p261 = scmp.ne.s32.totalorder %s250, %s251
    %p262 = scmp.eq.s32.totalorder %s22, 0
    %p263 = por %p261, %p262
    %p264 = scmp.ne.s32.totalorder %s250, %s251
    %p265 = scmp.eq.s32.totalorder %s23, 1
    %p266 = por %p264, %p265
    %p268 = scmp.ne.s32.totalorder %s251, %s267
    %p269 = scmp.eq.s32.totalorder %s23, 0
    %p270 = por %p268, %p269
    %p271 = scmp.le.s32.totalorder 1, %s17
    %p272 = scmp.lt.s32.totalorder %s17, 3
    %p273 = pnand %p271, %p272
    %p274 = pneg %p273
    // Predicated region
    $region9: #{_lambda_.4} parent=5 // pred_check
      _
    $region10: #{_lambda_.4} parent=5 // pred_check_branch
      %276 = sbr.rel (%p273) target = $region12
    $region11: #{_lambda_.4} parent=5 // pred_region
      %s277 = ssub.s32 %s17, 1
      // Predicated region
      $region13: #{_lambda_.4} parent=11 // pred_check
        %p278 = pneg %p64
      $region14: #{_lambda_.4} parent=11 // pred_check_branch
        %280 = sbr.rel (%p278) target = $region16
      $region15: #{_lambda_.4} parent=11 // pred_region
        _
      $region16: #{_lambda_.4} parent=11 // pred_fallthru
        _
      // Predicated region
      $region17: #{_lambda_.4} parent=11 // pred_check
        %p281 = pneg %p85
      $region18: #{_lambda_.4} parent=11 // pred_check_branch
        %283 = sbr.rel (%p281) target = $region20
      $region19: #{_lambda_.4} parent=11 // pred_region
        _
      $region20: #{_lambda_.4} parent=11 // pred_fallthru
        _
      // Predicated region
      $region21: #{_lambda_.4} parent=11 // pred_check
        %p284 = pneg %p106
      $region22: #{_lambda_.4} parent=11 // pred_check_branch
        %286 = sbr.rel (%p284) target = $region24
      $region23: #{_lambda_.4} parent=11 // pred_region
        _
      $region24: #{_lambda_.4} parent=11 // pred_fallthru
        _
      // Predicated region
      $region25: #{_lambda_.4} parent=11 // pred_check
        %p287 = pneg %p127
      $region26: #{_lambda_.4} parent=11 // pred_check_branch
        %289 = sbr.rel (%p287) target = $region28
      $region27: #{_lambda_.4} parent=11 // pred_region
        _
      $region28: #{_lambda_.4} parent=11 // pred_fallthru
        _
      // Predicated region
      $region29: #{_lambda_.4} parent=11 // pred_check
        %p290 = pneg %p148
      $region30: #{_lambda_.4} parent=11 // pred_check_branch
        %292 = sbr.rel (%p290) target = $region32
      $region31: #{_lambda_.4} parent=11 // pred_region
        _
      $region32: #{_lambda_.4} parent=11 // pred_fallthru
        _
      // Predicated region
      $region33: #{_lambda_.4} parent=11 // pred_check
        %p293 = pneg %p169
      $region34: #{_lambda_.4} parent=11 // pred_check_branch
        %295 = sbr.rel (%p293) target = $region36
      $region35: #{_lambda_.4} parent=11 // pred_region
        _
      $region36: #{_lambda_.4} parent=11 // pred_fallthru
        _
      // Predicated region
      $region37: #{_lambda_.4} parent=11 // pred_check
        %p296 = pneg %p190
      $region38: #{_lambda_.4} parent=11 // pred_check_branch
        %298 = sbr.rel (%p296) target = $region40
      $region39: #{_lambda_.4} parent=11 // pred_region
        _
      $region40: #{_lambda_.4} parent=11 // pred_fallthru
        _
      // Predicated region
      $region41: #{_lambda_.4} parent=11 // pred_check
        %p299 = pneg %p211
      $region42: #{_lambda_.4} parent=11 // pred_check_branch
        %301 = sbr.rel (%p299) target = $region44
      $region43: #{_lambda_.4} parent=11 // pred_region
        _
      $region44: #{_lambda_.4} parent=11 // pred_fallthru
        _
    $region12: #{_lambda_.4} parent=5 // pred_fallthru
      _
    %p302 = scmp.lt.s32.totalorder %s17, 2
    // Predicated region
    $region45: #{_lambda_.4} parent=5 // pred_check
      %p303 = pneg %p302
    $region46: #{_lambda_.4} parent=5 // pred_check_branch
      %305 = sbr.rel (%p303) target = $region48
    $region47: #{_lambda_.4} parent=5 // pred_region
      // Predicated region
      $region49: #{_lambda_.4} parent=47 // pred_check
        %p306 = pneg %p37
      $region50: #{_lambda_.4} parent=47 // pred_check_branch
        %308 = sbr.rel (%p306) target = $region52
      $region51: #{_lambda_.4} parent=47 // pred_region
        %p309 = scmp.lt.s32.totalorder %s17, 1
        %s310 = scalar_select %p309, %s17, 1
        %s311 = smul.addr %s310, 20
        %s312 = smul.addr %s311, 8
        %s313 = scalar_lea.vmem %s0, %s312
      $region52: #{_lambda_.4} parent=47 // pred_fallthru
        _
    $region48: #{_lambda_.4} parent=5 // pred_fallthru
      _
    %p314 = scmp.le.s32.totalorder 1, %s17
    %p315 = scmp.lt.s32.totalorder %s17, 3
    %p316 = pnand %p314, %p315
    %p317 = pneg %p316
    // Predicated region
    $region53: #{_lambda_.4} parent=5 // pred_check
      _
    $region54: #{_lambda_.4} parent=5 // pred_check_branch
      %319 = sbr.rel (%p316) target = $region56
    $region55: #{_lambda_.4} parent=5 // pred_region
      %s320 = ssub.s32 %s17, 1
      %p321 = scmp.lt.s32.totalorder %s22, 1
      %s322 = scalar_select %p321, %s22, 1
      %s323 = smul.addr %s322, 20
      %s324 = smul.addr %s323, 8
      %s325 = scalar_lea.vmem %s0, %s324
      %p326 = pneg %p43
      %p327 = pneg %p40
      %p328 = pneg %p64
      %p329 = pneg %p61
      %p330 = pneg %p85
      %p331 = pneg %p82
      %p332 = pneg %p106
      %p333 = pneg %p103
      %p334 = pneg %p127
      %p335 = pneg %p124
      %p336 = pneg %p148
      %p337 = pneg %p145
      %p338 = pneg %p169
      %p339 = pneg %p166
      %p340 = pneg %p190
      %p341 = pneg %p187
      %p342 = pneg %p211
      %p343 = pneg %p208
      %p344 = pneg %p237
      %p345 = pneg %p234
      %p346 = scmp.lt.s32.totalorder %s22, 1
      %s347 = scalar_select %p346, %s22, 1
      %s348 = smul.addr %s347, 8
      %s349 = smul.addr %s348, 8
      %s350 = scalar_lea.vmem %s9, %s349
      %p351 = pneg %p263
      %p352 = pneg %p260
      %p353 = scmp.lt.s32.totalorder %s22, 1
      %s354 = scalar_select %p353, %s22, 1
      %s355 = smul.addr %s354, 8
      %s356 = smul.addr %s355, 8
      %s357 = scalar_lea.vmem %s10, %s356
      %p358 = scmp.lt.s32.totalorder %s22, 1
      %s359 = scalar_select %p358, %s22, 1
      %s360 = smul.addr %s359, 20
      %s361 = smul.addr %s360, 8
      %s362 = scalar_lea.vmem %s0, %s361
      %p363 = scmp.lt.s32.totalorder %s22, 1
      %s364 = scalar_select %p363, %s22, 1
      %s365 = smul.addr %s364, 8
      %s366 = smul.addr %s365, 8
      %s367 = scalar_lea.vmem %s9, %s366
      %p368 = scmp.lt.s32.totalorder %s22, 1
      %s369 = scalar_select %p368, %s22, 1
      %s370 = smul.addr %s369, 8
      %s371 = smul.addr %s370, 8
      %s372 = scalar_lea.vmem %s10, %s371
      %v374 = vld [vmem:[%s362] sm:$0xff]
      %v375 = vld [vmem:[%s362 + $0x10] sm:$0xff]
      %v376 = vld [vmem:[%s362 + $0x20] sm:$0xff]
      %v377 = vld [vmem:[%s362 + $0x30] sm:$0xff]
      %v378 = vld [vmem:[%s362 + $0x40] sm:$0xff]
      %v379 = vld [vmem:[%s362 + $0x50] sm:$0xff]
      %v380 = vld [vmem:[%s362 + $0x60] sm:$0xff]
      %v381 = vld [vmem:[%s362 + $0x70] sm:$0xff]
      %v382 = vld [vmem:[%s1] sm:$0x1]
      %v384 = vlaneseq
      %v385 = vshrl.u32 %v384, 7
      %v386 = vsub.s32 0, %v385
      %v387 = vrot.slane %v382, %v386
      %v389 = vmul.f32 %v374, %v387
      %v390 = vmul.f32 %v375, %v387
      %v391 = vmul.f32 %v376, %v387
      %v392 = vmul.f32 %v377, %v387
      %v393 = vmul.f32 %v378, %v387
      %v394 = vmul.f32 %v379, %v387
      %v395 = vmul.f32 %v380, %v387
      %v396 = vmul.f32 %v381, %v387
      %v397 = vadd.f32 %v389, 0.0
      %v398 = vadd.f32 %v390, 0.0
      %v399 = vadd.f32 %v391, 0.0
      %v400 = vadd.f32 %v392, 0.0
      %v401 = vadd.f32 %v393, 0.0
      %v402 = vadd.f32 %v394, 0.0
      %v403 = vadd.f32 %v395, 0.0
      %v404 = vadd.f32 %v396, 0.0
      %v405 = vld [vmem:[%s362 + $0x1] sm:$0xff]
      %v406 = vld [vmem:[%s362 + $0x11] sm:$0xff]
      %v407 = vld [vmem:[%s362 + $0x21] sm:$0xff]
      %v408 = vld [vmem:[%s362 + $0x31] sm:$0xff]
      %v409 = vld [vmem:[%s362 + $0x41] sm:$0xff]
      %v410 = vld [vmem:[%s362 + $0x51] sm:$0xff]
      %v411 = vld [vmem:[%s362 + $0x61] sm:$0xff]
      %v412 = vld [vmem:[%s362 + $0x71] sm:$0xff]
      %s413 = scalar_lea.vmem %s1, 1
      %v414 = vld [vmem:[%s413] sm:$0x1]
      %v416 = vlaneseq
      %v417 = vshrl.u32 %v416, 7
      %v418 = vsub.s32 0, %v417
      %v419 = vrot.slane %v414, %v418
      %v421 = vmul.f32 %v405, %v419
      %v422 = vmul.f32 %v406, %v419
      %v423 = vmul.f32 %v407, %v419
      %v424 = vmul.f32 %v408, %v419
      %v425 = vmul.f32 %v409, %v419
      %v426 = vmul.f32 %v410, %v419
      %v427 = vmul.f32 %v411, %v419
      %v428 = vmul.f32 %v412, %v419
      %v429 = vadd.f32 %v397, %v421
      %v430 = vadd.f32 %v398, %v422
      %v431 = vadd.f32 %v399, %v423
      %v432 = vadd.f32 %v400, %v424
      %v433 = vadd.f32 %v401, %v425
      %v434 = vadd.f32 %v402, %v426
      %v435 = vadd.f32 %v403, %v427
      %v436 = vadd.f32 %v404, %v428
      %v437 = vld [vmem:[%s362 + $0x2] sm:$0xff]
      %v438 = vld [vmem:[%s362 + $0x12] sm:$0xff]
      %v439 = vld [vmem:[%s362 + $0x22] sm:$0xff]
      %v440 = vld [vmem:[%s362 + $0x32] sm:$0xff]
      %v441 = vld [vmem:[%s362 + $0x42] sm:$0xff]
      %v442 = vld [vmem:[%s362 + $0x52] sm:$0xff]
      %v443 = vld [vmem:[%s362 + $0x62] sm:$0xff]
      %v444 = vld [vmem:[%s362 + $0x72] sm:$0xff]
      %s445 = scalar_lea.vmem %s1, 2
      %v446 = vld [vmem:[%s445] sm:$0x1]
      %v448 = vlaneseq
      %v449 = vshrl.u32 %v448, 7
      %v450 = vsub.s32 0, %v449
      %v451 = vrot.slane %v446, %v450
      %v453 = vmul.f32 %v437, %v451
      %v454 = vmul.f32 %v438, %v451
      %v455 = vmul.f32 %v439, %v451
      %v456 = vmul.f32 %v440, %v451
      %v457 = vmul.f32 %v441, %v451
      %v458 = vmul.f32 %v442, %v451
      %v459 = vmul.f32 %v443, %v451
      %v460 = vmul.f32 %v444, %v451
      %v461 = vadd.f32 %v429, %v453
      %v462 = vadd.f32 %v430, %v454
      %v463 = vadd.f32 %v431, %v455
      %v464 = vadd.f32 %v432, %v456
      %v465 = vadd.f32 %v433, %v457
      %v466 = vadd.f32 %v434, %v458
      %v467 = vadd.f32 %v435, %v459
      %v468 = vadd.f32 %v436, %v460
      %s469 = scalar_lea.vmem %s362, 16
      %v470 = vld [vmem:[%s469] sm:$0xff]
      %v471 = vld [vmem:[%s469 + $0x10] sm:$0xff]
      %v472 = vld [vmem:[%s469 + $0x20] sm:$0xff]
      %v473 = vld [vmem:[%s469 + $0x30] sm:$0xff]
      %v474 = vld [vmem:[%s469 + $0x40] sm:$0xff]
      %v475 = vld [vmem:[%s469 + $0x50] sm:$0xff]
      %v476 = vld [vmem:[%s469 + $0x60] sm:$0xff]
      %v477 = vld [vmem:[%s469 + $0x70] sm:$0xff]
      %s478 = scalar_lea.vmem %s1, 3
      %v479 = vld [vmem:[%s478] sm:$0x1]
      %v481 = vlaneseq
      %v482 = vshrl.u32 %v481, 7
      %v483 = vsub.s32 0, %v482
      %v484 = vrot.slane %v479, %v483
      %v486 = vmul.f32 %v470, %v484
      %v487 = vmul.f32 %v471, %v484
      %v488 = vmul.f32 %v472, %v484
      %v489 = vmul.f32 %v473, %v484
      %v490 = vmul.f32 %v474, %v484
      %v491 = vmul.f32 %v475, %v484
      %v492 = vmul.f32 %v476, %v484
      %v493 = vmul.f32 %v477, %v484
      %v494 = vadd.f32 %v461, %v486
      %v495 = vadd.f32 %v462, %v487
      %v496 = vadd.f32 %v463, %v488
      %v497 = vadd.f32 %v464, %v489
      %v498 = vadd.f32 %v465, %v490
      %v499 = vadd.f32 %v466, %v491
      %v500 = vadd.f32 %v467, %v492
      %v501 = vadd.f32 %v468, %v493
      %v502 = vld [vmem:[%s469 + $0x1] sm:$0xff]
      %v503 = vld [vmem:[%s469 + $0x11] sm:$0xff]
      %v504 = vld [vmem:[%s469 + $0x21] sm:$0xff]
      %v505 = vld [vmem:[%s469 + $0x31] sm:$0xff]
      %v506 = vld [vmem:[%s469 + $0x41] sm:$0xff]
      %v507 = vld [vmem:[%s469 + $0x51] sm:$0xff]
      %v508 = vld [vmem:[%s469 + $0x61] sm:$0xff]
      %v509 = vld [vmem:[%s469 + $0x71] sm:$0xff]
      %s510 = scalar_lea.vmem %s1, 4
      %v511 = vld [vmem:[%s510] sm:$0x1]
      %v513 = vlaneseq
      %v514 = vshrl.u32 %v513, 7
      %v515 = vsub.s32 0, %v514
      %v516 = vrot.slane %v511, %v515
      %v518 = vmul.f32 %v502, %v516
      %v519 = vmul.f32 %v503, %v516
      %v520 = vmul.f32 %v504, %v516
      %v521 = vmul.f32 %v505, %v516
      %v522 = vmul.f32 %v506, %v516
      %v523 = vmul.f32 %v507, %v516
      %v524 = vmul.f32 %v508, %v516
      %v525 = vmul.f32 %v509, %v516
      %v526 = vadd.f32 %v494, %v518
      %v527 = vadd.f32 %v495, %v519
      %v528 = vadd.f32 %v496, %v520
      %v529 = vadd.f32 %v497, %v521
      %v530 = vadd.f32 %v498, %v522
      %v531 = vadd.f32 %v499, %v523
      %v532 = vadd.f32 %v500, %v524
      %v533 = vadd.f32 %v501, %v525
      %v534 = vld [vmem:[%s469 + $0x2] sm:$0xff]
      %v535 = vld [vmem:[%s469 + $0x12] sm:$0xff]
      %v536 = vld [vmem:[%s469 + $0x22] sm:$0xff]
      %v537 = vld [vmem:[%s469 + $0x32] sm:$0xff]
      %v538 = vld [vmem:[%s469 + $0x42] sm:$0xff]
      %v539 = vld [vmem:[%s469 + $0x52] sm:$0xff]
      %v540 = vld [vmem:[%s469 + $0x62] sm:$0xff]
      %v541 = vld [vmem:[%s469 + $0x72] sm:$0xff]
      %s542 = scalar_lea.vmem %s1, 5
      %v543 = vld [vmem:[%s542] sm:$0x1]
      %v545 = vlaneseq
      %v546 = vshrl.u32 %v545, 7
      %v547 = vsub.s32 0, %v546
      %v548 = vrot.slane %v543, %v547
      %v550 = vmul.f32 %v534, %v548
      %v551 = vmul.f32 %v535, %v548
      %v552 = vmul.f32 %v536, %v548
      %v553 = vmul.f32 %v537, %v548
      %v554 = vmul.f32 %v538, %v548
      %v555 = vmul.f32 %v539, %v548
      %v556 = vmul.f32 %v540, %v548
      %v557 = vmul.f32 %v541, %v548
      %v558 = vadd.f32 %v526, %v550
      %v559 = vadd.f32 %v527, %v551
      %v560 = vadd.f32 %v528, %v552
      %v561 = vadd.f32 %v529, %v553
      %v562 = vadd.f32 %v530, %v554
      %v563 = vadd.f32 %v531, %v555
      %v564 = vadd.f32 %v532, %v556
      %v565 = vadd.f32 %v533, %v557
      %s566 = scalar_lea.vmem %s362, 32
      %v567 = vld [vmem:[%s566] sm:$0xff]
      %v568 = vld [vmem:[%s566 + $0x10] sm:$0xff]
      %v569 = vld [vmem:[%s566 + $0x20] sm:$0xff]
      %v570 = vld [vmem:[%s566 + $0x30] sm:$0xff]
      %v571 = vld [vmem:[%s566 + $0x40] sm:$0xff]
      %v572 = vld [vmem:[%s566 + $0x50] sm:$0xff]
      %v573 = vld [vmem:[%s566 + $0x60] sm:$0xff]
      %v574 = vld [vmem:[%s566 + $0x70] sm:$0xff]
      %s575 = scalar_lea.vmem %s1, 6
      %v576 = vld [vmem:[%s575] sm:$0x1]
      %v578 = vlaneseq
      %v579 = vshrl.u32 %v578, 7
      %v580 = vsub.s32 0, %v579
      %v581 = vrot.slane %v576, %v580
      %v583 = vmul.f32 %v567, %v581
      %v584 = vmul.f32 %v568, %v581
      %v585 = vmul.f32 %v569, %v581
      %v586 = vmul.f32 %v570, %v581
      %v587 = vmul.f32 %v571, %v581
      %v588 = vmul.f32 %v572, %v581
      %v589 = vmul.f32 %v573, %v581
      %v590 = vmul.f32 %v574, %v581
      %v591 = vadd.f32 %v558, %v583
      %v592 = vadd.f32 %v559, %v584
      %v593 = vadd.f32 %v560, %v585
      %v594 = vadd.f32 %v561, %v586
      %v595 = vadd.f32 %v562, %v587
      %v596 = vadd.f32 %v563, %v588
      %v597 = vadd.f32 %v564, %v589
      %v598 = vadd.f32 %v565, %v590
      %v599 = vld [vmem:[%s566 + $0x1] sm:$0xff]
      %v600 = vld [vmem:[%s566 + $0x11] sm:$0xff]
      %v601 = vld [vmem:[%s566 + $0x21] sm:$0xff]
      %v602 = vld [vmem:[%s566 + $0x31] sm:$0xff]
      %v603 = vld [vmem:[%s566 + $0x41] sm:$0xff]
      %v604 = vld [vmem:[%s566 + $0x51] sm:$0xff]
      %v605 = vld [vmem:[%s566 + $0x61] sm:$0xff]
      %v606 = vld [vmem:[%s566 + $0x71] sm:$0xff]
      %s607 = scalar_lea.vmem %s1, 7
      %v608 = vld [vmem:[%s607] sm:$0x1]
      %v610 = vlaneseq
      %v611 = vshrl.u32 %v610, 7
      %v612 = vsub.s32 0, %v611
      %v613 = vrot.slane %v608, %v612
      %v615 = vmul.f32 %v599, %v613
      %v616 = vmul.f32 %v600, %v613
      %v617 = vmul.f32 %v601, %v613
      %v618 = vmul.f32 %v602, %v613
      %v619 = vmul.f32 %v603, %v613
      %v620 = vmul.f32 %v604, %v613
      %v621 = vmul.f32 %v605, %v613
      %v622 = vmul.f32 %v606, %v613
      %v623 = vadd.f32 %v591, %v615
      %v624 = vadd.f32 %v592, %v616
      %v625 = vadd.f32 %v593, %v617
      %v626 = vadd.f32 %v594, %v618
      %v627 = vadd.f32 %v595, %v619
      %v628 = vadd.f32 %v596, %v620
      %v629 = vadd.f32 %v597, %v621
      %v630 = vadd.f32 %v598, %v622
      %v631 = vld [vmem:[%s566 + $0x2] sm:$0xff]
      %v632 = vld [vmem:[%s566 + $0x12] sm:$0xff]
      %v633 = vld [vmem:[%s566 + $0x22] sm:$0xff]
      %v634 = vld [vmem:[%s566 + $0x32] sm:$0xff]
      %v635 = vld [vmem:[%s566 + $0x42] sm:$0xff]
      %v636 = vld [vmem:[%s566 + $0x52] sm:$0xff]
      %v637 = vld [vmem:[%s566 + $0x62] sm:$0xff]
      %v638 = vld [vmem:[%s566 + $0x72] sm:$0xff]
      %s639 = scalar_lea.vmem %s1, 8
      %v640 = vld [vmem:[%s639] sm:$0x1]
      %v642 = vlaneseq
      %v643 = vshrl.u32 %v642, 7
      %v644 = vsub.s32 0, %v643
      %v645 = vrot.slane %v640, %v644
      %v647 = vmul.f32 %v631, %v645
      %v648 = vmul.f32 %v632, %v645
      %v649 = vmul.f32 %v633, %v645
      %v650 = vmul.f32 %v634, %v645
      %v651 = vmul.f32 %v635, %v645
      %v652 = vmul.f32 %v636, %v645
      %v653 = vmul.f32 %v637, %v645
      %v654 = vmul.f32 %v638, %v645
      %v655 = vadd.f32 %v623, %v647
      %v656 = vadd.f32 %v624, %v648
      %v657 = vadd.f32 %v625, %v649
      %v658 = vadd.f32 %v626, %v650
      %v659 = vadd.f32 %v627, %v651
      %v660 = vadd.f32 %v628, %v652
      %v661 = vadd.f32 %v629, %v653
      %v662 = vadd.f32 %v630, %v654
      %v663 = vadd.f32 %v502, %v655
      %v664 = vadd.f32 %v503, %v656
      %v665 = vadd.f32 %v504, %v657
      %v666 = vadd.f32 %v505, %v658
      %v667 = vadd.f32 %v506, %v659
      %v668 = vadd.f32 %v507, %v660
      %v669 = vadd.f32 %v508, %v661
      %v670 = vadd.f32 %v509, %v662
      %v671 = vld [vmem:[%s2] sm:$0x1]
      %v673 = vlaneseq
      %v674 = vshrl.u32 %v673, 7
      %v675 = vsub.s32 0, %v674
      %v676 = vrot.slane %v671, %v675
      %v678 = vadd.f32 %v663, %v676
      %v679 = vadd.f32 %v664, %v676
      %v680 = vadd.f32 %v665, %v676
      %v681 = vadd.f32 %v666, %v676
      %v682 = vadd.f32 %v667, %v676
      %v683 = vadd.f32 %v668, %v676
      %v684 = vadd.f32 %v669, %v676
      %v685 = vadd.f32 %v670, %v676
      %v686 = vpack.c.bf16 %v679, %v678
      %v687 = vpack.c.bf16 %v681, %v680
      %v688 = vpack.c.bf16 %v683, %v682
      %v689 = vpack.c.bf16 %v685, %v684
      %v690 = vld [vmem:[%s3] sm:$0xf]
      %v691 = vld [vmem:[%s3 + $0x4] sm:$0xf]
      %v692 = vld [vmem:[%s4] sm:$0x1]
      %v694 = vlaneseq
      %v695 = vshrl.u32 %v694, 7
      %v696 = vsub.s32 0, %v695
      %v697 = vrot.slane %v692, %v696
      %v701 = vunpack.c.l.b16 %v690
      %v702 = vunpack.c.l.b16 %v691
      %v703 = vpack.c.b16 %v702, %v701
      %vm705 = vcmask 130048
      %v707 = vsel %vm705, %v686, 0
      %v710 = vsel %vm705, %v687, 0
      %v713 = vsel %vm705, %v688, 0
      %v716 = vsel %vm705, %v689, 0
      %718 = vmatprep.subr.bf16.mxu0 0
      %719 = vmatpush1.bf16.msra.mxu0 %v703
      %720 = vmatprep.subr.bf16.mxu0 0
      %721 = vmatpush1.bf16.msra.mxu0 0
      %722 = vmatprep.subr.bf16.mxu0 0
      %723 = vmatpush1.bf16.msra.mxu0 0
      %724 = vmatprep.subr.bf16.mxu0 0
      %725 = vmatpush1.bf16.msra.mxu0 0
      %726 = vmatprep.subr.bf16.mxu0 0
      %727 = vmatpush1.bf16.msra.mxu0 0
      %728 = vmatprep.subr.bf16.mxu0 0
      %729 = vmatpush1.bf16.msra.mxu0 0
      %730 = vmatprep.subr.bf16.mxu0 0
      %731 = vmatpush1.bf16.msra.mxu0 0
      %732 = vmatprep.subr.bf16.mxu0 0
      %733 = vmatpush1.bf16.msra.mxu0 0
      %734 = vmatprep.subr.bf16.mxu0 0
      %735 = vmatpush1.bf16.msra.mxu0 0
      %736 = vmatprep.subr.bf16.mxu0 0
      %737 = vmatpush1.bf16.msra.mxu0 0
      %738 = vmatprep.subr.bf16.mxu0 0
      %739 = vmatpush1.bf16.msra.mxu0 0
      %740 = vmatprep.subr.bf16.mxu0 0
      %741 = vmatpush1.bf16.msra.mxu0 0
      %742 = vmatprep.subr.bf16.mxu0 0
      %743 = vmatpush1.bf16.msra.mxu0 0
      %744 = vmatprep.subr.bf16.mxu0 0
      %745 = vmatpush1.bf16.msra.mxu0 0
      %746 = vmatprep.subr.bf16.mxu0 0
      %747 = vmatpush1.bf16.msra.mxu0 0
      %748 = vmatprep.subr.bf16.mxu0 0
      %749 = vmatpush1.bf16.msra.mxu0 0
      %750 = vmatprep.mubr.bf16.mxu0 0
      %751 = vmatmul.mubr.bf16.gmra.mrb[0].mxu0 %v707
      %v752 = vpop.f32.mrb[0].mxu0
      %v753 = vadd.f32 %v697, %v752
      %v754 = vpop.f32.mrb[0].mxu0
      %v755 = vpop.f32.mrb[0].mxu0
      %v756 = vadd.f32 %v697, %v755
      %v757 = vpop.f32.mrb[0].mxu0
      %758 = vmatprep.mubr.bf16.mxu0 0
      %759 = vmatmul.mubr.bf16.gmra.mrb[0].mxu0 %v710
      %v760 = vpop.f32.mrb[0].mxu0
      %v761 = vadd.f32 %v697, %v760
      %v762 = vpop.f32.mrb[0].mxu0
      %v763 = vpop.f32.mrb[0].mxu0
      %v764 = vadd.f32 %v697, %v763
      %v765 = vpop.f32.mrb[0].mxu0
      %766 = vmatprep.mubr.bf16.mxu0 0
      %767 = vmatmul.mubr.bf16.gmra.mrb[0].mxu0 %v713
      %v768 = vpop.f32.mrb[0].mxu0
      %v769 = vadd.f32 %v697, %v768
      %v770 = vpop.f32.mrb[0].mxu0
      %v771 = vpop.f32.mrb[0].mxu0
      %v772 = vadd.f32 %v697, %v771
      %v773 = vpop.f32.mrb[0].mxu0
      %774 = vmatprep.mubr.bf16.mxu0 0
      %775 = vmatmul.mubr.bf16.gmra.mrb[0].mxu0 %v716
      %v776 = vpop.f32.mrb[0].mxu0
      %v777 = vadd.f32 %v697, %v776
      %v778 = vpop.f32.mrb[0].mxu0
      %v779 = vpop.f32.mrb[0].mxu0
      %v780 = vadd.f32 %v697, %v779
      %v781 = vpop.f32.mrb[0].mxu0
      %782 = vdwg.mxu0
      %v783 = vmax.f32 %v753, 0.0
      %v784 = vmax.f32 %v756, 0.0
      %v785 = vmax.f32 %v761, 0.0
      %v786 = vmax.f32 %v764, 0.0
      %v787 = vmax.f32 %v769, 0.0
      %v788 = vmax.f32 %v772, 0.0
      %v789 = vmax.f32 %v777, 0.0
      %v790 = vmax.f32 %v780, 0.0
      %v791 = vpack.c.bf16 %v784, %v783
      %v792 = vpack.c.bf16 %v786, %v785
      %v793 = vpack.c.bf16 %v788, %v787
      %v794 = vpack.c.bf16 %v790, %v789
      %v795 = vld [vmem:[%s5] sm:$0xf]
      %v796 = vld [vmem:[%s5 + $0x4] sm:$0xf]
      %v797 = vld [vmem:[%s5 + $0x8] sm:$0xf]
      %v798 = vld [vmem:[%s5 + $0xc] sm:$0xf]
      %v803 = vunpack.c.l.b16 %v795
      %v804 = vunpack.c.l.b16 %v796
      %v805 = vunpack.c.l.b16 %v797
      %v806 = vunpack.c.l.b16 %v798
      %v807 = vpack.c.b16 %v804, %v803
      %v808 = vpack.c.b16 %v806, %v805
      %vm811 = vcmask 261120
      %v813 = vsel %vm811, %v791, 0
      %v816 = vsel %vm811, %v792, 0
      %v819 = vsel %vm811, %v793, 0
      %v822 = vsel %vm811, %v794, 0
      %824 = vmatprep.subr.bf16.mxu0 0
      %825 = vmatpush1.bf16.msra.mxu0 %v807
      %826 = vmatprep.subr.bf16.mxu0 0
      %827 = vmatpush1.bf16.msra.mxu0 %v808
      %828 = vmatprep.subr.bf16.mxu0 0
      %829 = vmatpush1.bf16.msra.mxu0 0
      %830 = vmatprep.subr.bf16.mxu0 0
      %831 = vmatpush1.bf16.msra.mxu0 0
      %832 = vmatprep.subr.bf16.mxu0 0
      %833 = vmatpush1.bf16.msra.mxu0 0
      %834 = vmatprep.subr.bf16.mxu0 0
      %835 = vmatpush1.bf16.msra.mxu0 0
      %836 = vmatprep.subr.bf16.mxu0 0
      %837 = vmatpush1.bf16.msra.mxu0 0
      %838 = vmatprep.subr.bf16.mxu0 0
      %839 = vmatpush1.bf16.msra.mxu0 0
      %840 = vmatprep.subr.bf16.mxu0 0
      %841 = vmatpush1.bf16.msra.mxu0 0
      %842 = vmatprep.subr.bf16.mxu0 0
      %843 = vmatpush1.bf16.msra.mxu0 0
      %844 = vmatprep.subr.bf16.mxu0 0
      %845 = vmatpush1.bf16.msra.mxu0 0
      %846 = vmatprep.subr.bf16.mxu0 0
      %847 = vmatpush1.bf16.msra.mxu0 0
      %848 = vmatprep.subr.bf16.mxu0 0
      %849 = vmatpush1.bf16.msra.mxu0 0
      %850 = vmatprep.subr.bf16.mxu0 0
      %851 = vmatpush1.bf16.msra.mxu0 0
      %852 = vmatprep.subr.bf16.mxu0 0
      %853 = vmatpush1.bf16.msra.mxu0 0
      %854 = vmatprep.subr.bf16.mxu0 0
      %855 = vmatpush1.bf16.msra.mxu0 0
      %856 = vmatprep.mubr.bf16.mxu0 0
      %857 = vmatmul.mubr.bf16.gmra.mrb[0].mxu0 %v813
      %v858 = vpop.f32.mrb[0].mxu0
      %v859 = vadd.f32 0.0, %v858
      %v860 = vpop.f32.mrb[0].mxu0
      %v861 = vpop.f32.mrb[0].mxu0
      %v862 = vadd.f32 0.0, %v861
      %v863 = vpop.f32.mrb[0].mxu0
      %864 = vmatprep.mubr.bf16.mxu0 0
      %865 = vmatmul.mubr.bf16.gmra.mrb[0].mxu0 %v816
      %v866 = vpop.f32.mrb[0].mxu0
      %v867 = vadd.f32 0.0, %v866
      %v868 = vpop.f32.mrb[0].mxu0
      %v869 = vpop.f32.mrb[0].mxu0
      %v870 = vadd.f32 0.0, %v869
      %v871 = vpop.f32.mrb[0].mxu0
      %872 = vmatprep.mubr.bf16.mxu0 0
      %873 = vmatmul.mubr.bf16.gmra.mrb[0].mxu0 %v819
      %v874 = vpop.f32.mrb[0].mxu0
      %v875 = vadd.f32 0.0, %v874
      %v876 = vpop.f32.mrb[0].mxu0
      %v877 = vpop.f32.mrb[0].mxu0
      %v878 = vadd.f32 0.0, %v877
      %v879 = vpop.f32.mrb[0].mxu0
      %880 = vmatprep.mubr.bf16.mxu0 0
      %881 = vmatmul.mubr.bf16.gmra.mrb[0].mxu0 %v822
      %v882 = vpop.f32.mrb[0].mxu0
      %v883 = vadd.f32 0.0, %v882
      %v884 = vpop.f32.mrb[0].mxu0
      %v885 = vpop.f32.mrb[0].mxu0
      %v886 = vadd.f32 0.0, %v885
      %v887 = vpop.f32.mrb[0].mxu0
      %888 = vdwg.mxu0
      %v889 = vadd.f32 %v678, %v859
      %v890 = vadd.f32 %v679, %v862
      %v891 = vadd.f32 %v680, %v867
      %v892 = vadd.f32 %v681, %v870
      %v893 = vadd.f32 %v682, %v875
      %v894 = vadd.f32 %v683, %v878
      %v895 = vadd.f32 %v684, %v883
      %v896 = vadd.f32 %v685, %v886
      %v897 = vld [vmem:[%s6] sm:$0x1]
      %v899 = vlaneseq
      %v900 = vshrl.u32 %v899, 7
      %v901 = vsub.s32 0, %v900
      %v902 = vrot.slane %v897, %v901
      %v904 = vadd.f32 %v889, %v902
      %v905 = vadd.f32 %v890, %v902
      %v906 = vadd.f32 %v891, %v902
      %v907 = vadd.f32 %v892, %v902
      %v908 = vadd.f32 %v893, %v902
      %v909 = vadd.f32 %v894, %v902
      %v910 = vadd.f32 %v895, %v902
      %v911 = vadd.f32 %v896, %v902
      %912 = vst.msk [vmem:[%s367] sm:$0xff] %vm705, %v904
      %913 = vst.msk [vmem:[%s367 + $0x8] sm:$0xff] %vm705, %v905
      %914 = vst.msk [vmem:[%s367 + $0x10] sm:$0xff] %vm705, %v906
      %915 = vst.msk [vmem:[%s367 + $0x18] sm:$0xff] %vm705, %v907
      %916 = vst.msk [vmem:[%s367 + $0x20] sm:$0xff] %vm705, %v908
      %917 = vst.msk [vmem:[%s367 + $0x28] sm:$0xff] %vm705, %v909
      %918 = vst.msk [vmem:[%s367 + $0x30] sm:$0xff] %vm705, %v910
      %919 = vst.msk [vmem:[%s367 + $0x38] sm:$0xff] %vm705, %v911
      %v920 = vpack.c.bf16 %v905, %v904
      %v921 = vpack.c.bf16 %v907, %v906
      %v922 = vpack.c.bf16 %v909, %v908
      %v923 = vpack.c.bf16 %v911, %v910
      %v924 = vld [vmem:[%s7] sm:$0xf]
      %v925 = vld [vmem:[%s7 + $0x4] sm:$0xf]
      %v926 = vld [vmem:[%s8] sm:$0x1]
      %v928 = vlaneseq
      %v929 = vshrl.u32 %v928, 7
      %v930 = vsub.s32 0, %v929
      %v931 = vrot.slane %v926, %v930
      %v935 = vunpack.c.l.b16 %v924
      %v936 = vunpack.c.l.b16 %v925
      %v937 = vpack.c.b16 %v936, %v935
      %v940 = vsel %vm705, %v920, 0
      %v943 = vsel %vm705, %v921, 0
      %v946 = vsel %vm705, %v922, 0
      %v949 = vsel %vm705, %v923, 0
      %951 = vmatprep.subr.bf16.mxu0 0
      %952 = vmatpush1.bf16.msra.mxu0 %v937
      %953 = vmatprep.subr.bf16.mxu0 0
      %954 = vmatpush1.bf16.msra.mxu0 0
      %955 = vmatprep.subr.bf16.mxu0 0
      %956 = vmatpush1.bf16.msra.mxu0 0
      %957 = vmatprep.subr.bf16.mxu0 0
      %958 = vmatpush1.bf16.msra.mxu0 0
      %959 = vmatprep.subr.bf16.mxu0 0
      %960 = vmatpush1.bf16.msra.mxu0 0
      %961 = vmatprep.subr.bf16.mxu0 0
      %962 = vmatpush1.bf16.msra.mxu0 0
      %963 = vmatprep.subr.bf16.mxu0 0
      %964 = vmatpush1.bf16.msra.mxu0 0
      %965 = vmatprep.subr.bf16.mxu0 0
      %966 = vmatpush1.bf16.msra.mxu0 0
      %967 = vmatprep.subr.bf16.mxu0 0
      %968 = vmatpush1.bf16.msra.mxu0 0
      %969 = vmatprep.subr.bf16.mxu0 0
      %970 = vmatpush1.bf16.msra.mxu0 0
      %971 = vmatprep.subr.bf16.mxu0 0
      %972 = vmatpush1.bf16.msra.mxu0 0
      %973 = vmatprep.subr.bf16.mxu0 0
      %974 = vmatpush1.bf16.msra.mxu0 0
      %975 = vmatprep.subr.bf16.mxu0 0
      %976 = vmatpush1.bf16.msra.mxu0 0
      %977 = vmatprep.subr.bf16.mxu0 0
      %978 = vmatpush1.bf16.msra.mxu0 0
      %979 = vmatprep.subr.bf16.mxu0 0
      %980 = vmatpush1.bf16.msra.mxu0 0
      %981 = vmatprep.subr.bf16.mxu0 0
      %982 = vmatpush1.bf16.msra.mxu0 0
      %983 = vmatprep.mubr.bf16.mxu0 0
      %984 = vmatmul.mubr.bf16.gmra.mrb[0].mxu0 %v940
      %v985 = vpop.f32.mrb[0].mxu0
      %v986 = vadd.f32 %v931, %v985
      %v987 = vpop.f32.mrb[0].mxu0
      %v988 = vpop.f32.mrb[0].mxu0
      %v989 = vadd.f32 %v931, %v988
      %v990 = vpop.f32.mrb[0].mxu0
      %991 = vmatprep.mubr.bf16.mxu0 0
      %992 = vmatmul.mubr.bf16.gmra.mrb[0].mxu0 %v943
      %v993 = vpop.f32.mrb[0].mxu0
      %v994 = vadd.f32 %v931, %v993
      %v995 = vpop.f32.mrb[0].mxu0
      %v996 = vpop.f32.mrb[0].mxu0
      %v997 = vadd.f32 %v931, %v996
      %v998 = vpop.f32.mrb[0].mxu0
      %999 = vmatprep.mubr.bf16.mxu0 0
      %1000 = vmatmul.mubr.bf16.gmra.mrb[0].mxu0 %v946
      %v1001 = vpop.f32.mrb[0].mxu0
      %v1002 = vadd.f32 %v931, %v1001
      %v1003 = vpop.f32.mrb[0].mxu0
      %v1004 = vpop.f32.mrb[0].mxu0
      %v1005 = vadd.f32 %v931, %v1004
      %v1006 = vpop.f32.mrb[0].mxu0
      %1007 = vmatprep.mubr.bf16.mxu0 0
      %1008 = vmatmul.mubr.bf16.gmra.mrb[0].mxu0 %v949
      %v1009 = vpop.f32.mrb[0].mxu0
      %v1010 = vadd.f32 %v931, %v1009
      %v1011 = vpop.f32.mrb[0].mxu0
      %v1012 = vpop.f32.mrb[0].mxu0
      %v1013 = vadd.f32 %v931, %v1012
      %v1014 = vpop.f32.mrb[0].mxu0
      %1015 = vdwg.mxu0
      %vm1016 = vcmask 64512
      %1017 = vst.msk [vmem:[%s372] sm:$0xff] %vm1016, %v986
      %1018 = vst.msk [vmem:[%s372 + $0x8] sm:$0xff] %vm1016, %v989
      %1019 = vst.msk [vmem:[%s372 + $0x10] sm:$0xff] %vm1016, %v994
      %1020 = vst.msk [vmem:[%s372 + $0x18] sm:$0xff] %vm1016, %v997
      %1021 = vst.msk [vmem:[%s372 + $0x20] sm:$0xff] %vm1016, %v1002
      %1022 = vst.msk [vmem:[%s372 + $0x28] sm:$0xff] %vm1016, %v1005
      %1023 = vst.msk [vmem:[%s372 + $0x30] sm:$0xff] %vm1016, %v1010
      %1024 = vst.msk [vmem:[%s372 + $0x38] sm:$0xff] %vm1016, %v1013
      %p1025 = scmp.lt.s32.totalorder %s22, 1
      %s1026 = scalar_select %p1025, %s22, 1
      %s1027 = smul.addr %s1026, 8
      %s1028 = smul.addr %s1027, 8
      %s1029 = scalar_lea.vmem %s9, %s1028
      %p1030 = scmp.lt.s32.totalorder %s22, 1
      %s1031 = scalar_select %p1030, %s22, 1
      %s1032 = smul.addr %s1031, 8
      %s1033 = smul.addr %s1032, 8
      %s1034 = scalar_lea.vmem %s10, %s1033
      // Predicated region
      $region57: #{_lambda_.4} parent=55 // pred_check
        %p1035 = pneg %p234
      $region58: #{_lambda_.4} parent=55 // pred_check_branch
        %1037 = sbr.rel (%p1035) target = $region60
      $region59: #{_lambda_.4} parent=55 // pred_region
        _
      $region60: #{_lambda_.4} parent=55 // pred_fallthru
        _
      // Predicated region
      $region61: #{_lambda_.4} parent=55 // pred_check
        %p1038 = pneg %p260
      $region62: #{_lambda_.4} parent=55 // pred_check_branch
        %1040 = sbr.rel (%p1038) target = $region64
      $region63: #{_lambda_.4} parent=55 // pred_region
        _
      $region64: #{_lambda_.4} parent=55 // pred_fallthru
        _
    $region56: #{_lambda_.4} parent=5 // pred_fallthru
      _
    %p1041 = scmp.le.s32.totalorder 2, %s17
    // Predicated region
    $region65: #{_lambda_.4} parent=5 // pred_check
      %p1042 = pneg %p1041
    $region66: #{_lambda_.4} parent=5 // pred_check_branch
      %1044 = sbr.rel (%p1042) target = $region68
    $region67: #{_lambda_.4} parent=5 // pred_region
      %s1045 = ssub.s32 %s17, 2
      // Predicated region
      $region69: #{_lambda_.4} parent=67 // pred_check
        %p1046 = pneg %p240
      $region70: #{_lambda_.4} parent=67 // pred_check_branch
        %1048 = sbr.rel (%p1046) target = $region72
      $region71: #{_lambda_.4} parent=67 // pred_region
        %p1049 = scmp.lt.s32.totalorder %s23, 1
        %s1050 = scalar_select %p1049, %s23, 1
        %s1051 = smul.addr %s1050, 8
        %s1052 = smul.addr %s1051, 8
        %s1053 = scalar_lea.vmem %s9, %s1052
      $region72: #{_lambda_.4} parent=67 // pred_fallthru
        _
      // Predicated region
      $region73: #{_lambda_.4} parent=67 // pred_check
        %p1054 = pneg %p266
      $region74: #{_lambda_.4} parent=67 // pred_check_branch
        %1056 = sbr.rel (%p1054) target = $region76
      $region75: #{_lambda_.4} parent=67 // pred_region
        %p1057 = scmp.lt.s32.totalorder %s23, 1
        %s1058 = scalar_select %p1057, %s23, 1
        %s1059 = smul.addr %s1058, 8
        %s1060 = smul.addr %s1059, 8
        %s1061 = scalar_lea.vmem %s10, %s1060
      $region76: #{_lambda_.4} parent=67 // pred_fallthru
        _
    $region68: #{_lambda_.4} parent=5 // pred_fallthru
      _
  $region6: #{_lambda_.4} parent=0 // loop_footer
    %s21 = sadd.s32 1, %s17
  $region7: #{_lambda_.4} parent=0 // loop_footer_branch
    %16 = sbr.rel target = $region3
  $region8: #{_lambda_.4} parent=0 // loop_exit
    _

// kernel: _lambda_.6
$region0: #{_lambda_.6}
  #allocation0 [shape = 'u32[]', space=smem, size = 0x4, offset = 0x4, fixed_abs, tag = 'smem constant byte address 0x4 - core index']
  #allocation1 [shape = 'u32[144,128]{1,0:T(1,128)}', space=vmem, size = 0x12000, scoped, tag = 'internal scratch']
  %s0 = inlined_call_operand.vmem [shape: f32[8,16,4], index: 0, kind: input, shape index: {}]
  %s1 = inlined_call_operand.vmem [shape: f32[8,16,4], index: 1, kind: input, shape index: {}]
  %s2 = inlined_call_operand.vmem [shape: f32[8,16,16], index: 2, kind: input, shape index: {}]
  %s3 = inlined_call_operand.vmem [shape: f32[16,16], index: 3, kind: input, shape index: {}]
  %s4 = inlined_call_operand.vmem [shape: bf16[16,16], index: 4, kind: input, shape index: {}]
  %s5 = inlined_call_operand.vmem [shape: f32[1,16], index: 5, kind: input, shape index: {}]
  %s6 = inlined_call_operand.vmem [shape: f32[128,16], index: 6, kind: input, shape index: {}]
  %s7 = inlined_call_operand.vmem [shape: f32[128,16], index: 7, kind: output, shape index: {}]
  %s8 = sld [smem:[#allocation0]]
  $region61: #{_lambda_.6} parent=0
    _
  %s10 = ssub.s32 1, %s8
  %s11 = scalar_select 0, %s10, %s8
  loop: start=0, step=1, limit=4
  $region2: #{_lambda_.6} parent=0 // loop_pre_header
    _
  $region3: #{_lambda_.6} parent=0 // loop_header
    %s13 = sphi 0, %s17
    %p14 = scmp.ge.s32.totalorder %s13, 4
    %s23 = sphi 0, %s25
    %s26 = sphi 0, %s23
    %s27 = sphi 0, %s26
    %s43 = sphi 0, %s27
    %s49 = sphi 0, %s51
    %s52 = sphi 0, %s49
    %s53 = sphi 0, %s52
    %s69 = sphi 0, %s53
    %s75 = sphi 0, %s77
    %s78 = sphi 0, %s75
    %s79 = sphi 0, %s78
    %s95 = sphi 0, %s79
    %s99 = sphi 0, %s99
    %s101 = sphi 0, %s99
    %s102 = sphi 0, %s101
    %s116 = sphi 0, %s102
    %s120 = sphi 0, %s120
    %s122 = sphi 0, %s120
    %s123 = sphi 0, %s122
    %s137 = sphi 0, %s123
    %s141 = sphi 0, %s141
    %s143 = sphi 0, %s141
    %s144 = sphi 0, %s143
    %s158 = sphi 0, %s144
    %s164 = sphi 0, %s166
    %s167 = sphi 0, %s164
    %s168 = sphi 0, %s167
    %s184 = sphi 0, %s168
    %s190 = sphi 0, %s192
    %s193 = sphi 0, %s190
    %s194 = sphi 0, %s193
    %s210 = sphi 0, %s194
  $region4: #{_lambda_.6} parent=0 // loop_header_branch
    %16 = sbr.rel (%p14) target = $region8
  $region5: #{_lambda_.6} parent=0 // loop_body
    %s18 = ssub.s32 %s13, 1
    %s19 = ssub.s32 %s13, 2
    %s20 = sadd.s32 %s13, 1
    %s21 = ssub.s32 %s13, %s20
    %p22 = scmp.eq.s32.totalorder %s21, 0
    %s24 = sadd.s32 %s23, 1
    %s25 = scalar_select %p22, %s23, %s24
    %p28 = pneg %p22
    %p29 = scmp.eq.s32.totalorder %s13, 1
    %p30 = por %p28, %p29
    %p31 = scmp.ne.s32.totalorder %s23, %s26
    %p32 = scmp.eq.s32.totalorder %s13, 0
    %p33 = por %p31, %p32
    %p34 = scmp.ne.s32.totalorder %s23, %s26
    %p35 = scmp.eq.s32.totalorder %s18, 1
    %p36 = por %p34, %p35
    %p37 = scmp.ne.s32.totalorder %s26, %s27
    %p38 = scmp.eq.s32.totalorder %s18, 0
    %p39 = por %p37, %p38
    %p40 = scmp.ne.s32.totalorder %s26, %s27
    %p41 = scmp.eq.s32.totalorder %s19, 1
    %p42 = por %p40, %p41
    %p44 = scmp.ne.s32.totalorder %s27, %s43
    %p45 = scmp.eq.s32.totalorder %s19, 0
    %p46 = por %p44, %p45
    %s47 = ssub.s32 %s13, %s20
    %p48 = scmp.eq.s32.totalorder %s47, 0
    %s50 = sadd.s32 %s49, 1
    %s51 = scalar_select %p48, %s49, %s50
    %p54 = pneg %p48
    %p55 = scmp.eq.s32.totalorder %s13, 1
    %p56 = por %p54, %p55
    %p57 = scmp.ne.s32.totalorder %s49, %s52
    %p58 = scmp.eq.s32.totalorder %s13, 0
    %p59 = por %p57, %p58
    %p60 = scmp.ne.s32.totalorder %s49, %s52
    %p61 = scmp.eq.s32.totalorder %s18, 1
    %p62 = por %p60, %p61
    %p63 = scmp.ne.s32.totalorder %s52, %s53
    %p64 = scmp.eq.s32.totalorder %s18, 0
    %p65 = por %p63, %p64
    %p66 = scmp.ne.s32.totalorder %s52, %s53
    %p67 = scmp.eq.s32.totalorder %s19, 1
    %p68 = por %p66, %p67
    %p70 = scmp.ne.s32.totalorder %s53, %s69
    %p71 = scmp.eq.s32.totalorder %s19, 0
    %p72 = por %p70, %p71
    %s73 = ssub.s32 %s13, %s20
    %p74 = scmp.eq.s32.totalorder %s73, 0
    %s76 = sadd.s32 %s75, 1
    %s77 = scalar_select %p74, %s75, %s76
    %p80 = pneg %p74
    %p81 = scmp.eq.s32.totalorder %s13, 1
    %p82 = por %p80, %p81
    %p83 = scmp.ne.s32.totalorder %s75, %s78
    %p84 = scmp.eq.s32.totalorder %s13, 0
    %p85 = por %p83, %p84
    %p86 = scmp.ne.s32.totalorder %s75, %s78
    %p87 = scmp.eq.s32.totalorder %s18, 1
    %p88 = por %p86, %p87
    %p89 = scmp.ne.s32.totalorder %s78, %s79
    %p90 = scmp.eq.s32.totalorder %s18, 0
    %p91 = por %p89, %p90
    %p92 = scmp.ne.s32.totalorder %s78, %s79
    %p93 = scmp.eq.s32.totalorder %s19, 1
    %p94 = por %p92, %p93
    %p96 = scmp.ne.s32.totalorder %s79, %s95
    %p97 = scmp.eq.s32.totalorder %s19, 0
    %p98 = por %p96, %p97
    %s100 = sadd.s32 %s99, 1
    %p103 = scmp.eq.s32.totalorder %s13, 1
    %p104 = scmp.ne.s32.totalorder %s99, %s101
    %p105 = scmp.eq.s32.totalorder %s13, 0
    %p106 = por %p104, %p105
    %p107 = scmp.ne.s32.totalorder %s99, %s101
    %p108 = scmp.eq.s32.totalorder %s18, 1
    %p109 = por %p107, %p108
    %p110 = scmp.ne.s32.totalorder %s101, %s102
    %p111 = scmp.eq.s32.totalorder %s18, 0
    %p112 = por %p110, %p111
    %p113 = scmp.ne.s32.totalorder %s101, %s102
    %p114 = scmp.eq.s32.totalorder %s19, 1
    %p115 = por %p113, %p114
    %p117 = scmp.ne.s32.totalorder %s102, %s116
    %p118 = scmp.eq.s32.totalorder %s19, 0
    %p119 = por %p117, %p118
    %s121 = sadd.s32 %s120, 1
    %p124 = scmp.eq.s32.totalorder %s13, 1
    %p125 = scmp.ne.s32.totalorder %s120, %s122
    %p126 = scmp.eq.s32.totalorder %s13, 0
    %p127 = por %p125, %p126
    %p128 = scmp.ne.s32.totalorder %s120, %s122
    %p129 = scmp.eq.s32.totalorder %s18, 1
    %p130 = por %p128, %p129
    %p131 = scmp.ne.s32.totalorder %s122, %s123
    %p132 = scmp.eq.s32.totalorder %s18, 0
    %p133 = por %p131, %p132
    %p134 = scmp.ne.s32.totalorder %s122, %s123
    %p135 = scmp.eq.s32.totalorder %s19, 1
    %p136 = por %p134, %p135
    %p138 = scmp.ne.s32.totalorder %s123, %s137
    %p139 = scmp.eq.s32.totalorder %s19, 0
    %p140 = por %p138, %p139
    %s142 = sadd.s32 %s141, 1
    %p145 = scmp.eq.s32.totalorder %s13, 1
    %p146 = scmp.ne.s32.totalorder %s141, %s143
    %p147 = scmp.eq.s32.totalorder %s13, 0
    %p148 = por %p146, %p147
    %p149 = scmp.ne.s32.totalorder %s141, %s143
    %p150 = scmp.eq.s32.totalorder %s18, 1
    %p151 = por %p149, %p150
    %p152 = scmp.ne.s32.totalorder %s143, %s144
    %p153 = scmp.eq.s32.totalorder %s18, 0
    %p154 = por %p152, %p153
    %p155 = scmp.ne.s32.totalorder %s143, %s144
    %p156 = scmp.eq.s32.totalorder %s19, 1
    %p157 = por %p155, %p156
    %p159 = scmp.ne.s32.totalorder %s144, %s158
    %p160 = scmp.eq.s32.totalorder %s19, 0
    %p161 = por %p159, %p160
    %s162 = ssub.s32 %s13, %s20
    %p163 = scmp.eq.s32.totalorder %s162, 0
    %s165 = sadd.s32 %s164, 1
    %s166 = scalar_select %p163, %s164, %s165
    %p169 = pneg %p163
    %p170 = scmp.eq.s32.totalorder %s13, 1
    %p171 = por %p169, %p170
    %p172 = scmp.ne.s32.totalorder %s164, %s167
    %p173 = scmp.eq.s32.totalorder %s13, 0
    %p174 = por %p172, %p173
    %p175 = scmp.ne.s32.totalorder %s164, %s167
    %p176 = scmp.eq.s32.totalorder %s18, 1
    %p177 = por %p175, %p176
    %p178 = scmp.ne.s32.totalorder %s167, %s168
    %p179 = scmp.eq.s32.totalorder %s18, 0
    %p180 = por %p178, %p179
    %p181 = scmp.ne.s32.totalorder %s167, %s168
    %p182 = scmp.eq.s32.totalorder %s19, 1
    %p183 = por %p181, %p182
    %p185 = scmp.ne.s32.totalorder %s168, %s184
    %p186 = scmp.eq.s32.totalorder %s19, 0
    %p187 = por %p185, %p186
    %s188 = ssub.s32 %s13, %s20
    %p189 = scmp.eq.s32.totalorder %s188, 0
    %s191 = sadd.s32 %s190, 1
    %s192 = scalar_select %p189, %s190, %s191
    %p195 = pneg %p189
    %p196 = scmp.eq.s32.totalorder %s13, 1
    %p197 = por %p195, %p196
    %p198 = scmp.ne.s32.totalorder %s190, %s193
    %p199 = scmp.eq.s32.totalorder %s13, 0
    %p200 = por %p198, %p199
    %p201 = scmp.ne.s32.totalorder %s190, %s193
    %p202 = scmp.eq.s32.totalorder %s18, 1
    %p203 = por %p201, %p202
    %p204 = scmp.ne.s32.totalorder %s193, %s194
    %p205 = scmp.eq.s32.totalorder %s18, 0
    %p206 = por %p204, %p205
    %p207 = scmp.ne.s32.totalorder %s193, %s194
    %p208 = scmp.eq.s32.totalorder %s19, 1
    %p209 = por %p207, %p208
    %p211 = scmp.ne.s32.totalorder %s194, %s210
    %p212 = scmp.eq.s32.totalorder %s19, 0
    %p213 = por %p211, %p212
    %p214 = scmp.le.s32.totalorder 1, %s13
    %p215 = scmp.lt.s32.totalorder %s13, 3
    %p216 = pnand %p214, %p215
    %p217 = pneg %p216
    // Predicated region
    $region9: #{_lambda_.6} parent=5 // pred_check
      _
    $region10: #{_lambda_.6} parent=5 // pred_check_branch
      %219 = sbr.rel (%p216) target = $region12
    $region11: #{_lambda_.6} parent=5 // pred_region
      %s220 = ssub.s32 %s13, 1
      // Predicated region
      $region13: #{_lambda_.6} parent=11 // pred_check
        %p221 = pneg %p112
      $region14: #{_lambda_.6} parent=11 // pred_check_branch
        %223 = sbr.rel (%p221) target = $region16
      $region15: #{_lambda_.6} parent=11 // pred_region
        _
      $region16: #{_lambda_.6} parent=11 // pred_fallthru
        _
      // Predicated region
      $region17: #{_lambda_.6} parent=11 // pred_check
        %p224 = pneg %p133
      $region18: #{_lambda_.6} parent=11 // pred_check_branch
        %226 = sbr.rel (%p224) target = $region20
      $region19: #{_lambda_.6} parent=11 // pred_region
        _
      $region20: #{_lambda_.6} parent=11 // pred_fallthru
        _
      // Predicated region
      $region21: #{_lambda_.6} parent=11 // pred_check
        %p227 = pneg %p154
      $region22: #{_lambda_.6} parent=11 // pred_check_branch
        %229 = sbr.rel (%p227) target = $region24
      $region23: #{_lambda_.6} parent=11 // pred_region
        _
      $region24: #{_lambda_.6} parent=11 // pred_fallthru
        _
    $region12: #{_lambda_.6} parent=5 // pred_fallthru
      _
    %p230 = scmp.lt.s32.totalorder %s13, 2
    // Predicated region
    $region25: #{_lambda_.6} parent=5 // pred_check
      %p231 = pneg %p230
    $region26: #{_lambda_.6} parent=5 // pred_check_branch
      %233 = sbr.rel (%p231) target = $region28
    $region27: #{_lambda_.6} parent=5 // pred_region
      // Predicated region
      $region29: #{_lambda_.6} parent=27 // pred_check
        %p234 = pneg %p33
      $region30: #{_lambda_.6} parent=27 // pred_check_branch
        %236 = sbr.rel (%p234) target = $region32
      $region31: #{_lambda_.6} parent=27 // pred_region
        %s237 = smul.u32 4, %s13
        %p238 = scmp.lt.s32.totalorder %s237, 7
        %s239 = scalar_select %p238, %s237, 7
        %s240 = smul.addr %s239, 2
        %s241 = smul.addr %s240, 8
        %s242 = scalar_lea.vmem %s0, %s241
        %s243 = smul.u32 4, %s13
      $region32: #{_lambda_.6} parent=27 // pred_fallthru
        _
      // Predicated region
      $region33: #{_lambda_.6} parent=27 // pred_check
        %p244 = pneg %p59
      $region34: #{_lambda_.6} parent=27 // pred_check_branch
        %246 = sbr.rel (%p244) target = $region36
      $region35: #{_lambda_.6} parent=27 // pred_region
        %s247 = smul.u32 4, %s13
        %p248 = scmp.lt.s32.totalorder %s247, 7
        %s249 = scalar_select %p248, %s247, 7
        %s250 = smul.addr %s249, 2
        %s251 = smul.addr %s250, 8
        %s252 = scalar_lea.vmem %s1, %s251
        %s253 = smul.u32 4, %s13
      $region36: #{_lambda_.6} parent=27 // pred_fallthru
        _
      // Predicated region
      $region37: #{_lambda_.6} parent=27 // pred_check
        %p254 = pneg %p85
      $region38: #{_lambda_.6} parent=27 // pred_check_branch
        %256 = sbr.rel (%p254) target = $region40
      $region39: #{_lambda_.6} parent=27 // pred_region
        %s257 = smul.u32 4, %s13
        %p258 = scmp.lt.s32.totalorder %s257, 7
        %s259 = scalar_select %p258, %s257, 7
        %s260 = smul.addr %s259, 2
        %s261 = smul.addr %s260, 8
        %s262 = scalar_lea.vmem %s2, %s261
        %s263 = smul.u32 4, %s13
      $region40: #{_lambda_.6} parent=27 // pred_fallthru
        _
      // Predicated region
      $region41: #{_lambda_.6} parent=27 // pred_check
        %p264 = pneg %p174
      $region42: #{_lambda_.6} parent=27 // pred_check_branch
        %266 = sbr.rel (%p264) target = $region44
      $region43: #{_lambda_.6} parent=27 // pred_region
        %s267 = smul.u32 8, %s13
        %p268 = scmp.lt.s32.totalorder %s267, 15
        %s269 = scalar_select %p268, %s267, 15
        %s270 = smul.addr %s269, 8
        %s271 = scalar_lea.vmem %s6, %s270
        %s272 = smul.u32 8, %s13
      $region44: #{_lambda_.6} parent=27 // pred_fallthru
        _
    $region28: #{_lambda_.6} parent=5 // pred_fallthru
      _
    %p273 = scmp.le.s32.totalorder 1, %s13
    %p274 = scmp.lt.s32.totalorder %s13, 3
    %p275 = pnand %p273, %p274
    %p276 = pneg %p275
    // Predicated region
    $region45: #{_lambda_.6} parent=5 // pred_check
      _
    $region46: #{_lambda_.6} parent=5 // pred_check_branch
      %278 = sbr.rel (%p275) target = $region48
    $region47: #{_lambda_.6} parent=5 // pred_region
      %s279 = ssub.s32 %s13, 1
      %s280 = smul.u32 4, %s18
      %p281 = scmp.lt.s32.totalorder %s280, 7
      %s282 = scalar_select %p281, %s280, 7
      %s283 = smul.addr %s282, 2
      %s284 = smul.addr %s283, 8
      %s285 = scalar_lea.vmem %s0, %s284
      %p286 = pneg %p39
      %p287 = pneg %p36
      %s288 = smul.u32 4, %s18
      %p289 = scmp.lt.s32.totalorder %s288, 7
      %s290 = scalar_select %p289, %s288, 7
      %s291 = smul.addr %s290, 2
      %s292 = smul.addr %s291, 8
      %s293 = scalar_lea.vmem %s1, %s292
      %p294 = pneg %p65
      %p295 = pneg %p62
      %s296 = smul.u32 4, %s18
      %p297 = scmp.lt.s32.totalorder %s296, 7
      %s298 = scalar_select %p297, %s296, 7
      %s299 = smul.addr %s298, 2
      %s300 = smul.addr %s299, 8
      %s301 = scalar_lea.vmem %s2, %s300
      %p302 = pneg %p91
      %p303 = pneg %p88
      %p304 = pneg %p112
      %p305 = pneg %p109
      %p306 = pneg %p133
      %p307 = pneg %p130
      %p308 = pneg %p154
      %p309 = pneg %p151
      %s310 = smul.u32 8, %s18
      %p311 = scmp.lt.s32.totalorder %s310, 15
      %s312 = scalar_select %p311, %s310, 15
      %s313 = smul.addr %s312, 8
      %s314 = scalar_lea.vmem %s6, %s313
      %p315 = pneg %p180
      %p316 = pneg %p177
      %p317 = pneg %p206
      %p318 = pneg %p203
      %s319 = smul.u32 8, %s18
      %p320 = scmp.lt.s32.totalorder %s319, 15
      %s321 = scalar_select %p320, %s319, 15
      %s322 = smul.addr %s321, 8
      %s323 = scalar_lea.vmem %s7, %s322
      %s324 = smul.u32 4, %s18
      %p325 = scmp.lt.s32.totalorder %s324, 7
      %s326 = scalar_select %p325, %s324, 7
      %s327 = smul.addr %s326, 2
      %s328 = smul.addr %s327, 8
      %s329 = scalar_lea.vmem %s0, %s328
      %s330 = smul.u32 4, %s18
      %s331 = smul.u32 4, %s18
      %p332 = scmp.lt.s32.totalorder %s331, 7
      %s333 = scalar_select %p332, %s331, 7
      %s334 = smul.addr %s333, 2
      %s335 = smul.addr %s334, 8
      %s336 = scalar_lea.vmem %s1, %s335
      %s337 = smul.u32 4, %s18
      %s338 = smul.u32 4, %s18
      %p339 = scmp.lt.s32.totalorder %s338, 7
      %s340 = scalar_select %p339, %s338, 7
      %s341 = smul.addr %s340, 2
      %s342 = smul.addr %s341, 8
      %s343 = scalar_lea.vmem %s2, %s342
      %s344 = smul.u32 4, %s18
      %s345 = smul.u32 8, %s18
      %p346 = scmp.lt.s32.totalorder %s345, 15
      %s347 = scalar_select %p346, %s345, 15
      %s348 = smul.addr %s347, 8
      %s349 = scalar_lea.vmem %s6, %s348
      %s350 = smul.u32 8, %s18
      %s351 = smul.u32 8, %s18
      %p352 = scmp.lt.s32.totalorder %s351, 15
      %s353 = scalar_select %p352, %s351, 15
      %s354 = smul.addr %s353, 8
      %s355 = scalar_lea.vmem %s7, %s354
      %s356 = smul.u32 8, %s18
      %v358 = vld [vmem:[%s329] sm:$0xff]
      %v359 = vld [vmem:[%s329 + $0x8] sm:$0xff]
      %v360 = vld [vmem:[%s329 + $0x10] sm:$0xff]
      %v361 = vld [vmem:[%s329 + $0x18] sm:$0xff]
      %v362 = vld [vmem:[%s329 + $0x20] sm:$0xff]
      %v363 = vld [vmem:[%s329 + $0x28] sm:$0xff]
      %v364 = vld [vmem:[%s329 + $0x30] sm:$0xff]
      %v365 = vld [vmem:[%s329 + $0x38] sm:$0xff]
      %v366 = vpack.c.bf16 %v359, %v358
      %v367 = vpack.c.bf16 %v361, %v360
      %v368 = vpack.c.bf16 %v363, %v362
      %v369 = vpack.c.bf16 %v365, %v364
      %v370 = vld [vmem:[%s336] sm:$0xff]
      %v371 = vld [vmem:[%s336 + $0x8] sm:$0xff]
      %v372 = vld [vmem:[%s336 + $0x10] sm:$0xff]
      %v373 = vld [vmem:[%s336 + $0x18] sm:$0xff]
      %v374 = vld [vmem:[%s336 + $0x20] sm:$0xff]
      %v375 = vld [vmem:[%s336 + $0x28] sm:$0xff]
      %v376 = vld [vmem:[%s336 + $0x30] sm:$0xff]
      %v377 = vld [vmem:[%s336 + $0x38] sm:$0xff]
      %v378 = vpack.c.bf16 %v371, %v370
      %v379 = vpack.c.bf16 %v373, %v372
      %v380 = vpack.c.bf16 %v375, %v374
      %v381 = vpack.c.bf16 %v377, %v376
      %v382 = vld [vmem:[%s3] sm:$0xff]
      %v383 = vld [vmem:[%s3 + $0x8] sm:$0xff]
      %vm384 = vcmask 31744
      %v386 = vsel %vm384, %v366, 0
      %v389 = vsel %vm384, %v378, 0
      %391 = vmatprep.subr.bf16.mxu0 0
      %392 = vmatpush1.bf16.xpose.msra.mxu0 %v389
      %393 = vmatprep.subr.bf16.mxu0 0
      %394 = vmatpush1.bf16.xpose.msra.mxu0 0
      %395 = vmatprep.subr.bf16.mxu0 0
      %396 = vmatpush1.bf16.xpose.msra.mxu0 0
      %397 = vmatprep.subr.bf16.mxu0 0
      %398 = vmatpush1.bf16.xpose.msra.mxu0 0
      %399 = vmatprep.subr.bf16.mxu0 0
      %400 = vmatpush1.bf16.xpose.msra.mxu0 0
      %401 = vmatprep.subr.bf16.mxu0 0
      %402 = vmatpush1.bf16.xpose.msra.mxu0 0
      %403 = vmatprep.subr.bf16.mxu0 0
      %404 = vmatpush1.bf16.xpose.msra.mxu0 0
      %405 = vmatprep.subr.bf16.mxu0 0
      %406 = vmatpush1.bf16.xpose.msra.mxu0 0
      %407 = vmatprep.subr.bf16.mxu0 0
      %408 = vmatpush1.bf16.xpose.msra.mxu0 0
      %409 = vmatprep.subr.bf16.mxu0 0
      %410 = vmatpush1.bf16.xpose.msra.mxu0 0
      %411 = vmatprep.subr.bf16.mxu0 0
      %412 = vmatpush1.bf16.xpose.msra.mxu0 0
      %413 = vmatprep.subr.bf16.mxu0 0
      %414 = vmatpush1.bf16.xpose.msra.mxu0 0
      %415 = vmatprep.subr.bf16.mxu0 0
      %416 = vmatpush1.bf16.xpose.msra.mxu0 0
      %417 = vmatprep.subr.bf16.mxu0 0
      %418 = vmatpush1.bf16.xpose.msra.mxu0 0
      %419 = vmatprep.subr.bf16.mxu0 0
      %420 = vmatpush1.bf16.xpose.msra.mxu0 0
      %421 = vmatprep.subr.bf16.mxu0 0
      %422 = vmatpush1.bf16.xpose.msra.mxu0 0
      %423 = vmatprep.mubr.bf16.mxu0 0
      %424 = vmatmul.mubr.bf16.gmra.mrb[0].mxu0 %v386
      %v425 = vpop.f32.mrb[0].mxu0
      %v426 = vadd.f32 %v382, %v425
      %v427 = vpop.f32.mrb[0].mxu0
      %v428 = vpop.f32.mrb[0].mxu0
      %v429 = vadd.f32 %v383, %v428
      %v430 = vpop.f32.mrb[0].mxu0
      %431 = vdwg.mxu0
      %v433 = vsel %vm384, %v367, 0
      %v436 = vsel %vm384, %v379, 0
      %438 = vmatprep.subr.bf16.mxu0 0
      %439 = vmatpush1.bf16.xpose.msra.mxu0 %v436
      %440 = vmatprep.subr.bf16.mxu0 0
      %441 = vmatpush1.bf16.xpose.msra.mxu0 0
      %442 = vmatprep.subr.bf16.mxu0 0
      %443 = vmatpush1.bf16.xpose.msra.mxu0 0
      %444 = vmatprep.subr.bf16.mxu0 0
      %445 = vmatpush1.bf16.xpose.msra.mxu0 0
      %446 = vmatprep.subr.bf16.mxu0 0
      %447 = vmatpush1.bf16.xpose.msra.mxu0 0
      %448 = vmatprep.subr.bf16.mxu0 0
      %449 = vmatpush1.bf16.xpose.msra.mxu0 0
      %450 = vmatprep.subr.bf16.mxu0 0
      %451 = vmatpush1.bf16.xpose.msra.mxu0 0
      %452 = vmatprep.subr.bf16.mxu0 0
      %453 = vmatpush1.bf16.xpose.msra.mxu0 0
      %454 = vmatprep.subr.bf16.mxu0 0
      %455 = vmatpush1.bf16.xpose.msra.mxu0 0
      %456 = vmatprep.subr.bf16.mxu0 0
      %457 = vmatpush1.bf16.xpose.msra.mxu0 0
      %458 = vmatprep.subr.bf16.mxu0 0
      %459 = vmatpush1.bf16.xpose.msra.mxu0 0
      %460 = vmatprep.subr.bf16.mxu0 0
      %461 = vmatpush1.bf16.xpose.msra.mxu0 0
      %462 = vmatprep.subr.bf16.mxu0 0
      %463 = vmatpush1.bf16.xpose.msra.mxu0 0
      %464 = vmatprep.subr.bf16.mxu0 0
      %465 = vmatpush1.bf16.xpose.msra.mxu0 0
      %466 = vmatprep.subr.bf16.mxu0 0
      %467 = vmatpush1.bf16.xpose.msra.mxu0 0
      %468 = vmatprep.subr.bf16.mxu0 0
      %469 = vmatpush1.bf16.xpose.msra.mxu0 0
      %470 = vmatprep.mubr.bf16.mxu0 0
      %471 = vmatmul.mubr.bf16.gmra.mrb[0].mxu0 %v433
      %v472 = vpop.f32.mrb[0].mxu0
      %v473 = vadd.f32 %v382, %v472
      %v474 = vpop.f32.mrb[0].mxu0
      %v475 = vpop.f32.mrb[0].mxu0
      %v476 = vadd.f32 %v383, %v475
      %v477 = vpop.f32.mrb[0].mxu0
      %478 = vdwg.mxu0
      %v480 = vsel %vm384, %v368, 0
      %v483 = vsel %vm384, %v380, 0
      %485 = vmatprep.subr.bf16.mxu0 0
      %486 = vmatpush1.bf16.xpose.msra.mxu0 %v483
      %487 = vmatprep.subr.bf16.mxu0 0
      %488 = vmatpush1.bf16.xpose.msra.mxu0 0
      %489 = vmatprep.subr.bf16.mxu0 0
      %490 = vmatpush1.bf16.xpose.msra.mxu0 0
      %491 = vmatprep.subr.bf16.mxu0 0
      %492 = vmatpush1.bf16.xpose.msra.mxu0 0
      %493 = vmatprep.subr.bf16.mxu0 0
      %494 = vmatpush1.bf16.xpose.msra.mxu0 0
      %495 = vmatprep.subr.bf16.mxu0 0
      %496 = vmatpush1.bf16.xpose.msra.mxu0 0
      %497 = vmatprep.subr.bf16.mxu0 0
      %498 = vmatpush1.bf16.xpose.msra.mxu0 0
      %499 = vmatprep.subr.bf16.mxu0 0
      %500 = vmatpush1.bf16.xpose.msra.mxu0 0
      %501 = vmatprep.subr.bf16.mxu0 0
      %502 = vmatpush1.bf16.xpose.msra.mxu0 0
      %503 = vmatprep.subr.bf16.mxu0 0
      %504 = vmatpush1.bf16.xpose.msra.mxu0 0
      %505 = vmatprep.subr.bf16.mxu0 0
      %506 = vmatpush1.bf16.xpose.msra.mxu0 0
      %507 = vmatprep.subr.bf16.mxu0 0
      %508 = vmatpush1.bf16.xpose.msra.mxu0 0
      %509 = vmatprep.subr.bf16.mxu0 0
      %510 = vmatpush1.bf16.xpose.msra.mxu0 0
      %511 = vmatprep.subr.bf16.mxu0 0
      %512 = vmatpush1.bf16.xpose.msra.mxu0 0
      %513 = vmatprep.subr.bf16.mxu0 0
      %514 = vmatpush1.bf16.xpose.msra.mxu0 0
      %515 = vmatprep.subr.bf16.mxu0 0
      %516 = vmatpush1.bf16.xpose.msra.mxu0 0
      %517 = vmatprep.mubr.bf16.mxu0 0
      %518 = vmatmul.mubr.bf16.gmra.mrb[0].mxu0 %v480
      %v519 = vpop.f32.mrb[0].mxu0
      %v520 = vadd.f32 %v382, %v519
      %v521 = vpop.f32.mrb[0].mxu0
      %v522 = vpop.f32.mrb[0].mxu0
      %v523 = vadd.f32 %v383, %v522
      %v524 = vpop.f32.mrb[0].mxu0
      %525 = vdwg.mxu0
      %v527 = vsel %vm384, %v369, 0
      %v530 = vsel %vm384, %v381, 0
      %532 = vmatprep.subr.bf16.mxu0 0
      %533 = vmatpush1.bf16.xpose.msra.mxu0 %v530
      %534 = vmatprep.subr.bf16.mxu0 0
      %535 = vmatpush1.bf16.xpose.msra.mxu0 0
      %536 = vmatprep.subr.bf16.mxu0 0
      %537 = vmatpush1.bf16.xpose.msra.mxu0 0
      %538 = vmatprep.subr.bf16.mxu0 0
      %539 = vmatpush1.bf16.xpose.msra.mxu0 0
      %540 = vmatprep.subr.bf16.mxu0 0
      %541 = vmatpush1.bf16.xpose.msra.mxu0 0
      %542 = vmatprep.subr.bf16.mxu0 0
      %543 = vmatpush1.bf16.xpose.msra.mxu0 0
      %544 = vmatprep.subr.bf16.mxu0 0
      %545 = vmatpush1.bf16.xpose.msra.mxu0 0
      %546 = vmatprep.subr.bf16.mxu0 0
      %547 = vmatpush1.bf16.xpose.msra.mxu0 0
      %548 = vmatprep.subr.bf16.mxu0 0
      %549 = vmatpush1.bf16.xpose.msra.mxu0 0
      %550 = vmatprep.subr.bf16.mxu0 0
      %551 = vmatpush1.bf16.xpose.msra.mxu0 0
      %552 = vmatprep.subr.bf16.mxu0 0
      %553 = vmatpush1.bf16.xpose.msra.mxu0 0
      %554 = vmatprep.subr.bf16.mxu0 0
      %555 = vmatpush1.bf16.xpose.msra.mxu0 0
      %556 = vmatprep.subr.bf16.mxu0 0
      %557 = vmatpush1.bf16.xpose.msra.mxu0 0
      %558 = vmatprep.subr.bf16.mxu0 0
      %559 = vmatpush1.bf16.xpose.msra.mxu0 0
      %560 = vmatprep.subr.bf16.mxu0 0
      %561 = vmatpush1.bf16.xpose.msra.mxu0 0
      %562 = vmatprep.subr.bf16.mxu0 0
      %563 = vmatpush1.bf16.xpose.msra.mxu0 0
      %564 = vmatprep.mubr.bf16.mxu0 0
      %565 = vmatmul.mubr.bf16.gmra.mrb[0].mxu0 %v527
      %v566 = vpop.f32.mrb[0].mxu0
      %v567 = vadd.f32 %v382, %v566
      %v568 = vpop.f32.mrb[0].mxu0
      %v569 = vpop.f32.mrb[0].mxu0
      %v570 = vadd.f32 %v383, %v569
      %v571 = vpop.f32.mrb[0].mxu0
      %572 = vdwg.mxu0
      %vm573 = vcmask 130048
      %v574 = vsel %vm573, %v426, -inf
      %575 = vmax.xlane.f32.xlu0 %v574
      %v576 = vpop.xlane.xlu0 %575
      %v577 = vsel %vm573, %v429, -inf
      %578 = vmax.xlane.f32.xlu0 %v577
      %v579 = vpop.xlane.xlu0 %578
      %v580 = vsel %vm573, %v473, -inf
      %581 = vmax.xlane.f32.xlu0 %v580
      %v582 = vpop.xlane.xlu0 %581
      %v583 = vsel %vm573, %v476, -inf
      %584 = vmax.xlane.f32.xlu0 %v583
      %v585 = vpop.xlane.xlu0 %584
      %v586 = vsel %vm573, %v520, -inf
      %587 = vmax.xlane.f32.xlu0 %v586
      %v588 = vpop.xlane.xlu0 %587
      %v589 = vsel %vm573, %v523, -inf
      %590 = vmax.xlane.f32.xlu0 %v589
      %v591 = vpop.xlane.xlu0 %590
      %v592 = vsel %vm573, %v567, -inf
      %593 = vmax.xlane.f32.xlu0 %v592
      %v594 = vpop.xlane.xlu0 %593
      %v595 = vsel %vm573, %v570, -inf
      %596 = vmax.xlane.f32.xlu0 %v595
      %v597 = vpop.xlane.xlu0 %596
      %v598 = vsub.f32 %v426, %v576
      %v599 = vsub.f32 %v429, %v579
      %v600 = vsub.f32 %v473, %v582
      %v601 = vsub.f32 %v476, %v585
      %v602 = vsub.f32 %v520, %v588
      %v603 = vsub.f32 %v523, %v591
      %v604 = vsub.f32 %v567, %v594
      %v605 = vsub.f32 %v570, %v597
      %v606 = vmul.f32 %v598, 1.442695
      %v607 = vpow.pop %v606
      %v608 = vmul.f32 %v599, 1.442695
      %v609 = vpow.pop %v608
      %v610 = vmul.f32 %v600, 1.442695
      %v611 = vpow.pop %v610
      %v612 = vmul.f32 %v601, 1.442695
      %v613 = vpow.pop %v612
      %v614 = vmul.f32 %v602, 1.442695
      %v615 = vpow.pop %v614
      %v616 = vmul.f32 %v603, 1.442695
      %v617 = vpow.pop %v616
      %v618 = vmul.f32 %v604, 1.442695
      %v619 = vpow.pop %v618
      %v620 = vmul.f32 %v605, 1.442695
      %v621 = vpow.pop %v620
      %v622 = vsel %vm573, %v607, 0.0
      %623 = vadd.xlane.f32.xlu0 %v622
      %v624 = vpop.xlane.xlu0 %623
      %v625 = vsel %vm573, %v609, 0.0
      %626 = vadd.xlane.f32.xlu0 %v625
      %v627 = vpop.xlane.xlu0 %626
      %v628 = vsel %vm573, %v611, 0.0
      %629 = vadd.xlane.f32.xlu0 %v628
      %v630 = vpop.xlane.xlu0 %629
      %v631 = vsel %vm573, %v613, 0.0
      %632 = vadd.xlane.f32.xlu0 %v631
      %v633 = vpop.xlane.xlu0 %632
      %v634 = vsel %vm573, %v615, 0.0
      %635 = vadd.xlane.f32.xlu0 %v634
      %v636 = vpop.xlane.xlu0 %635
      %v637 = vsel %vm573, %v617, 0.0
      %638 = vadd.xlane.f32.xlu0 %v637
      %v639 = vpop.xlane.xlu0 %638
      %v640 = vsel %vm573, %v619, 0.0
      %641 = vadd.xlane.f32.xlu0 %v640
      %v642 = vpop.xlane.xlu0 %641
      %v643 = vsel %vm573, %v621, 0.0
      %644 = vadd.xlane.f32.xlu0 %v643
      %v645 = vpop.xlane.xlu0 %644
      %v646 = vrcp.pop %v624
      %v647 = vrcp.pop %v627
      %v648 = vrcp.pop %v630
      %v649 = vrcp.pop %v633
      %v650 = vrcp.pop %v636
      %v651 = vrcp.pop %v639
      %v652 = vrcp.pop %v642
      %v653 = vrcp.pop %v645
      %v654 = vmul.f32 %v607, %v646
      %v655 = vmul.f32 %v609, %v647
      %v656 = vmul.f32 %v611, %v648
      %v657 = vmul.f32 %v613, %v649
      %v658 = vmul.f32 %v615, %v650
      %v659 = vmul.f32 %v617, %v651
      %v660 = vmul.f32 %v619, %v652
      %v661 = vmul.f32 %v621, %v653
      %v662 = vpack.c.bf16 %v655, %v654
      %v663 = vpack.c.bf16 %v657, %v656
      %v664 = vpack.c.bf16 %v659, %v658
      %v665 = vpack.c.bf16 %v661, %v660
      %v666 = vld [vmem:[%s343] sm:$0xff]
      %v667 = vld [vmem:[%s343 + $0x8] sm:$0xff]
      %v668 = vld [vmem:[%s343 + $0x10] sm:$0xff]
      %v669 = vld [vmem:[%s343 + $0x18] sm:$0xff]
      %v670 = vld [vmem:[%s343 + $0x20] sm:$0xff]
      %v671 = vld [vmem:[%s343 + $0x28] sm:$0xff]
      %v672 = vld [vmem:[%s343 + $0x30] sm:$0xff]
      %v673 = vld [vmem:[%s343 + $0x38] sm:$0xff]
      %v674 = vpack.c.bf16 %v667, %v666
      %v675 = vpack.c.bf16 %v669, %v668
      %v676 = vpack.c.bf16 %v671, %v670
      %v677 = vpack.c.bf16 %v673, %v672
      %v679 = vsel %vm573, %v662, 0
      %681 = vmatprep.subr.bf16.mxu0 0
      %682 = vmatpush1.bf16.msra.mxu0 %v674
      %683 = vmatprep.subr.bf16.mxu0 0
      %684 = vmatpush1.bf16.msra.mxu0 0
      %685 = vmatprep.subr.bf16.mxu0 0
      %686 = vmatpush1.bf16.msra.mxu0 0
      %687 = vmatprep.subr.bf16.mxu0 0
      %688 = vmatpush1.bf16.msra.mxu0 0
      %689 = vmatprep.subr.bf16.mxu0 0
      %690 = vmatpush1.bf16.msra.mxu0 0
      %691 = vmatprep.subr.bf16.mxu0 0
      %692 = vmatpush1.bf16.msra.mxu0 0
      %693 = vmatprep.subr.bf16.mxu0 0
      %694 = vmatpush1.bf16.msra.mxu0 0
      %695 = vmatprep.subr.bf16.mxu0 0
      %696 = vmatpush1.bf16.msra.mxu0 0
      %697 = vmatprep.subr.bf16.mxu0 0
      %698 = vmatpush1.bf16.msra.mxu0 0
      %699 = vmatprep.subr.bf16.mxu0 0
      %700 = vmatpush1.bf16.msra.mxu0 0
      %701 = vmatprep.subr.bf16.mxu0 0
      %702 = vmatpush1.bf16.msra.mxu0 0
      %703 = vmatprep.subr.bf16.mxu0 0
      %704 = vmatpush1.bf16.msra.mxu0 0
      %705 = vmatprep.subr.bf16.mxu0 0
      %706 = vmatpush1.bf16.msra.mxu0 0
      %707 = vmatprep.subr.bf16.mxu0 0
      %708 = vmatpush1.bf16.msra.mxu0 0
      %709 = vmatprep.subr.bf16.mxu0 0
      %710 = vmatpush1.bf16.msra.mxu0 0
      %711 = vmatprep.subr.bf16.mxu0 0
      %712 = vmatpush1.bf16.msra.mxu0 0
      %713 = vmatprep.mubr.bf16.mxu0 0
      %714 = vmatmul.mubr.bf16.gmra.mrb[0].mxu0 %v679
      %v715 = vpop.f32.mrb[0].mxu0
      %v716 = vadd.f32 0.0, %v715
      %v717 = vpop.f32.mrb[0].mxu0
      %v718 = vpop.f32.mrb[0].mxu0
      %v719 = vadd.f32 0.0, %v718
      %v720 = vpop.f32.mrb[0].mxu0
      %721 = vdwg.mxu0
      %v723 = vsel %vm573, %v663, 0
      %725 = vmatprep.subr.bf16.mxu0 0
      %726 = vmatpush1.bf16.msra.mxu0 %v675
      %727 = vmatprep.subr.bf16.mxu0 0
      %728 = vmatpush1.bf16.msra.mxu0 0
      %729 = vmatprep.subr.bf16.mxu0 0
      %730 = vmatpush1.bf16.msra.mxu0 0
      %731 = vmatprep.subr.bf16.mxu0 0
      %732 = vmatpush1.bf16.msra.mxu0 0
      %733 = vmatprep.subr.bf16.mxu0 0
      %734 = vmatpush1.bf16.msra.mxu0 0
      %735 = vmatprep.subr.bf16.mxu0 0
      %736 = vmatpush1.bf16.msra.mxu0 0
      %737 = vmatprep.subr.bf16.mxu0 0
      %738 = vmatpush1.bf16.msra.mxu0 0
      %739 = vmatprep.subr.bf16.mxu0 0
      %740 = vmatpush1.bf16.msra.mxu0 0
      %741 = vmatprep.subr.bf16.mxu0 0
      %742 = vmatpush1.bf16.msra.mxu0 0
      %743 = vmatprep.subr.bf16.mxu0 0
      %744 = vmatpush1.bf16.msra.mxu0 0
      %745 = vmatprep.subr.bf16.mxu0 0
      %746 = vmatpush1.bf16.msra.mxu0 0
      %747 = vmatprep.subr.bf16.mxu0 0
      %748 = vmatpush1.bf16.msra.mxu0 0
      %749 = vmatprep.subr.bf16.mxu0 0
      %750 = vmatpush1.bf16.msra.mxu0 0
      %751 = vmatprep.subr.bf16.mxu0 0
      %752 = vmatpush1.bf16.msra.mxu0 0
      %753 = vmatprep.subr.bf16.mxu0 0
      %754 = vmatpush1.bf16.msra.mxu0 0
      %755 = vmatprep.subr.bf16.mxu0 0
      %756 = vmatpush1.bf16.msra.mxu0 0
      %757 = vmatprep.mubr.bf16.mxu0 0
      %758 = vmatmul.mubr.bf16.gmra.mrb[0].mxu0 %v723
      %v759 = vpop.f32.mrb[0].mxu0
      %v760 = vadd.f32 0.0, %v759
      %v761 = vpop.f32.mrb[0].mxu0
      %v762 = vpop.f32.mrb[0].mxu0
      %v763 = vadd.f32 0.0, %v762
      %v764 = vpop.f32.mrb[0].mxu0
      %765 = vdwg.mxu0
      %v767 = vsel %vm573, %v664, 0
      %769 = vmatprep.subr.bf16.mxu0 0
      %770 = vmatpush1.bf16.msra.mxu0 %v676
      %771 = vmatprep.subr.bf16.mxu0 0
      %772 = vmatpush1.bf16.msra.mxu0 0
      %773 = vmatprep.subr.bf16.mxu0 0
      %774 = vmatpush1.bf16.msra.mxu0 0
      %775 = vmatprep.subr.bf16.mxu0 0
      %776 = vmatpush1.bf16.msra.mxu0 0
      %777 = vmatprep.subr.bf16.mxu0 0
      %778 = vmatpush1.bf16.msra.mxu0 0
      %779 = vmatprep.subr.bf16.mxu0 0
      %780 = vmatpush1.bf16.msra.mxu0 0
      %781 = vmatprep.subr.bf16.mxu0 0
      %782 = vmatpush1.bf16.msra.mxu0 0
      %783 = vmatprep.subr.bf16.mxu0 0
      %784 = vmatpush1.bf16.msra.mxu0 0
      %785 = vmatprep.subr.bf16.mxu0 0
      %786 = vmatpush1.bf16.msra.mxu0 0
      %787 = vmatprep.subr.bf16.mxu0 0
      %788 = vmatpush1.bf16.msra.mxu0 0
      %789 = vmatprep.subr.bf16.mxu0 0
      %790 = vmatpush1.bf16.msra.mxu0 0
      %791 = vmatprep.subr.bf16.mxu0 0
      %792 = vmatpush1.bf16.msra.mxu0 0
      %793 = vmatprep.subr.bf16.mxu0 0
      %794 = vmatpush1.bf16.msra.mxu0 0
      %795 = vmatprep.subr.bf16.mxu0 0
      %796 = vmatpush1.bf16.msra.mxu0 0
      %797 = vmatprep.subr.bf16.mxu0 0
      %798 = vmatpush1.bf16.msra.mxu0 0
      %799 = vmatprep.subr.bf16.mxu0 0
      %800 = vmatpush1.bf16.msra.mxu0 0
      %801 = vmatprep.mubr.bf16.mxu0 0
      %802 = vmatmul.mubr.bf16.gmra.mrb[0].mxu0 %v767
      %v803 = vpop.f32.mrb[0].mxu0
      %v804 = vadd.f32 0.0, %v803
      %v805 = vpop.f32.mrb[0].mxu0
      %v806 = vpop.f32.mrb[0].mxu0
      %v807 = vadd.f32 0.0, %v806
      %v808 = vpop.f32.mrb[0].mxu0
      %809 = vdwg.mxu0
      %v811 = vsel %vm573, %v665, 0
      %813 = vmatprep.subr.bf16.mxu0 0
      %814 = vmatpush1.bf16.msra.mxu0 %v677
      %815 = vmatprep.subr.bf16.mxu0 0
      %816 = vmatpush1.bf16.msra.mxu0 0
      %817 = vmatprep.subr.bf16.mxu0 0
      %818 = vmatpush1.bf16.msra.mxu0 0
      %819 = vmatprep.subr.bf16.mxu0 0
      %820 = vmatpush1.bf16.msra.mxu0 0
      %821 = vmatprep.subr.bf16.mxu0 0
      %822 = vmatpush1.bf16.msra.mxu0 0
      %823 = vmatprep.subr.bf16.mxu0 0
      %824 = vmatpush1.bf16.msra.mxu0 0
      %825 = vmatprep.subr.bf16.mxu0 0
      %826 = vmatpush1.bf16.msra.mxu0 0
      %827 = vmatprep.subr.bf16.mxu0 0
      %828 = vmatpush1.bf16.msra.mxu0 0
      %829 = vmatprep.subr.bf16.mxu0 0
      %830 = vmatpush1.bf16.msra.mxu0 0
      %831 = vmatprep.subr.bf16.mxu0 0
      %832 = vmatpush1.bf16.msra.mxu0 0
      %833 = vmatprep.subr.bf16.mxu0 0
      %834 = vmatpush1.bf16.msra.mxu0 0
      %835 = vmatprep.subr.bf16.mxu0 0
      %836 = vmatpush1.bf16.msra.mxu0 0
      %837 = vmatprep.subr.bf16.mxu0 0
      %838 = vmatpush1.bf16.msra.mxu0 0
      %839 = vmatprep.subr.bf16.mxu0 0
      %840 = vmatpush1.bf16.msra.mxu0 0
      %841 = vmatprep.subr.bf16.mxu0 0
      %842 = vmatpush1.bf16.msra.mxu0 0
      %843 = vmatprep.subr.bf16.mxu0 0
      %844 = vmatpush1.bf16.msra.mxu0 0
      %845 = vmatprep.mubr.bf16.mxu0 0
      %846 = vmatmul.mubr.bf16.gmra.mrb[0].mxu0 %v811
      %v847 = vpop.f32.mrb[0].mxu0
      %v848 = vadd.f32 0.0, %v847
      %v849 = vpop.f32.mrb[0].mxu0
      %v850 = vpop.f32.mrb[0].mxu0
      %v851 = vadd.f32 0.0, %v850
      %v852 = vpop.f32.mrb[0].mxu0
      %853 = vdwg.mxu0
      %v854 = vmax.f32 %v716, 0.0
      %v855 = vmax.f32 %v719, 0.0
      %v856 = vmax.f32 %v760, 0.0
      %v857 = vmax.f32 %v763, 0.0
      %v858 = vmax.f32 %v804, 0.0
      %v859 = vmax.f32 %v807, 0.0
      %v860 = vmax.f32 %v848, 0.0
      %v861 = vmax.f32 %v851, 0.0
      %v862 = vpack.c.bf16 %v855, %v854
      %v863 = vpack.c.bf16 %v857, %v856
      %v864 = vpack.c.bf16 %v859, %v858
      %v865 = vpack.c.bf16 %v861, %v860
      %v866 = vld [vmem:[%s4] sm:$0xf]
      %v867 = vld [vmem:[%s4 + $0x4] sm:$0xf]
      %v868 = vld [vmem:[%s5] sm:$0x1]
      %v870 = vlaneseq
      %v871 = vshrl.u32 %v870, 7
      %v872 = vsub.s32 0, %v871
      %v873 = vrot.slane %v868, %v872
      %v877 = vunpack.c.l.b16 %v866
      %v878 = vunpack.c.l.b16 %v867
      %v879 = vpack.c.b16 %v878, %v877
      %v882 = vsel %vm573, %v862, 0
      %v885 = vsel %vm573, %v863, 0
      %v888 = vsel %vm573, %v864, 0
      %v891 = vsel %vm573, %v865, 0
      %893 = vmatprep.subr.bf16.mxu0 0
      %894 = vmatpush1.bf16.msra.mxu0 %v879
      %895 = vmatprep.subr.bf16.mxu0 0
      %896 = vmatpush1.bf16.msra.mxu0 0
      %897 = vmatprep.subr.bf16.mxu0 0
      %898 = vmatpush1.bf16.msra.mxu0 0
      %899 = vmatprep.subr.bf16.mxu0 0
      %900 = vmatpush1.bf16.msra.mxu0 0
      %901 = vmatprep.subr.bf16.mxu0 0
      %902 = vmatpush1.bf16.msra.mxu0 0
      %903 = vmatprep.subr.bf16.mxu0 0
      %904 = vmatpush1.bf16.msra.mxu0 0
      %905 = vmatprep.subr.bf16.mxu0 0
      %906 = vmatpush1.bf16.msra.mxu0 0
      %907 = vmatprep.subr.bf16.mxu0 0
      %908 = vmatpush1.bf16.msra.mxu0 0
      %909 = vmatprep.subr.bf16.mxu0 0
      %910 = vmatpush1.bf16.msra.mxu0 0
      %911 = vmatprep.subr.bf16.mxu0 0
      %912 = vmatpush1.bf16.msra.mxu0 0
      %913 = vmatprep.subr.bf16.mxu0 0
      %914 = vmatpush1.bf16.msra.mxu0 0
      %915 = vmatprep.subr.bf16.mxu0 0
      %916 = vmatpush1.bf16.msra.mxu0 0
      %917 = vmatprep.subr.bf16.mxu0 0
      %918 = vmatpush1.bf16.msra.mxu0 0
      %919 = vmatprep.subr.bf16.mxu0 0
      %920 = vmatpush1.bf16.msra.mxu0 0
      %921 = vmatprep.subr.bf16.mxu0 0
      %922 = vmatpush1.bf16.msra.mxu0 0
      %923 = vmatprep.subr.bf16.mxu0 0
      %924 = vmatpush1.bf16.msra.mxu0 0
      %925 = vmatprep.mubr.bf16.mxu0 0
      %926 = vmatmul.mubr.bf16.gmra.mrb[0].mxu0 %v882
      %v927 = vpop.f32.mrb[0].mxu0
      %v928 = vadd.f32 %v873, %v927
      %v929 = vpop.f32.mrb[0].mxu0
      %v930 = vpop.f32.mrb[0].mxu0
      %v931 = vadd.f32 %v873, %v930
      %v932 = vpop.f32.mrb[0].mxu0
      %933 = vmatprep.mubr.bf16.mxu0 0
      %934 = vmatmul.mubr.bf16.gmra.mrb[0].mxu0 %v885
      %v935 = vpop.f32.mrb[0].mxu0
      %v936 = vadd.f32 %v873, %v935
      %v937 = vpop.f32.mrb[0].mxu0
      %v938 = vpop.f32.mrb[0].mxu0
      %v939 = vadd.f32 %v873, %v938
      %v940 = vpop.f32.mrb[0].mxu0
      %941 = vmatprep.mubr.bf16.mxu0 0
      %942 = vmatmul.mubr.bf16.gmra.mrb[0].mxu0 %v888
      %v943 = vpop.f32.mrb[0].mxu0
      %v944 = vadd.f32 %v873, %v943
      %v945 = vpop.f32.mrb[0].mxu0
      %v946 = vpop.f32.mrb[0].mxu0
      %v947 = vadd.f32 %v873, %v946
      %v948 = vpop.f32.mrb[0].mxu0
      %949 = vmatprep.mubr.bf16.mxu0 0
      %950 = vmatmul.mubr.bf16.gmra.mrb[0].mxu0 %v891
      %v951 = vpop.f32.mrb[0].mxu0
      %v952 = vadd.f32 %v873, %v951
      %v953 = vpop.f32.mrb[0].mxu0
      %v954 = vpop.f32.mrb[0].mxu0
      %v955 = vadd.f32 %v873, %v954
      %v956 = vpop.f32.mrb[0].mxu0
      %957 = vdwg.mxu0
      %v958 = vld [vmem:[%s349] sm:$0xff]
      %v959 = vld [vmem:[%s349 + $0x8] sm:$0xff]
      %v960 = vld [vmem:[%s349 + $0x10] sm:$0xff]
      %v961 = vld [vmem:[%s349 + $0x18] sm:$0xff]
      %v962 = vld [vmem:[%s349 + $0x20] sm:$0xff]
      %v963 = vld [vmem:[%s349 + $0x28] sm:$0xff]
      %v964 = vld [vmem:[%s349 + $0x30] sm:$0xff]
      %v965 = vld [vmem:[%s349 + $0x38] sm:$0xff]
      %v966 = vadd.f32 %v928, %v958
      %v967 = vadd.f32 %v931, %v959
      %v968 = vadd.f32 %v936, %v960
      %v969 = vadd.f32 %v939, %v961
      %v970 = vadd.f32 %v944, %v962
      %v971 = vadd.f32 %v947, %v963
      %v972 = vadd.f32 %v952, %v964
      %v973 = vadd.f32 %v955, %v965
      %974 = vst.msk [vmem:[%s355] sm:$0xff] %vm573, %v966
      %975 = vst.msk [vmem:[%s355 + $0x8] sm:$0xff] %vm573, %v967
      %976 = vst.msk [vmem:[%s355 + $0x10] sm:$0xff] %vm573, %v968
      %977 = vst.msk [vmem:[%s355 + $0x18] sm:$0xff] %vm573, %v969
      %978 = vst.msk [vmem:[%s355 + $0x20] sm:$0xff] %vm573, %v970
      %979 = vst.msk [vmem:[%s355 + $0x28] sm:$0xff] %vm573, %v971
      %980 = vst.msk [vmem:[%s355 + $0x30] sm:$0xff] %vm573, %v972
      %981 = vst.msk [vmem:[%s355 + $0x38] sm:$0xff] %vm573, %v973
      %s982 = smul.u32 8, %s18
      %p983 = scmp.lt.s32.totalorder %s982, 15
      %s984 = scalar_select %p983, %s982, 15
      %s985 = smul.addr %s984, 8
      %s986 = scalar_lea.vmem %s7, %s985
      // Predicated region
      $region49: #{_lambda_.6} parent=47 // pred_check
        %p987 = pneg %p203
      $region50: #{_lambda_.6} parent=47 // pred_check_branch
        %989 = sbr.rel (%p987) target = $region52
      $region51: #{_lambda_.6} parent=47 // pred_region
        %s990 = smul.u32 8, %s18
      $region52: #{_lambda_.6} parent=47 // pred_fallthru
        _
    $region48: #{_lambda_.6} parent=5 // pred_fallthru
      _
    %p991 = scmp.le.s32.totalorder 2, %s13
    // Predicated region
    $region53: #{_lambda_.6} parent=5 // pred_check
      %p992 = pneg %p991
    $region54: #{_lambda_.6} parent=5 // pred_check_branch
      %994 = sbr.rel (%p992) target = $region56
    $region55: #{_lambda_.6} parent=5 // pred_region
      %s995 = ssub.s32 %s13, 2
      // Predicated region
      $region57: #{_lambda_.6} parent=55 // pred_check
        %p996 = pneg %p209
      $region58: #{_lambda_.6} parent=55 // pred_check_branch
        %998 = sbr.rel (%p996) target = $region60
      $region59: #{_lambda_.6} parent=55 // pred_region
        %s999 = smul.u32 8, %s19
        %p1000 = scmp.lt.s32.totalorder %s999, 15
        %s1001 = scalar_select %p1000, %s999, 15
        %s1002 = smul.addr %s1001, 8
        %s1003 = scalar_lea.vmem %s7, %s1002
      $region60: #{_lambda_.6} parent=55 // pred_fallthru
        _
    $region56: #{_lambda_.6} parent=5 // pred_fallthru
      _
  $region6: #{_lambda_.6} parent=0 // loop_footer
    %s17 = sadd.s32 1, %s13
  $region7: #{_lambda_.6} parent=0 // loop_footer_branch
    %12 = sbr.rel target = $region3
  $region8: #{_lambda_.6} parent=0 // loop_exit
    _

// kernel: _lambda_.7
$region0: #{_lambda_.7}
  #allocation0 [shape = 'u32[]', space=smem, size = 0x4, offset = 0x4, fixed_abs, tag = 'smem constant byte address 0x4 - core index']
  #allocation1 [shape = 'u32[144,128]{1,0:T(1,128)}', space=vmem, size = 0x12000, scoped, tag = 'internal scratch']
  %s0 = inlined_call_operand.vmem [shape: f32[2,10,10,16], index: 0, kind: input, shape index: {}]
  %s1 = inlined_call_operand.vmem [shape: f32[9,1,16], index: 1, kind: input, shape index: {}]
  %s2 = inlined_call_operand.vmem [shape: f32[1,1,16], index: 2, kind: input, shape index: {}]
  %s3 = inlined_call_operand.vmem [shape: bf16[16,32], index: 3, kind: input, shape index: {}]
  %s4 = inlined_call_operand.vmem [shape: f32[1,32], index: 4, kind: input, shape index: {}]
  %s5 = inlined_call_operand.vmem [shape: bf16[32,16], index: 5, kind: input, shape index: {}]
  %s6 = inlined_call_operand.vmem [shape: f32[1,16], index: 6, kind: input, shape index: {}]
  %s7 = inlined_call_operand.hbm [shape: f32[2,64,16], index: 7, kind: output, shape index: {}]
  %s8 = sld [smem:[#allocation0]]
  $region61: #{_lambda_.7} parent=0
    _
  %s10 = ssub.s32 1, %s8
  %s11 = scalar_select 0, %s10, %s8
  $region1: #{_lambda_.7} parent=0
    #allocation2 [shape = 'u8[65536]{0}', space=vmem, size = 0x10000, scoped, tag = 'output window, operand 0']
    #allocation3 [shape = 's32[2]{0}', space=sflag, size = 0x8, scoped, tag = 'scoped memory for _lambda_.7']
    %12 = vsyncpa [#allocation3], 0
    %s13 = scalar_lea.sflag [#allocation3], 1
    %14 = vsyncpa %s13, 0
    loop: start=0, step=1, limit=4
    $region2: #{_lambda_.7} parent=1 // loop_pre_header
      _
    $region3: #{_lambda_.7} parent=1 // loop_header
      %s16 = sphi 0, %s20
      %p17 = scmp.ge.s32.totalorder %s16, 4
      %s26 = sphi 0, %s28
      %s29 = sphi 0, %s26
      %s30 = sphi 0, %s29
      %s46 = sphi 0, %s30
      %s50 = sphi 0, %s50
      %s52 = sphi 0, %s50
      %s53 = sphi 0, %s52
      %s67 = sphi 0, %s53
      %s71 = sphi 0, %s71
      %s73 = sphi 0, %s71
      %s74 = sphi 0, %s73
      %s88 = sphi 0, %s74
      %s92 = sphi 0, %s92
      %s94 = sphi 0, %s92
      %s95 = sphi 0, %s94
      %s109 = sphi 0, %s95
      %s113 = sphi 0, %s113
      %s115 = sphi 0, %s113
      %s116 = sphi 0, %s115
      %s130 = sphi 0, %s116
      %s134 = sphi 0, %s134
      %s136 = sphi 0, %s134
      %s137 = sphi 0, %s136
      %s151 = sphi 0, %s137
      %s155 = sphi 0, %s155
      %s157 = sphi 0, %s155
      %s158 = sphi 0, %s157
      %s172 = sphi 0, %s158
      %s178 = sphi 0, %s180
      %s181 = sphi 0, %s178
      %s182 = sphi 0, %s181
      %s198 = sphi 0, %s182
    $region4: #{_lambda_.7} parent=1 // loop_header_branch
      %19 = sbr.rel (%p17) target = $region8
    $region5: #{_lambda_.7} parent=1 // loop_body
      %s21 = ssub.s32 %s16, 1
      %s22 = ssub.s32 %s16, 2
      %s23 = sadd.s32 %s16, 1
      %s24 = ssub.s32 %s16, %s23
      %p25 = scmp.eq.s32.totalorder %s24, 0
      %s27 = sadd.s32 %s26, 1
      %s28 = scalar_select %p25, %s26, %s27
      %p31 = pneg %p25
      %p32 = scmp.eq.s32.totalorder %s16, 1
      %p33 = por %p31, %p32
      %p34 = scmp.ne.s32.totalorder %s26, %s29
      %p35 = scmp.eq.s32.totalorder %s16, 0
      %p36 = por %p34, %p35
      %p37 = scmp.ne.s32.totalorder %s26, %s29
      %p38 = scmp.eq.s32.totalorder %s21, 1
      %p39 = por %p37, %p38
      %p40 = scmp.ne.s32.totalorder %s29, %s30
      %p41 = scmp.eq.s32.totalorder %s21, 0
      %p42 = por %p40, %p41
      %p43 = scmp.ne.s32.totalorder %s29, %s30
      %p44 = scmp.eq.s32.totalorder %s22, 1
      %p45 = por %p43, %p44
      %p47 = scmp.ne.s32.totalorder %s30, %s46
      %p48 = scmp.eq.s32.totalorder %s22, 0
      %p49 = por %p47, %p48
      %s51 = sadd.s32 %s50, 1
      %p54 = scmp.eq.s32.totalorder %s16, 1
      %p55 = scmp.ne.s32.totalorder %s50, %s52
      %p56 = scmp.eq.s32.totalorder %s16, 0
      %p57 = por %p55, %p56
      %p58 = scmp.ne.s32.totalorder %s50, %s52
      %p59 = scmp.eq.s32.totalorder %s21, 1
      %p60 = por %p58, %p59
      %p61 = scmp.ne.s32.totalorder %s52, %s53
      %p62 = scmp.eq.s32.totalorder %s21, 0
      %p63 = por %p61, %p62
      %p64 = scmp.ne.s32.totalorder %s52, %s53
      %p65 = scmp.eq.s32.totalorder %s22, 1
      %p66 = por %p64, %p65
      %p68 = scmp.ne.s32.totalorder %s53, %s67
      %p69 = scmp.eq.s32.totalorder %s22, 0
      %p70 = por %p68, %p69
      %s72 = sadd.s32 %s71, 1
      %p75 = scmp.eq.s32.totalorder %s16, 1
      %p76 = scmp.ne.s32.totalorder %s71, %s73
      %p77 = scmp.eq.s32.totalorder %s16, 0
      %p78 = por %p76, %p77
      %p79 = scmp.ne.s32.totalorder %s71, %s73
      %p80 = scmp.eq.s32.totalorder %s21, 1
      %p81 = por %p79, %p80
      %p82 = scmp.ne.s32.totalorder %s73, %s74
      %p83 = scmp.eq.s32.totalorder %s21, 0
      %p84 = por %p82, %p83
      %p85 = scmp.ne.s32.totalorder %s73, %s74
      %p86 = scmp.eq.s32.totalorder %s22, 1
      %p87 = por %p85, %p86
      %p89 = scmp.ne.s32.totalorder %s74, %s88
      %p90 = scmp.eq.s32.totalorder %s22, 0
      %p91 = por %p89, %p90
      %s93 = sadd.s32 %s92, 1
      %p96 = scmp.eq.s32.totalorder %s16, 1
      %p97 = scmp.ne.s32.totalorder %s92, %s94
      %p98 = scmp.eq.s32.totalorder %s16, 0
      %p99 = por %p97, %p98
      %p100 = scmp.ne.s32.totalorder %s92, %s94
      %p101 = scmp.eq.s32.totalorder %s21, 1
      %p102 = por %p100, %p101
      %p103 = scmp.ne.s32.totalorder %s94, %s95
      %p104 = scmp.eq.s32.totalorder %s21, 0
      %p105 = por %p103, %p104
      %p106 = scmp.ne.s32.totalorder %s94, %s95
      %p107 = scmp.eq.s32.totalorder %s22, 1
      %p108 = por %p106, %p107
      %p110 = scmp.ne.s32.totalorder %s95, %s109
      %p111 = scmp.eq.s32.totalorder %s22, 0
      %p112 = por %p110, %p111
      %s114 = sadd.s32 %s113, 1
      %p117 = scmp.eq.s32.totalorder %s16, 1
      %p118 = scmp.ne.s32.totalorder %s113, %s115
      %p119 = scmp.eq.s32.totalorder %s16, 0
      %p120 = por %p118, %p119
      %p121 = scmp.ne.s32.totalorder %s113, %s115
      %p122 = scmp.eq.s32.totalorder %s21, 1
      %p123 = por %p121, %p122
      %p124 = scmp.ne.s32.totalorder %s115, %s116
      %p125 = scmp.eq.s32.totalorder %s21, 0
      %p126 = por %p124, %p125
      %p127 = scmp.ne.s32.totalorder %s115, %s116
      %p128 = scmp.eq.s32.totalorder %s22, 1
      %p129 = por %p127, %p128
      %p131 = scmp.ne.s32.totalorder %s116, %s130
      %p132 = scmp.eq.s32.totalorder %s22, 0
      %p133 = por %p131, %p132
      %s135 = sadd.s32 %s134, 1
      %p138 = scmp.eq.s32.totalorder %s16, 1
      %p139 = scmp.ne.s32.totalorder %s134, %s136
      %p140 = scmp.eq.s32.totalorder %s16, 0
      %p141 = por %p139, %p140
      %p142 = scmp.ne.s32.totalorder %s134, %s136
      %p143 = scmp.eq.s32.totalorder %s21, 1
      %p144 = por %p142, %p143
      %p145 = scmp.ne.s32.totalorder %s136, %s137
      %p146 = scmp.eq.s32.totalorder %s21, 0
      %p147 = por %p145, %p146
      %p148 = scmp.ne.s32.totalorder %s136, %s137
      %p149 = scmp.eq.s32.totalorder %s22, 1
      %p150 = por %p148, %p149
      %p152 = scmp.ne.s32.totalorder %s137, %s151
      %p153 = scmp.eq.s32.totalorder %s22, 0
      %p154 = por %p152, %p153
      %s156 = sadd.s32 %s155, 1
      %p159 = scmp.eq.s32.totalorder %s16, 1
      %p160 = scmp.ne.s32.totalorder %s155, %s157
      %p161 = scmp.eq.s32.totalorder %s16, 0
      %p162 = por %p160, %p161
      %p163 = scmp.ne.s32.totalorder %s155, %s157
      %p164 = scmp.eq.s32.totalorder %s21, 1
      %p165 = por %p163, %p164
      %p166 = scmp.ne.s32.totalorder %s157, %s158
      %p167 = scmp.eq.s32.totalorder %s21, 0
      %p168 = por %p166, %p167
      %p169 = scmp.ne.s32.totalorder %s157, %s158
      %p170 = scmp.eq.s32.totalorder %s22, 1
      %p171 = por %p169, %p170
      %p173 = scmp.ne.s32.totalorder %s158, %s172
      %p174 = scmp.eq.s32.totalorder %s22, 0
      %p175 = por %p173, %p174
      %s176 = ssub.s32 %s16, %s23
      %p177 = scmp.eq.s32.totalorder %s176, 0
      %s179 = sadd.s32 %s178, 1
      %s180 = scalar_select %p177, %s178, %s179
      %p183 = pneg %p177
      %p184 = scmp.eq.s32.totalorder %s16, 1
      %p185 = por %p183, %p184
      %p186 = scmp.ne.s32.totalorder %s178, %s181
      %p187 = scmp.eq.s32.totalorder %s16, 0
      %p188 = por %p186, %p187
      %p189 = scmp.ne.s32.totalorder %s178, %s181
      %p190 = scmp.eq.s32.totalorder %s21, 1
      %p191 = por %p189, %p190
      %p192 = scmp.ne.s32.totalorder %s181, %s182
      %p193 = scmp.eq.s32.totalorder %s21, 0
      %p194 = por %p192, %p193
      %p195 = scmp.ne.s32.totalorder %s181, %s182
      %p196 = scmp.eq.s32.totalorder %s22, 1
      %p197 = por %p195, %p196
      %p199 = scmp.ne.s32.totalorder %s182, %s198
      %p200 = scmp.eq.s32.totalorder %s22, 0
      %p201 = por %p199, %p200
      %p202 = scmp.le.s32.totalorder 1, %s16
      %p203 = scmp.lt.s32.totalorder %s16, 3
      %p204 = pnand %p202, %p203
      %p205 = pneg %p204
      // Predicated region
      $region9: #{_lambda_.7} parent=5 // pred_check
        _
      $region10: #{_lambda_.7} parent=5 // pred_check_branch
        %207 = sbr.rel (%p204) target = $region12
      $region11: #{_lambda_.7} parent=5 // pred_region
        %s208 = ssub.s32 %s16, 1
        // Predicated region
        $region13: #{_lambda_.7} parent=11 // pred_check
          %p209 = pneg %p63
        $region14: #{_lambda_.7} parent=11 // pred_check_branch
          %211 = sbr.rel (%p209) target = $region16
        $region15: #{_lambda_.7} parent=11 // pred_region
          _
        $region16: #{_lambda_.7} parent=11 // pred_fallthru
          _
        // Predicated region
        $region17: #{_lambda_.7} parent=11 // pred_check
          %p212 = pneg %p84
        $region18: #{_lambda_.7} parent=11 // pred_check_branch
          %214 = sbr.rel (%p212) target = $region20
        $region19: #{_lambda_.7} parent=11 // pred_region
          _
        $region20: #{_lambda_.7} parent=11 // pred_fallthru
          _
        // Predicated region
        $region21: #{_lambda_.7} parent=11 // pred_check
          %p215 = pneg %p105
        $region22: #{_lambda_.7} parent=11 // pred_check_branch
          %217 = sbr.rel (%p215) target = $region24
        $region23: #{_lambda_.7} parent=11 // pred_region
          _
        $region24: #{_lambda_.7} parent=11 // pred_fallthru
          _
        // Predicated region
        $region25: #{_lambda_.7} parent=11 // pred_check
          %p218 = pneg %p126
        $region26: #{_lambda_.7} parent=11 // pred_check_branch
          %220 = sbr.rel (%p218) target = $region28
        $region27: #{_lambda_.7} parent=11 // pred_region
          _
        $region28: #{_lambda_.7} parent=11 // pred_fallthru
          _
        // Predicated region
        $region29: #{_lambda_.7} parent=11 // pred_check
          %p221 = pneg %p147
        $region30: #{_lambda_.7} parent=11 // pred_check_branch
          %223 = sbr.rel (%p221) target = $region32
        $region31: #{_lambda_.7} parent=11 // pred_region
          _
        $region32: #{_lambda_.7} parent=11 // pred_fallthru
          _
        // Predicated region
        $region33: #{_lambda_.7} parent=11 // pred_check
          %p224 = pneg %p168
        $region34: #{_lambda_.7} parent=11 // pred_check_branch
          %226 = sbr.rel (%p224) target = $region36
        $region35: #{_lambda_.7} parent=11 // pred_region
          _
        $region36: #{_lambda_.7} parent=11 // pred_fallthru
          _
      $region12: #{_lambda_.7} parent=5 // pred_fallthru
        _
      %p227 = scmp.lt.s32.totalorder %s16, 2
      // Predicated region
      $region37: #{_lambda_.7} parent=5 // pred_check
        %p228 = pneg %p227
      $region38: #{_lambda_.7} parent=5 // pred_check_branch
        %230 = sbr.rel (%p228) target = $region40
      $region39: #{_lambda_.7} parent=5 // pred_region
        // Predicated region
        $region41: #{_lambda_.7} parent=39 // pred_check
          %p231 = pneg %p36
        $region42: #{_lambda_.7} parent=39 // pred_check_branch
          %233 = sbr.rel (%p231) target = $region44
        $region43: #{_lambda_.7} parent=39 // pred_region
          %p234 = scmp.lt.s32.totalorder %s16, 1
          %s235 = scalar_select %p234, %s16, 1
          %s236 = smul.addr %s235, 20
          %s237 = smul.addr %s236, 8
          %s238 = scalar_lea.vmem %s0, %s237
        $region44: #{_lambda_.7} parent=39 // pred_fallthru
          _
      $region40: #{_lambda_.7} parent=5 // pred_fallthru
        _
      %p239 = scmp.le.s32.totalorder 1, %s16
      %p240 = scmp.lt.s32.totalorder %s16, 3
      %p241 = pnand %p239, %p240
      %p242 = pneg %p241
      // Predicated region
      $region45: #{_lambda_.7} parent=5 // pred_check
        _
      $region46: #{_lambda_.7} parent=5 // pred_check_branch
        %244 = sbr.rel (%p241) target = $region48
      $region47: #{_lambda_.7} parent=5 // pred_region
        %s245 = ssub.s32 %s16, 1
        %p246 = scmp.lt.s32.totalorder %s21, 1
        %s247 = scalar_select %p246, %s21, 1
        %s248 = smul.addr %s247, 20
        %s249 = smul.addr %s248, 8
        %s250 = scalar_lea.vmem %s0, %s249
        %p251 = pneg %p42
        %p252 = pneg %p39
        %p253 = pneg %p63
        %p254 = pneg %p60
        %p255 = pneg %p84
        %p256 = pneg %p81
        %p257 = pneg %p105
        %p258 = pneg %p102
        %p259 = pneg %p126
        %p260 = pneg %p123
        %p261 = pneg %p147
        %p262 = pneg %p144
        %p263 = pneg %p168
        %p264 = pneg %p165
        %p265 = pneg %p194
        %p266 = pneg %p191
        %s267 = sand.u32 %s181, 1
        %s268 = scalar_lea.sflag [#allocation3], %s267
        %s269 = sand.u32 %s181, 1
        %s270 = smul.addr %s269, 64
        %s271 = scalar_lea.vmem [#allocation2], %s270
        %p272 = scmp.lt.s32.totalorder %s21, 1
        %s273 = scalar_select %p272, %s21, 1
        %s274 = smul.addr %s273, 20
        %s275 = smul.addr %s274, 8
        %s276 = scalar_lea.vmem %s0, %s275
        %v278 = vld [vmem:[%s276] sm:$0xff]
        %v279 = vld [vmem:[%s276 + $0x10] sm:$0xff]
        %v280 = vld [vmem:[%s276 + $0x20] sm:$0xff]
        %v281 = vld [vmem:[%s276 + $0x30] sm:$0xff]
        %v282 = vld [vmem:[%s276 + $0x40] sm:$0xff]
        %v283 = vld [vmem:[%s276 + $0x50] sm:$0xff]
        %v284 = vld [vmem:[%s276 + $0x60] sm:$0xff]
        %v285 = vld [vmem:[%s276 + $0x70] sm:$0xff]
        %v286 = vld [vmem:[%s1] sm:$0x1]
        %v288 = vlaneseq
        %v289 = vshrl.u32 %v288, 7
        %v290 = vsub.s32 0, %v289
        %v291 = vrot.slane %v286, %v290
        %v293 = vmul.f32 %v278, %v291
        %v294 = vmul.f32 %v279, %v291
        %v295 = vmul.f32 %v280, %v291
        %v296 = vmul.f32 %v281, %v291
        %v297 = vmul.f32 %v282, %v291
        %v298 = vmul.f32 %v283, %v291
        %v299 = vmul.f32 %v284, %v291
        %v300 = vmul.f32 %v285, %v291
        %v301 = vadd.f32 %v293, 0.0
        %v302 = vadd.f32 %v294, 0.0
        %v303 = vadd.f32 %v295, 0.0
        %v304 = vadd.f32 %v296, 0.0
        %v305 = vadd.f32 %v297, 0.0
        %v306 = vadd.f32 %v298, 0.0
        %v307 = vadd.f32 %v299, 0.0
        %v308 = vadd.f32 %v300, 0.0
        %v309 = vld [vmem:[%s276 + $0x1] sm:$0xff]
        %v310 = vld [vmem:[%s276 + $0x11] sm:$0xff]
        %v311 = vld [vmem:[%s276 + $0x21] sm:$0xff]
        %v312 = vld [vmem:[%s276 + $0x31] sm:$0xff]
        %v313 = vld [vmem:[%s276 + $0x41] sm:$0xff]
        %v314 = vld [vmem:[%s276 + $0x51] sm:$0xff]
        %v315 = vld [vmem:[%s276 + $0x61] sm:$0xff]
        %v316 = vld [vmem:[%s276 + $0x71] sm:$0xff]
        %s317 = scalar_lea.vmem %s1, 1
        %v318 = vld [vmem:[%s317] sm:$0x1]
        %v320 = vlaneseq
        %v321 = vshrl.u32 %v320, 7
        %v322 = vsub.s32 0, %v321
        %v323 = vrot.slane %v318, %v322
        %v325 = vmul.f32 %v309, %v323
        %v326 = vmul.f32 %v310, %v323
        %v327 = vmul.f32 %v311, %v323
        %v328 = vmul.f32 %v312, %v323
        %v329 = vmul.f32 %v313, %v323
        %v330 = vmul.f32 %v314, %v323
        %v331 = vmul.f32 %v315, %v323
        %v332 = vmul.f32 %v316, %v323
        %v333 = vadd.f32 %v301, %v325
        %v334 = vadd.f32 %v302, %v326
        %v335 = vadd.f32 %v303, %v327
        %v336 = vadd.f32 %v304, %v328
        %v337 = vadd.f32 %v305, %v329
        %v338 = vadd.f32 %v306, %v330
        %v339 = vadd.f32 %v307, %v331
        %v340 = vadd.f32 %v308, %v332
        %v341 = vld [vmem:[%s276 + $0x2] sm:$0xff]
        %v342 = vld [vmem:[%s276 + $0x12] sm:$0xff]
        %v343 = vld [vmem:[%s276 + $0x22] sm:$0xff]
        %v344 = vld [vmem:[%s276 + $0x32] sm:$0xff]
        %v345 = vld [vmem:[%s276 + $0x42] sm:$0xff]
        %v346 = vld [vmem:[%s276 + $0x52] sm:$0xff]
        %v347 = vld [vmem:[%s276 + $0x62] sm:$0xff]
        %v348 = vld [vmem:[%s276 + $0x72] sm:$0xff]
        %s349 = scalar_lea.vmem %s1, 2
        %v350 = vld [vmem:[%s349] sm:$0x1]
        %v352 = vlaneseq
        %v353 = vshrl.u32 %v352, 7
        %v354 = vsub.s32 0, %v353
        %v355 = vrot.slane %v350, %v354
        %v357 = vmul.f32 %v341, %v355
        %v358 = vmul.f32 %v342, %v355
        %v359 = vmul.f32 %v343, %v355
        %v360 = vmul.f32 %v344, %v355
        %v361 = vmul.f32 %v345, %v355
        %v362 = vmul.f32 %v346, %v355
        %v363 = vmul.f32 %v347, %v355
        %v364 = vmul.f32 %v348, %v355
        %v365 = vadd.f32 %v333, %v357
        %v366 = vadd.f32 %v334, %v358
        %v367 = vadd.f32 %v335, %v359
        %v368 = vadd.f32 %v336, %v360
        %v369 = vadd.f32 %v337, %v361
        %v370 = vadd.f32 %v338, %v362
        %v371 = vadd.f32 %v339, %v363
        %v372 = vadd.f32 %v340, %v364
        %s373 = scalar_lea.vmem %s276, 16
        %v374 = vld [vmem:[%s373] sm:$0xff]
        %v375 = vld [vmem:[%s373 + $0x10] sm:$0xff]
        %v376 = vld [vmem:[%s373 + $0x20] sm:$0xff]
        %v377 = vld [vmem:[%s373 + $0x30] sm:$0xff]
        %v378 = vld [vmem:[%s373 + $0x40] sm:$0xff]
        %v379 = vld [vmem:[%s373 + $0x50] sm:$0xff]
        %v380 = vld [vmem:[%s373 + $0x60] sm:$0xff]
        %v381 = vld [vmem:[%s373 + $0x70] sm:$0xff]
        %s382 = scalar_lea.vmem %s1, 3
        %v383 = vld [vmem:[%s382] sm:$0x1]
        %v385 = vlaneseq
        %v386 = vshrl.u32 %v385, 7
        %v387 = vsub.s32 0, %v386
        %v388 = vrot.slane %v383, %v387
        %v390 = vmul.f32 %v374, %v388
        %v391 = vmul.f32 %v375, %v388
        %v392 = vmul.f32 %v376, %v388
        %v393 = vmul.f32 %v377, %v388
        %v394 = vmul.f32 %v378, %v388
        %v395 = vmul.f32 %v379, %v388
        %v396 = vmul.f32 %v380, %v388
        %v397 = vmul.f32 %v381, %v388
        %v398 = vadd.f32 %v365, %v390
        %v399 = vadd.f32 %v366, %v391
        %v400 = vadd.f32 %v367, %v392
        %v401 = vadd.f32 %v368, %v393
        %v402 = vadd.f32 %v369, %v394
        %v403 = vadd.f32 %v370, %v395
        %v404 = vadd.f32 %v371, %v396
        %v405 = vadd.f32 %v372, %v397
        %v406 = vld [vmem:[%s373 + $0x1] sm:$0xff]
        %v407 = vld [vmem:[%s373 + $0x11] sm:$0xff]
        %v408 = vld [vmem:[%s373 + $0x21] sm:$0xff]
        %v409 = vld [vmem:[%s373 + $0x31] sm:$0xff]
        %v410 = vld [vmem:[%s373 + $0x41] sm:$0xff]
        %v411 = vld [vmem:[%s373 + $0x51] sm:$0xff]
        %v412 = vld [vmem:[%s373 + $0x61] sm:$0xff]
        %v413 = vld [vmem:[%s373 + $0x71] sm:$0xff]
        %s414 = scalar_lea.vmem %s1, 4
        %v415 = vld [vmem:[%s414] sm:$0x1]
        %v417 = vlaneseq
        %v418 = vshrl.u32 %v417, 7
        %v419 = vsub.s32 0, %v418
        %v420 = vrot.slane %v415, %v419
        %v422 = vmul.f32 %v406, %v420
        %v423 = vmul.f32 %v407, %v420
        %v424 = vmul.f32 %v408, %v420
        %v425 = vmul.f32 %v409, %v420
        %v426 = vmul.f32 %v410, %v420
        %v427 = vmul.f32 %v411, %v420
        %v428 = vmul.f32 %v412, %v420
        %v429 = vmul.f32 %v413, %v420
        %v430 = vadd.f32 %v398, %v422
        %v431 = vadd.f32 %v399, %v423
        %v432 = vadd.f32 %v400, %v424
        %v433 = vadd.f32 %v401, %v425
        %v434 = vadd.f32 %v402, %v426
        %v435 = vadd.f32 %v403, %v427
        %v436 = vadd.f32 %v404, %v428
        %v437 = vadd.f32 %v405, %v429
        %v438 = vld [vmem:[%s373 + $0x2] sm:$0xff]
        %v439 = vld [vmem:[%s373 + $0x12] sm:$0xff]
        %v440 = vld [vmem:[%s373 + $0x22] sm:$0xff]
        %v441 = vld [vmem:[%s373 + $0x32] sm:$0xff]
        %v442 = vld [vmem:[%s373 + $0x42] sm:$0xff]
        %v443 = vld [vmem:[%s373 + $0x52] sm:$0xff]
        %v444 = vld [vmem:[%s373 + $0x62] sm:$0xff]
        %v445 = vld [vmem:[%s373 + $0x72] sm:$0xff]
        %s446 = scalar_lea.vmem %s1, 5
        %v447 = vld [vmem:[%s446] sm:$0x1]
        %v449 = vlaneseq
        %v450 = vshrl.u32 %v449, 7
        %v451 = vsub.s32 0, %v450
        %v452 = vrot.slane %v447, %v451
        %v454 = vmul.f32 %v438, %v452
        %v455 = vmul.f32 %v439, %v452
        %v456 = vmul.f32 %v440, %v452
        %v457 = vmul.f32 %v441, %v452
        %v458 = vmul.f32 %v442, %v452
        %v459 = vmul.f32 %v443, %v452
        %v460 = vmul.f32 %v444, %v452
        %v461 = vmul.f32 %v445, %v452
        %v462 = vadd.f32 %v430, %v454
        %v463 = vadd.f32 %v431, %v455
        %v464 = vadd.f32 %v432, %v456
        %v465 = vadd.f32 %v433, %v457
        %v466 = vadd.f32 %v434, %v458
        %v467 = vadd.f32 %v435, %v459
        %v468 = vadd.f32 %v436, %v460
        %v469 = vadd.f32 %v437, %v461
        %s470 = scalar_lea.vmem %s276, 32
        %v471 = vld [vmem:[%s470] sm:$0xff]
        %v472 = vld [vmem:[%s470 + $0x10] sm:$0xff]
        %v473 = vld [vmem:[%s470 + $0x20] sm:$0xff]
        %v474 = vld [vmem:[%s470 + $0x30] sm:$0xff]
        %v475 = vld [vmem:[%s470 + $0x40] sm:$0xff]
        %v476 = vld [vmem:[%s470 + $0x50] sm:$0xff]
        %v477 = vld [vmem:[%s470 + $0x60] sm:$0xff]
        %v478 = vld [vmem:[%s470 + $0x70] sm:$0xff]
        %s479 = scalar_lea.vmem %s1, 6
        %v480 = vld [vmem:[%s479] sm:$0x1]
        %v482 = vlaneseq
        %v483 = vshrl.u32 %v482, 7
        %v484 = vsub.s32 0, %v483
        %v485 = vrot.slane %v480, %v484
        %v487 = vmul.f32 %v471, %v485
        %v488 = vmul.f32 %v472, %v485
        %v489 = vmul.f32 %v473, %v485
        %v490 = vmul.f32 %v474, %v485
        %v491 = vmul.f32 %v475, %v485
        %v492 = vmul.f32 %v476, %v485
        %v493 = vmul.f32 %v477, %v485
        %v494 = vmul.f32 %v478, %v485
        %v495 = vadd.f32 %v462, %v487
        %v496 = vadd.f32 %v463, %v488
        %v497 = vadd.f32 %v464, %v489
        %v498 = vadd.f32 %v465, %v490
        %v499 = vadd.f32 %v466, %v491
        %v500 = vadd.f32 %v467, %v492
        %v501 = vadd.f32 %v468, %v493
        %v502 = vadd.f32 %v469, %v494
        %v503 = vld [vmem:[%s470 + $0x1] sm:$0xff]
        %v504 = vld [vmem:[%s470 + $0x11] sm:$0xff]
        %v505 = vld [vmem:[%s470 + $0x21] sm:$0xff]
        %v506 = vld [vmem:[%s470 + $0x31] sm:$0xff]
        %v507 = vld [vmem:[%s470 + $0x41] sm:$0xff]
        %v508 = vld [vmem:[%s470 + $0x51] sm:$0xff]
        %v509 = vld [vmem:[%s470 + $0x61] sm:$0xff]
        %v510 = vld [vmem:[%s470 + $0x71] sm:$0xff]
        %s511 = scalar_lea.vmem %s1, 7
        %v512 = vld [vmem:[%s511] sm:$0x1]
        %v514 = vlaneseq
        %v515 = vshrl.u32 %v514, 7
        %v516 = vsub.s32 0, %v515
        %v517 = vrot.slane %v512, %v516
        %v519 = vmul.f32 %v503, %v517
        %v520 = vmul.f32 %v504, %v517
        %v521 = vmul.f32 %v505, %v517
        %v522 = vmul.f32 %v506, %v517
        %v523 = vmul.f32 %v507, %v517
        %v524 = vmul.f32 %v508, %v517
        %v525 = vmul.f32 %v509, %v517
        %v526 = vmul.f32 %v510, %v517
        %v527 = vadd.f32 %v495, %v519
        %v528 = vadd.f32 %v496, %v520
        %v529 = vadd.f32 %v497, %v521
        %v530 = vadd.f32 %v498, %v522
        %v531 = vadd.f32 %v499, %v523
        %v532 = vadd.f32 %v500, %v524
        %v533 = vadd.f32 %v501, %v525
        %v534 = vadd.f32 %v502, %v526
        %v535 = vld [vmem:[%s470 + $0x2] sm:$0xff]
        %v536 = vld [vmem:[%s470 + $0x12] sm:$0xff]
        %v537 = vld [vmem:[%s470 + $0x22] sm:$0xff]
        %v538 = vld [vmem:[%s470 + $0x32] sm:$0xff]
        %v539 = vld [vmem:[%s470 + $0x42] sm:$0xff]
        %v540 = vld [vmem:[%s470 + $0x52] sm:$0xff]
        %v541 = vld [vmem:[%s470 + $0x62] sm:$0xff]
        %v542 = vld [vmem:[%s470 + $0x72] sm:$0xff]
        %s543 = scalar_lea.vmem %s1, 8
        %v544 = vld [vmem:[%s543] sm:$0x1]
        %v546 = vlaneseq
        %v547 = vshrl.u32 %v546, 7
        %v548 = vsub.s32 0, %v547
        %v549 = vrot.slane %v544, %v548
        %v551 = vmul.f32 %v535, %v549
        %v552 = vmul.f32 %v536, %v549
        %v553 = vmul.f32 %v537, %v549
        %v554 = vmul.f32 %v538, %v549
        %v555 = vmul.f32 %v539, %v549
        %v556 = vmul.f32 %v540, %v549
        %v557 = vmul.f32 %v541, %v549
        %v558 = vmul.f32 %v542, %v549
        %v559 = vadd.f32 %v527, %v551
        %v560 = vadd.f32 %v528, %v552
        %v561 = vadd.f32 %v529, %v553
        %v562 = vadd.f32 %v530, %v554
        %v563 = vadd.f32 %v531, %v555
        %v564 = vadd.f32 %v532, %v556
        %v565 = vadd.f32 %v533, %v557
        %v566 = vadd.f32 %v534, %v558
        %v567 = vadd.f32 %v406, %v559
        %v568 = vadd.f32 %v407, %v560
        %v569 = vadd.f32 %v408, %v561
        %v570 = vadd.f32 %v409, %v562
        %v571 = vadd.f32 %v410, %v563
        %v572 = vadd.f32 %v411, %v564
        %v573 = vadd.f32 %v412, %v565
        %v574 = vadd.f32 %v413, %v566
        %v575 = vld [vmem:[%s2] sm:$0x1]
        %v577 = vlaneseq
        %v578 = vshrl.u32 %v577, 7
        %v579 = vsub.s32 0, %v578
        %v580 = vrot.slane %v575, %v579
        %v582 = vadd.f32 %v567, %v580
        %v583 = vadd.f32 %v568, %v580
        %v584 = vadd.f32 %v569, %v580
        %v585 = vadd.f32 %v570, %v580
        %v586 = vadd.f32 %v571, %v580
        %v587 = vadd.f32 %v572, %v580
        %v588 = vadd.f32 %v573, %v580
        %v589 = vadd.f32 %v574, %v580
        %v590 = vpack.c.bf16 %v583, %v582
        %v591 = vpack.c.bf16 %v585, %v584
        %v592 = vpack.c.bf16 %v587, %v586
        %v593 = vpack.c.bf16 %v589, %v588
        %v594 = vld [vmem:[%s3] sm:$0xf]
        %v595 = vld [vmem:[%s3 + $0x4] sm:$0xf]
        %v596 = vld [vmem:[%s4] sm:$0x1]
        %v598 = vlaneseq
        %v599 = vshrl.u32 %v598, 7
        %v600 = vsub.s32 0, %v599
        %v601 = vrot.slane %v596, %v600
        %v605 = vunpack.c.l.b16 %v594
        %v606 = vunpack.c.l.b16 %v595
        %v607 = vpack.c.b16 %v606, %v605
        %vm609 = vcmask 130048
        %v611 = vsel %vm609, %v590, 0
        %v614 = vsel %vm609, %v591, 0
        %v617 = vsel %vm609, %v592, 0
        %v620 = vsel %vm609, %v593, 0
        %622 = vmatprep.subr.bf16.mxu0 0
        %623 = vmatpush1.bf16.msra.mxu0 %v607
        %624 = vmatprep.subr.bf16.mxu0 0
        %625 = vmatpush1.bf16.msra.mxu0 0
        %626 = vmatprep.subr.bf16.mxu0 0
        %627 = vmatpush1.bf16.msra.mxu0 0
        %628 = vmatprep.subr.bf16.mxu0 0
        %629 = vmatpush1.bf16.msra.mxu0 0
        %630 = vmatprep.subr.bf16.mxu0 0
        %631 = vmatpush1.bf16.msra.mxu0 0
        %632 = vmatprep.subr.bf16.mxu0 0
        %633 = vmatpush1.bf16.msra.mxu0 0
        %634 = vmatprep.subr.bf16.mxu0 0
        %635 = vmatpush1.bf16.msra.mxu0 0
        %636 = vmatprep.subr.bf16.mxu0 0
        %637 = vmatpush1.bf16.msra.mxu0 0
        %638 = vmatprep.subr.bf16.mxu0 0
        %639 = vmatpush1.bf16.msra.mxu0 0
        %640 = vmatprep.subr.bf16.mxu0 0
        %641 = vmatpush1.bf16.msra.mxu0 0
        %642 = vmatprep.subr.bf16.mxu0 0
        %643 = vmatpush1.bf16.msra.mxu0 0
        %644 = vmatprep.subr.bf16.mxu0 0
        %645 = vmatpush1.bf16.msra.mxu0 0
        %646 = vmatprep.subr.bf16.mxu0 0
        %647 = vmatpush1.bf16.msra.mxu0 0
        %648 = vmatprep.subr.bf16.mxu0 0
        %649 = vmatpush1.bf16.msra.mxu0 0
        %650 = vmatprep.subr.bf16.mxu0 0
        %651 = vmatpush1.bf16.msra.mxu0 0
        %652 = vmatprep.subr.bf16.mxu0 0
        %653 = vmatpush1.bf16.msra.mxu0 0
        %654 = vmatprep.mubr.bf16.mxu0 0
        %655 = vmatmul.mubr.bf16.gmra.mrb[0].mxu0 %v611
        %v656 = vpop.f32.mrb[0].mxu0
        %v657 = vadd.f32 %v601, %v656
        %v658 = vpop.f32.mrb[0].mxu0
        %v659 = vpop.f32.mrb[0].mxu0
        %v660 = vadd.f32 %v601, %v659
        %v661 = vpop.f32.mrb[0].mxu0
        %662 = vmatprep.mubr.bf16.mxu0 0
        %663 = vmatmul.mubr.bf16.gmra.mrb[0].mxu0 %v614
        %v664 = vpop.f32.mrb[0].mxu0
        %v665 = vadd.f32 %v601, %v664
        %v666 = vpop.f32.mrb[0].mxu0
        %v667 = vpop.f32.mrb[0].mxu0
        %v668 = vadd.f32 %v601, %v667
        %v669 = vpop.f32.mrb[0].mxu0
        %670 = vmatprep.mubr.bf16.mxu0 0
        %671 = vmatmul.mubr.bf16.gmra.mrb[0].mxu0 %v617
        %v672 = vpop.f32.mrb[0].mxu0
        %v673 = vadd.f32 %v601, %v672
        %v674 = vpop.f32.mrb[0].mxu0
        %v675 = vpop.f32.mrb[0].mxu0
        %v676 = vadd.f32 %v601, %v675
        %v677 = vpop.f32.mrb[0].mxu0
        %678 = vmatprep.mubr.bf16.mxu0 0
        %679 = vmatmul.mubr.bf16.gmra.mrb[0].mxu0 %v620
        %v680 = vpop.f32.mrb[0].mxu0
        %v681 = vadd.f32 %v601, %v680
        %v682 = vpop.f32.mrb[0].mxu0
        %v683 = vpop.f32.mrb[0].mxu0
        %v684 = vadd.f32 %v601, %v683
        %v685 = vpop.f32.mrb[0].mxu0
        %686 = vdwg.mxu0
        %v687 = vmax.f32 %v657, 0.0
        %v688 = vmax.f32 %v660, 0.0
        %v689 = vmax.f32 %v665, 0.0
        %v690 = vmax.f32 %v668, 0.0
        %v691 = vmax.f32 %v673, 0.0
        %v692 = vmax.f32 %v676, 0.0
        %v693 = vmax.f32 %v681, 0.0
        %v694 = vmax.f32 %v684, 0.0
        %v695 = vpack.c.bf16 %v688, %v687
        %v696 = vpack.c.bf16 %v690, %v689
        %v697 = vpack.c.bf16 %v692, %v691
        %v698 = vpack.c.bf16 %v694, %v693
        %v699 = vld [vmem:[%s5] sm:$0xf]
        %v700 = vld [vmem:[%s5 + $0x4] sm:$0xf]
        %v701 = vld [vmem:[%s5 + $0x8] sm:$0xf]
        %v702 = vld [vmem:[%s5 + $0xc] sm:$0xf]
        %v707 = vunpack.c.l.b16 %v699
        %v708 = vunpack.c.l.b16 %v700
        %v709 = vunpack.c.l.b16 %v701
        %v710 = vunpack.c.l.b16 %v702
        %v711 = vpack.c.b16 %v708, %v707
        %v712 = vpack.c.b16 %v710, %v709
        %vm715 = vcmask 261120
        %v717 = vsel %vm715, %v695, 0
        %v720 = vsel %vm715, %v696, 0
        %v723 = vsel %vm715, %v697, 0
        %v726 = vsel %vm715, %v698, 0
        %728 = vmatprep.subr.bf16.mxu0 0
        %729 = vmatpush1.bf16.msra.mxu0 %v711
        %730 = vmatprep.subr.bf16.mxu0 0
        %731 = vmatpush1.bf16.msra.mxu0 %v712
        %732 = vmatprep.subr.bf16.mxu0 0
        %733 = vmatpush1.bf16.msra.mxu0 0
        %734 = vmatprep.subr.bf16.mxu0 0
        %735 = vmatpush1.bf16.msra.mxu0 0
        %736 = vmatprep.subr.bf16.mxu0 0
        %737 = vmatpush1.bf16.msra.mxu0 0
        %738 = vmatprep.subr.bf16.mxu0 0
        %739 = vmatpush1.bf16.msra.mxu0 0
        %740 = vmatprep.subr.bf16.mxu0 0
        %741 = vmatpush1.bf16.msra.mxu0 0
        %742 = vmatprep.subr.bf16.mxu0 0
        %743 = vmatpush1.bf16.msra.mxu0 0
        %744 = vmatprep.subr.bf16.mxu0 0
        %745 = vmatpush1.bf16.msra.mxu0 0
        %746 = vmatprep.subr.bf16.mxu0 0
        %747 = vmatpush1.bf16.msra.mxu0 0
        %748 = vmatprep.subr.bf16.mxu0 0
        %749 = vmatpush1.bf16.msra.mxu0 0
        %750 = vmatprep.subr.bf16.mxu0 0
        %751 = vmatpush1.bf16.msra.mxu0 0
        %752 = vmatprep.subr.bf16.mxu0 0
        %753 = vmatpush1.bf16.msra.mxu0 0
        %754 = vmatprep.subr.bf16.mxu0 0
        %755 = vmatpush1.bf16.msra.mxu0 0
        %756 = vmatprep.subr.bf16.mxu0 0
        %757 = vmatpush1.bf16.msra.mxu0 0
        %758 = vmatprep.subr.bf16.mxu0 0
        %759 = vmatpush1.bf16.msra.mxu0 0
        %760 = vmatprep.mubr.bf16.mxu0 0
        %761 = vmatmul.mubr.bf16.gmra.mrb[0].mxu0 %v717
        %v762 = vpop.f32.mrb[0].mxu0
        %v763 = vadd.f32 0.0, %v762
        %v764 = vpop.f32.mrb[0].mxu0
        %v765 = vpop.f32.mrb[0].mxu0
        %v766 = vadd.f32 0.0, %v765
        %v767 = vpop.f32.mrb[0].mxu0
        %768 = vmatprep.mubr.bf16.mxu0 0
        %769 = vmatmul.mubr.bf16.gmra.mrb[0].mxu0 %v720
        %v770 = vpop.f32.mrb[0].mxu0
        %v771 = vadd.f32 0.0, %v770
        %v772 = vpop.f32.mrb[0].mxu0
        %v773 = vpop.f32.mrb[0].mxu0
        %v774 = vadd.f32 0.0, %v773
        %v775 = vpop.f32.mrb[0].mxu0
        %776 = vmatprep.mubr.bf16.mxu0 0
        %777 = vmatmul.mubr.bf16.gmra.mrb[0].mxu0 %v723
        %v778 = vpop.f32.mrb[0].mxu0
        %v779 = vadd.f32 0.0, %v778
        %v780 = vpop.f32.mrb[0].mxu0
        %v781 = vpop.f32.mrb[0].mxu0
        %v782 = vadd.f32 0.0, %v781
        %v783 = vpop.f32.mrb[0].mxu0
        %784 = vmatprep.mubr.bf16.mxu0 0
        %785 = vmatmul.mubr.bf16.gmra.mrb[0].mxu0 %v726
        %v786 = vpop.f32.mrb[0].mxu0
        %v787 = vadd.f32 0.0, %v786
        %v788 = vpop.f32.mrb[0].mxu0
        %v789 = vpop.f32.mrb[0].mxu0
        %v790 = vadd.f32 0.0, %v789
        %v791 = vpop.f32.mrb[0].mxu0
        %792 = vdwg.mxu0
        %v793 = vadd.f32 %v582, %v763
        %v794 = vadd.f32 %v583, %v766
        %v795 = vadd.f32 %v584, %v771
        %v796 = vadd.f32 %v585, %v774
        %v797 = vadd.f32 %v586, %v779
        %v798 = vadd.f32 %v587, %v782
        %v799 = vadd.f32 %v588, %v787
        %v800 = vadd.f32 %v589, %v790
        %v801 = vld [vmem:[%s6] sm:$0x1]
        %v803 = vlaneseq
        %v804 = vshrl.u32 %v803, 7
        %v805 = vsub.s32 0, %v804
        %v806 = vrot.slane %v801, %v805
        %v808 = vadd.f32 %v793, %v806
        %v809 = vadd.f32 %v794, %v806
        %v810 = vadd.f32 %v795, %v806
        %v811 = vadd.f32 %v796, %v806
        %v812 = vadd.f32 %v797, %v806
        %v813 = vadd.f32 %v798, %v806
        %v814 = vadd.f32 %v799, %v806
        %v815 = vadd.f32 %v800, %v806
        %816 = vst.msk [vmem:[%s271] sm:$0xff] %vm609, %v808
        %817 = vst.msk [vmem:[%s271 + $0x8] sm:$0xff] %vm609, %v809
        %818 = vst.msk [vmem:[%s271 + $0x10] sm:$0xff] %vm609, %v810
        %819 = vst.msk [vmem:[%s271 + $0x18] sm:$0xff] %vm609, %v811
        %820 = vst.msk [vmem:[%s271 + $0x20] sm:$0xff] %vm609, %v812
        %821 = vst.msk [vmem:[%s271 + $0x28] sm:$0xff] %vm609, %v813
        %822 = vst.msk [vmem:[%s271 + $0x30] sm:$0xff] %vm609, %v814
        %823 = vst.msk [vmem:[%s271 + $0x38] sm:$0xff] %vm609, %v815
        %s824 = sand.u32 %s181, 1
        %s825 = scalar_lea.sflag [#allocation3], %s824
        %s826 = sand.u32 %s181, 1
        %s827 = smul.addr %s826, 64
        %s828 = scalar_lea.vmem [#allocation2], %s827
        // Predicated region
        $region49: #{_lambda_.7} parent=47 // pred_check
          %p829 = pneg %p191
        $region50: #{_lambda_.7} parent=47 // pred_check_branch
          %831 = sbr.rel (%p829) target = $region52
        $region51: #{_lambda_.7} parent=47 // pred_region
          %s833 = ssub.s32 1024, 1024
          %834 = vsyncadd %s825, %s833
          %s835 = smul.addr %s21, 8
          %s836 = smul.addr %s835, 128
          %s837 = scalar_lea.hbm %s7, %s836
          %s838 = sshll.u32 %s828, 4
          %s839 = int_to_ptr.vmem [resolvable:$true] %s838
          %844 = dma.vmem_to_hbm [thread:$0]  %s839, 1024, %s837, %s825, 128, 128, 8
        $region52: #{_lambda_.7} parent=47 // pred_fallthru
          _
      $region48: #{_lambda_.7} parent=5 // pred_fallthru
        _
      %p845 = scmp.le.s32.totalorder 2, %s16
      // Predicated region
      $region53: #{_lambda_.7} parent=5 // pred_check
        %p846 = pneg %p845
      $region54: #{_lambda_.7} parent=5 // pred_check_branch
        %848 = sbr.rel (%p846) target = $region56
      $region55: #{_lambda_.7} parent=5 // pred_region
        %s849 = ssub.s32 %s16, 2
        // Predicated region
        $region57: #{_lambda_.7} parent=55 // pred_check
          %p850 = pneg %p197
        $region58: #{_lambda_.7} parent=55 // pred_check_branch
          %852 = sbr.rel (%p850) target = $region60
        $region59: #{_lambda_.7} parent=55 // pred_region
          %s853 = sand.u32 %s182, 1
          %s854 = scalar_lea.sflag [#allocation3], %s853
          %s855 = sand.u32 %s182, 1
          %s856 = smul.addr %s855, 64
          %s857 = scalar_lea.vmem [#allocation2], %s856
          %858 = dma.done %s854, 1024
        $region60: #{_lambda_.7} parent=55 // pred_fallthru
          _
      $region56: #{_lambda_.7} parent=5 // pred_fallthru
        _
    $region6: #{_lambda_.7} parent=1 // loop_footer
      %s20 = sadd.s32 1, %s16
    $region7: #{_lambda_.7} parent=1 // loop_footer_branch
      %15 = sbr.rel target = $region3
    $region8: #{_lambda_.7} parent=1 // loop_exit
      _
    %859 = vsyncpa [#allocation3], 1
    %s860 = scalar_lea.sflag [#allocation3], 1
    %861 = vsyncpa %s860, 1

// kernel: _lambda_.5
$region0: #{_lambda_.5}
  #allocation0 [shape = 'u32[]', space=smem, size = 0x4, offset = 0x4, fixed_abs, tag = 'smem constant byte address 0x4 - core index']
  #allocation1 [shape = 'u32[144,128]{1,0:T(1,128)}', space=vmem, size = 0x12000, scoped, tag = 'internal scratch']
  %s0 = inlined_call_operand.vmem [shape: f32[8,8,8,4], index: 0, kind: input, shape index: {}]
  %s1 = inlined_call_operand.vmem [shape: f32[8,8,8,16], index: 1, kind: input, shape index: {}]
  %s2 = inlined_call_operand.vmem [shape: f32[25,1,4], index: 2, kind: input, shape index: {}]
  %s3 = inlined_call_operand.vmem [shape: f32[1,1,1,4], index: 3, kind: input, shape index: {}]
  %s4 = inlined_call_operand.vmem [shape: f32[25,1,16], index: 4, kind: input, shape index: {}]
  %s5 = inlined_call_operand.vmem [shape: f32[1,1,1,16], index: 5, kind: input, shape index: {}]
  %s6 = inlined_call_operand.vmem [shape: f32[8,4,4,4], index: 6, kind: output, shape index: {0}]
  %s7 = inlined_call_operand.vmem [shape: f32[8,4,4,16], index: 7, kind: output, shape index: {1}]
  %8 = xla_tuple %s6, %s7
  %s9 = sld [smem:[#allocation0]]
  $region65: #{_lambda_.5} parent=0
    _
  %s11 = ssub.s32 1, %s9
  %s12 = scalar_select 0, %s11, %s9
  loop: start=0, step=1, limit=4
  $region2: #{_lambda_.5} parent=0 // loop_pre_header
    _
  $region3: #{_lambda_.5} parent=0 // loop_header
    %s14 = sphi 0, %s18
    %p15 = scmp.ge.s32.totalorder %s14, 4
    %s24 = sphi 0, %s26
    %s27 = sphi 0, %s24
    %s28 = sphi 0, %s27
    %s44 = sphi 0, %s28
    %s50 = sphi 0, %s52
    %s53 = sphi 0, %s50
    %s54 = sphi 0, %s53
    %s70 = sphi 0, %s54
    %s74 = sphi 0, %s74
    %s76 = sphi 0, %s74
    %s77 = sphi 0, %s76
    %s91 = sphi 0, %s77
    %s95 = sphi 0, %s95
    %s97 = sphi 0, %s95
    %s98 = sphi 0, %s97
    %s112 = sphi 0, %s98
    %s116 = sphi 0, %s116
    %s118 = sphi 0, %s116
    %s119 = sphi 0, %s118
    %s133 = sphi 0, %s119
    %s137 = sphi 0, %s137
    %s139 = sphi 0, %s137
    %s140 = sphi 0, %s139
    %s154 = sphi 0, %s140
    %s160 = sphi 0, %s162
    %s163 = sphi 0, %s160
    %s164 = sphi 0, %s163
    %s180 = sphi 0, %s164
    %s186 = sphi 0, %s188
    %s189 = sphi 0, %s186
    %s190 = sphi 0, %s189
    %s206 = sphi 0, %s190
  $region4: #{_lambda_.5} parent=0 // loop_header_branch
    %17 = sbr.rel (%p15) target = $region8
  $region5: #{_lambda_.5} parent=0 // loop_body
    %s19 = ssub.s32 %s14, 1
    %s20 = ssub.s32 %s14, 2
    %s21 = sadd.s32 %s14, 1
    %s22 = ssub.s32 %s14, %s21
    %p23 = scmp.eq.s32.totalorder %s22, 0
    %s25 = sadd.s32 %s24, 1
    %s26 = scalar_select %p23, %s24, %s25
    %p29 = pneg %p23
    %p30 = scmp.eq.s32.totalorder %s14, 1
    %p31 = por %p29, %p30
    %p32 = scmp.ne.s32.totalorder %s24, %s27
    %p33 = scmp.eq.s32.totalorder %s14, 0
    %p34 = por %p32, %p33
    %p35 = scmp.ne.s32.totalorder %s24, %s27
    %p36 = scmp.eq.s32.totalorder %s19, 1
    %p37 = por %p35, %p36
    %p38 = scmp.ne.s32.totalorder %s27, %s28
    %p39 = scmp.eq.s32.totalorder %s19, 0
    %p40 = por %p38, %p39
    %p41 = scmp.ne.s32.totalorder %s27, %s28
    %p42 = scmp.eq.s32.totalorder %s20, 1
    %p43 = por %p41, %p42
    %p45 = scmp.ne.s32.totalorder %s28, %s44
    %p46 = scmp.eq.s32.totalorder %s20, 0
    %p47 = por %p45, %p46
    %s48 = ssub.s32 %s14, %s21
    %p49 = scmp.eq.s32.totalorder %s48, 0
    %s51 = sadd.s32 %s50, 1
    %s52 = scalar_select %p49, %s50, %s51
    %p55 = pneg %p49
    %p56 = scmp.eq.s32.totalorder %s14, 1
    %p57 = por %p55, %p56
    %p58 = scmp.ne.s32.totalorder %s50, %s53
    %p59 = scmp.eq.s32.totalorder %s14, 0
    %p60 = por %p58, %p59
    %p61 = scmp.ne.s32.totalorder %s50, %s53
    %p62 = scmp.eq.s32.totalorder %s19, 1
    %p63 = por %p61, %p62
    %p64 = scmp.ne.s32.totalorder %s53, %s54
    %p65 = scmp.eq.s32.totalorder %s19, 0
    %p66 = por %p64, %p65
    %p67 = scmp.ne.s32.totalorder %s53, %s54
    %p68 = scmp.eq.s32.totalorder %s20, 1
    %p69 = por %p67, %p68
    %p71 = scmp.ne.s32.totalorder %s54, %s70
    %p72 = scmp.eq.s32.totalorder %s20, 0
    %p73 = por %p71, %p72
    %s75 = sadd.s32 %s74, 1
    %p78 = scmp.eq.s32.totalorder %s14, 1
    %p79 = scmp.ne.s32.totalorder %s74, %s76
    %p80 = scmp.eq.s32.totalorder %s14, 0
    %p81 = por %p79, %p80
    %p82 = scmp.ne.s32.totalorder %s74, %s76
    %p83 = scmp.eq.s32.totalorder %s19, 1
    %p84 = por %p82, %p83
    %p85 = scmp.ne.s32.totalorder %s76, %s77
    %p86 = scmp.eq.s32.totalorder %s19, 0
    %p87 = por %p85, %p86
    %p88 = scmp.ne.s32.totalorder %s76, %s77
    %p89 = scmp.eq.s32.totalorder %s20, 1
    %p90 = por %p88, %p89
    %p92 = scmp.ne.s32.totalorder %s77, %s91
    %p93 = scmp.eq.s32.totalorder %s20, 0
    %p94 = por %p92, %p93
    %s96 = sadd.s32 %s95, 1
    %p99 = scmp.eq.s32.totalorder %s14, 1
    %p100 = scmp.ne.s32.totalorder %s95, %s97
    %p101 = scmp.eq.s32.totalorder %s14, 0
    %p102 = por %p100, %p101
    %p103 = scmp.ne.s32.totalorder %s95, %s97
    %p104 = scmp.eq.s32.totalorder %s19, 1
    %p105 = por %p103, %p104
    %p106 = scmp.ne.s32.totalorder %s97, %s98
    %p107 = scmp.eq.s32.totalorder %s19, 0
    %p108 = por %p106, %p107
    %p109 = scmp.ne.s32.totalorder %s97, %s98
    %p110 = scmp.eq.s32.totalorder %s20, 1
    %p111 = por %p109, %p110
    %p113 = scmp.ne.s32.totalorder %s98, %s112
    %p114 = scmp.eq.s32.totalorder %s20, 0
    %p115 = por %p113, %p114
    %s117 = sadd.s32 %s116, 1
    %p120 = scmp.eq.s32.totalorder %s14, 1
    %p121 = scmp.ne.s32.totalorder %s116, %s118
    %p122 = scmp.eq.s32.totalorder %s14, 0
    %p123 = por %p121, %p122
    %p124 = scmp.ne.s32.totalorder %s116, %s118
    %p125 = scmp.eq.s32.totalorder %s19, 1
    %p126 = por %p124, %p125
    %p127 = scmp.ne.s32.totalorder %s118, %s119
    %p128 = scmp.eq.s32.totalorder %s19, 0
    %p129 = por %p127, %p128
    %p130 = scmp.ne.s32.totalorder %s118, %s119
    %p131 = scmp.eq.s32.totalorder %s20, 1
    %p132 = por %p130, %p131
    %p134 = scmp.ne.s32.totalorder %s119, %s133
    %p135 = scmp.eq.s32.totalorder %s20, 0
    %p136 = por %p134, %p135
    %s138 = sadd.s32 %s137, 1
    %p141 = scmp.eq.s32.totalorder %s14, 1
    %p142 = scmp.ne.s32.totalorder %s137, %s139
    %p143 = scmp.eq.s32.totalorder %s14, 0
    %p144 = por %p142, %p143
    %p145 = scmp.ne.s32.totalorder %s137, %s139
    %p146 = scmp.eq.s32.totalorder %s19, 1
    %p147 = por %p145, %p146
    %p148 = scmp.ne.s32.totalorder %s139, %s140
    %p149 = scmp.eq.s32.totalorder %s19, 0
    %p150 = por %p148, %p149
    %p151 = scmp.ne.s32.totalorder %s139, %s140
    %p152 = scmp.eq.s32.totalorder %s20, 1
    %p153 = por %p151, %p152
    %p155 = scmp.ne.s32.totalorder %s140, %s154
    %p156 = scmp.eq.s32.totalorder %s20, 0
    %p157 = por %p155, %p156
    %s158 = ssub.s32 %s14, %s21
    %p159 = scmp.eq.s32.totalorder %s158, 0
    %s161 = sadd.s32 %s160, 1
    %s162 = scalar_select %p159, %s160, %s161
    %p165 = pneg %p159
    %p166 = scmp.eq.s32.totalorder %s14, 1
    %p167 = por %p165, %p166
    %p168 = scmp.ne.s32.totalorder %s160, %s163
    %p169 = scmp.eq.s32.totalorder %s14, 0
    %p170 = por %p168, %p169
    %p171 = scmp.ne.s32.totalorder %s160, %s163
    %p172 = scmp.eq.s32.totalorder %s19, 1
    %p173 = por %p171, %p172
    %p174 = scmp.ne.s32.totalorder %s163, %s164
    %p175 = scmp.eq.s32.totalorder %s19, 0
    %p176 = por %p174, %p175
    %p177 = scmp.ne.s32.totalorder %s163, %s164
    %p178 = scmp.eq.s32.totalorder %s20, 1
    %p179 = por %p177, %p178
    %p181 = scmp.ne.s32.totalorder %s164, %s180
    %p182 = scmp.eq.s32.totalorder %s20, 0
    %p183 = por %p181, %p182
    %s184 = ssub.s32 %s14, %s21
    %p185 = scmp.eq.s32.totalorder %s184, 0
    %s187 = sadd.s32 %s186, 1
    %s188 = scalar_select %p185, %s186, %s187
    %p191 = pneg %p185
    %p192 = scmp.eq.s32.totalorder %s14, 1
    %p193 = por %p191, %p192
    %p194 = scmp.ne.s32.totalorder %s186, %s189
    %p195 = scmp.eq.s32.totalorder %s14, 0
    %p196 = por %p194, %p195
    %p197 = scmp.ne.s32.totalorder %s186, %s189
    %p198 = scmp.eq.s32.totalorder %s19, 1
    %p199 = por %p197, %p198
    %p200 = scmp.ne.s32.totalorder %s189, %s190
    %p201 = scmp.eq.s32.totalorder %s19, 0
    %p202 = por %p200, %p201
    %p203 = scmp.ne.s32.totalorder %s189, %s190
    %p204 = scmp.eq.s32.totalorder %s20, 1
    %p205 = por %p203, %p204
    %p207 = scmp.ne.s32.totalorder %s190, %s206
    %p208 = scmp.eq.s32.totalorder %s20, 0
    %p209 = por %p207, %p208
    %p210 = scmp.le.s32.totalorder 1, %s14
    %p211 = scmp.lt.s32.totalorder %s14, 3
    %p212 = pnand %p210, %p211
    %p213 = pneg %p212
    // Predicated region
    $region9: #{_lambda_.5} parent=5 // pred_check
      _
    $region10: #{_lambda_.5} parent=5 // pred_check_branch
      %215 = sbr.rel (%p212) target = $region12
    $region11: #{_lambda_.5} parent=5 // pred_region
      %s216 = ssub.s32 %s14, 1
      // Predicated region
      $region13: #{_lambda_.5} parent=11 // pred_check
        %p217 = pneg %p87
      $region14: #{_lambda_.5} parent=11 // pred_check_branch
        %219 = sbr.rel (%p217) target = $region16
      $region15: #{_lambda_.5} parent=11 // pred_region
        _
      $region16: #{_lambda_.5} parent=11 // pred_fallthru
        _
      // Predicated region
      $region17: #{_lambda_.5} parent=11 // pred_check
        %p220 = pneg %p108
      $region18: #{_lambda_.5} parent=11 // pred_check_branch
        %222 = sbr.rel (%p220) target = $region20
      $region19: #{_lambda_.5} parent=11 // pred_region
        _
      $region20: #{_lambda_.5} parent=11 // pred_fallthru
        _
      // Predicated region
      $region21: #{_lambda_.5} parent=11 // pred_check
        %p223 = pneg %p129
      $region22: #{_lambda_.5} parent=11 // pred_check_branch
        %225 = sbr.rel (%p223) target = $region24
      $region23: #{_lambda_.5} parent=11 // pred_region
        _
      $region24: #{_lambda_.5} parent=11 // pred_fallthru
        _
      // Predicated region
      $region25: #{_lambda_.5} parent=11 // pred_check
        %p226 = pneg %p150
      $region26: #{_lambda_.5} parent=11 // pred_check_branch
        %228 = sbr.rel (%p226) target = $region28
      $region27: #{_lambda_.5} parent=11 // pred_region
        _
      $region28: #{_lambda_.5} parent=11 // pred_fallthru
        _
    $region12: #{_lambda_.5} parent=5 // pred_fallthru
      _
    %p229 = scmp.lt.s32.totalorder %s14, 2
    // Predicated region
    $region29: #{_lambda_.5} parent=5 // pred_check
      %p230 = pneg %p229
    $region30: #{_lambda_.5} parent=5 // pred_check_branch
      %232 = sbr.rel (%p230) target = $region32
    $region31: #{_lambda_.5} parent=5 // pred_region
      // Predicated region
      $region33: #{_lambda_.5} parent=31 // pred_check
        %p233 = pneg %p34
      $region34: #{_lambda_.5} parent=31 // pred_check_branch
        %235 = sbr.rel (%p233) target = $region36
      $region35: #{_lambda_.5} parent=31 // pred_region
        %s236 = smul.u32 4, %s14
        %p237 = scmp.lt.s32.totalorder %s236, 7
        %s238 = scalar_select %p237, %s236, 7
        %s239 = smul.addr %s238, 8
        %s240 = smul.addr %s239, 8
        %s241 = scalar_lea.vmem %s0, %s240
        %s242 = smul.u32 4, %s14
      $region36: #{_lambda_.5} parent=31 // pred_fallthru
        _
      // Predicated region
      $region37: #{_lambda_.5} parent=31 // pred_check
        %p243 = pneg %p60
      $region38: #{_lambda_.5} parent=31 // pred_check_branch
        %245 = sbr.rel (%p243) target = $region40
      $region39: #{_lambda_.5} parent=31 // pred_region
        %s246 = smul.u32 4, %s14
        %p247 = scmp.lt.s32.totalorder %s246, 7
        %s248 = scalar_select %p247, %s246, 7
        %s249 = smul.addr %s248, 8
        %s250 = smul.addr %s249, 8
        %s251 = scalar_lea.vmem %s1, %s250
        %s252 = smul.u32 4, %s14
      $region40: #{_lambda_.5} parent=31 // pred_fallthru
        _
    $region32: #{_lambda_.5} parent=5 // pred_fallthru
      _
    %p253 = scmp.le.s32.totalorder 1, %s14
    %p254 = scmp.lt.s32.totalorder %s14, 3
    %p255 = pnand %p253, %p254
    %p256 = pneg %p255
    // Predicated region
    $region41: #{_lambda_.5} parent=5 // pred_check
      _
    $region42: #{_lambda_.5} parent=5 // pred_check_branch
      %258 = sbr.rel (%p255) target = $region44
    $region43: #{_lambda_.5} parent=5 // pred_region
      %s259 = ssub.s32 %s14, 1
      %s260 = smul.u32 4, %s19
      %p261 = scmp.lt.s32.totalorder %s260, 7
      %s262 = scalar_select %p261, %s260, 7
      %s263 = smul.addr %s262, 8
      %s264 = smul.addr %s263, 8
      %s265 = scalar_lea.vmem %s0, %s264
      %p266 = pneg %p40
      %p267 = pneg %p37
      %s268 = smul.u32 4, %s19
      %p269 = scmp.lt.s32.totalorder %s268, 7
      %s270 = scalar_select %p269, %s268, 7
      %s271 = smul.addr %s270, 8
      %s272 = smul.addr %s271, 8
      %s273 = scalar_lea.vmem %s1, %s272
      %p274 = pneg %p66
      %p275 = pneg %p63
      %p276 = pneg %p87
      %p277 = pneg %p84
      %p278 = pneg %p108
      %p279 = pneg %p105
      %p280 = pneg %p129
      %p281 = pneg %p126
      %p282 = pneg %p150
      %p283 = pneg %p147
      %p284 = pneg %p176
      %p285 = pneg %p173
      %s286 = smul.u32 4, %s19
      %p287 = scmp.lt.s32.totalorder %s286, 7
      %s288 = scalar_select %p287, %s286, 7
      %s289 = smul.addr %s288, 4
      %s290 = smul.addr %s289, 4
      %s291 = scalar_lea.vmem %s6, %s290
      %p292 = pneg %p202
      %p293 = pneg %p199
      %s294 = smul.u32 4, %s19
      %p295 = scmp.lt.s32.totalorder %s294, 7
      %s296 = scalar_select %p295, %s294, 7
      %s297 = smul.addr %s296, 4
      %s298 = smul.addr %s297, 4
      %s299 = scalar_lea.vmem %s7, %s298
      %s300 = smul.u32 4, %s19
      %p301 = scmp.lt.s32.totalorder %s300, 7
      %s302 = scalar_select %p301, %s300, 7
      %s303 = smul.addr %s302, 8
      %s304 = smul.addr %s303, 8
      %s305 = scalar_lea.vmem %s0, %s304
      %s306 = smul.u32 4, %s19
      %s307 = smul.u32 4, %s19
      %p308 = scmp.lt.s32.totalorder %s307, 7
      %s309 = scalar_select %p308, %s307, 7
      %s310 = smul.addr %s309, 8
      %s311 = smul.addr %s310, 8
      %s312 = scalar_lea.vmem %s1, %s311
      %s313 = smul.u32 4, %s19
      %s314 = smul.u32 4, %s19
      %p315 = scmp.lt.s32.totalorder %s314, 7
      %s316 = scalar_select %p315, %s314, 7
      %s317 = smul.addr %s316, 4
      %s318 = smul.addr %s317, 4
      %s319 = scalar_lea.vmem %s6, %s318
      %s320 = smul.u32 4, %s19
      %s321 = smul.u32 4, %s19
      %p322 = scmp.lt.s32.totalorder %s321, 7
      %s323 = scalar_select %p322, %s321, 7
      %s324 = smul.addr %s323, 4
      %s325 = smul.addr %s324, 4
      %s326 = scalar_lea.vmem %s7, %s325
      %s327 = smul.u32 4, %s19
      %v328 = vld [vmem:[%s305] sm:$0xf]
      %v329 = vld [vmem:[%s305 + $0x8] sm:$0xf]
      %v330 = vld [vmem:[%s305 + $0x10] sm:$0xf]
      %v331 = vld [vmem:[%s305 + $0x18] sm:$0xf]
      %v332 = vld [vmem:[%s305 + $0x40] sm:$0xf]
      %v333 = vld [vmem:[%s305 + $0x48] sm:$0xf]
      %v334 = vld [vmem:[%s305 + $0x50] sm:$0xf]
      %v335 = vld [vmem:[%s305 + $0x58] sm:$0xf]
      %v336 = vld [vmem:[%s305 + $0x80] sm:$0xf]
      %v337 = vld [vmem:[%s305 + $0x88] sm:$0xf]
      %v338 = vld [vmem:[%s305 + $0x90] sm:$0xf]
      %v339 = vld [vmem:[%s305 + $0x98] sm:$0xf]
      %v340 = vld [vmem:[%s305 + $0xc0] sm:$0xf]
      %v341 = vld [vmem:[%s305 + $0xc8] sm:$0xf]
      %v342 = vld [vmem:[%s305 + $0xd0] sm:$0xf]
      %v343 = vld [vmem:[%s305 + $0xd8] sm:$0xf]
      %v344 = vld [vmem:[%s2] sm:$0x1]
      %v346 = vlaneseq
      %v347 = vshrl.u32 %v346, 7
      %v348 = vsub.s32 0, %v347
      %v349 = vrot.slane %v344, %v348
      %v351 = vmul.f32 %v328, %v349
      %v352 = vmul.f32 %v329, %v349
      %v353 = vmul.f32 %v330, %v349
      %v354 = vmul.f32 %v331, %v349
      %v355 = vmul.f32 %v332, %v349
      %v356 = vmul.f32 %v333, %v349
      %v357 = vmul.f32 %v334, %v349
      %v358 = vmul.f32 %v335, %v349
      %v359 = vmul.f32 %v336, %v349
      %v360 = vmul.f32 %v337, %v349
      %v361 = vmul.f32 %v338, %v349
      %v362 = vmul.f32 %v339, %v349
      %v363 = vmul.f32 %v340, %v349
      %v364 = vmul.f32 %v341, %v349
      %v365 = vmul.f32 %v342, %v349
      %v366 = vmul.f32 %v343, %v349
      %v367 = vadd.f32 %v351, 0.0
      %v368 = vadd.f32 %v352, 0.0
      %v369 = vadd.f32 %v353, 0.0
      %v370 = vadd.f32 %v354, 0.0
      %v371 = vadd.f32 %v355, 0.0
      %v372 = vadd.f32 %v356, 0.0
      %v373 = vadd.f32 %v357, 0.0
      %v374 = vadd.f32 %v358, 0.0
      %v375 = vadd.f32 %v359, 0.0
      %v376 = vadd.f32 %v360, 0.0
      %v377 = vadd.f32 %v361, 0.0
      %v378 = vadd.f32 %v362, 0.0
      %v379 = vadd.f32 %v363, 0.0
      %v380 = vadd.f32 %v364, 0.0
      %v381 = vadd.f32 %v365, 0.0
      %v382 = vadd.f32 %v366, 0.0
      %v383 = vld [vmem:[%s305 + $0x1] sm:$0xf]
      %v384 = vld [vmem:[%s305 + $0x9] sm:$0xf]
      %v385 = vld [vmem:[%s305 + $0x11] sm:$0xf]
      %v386 = vld [vmem:[%s305 + $0x19] sm:$0xf]
      %v387 = vld [vmem:[%s305 + $0x41] sm:$0xf]
      %v388 = vld [vmem:[%s305 + $0x49] sm:$0xf]
      %v389 = vld [vmem:[%s305 + $0x51] sm:$0xf]
      %v390 = vld [vmem:[%s305 + $0x59] sm:$0xf]
      %v391 = vld [vmem:[%s305 + $0x81] sm:$0xf]
      %v392 = vld [vmem:[%s305 + $0x89] sm:$0xf]
      %v393 = vld [vmem:[%s305 + $0x91] sm:$0xf]
      %v394 = vld [vmem:[%s305 + $0x99] sm:$0xf]
      %v395 = vld [vmem:[%s305 + $0xc1] sm:$0xf]
      %v396 = vld [vmem:[%s305 + $0xc9] sm:$0xf]
      %v397 = vld [vmem:[%s305 + $0xd1] sm:$0xf]
      %v398 = vld [vmem:[%s305 + $0xd9] sm:$0xf]
      %s399 = scalar_lea.vmem %s2, 1
      %v400 = vld [vmem:[%s399] sm:$0x1]
      %v402 = vlaneseq
      %v403 = vshrl.u32 %v402, 7
      %v404 = vsub.s32 0, %v403
      %v405 = vrot.slane %v400, %v404
      %v407 = vmul.f32 %v383, %v405
      %v408 = vmul.f32 %v384, %v405
      %v409 = vmul.f32 %v385, %v405
      %v410 = vmul.f32 %v386, %v405
      %v411 = vmul.f32 %v387, %v405
      %v412 = vmul.f32 %v388, %v405
      %v413 = vmul.f32 %v389, %v405
      %v414 = vmul.f32 %v390, %v405
      %v415 = vmul.f32 %v391, %v405
      %v416 = vmul.f32 %v392, %v405
      %v417 = vmul.f32 %v393, %v405
      %v418 = vmul.f32 %v394, %v405
      %v419 = vmul.f32 %v395, %v405
      %v420 = vmul.f32 %v396, %v405
      %v421 = vmul.f32 %v397, %v405
      %v422 = vmul.f32 %v398, %v405
      %v423 = vadd.f32 %v367, %v407
      %v424 = vadd.f32 %v368, %v408
      %v425 = vadd.f32 %v369, %v409
      %v426 = vadd.f32 %v370, %v410
      %v427 = vadd.f32 %v371, %v411
      %v428 = vadd.f32 %v372, %v412
      %v429 = vadd.f32 %v373, %v413
      %v430 = vadd.f32 %v374, %v414
      %v431 = vadd.f32 %v375, %v415
      %v432 = vadd.f32 %v376, %v416
      %v433 = vadd.f32 %v377, %v417
      %v434 = vadd.f32 %v378, %v418
      %v435 = vadd.f32 %v379, %v419
      %v436 = vadd.f32 %v380, %v420
      %v437 = vadd.f32 %v381, %v421
      %v438 = vadd.f32 %v382, %v422
      %v439 = vld [vmem:[%s305 + $0x2] sm:$0xf]
      %v440 = vld [vmem:[%s305 + $0xa] sm:$0xf]
      %v441 = vld [vmem:[%s305 + $0x12] sm:$0xf]
      %v442 = vld [vmem:[%s305 + $0x1a] sm:$0xf]
      %v443 = vld [vmem:[%s305 + $0x42] sm:$0xf]
      %v444 = vld [vmem:[%s305 + $0x4a] sm:$0xf]
      %v445 = vld [vmem:[%s305 + $0x52] sm:$0xf]
      %v446 = vld [vmem:[%s305 + $0x5a] sm:$0xf]
      %v447 = vld [vmem:[%s305 + $0x82] sm:$0xf]
      %v448 = vld [vmem:[%s305 + $0x8a] sm:$0xf]
      %v449 = vld [vmem:[%s305 + $0x92] sm:$0xf]
      %v450 = vld [vmem:[%s305 + $0x9a] sm:$0xf]
      %v451 = vld [vmem:[%s305 + $0xc2] sm:$0xf]
      %v452 = vld [vmem:[%s305 + $0xca] sm:$0xf]
      %v453 = vld [vmem:[%s305 + $0xd2] sm:$0xf]
      %v454 = vld [vmem:[%s305 + $0xda] sm:$0xf]
      %s455 = scalar_lea.vmem %s2, 2
      %v456 = vld [vmem:[%s455] sm:$0x1]
      %v458 = vlaneseq
      %v459 = vshrl.u32 %v458, 7
      %v460 = vsub.s32 0, %v459
      %v461 = vrot.slane %v456, %v460
      %v463 = vmul.f32 %v439, %v461
      %v464 = vmul.f32 %v440, %v461
      %v465 = vmul.f32 %v441, %v461
      %v466 = vmul.f32 %v442, %v461
      %v467 = vmul.f32 %v443, %v461
      %v468 = vmul.f32 %v444, %v461
      %v469 = vmul.f32 %v445, %v461
      %v470 = vmul.f32 %v446, %v461
      %v471 = vmul.f32 %v447, %v461
      %v472 = vmul.f32 %v448, %v461
      %v473 = vmul.f32 %v449, %v461
      %v474 = vmul.f32 %v450, %v461
      %v475 = vmul.f32 %v451, %v461
      %v476 = vmul.f32 %v452, %v461
      %v477 = vmul.f32 %v453, %v461
      %v478 = vmul.f32 %v454, %v461
      %v479 = vadd.f32 %v423, %v463
      %v480 = vadd.f32 %v424, %v464
      %v481 = vadd.f32 %v425, %v465
      %v482 = vadd.f32 %v426, %v466
      %v483 = vadd.f32 %v427, %v467
      %v484 = vadd.f32 %v428, %v468
      %v485 = vadd.f32 %v429, %v469
      %v486 = vadd.f32 %v430, %v470
      %v487 = vadd.f32 %v431, %v471
      %v488 = vadd.f32 %v432, %v472
      %v489 = vadd.f32 %v433, %v473
      %v490 = vadd.f32 %v434, %v474
      %v491 = vadd.f32 %v435, %v475
      %v492 = vadd.f32 %v436, %v476
      %v493 = vadd.f32 %v437, %v477
      %v494 = vadd.f32 %v438, %v478
      %v495 = vld [vmem:[%s305 + $0x3] sm:$0xf]
      %v496 = vld [vmem:[%s305 + $0xb] sm:$0xf]
      %v497 = vld [vmem:[%s305 + $0x13] sm:$0xf]
      %v498 = vld [vmem:[%s305 + $0x1b] sm:$0xf]
      %v499 = vld [vmem:[%s305 + $0x43] sm:$0xf]
      %v500 = vld [vmem:[%s305 + $0x4b] sm:$0xf]
      %v501 = vld [vmem:[%s305 + $0x53] sm:$0xf]
      %v502 = vld [vmem:[%s305 + $0x5b] sm:$0xf]
      %v503 = vld [vmem:[%s305 + $0x83] sm:$0xf]
      %v504 = vld [vmem:[%s305 + $0x8b] sm:$0xf]
      %v505 = vld [vmem:[%s305 + $0x93] sm:$0xf]
      %v506 = vld [vmem:[%s305 + $0x9b] sm:$0xf]
      %v507 = vld [vmem:[%s305 + $0xc3] sm:$0xf]
      %v508 = vld [vmem:[%s305 + $0xcb] sm:$0xf]
      %v509 = vld [vmem:[%s305 + $0xd3] sm:$0xf]
      %v510 = vld [vmem:[%s305 + $0xdb] sm:$0xf]
      %s511 = scalar_lea.vmem %s2, 3
      %v512 = vld [vmem:[%s511] sm:$0x1]
      %v514 = vlaneseq
      %v515 = vshrl.u32 %v514, 7
      %v516 = vsub.s32 0, %v515
      %v517 = vrot.slane %v512, %v516
      %v519 = vmul.f32 %v495, %v517
      %v520 = vmul.f32 %v496, %v517
      %v521 = vmul.f32 %v497, %v517
      %v522 = vmul.f32 %v498, %v517
      %v523 = vmul.f32 %v499, %v517
      %v524 = vmul.f32 %v500, %v517
      %v525 = vmul.f32 %v501, %v517
      %v526 = vmul.f32 %v502, %v517
      %v527 = vmul.f32 %v503, %v517
      %v528 = vmul.f32 %v504, %v517
      %v529 = vmul.f32 %v505, %v517
      %v530 = vmul.f32 %v506, %v517
      %v531 = vmul.f32 %v507, %v517
      %v532 = vmul.f32 %v508, %v517
      %v533 = vmul.f32 %v509, %v517
      %v534 = vmul.f32 %v510, %v517
      %v535 = vadd.f32 %v479, %v519
      %v536 = vadd.f32 %v480, %v520
      %v537 = vadd.f32 %v481, %v521
      %v538 = vadd.f32 %v482, %v522
      %v539 = vadd.f32 %v483, %v523
      %v540 = vadd.f32 %v484, %v524
      %v541 = vadd.f32 %v485, %v525
      %v542 = vadd.f32 %v486, %v526
      %v543 = vadd.f32 %v487, %v527
      %v544 = vadd.f32 %v488, %v528
      %v545 = vadd.f32 %v489, %v529
      %v546 = vadd.f32 %v490, %v530
      %v547 = vadd.f32 %v491, %v531
      %v548 = vadd.f32 %v492, %v532
      %v549 = vadd.f32 %v493, %v533
      %v550 = vadd.f32 %v494, %v534
      %v551 = vld [vmem:[%s305 + $0x4] sm:$0xf]
      %v552 = vld [vmem:[%s305 + $0xc] sm:$0xf]
      %v553 = vld [vmem:[%s305 + $0x14] sm:$0xf]
      %v554 = vld [vmem:[%s305 + $0x1c] sm:$0xf]
      %v555 = vld [vmem:[%s305 + $0x44] sm:$0xf]
      %v556 = vld [vmem:[%s305 + $0x4c] sm:$0xf]
      %v557 = vld [vmem:[%s305 + $0x54] sm:$0xf]
      %v558 = vld [vmem:[%s305 + $0x5c] sm:$0xf]
      %v559 = vld [vmem:[%s305 + $0x84] sm:$0xf]
      %v560 = vld [vmem:[%s305 + $0x8c] sm:$0xf]
      %v561 = vld [vmem:[%s305 + $0x94] sm:$0xf]
      %v562 = vld [vmem:[%s305 + $0x9c] sm:$0xf]
      %v563 = vld [vmem:[%s305 + $0xc4] sm:$0xf]
      %v564 = vld [vmem:[%s305 + $0xcc] sm:$0xf]
      %v565 = vld [vmem:[%s305 + $0xd4] sm:$0xf]
      %v566 = vld [vmem:[%s305 + $0xdc] sm:$0xf]
      %s567 = scalar_lea.vmem %s2, 4
      %v568 = vld [vmem:[%s567] sm:$0x1]
      %v570 = vlaneseq
      %v571 = vshrl.u32 %v570, 7
      %v572 = vsub.s32 0, %v571
      %v573 = vrot.slane %v568, %v572
      %v575 = vmul.f32 %v551, %v573
      %v576 = vmul.f32 %v552, %v573
      %v577 = vmul.f32 %v553, %v573
      %v578 = vmul.f32 %v554, %v573
      %v579 = vmul.f32 %v555, %v573
      %v580 = vmul.f32 %v556, %v573
      %v581 = vmul.f32 %v557, %v573
      %v582 = vmul.f32 %v558, %v573
      %v583 = vmul.f32 %v559, %v573
      %v584 = vmul.f32 %v560, %v573
      %v585 = vmul.f32 %v561, %v573
      %v586 = vmul.f32 %v562, %v573
      %v587 = vmul.f32 %v563, %v573
      %v588 = vmul.f32 %v564, %v573
      %v589 = vmul.f32 %v565, %v573
      %v590 = vmul.f32 %v566, %v573
      %v591 = vadd.f32 %v535, %v575
      %v592 = vadd.f32 %v536, %v576
      %v593 = vadd.f32 %v537, %v577
      %v594 = vadd.f32 %v538, %v578
      %v595 = vadd.f32 %v539, %v579
      %v596 = vadd.f32 %v540, %v580
      %v597 = vadd.f32 %v541, %v581
      %v598 = vadd.f32 %v542, %v582
      %v599 = vadd.f32 %v543, %v583
      %v600 = vadd.f32 %v544, %v584
      %v601 = vadd.f32 %v545, %v585
      %v602 = vadd.f32 %v546, %v586
      %v603 = vadd.f32 %v547, %v587
      %v604 = vadd.f32 %v548, %v588
      %v605 = vadd.f32 %v549, %v589
      %v606 = vadd.f32 %v550, %v590
      %s607 = scalar_lea.vmem %s305, 8
      %v608 = vld [vmem:[%s607] sm:$0xf]
      %v609 = vld [vmem:[%s607 + $0x8] sm:$0xf]
      %v610 = vld [vmem:[%s607 + $0x10] sm:$0xf]
      %v611 = vld [vmem:[%s607 + $0x18] sm:$0xf]
      %v612 = vld [vmem:[%s607 + $0x40] sm:$0xf]
      %v613 = vld [vmem:[%s607 + $0x48] sm:$0xf]
      %v614 = vld [vmem:[%s607 + $0x50] sm:$0xf]
      %v615 = vld [vmem:[%s607 + $0x58] sm:$0xf]
      %v616 = vld [vmem:[%s607 + $0x80] sm:$0xf]
      %v617 = vld [vmem:[%s607 + $0x88] sm:$0xf]
      %v618 = vld [vmem:[%s607 + $0x90] sm:$0xf]
      %v619 = vld [vmem:[%s607 + $0x98] sm:$0xf]
      %v620 = vld [vmem:[%s607 + $0xc0] sm:$0xf]
      %v621 = vld [vmem:[%s607 + $0xc8] sm:$0xf]
      %v622 = vld [vmem:[%s607 + $0xd0] sm:$0xf]
      %v623 = vld [vmem:[%s607 + $0xd8] sm:$0xf]
      %s624 = scalar_lea.vmem %s2, 5
      %v625 = vld [vmem:[%s624] sm:$0x1]
      %v627 = vlaneseq
      %v628 = vshrl.u32 %v627, 7
      %v629 = vsub.s32 0, %v628
      %v630 = vrot.slane %v625, %v629
      %v632 = vmul.f32 %v608, %v630
      %v633 = vmul.f32 %v609, %v630
      %v634 = vmul.f32 %v610, %v630
      %v635 = vmul.f32 %v611, %v630
      %v636 = vmul.f32 %v612, %v630
      %v637 = vmul.f32 %v613, %v630
      %v638 = vmul.f32 %v614, %v630
      %v639 = vmul.f32 %v615, %v630
      %v640 = vmul.f32 %v616, %v630
      %v641 = vmul.f32 %v617, %v630
      %v642 = vmul.f32 %v618, %v630
      %v643 = vmul.f32 %v619, %v630
      %v644 = vmul.f32 %v620, %v630
      %v645 = vmul.f32 %v621, %v630
      %v646 = vmul.f32 %v622, %v630
      %v647 = vmul.f32 %v623, %v630
      %v648 = vadd.f32 %v591, %v632
      %v649 = vadd.f32 %v592, %v633
      %v650 = vadd.f32 %v593, %v634
      %v651 = vadd.f32 %v594, %v635
      %v652 = vadd.f32 %v595, %v636
      %v653 = vadd.f32 %v596, %v637
      %v654 = vadd.f32 %v597, %v638
      %v655 = vadd.f32 %v598, %v639
      %v656 = vadd.f32 %v599, %v640
      %v657 = vadd.f32 %v600, %v641
      %v658 = vadd.f32 %v601, %v642
      %v659 = vadd.f32 %v602, %v643
      %v660 = vadd.f32 %v603, %v644
      %v661 = vadd.f32 %v604, %v645
      %v662 = vadd.f32 %v605, %v646
      %v663 = vadd.f32 %v606, %v647
      %v664 = vld [vmem:[%s607 + $0x1] sm:$0xf]
      %v665 = vld [vmem:[%s607 + $0x9] sm:$0xf]
      %v666 = vld [vmem:[%s607 + $0x11] sm:$0xf]
      %v667 = vld [vmem:[%s607 + $0x19] sm:$0xf]
      %v668 = vld [vmem:[%s607 + $0x41] sm:$0xf]
      %v669 = vld [vmem:[%s607 + $0x49] sm:$0xf]
      %v670 = vld [vmem:[%s607 + $0x51] sm:$0xf]
      %v671 = vld [vmem:[%s607 + $0x59] sm:$0xf]
      %v672 = vld [vmem:[%s607 + $0x81] sm:$0xf]
      %v673 = vld [vmem:[%s607 + $0x89] sm:$0xf]
      %v674 = vld [vmem:[%s607 + $0x91] sm:$0xf]
      %v675 = vld [vmem:[%s607 + $0x99] sm:$0xf]
      %v676 = vld [vmem:[%s607 + $0xc1] sm:$0xf]
      %v677 = vld [vmem:[%s607 + $0xc9] sm:$0xf]
      %v678 = vld [vmem:[%s607 + $0xd1] sm:$0xf]
      %v679 = vld [vmem:[%s607 + $0xd9] sm:$0xf]
      %s680 = scalar_lea.vmem %s2, 6
      %v681 = vld [vmem:[%s680] sm:$0x1]
      %v683 = vlaneseq
      %v684 = vshrl.u32 %v683, 7
      %v685 = vsub.s32 0, %v684
      %v686 = vrot.slane %v681, %v685
      %v688 = vmul.f32 %v664, %v686
      %v689 = vmul.f32 %v665, %v686
      %v690 = vmul.f32 %v666, %v686
      %v691 = vmul.f32 %v667, %v686
      %v692 = vmul.f32 %v668, %v686
      %v693 = vmul.f32 %v669, %v686
      %v694 = vmul.f32 %v670, %v686
      %v695 = vmul.f32 %v671, %v686
      %v696 = vmul.f32 %v672, %v686
      %v697 = vmul.f32 %v673, %v686
      %v698 = vmul.f32 %v674, %v686
      %v699 = vmul.f32 %v675, %v686
      %v700 = vmul.f32 %v676, %v686
      %v701 = vmul.f32 %v677, %v686
      %v702 = vmul.f32 %v678, %v686
      %v703 = vmul.f32 %v679, %v686
      %v704 = vadd.f32 %v648, %v688
      %v705 = vadd.f32 %v649, %v689
      %v706 = vadd.f32 %v650, %v690
      %v707 = vadd.f32 %v651, %v691
      %v708 = vadd.f32 %v652, %v692
      %v709 = vadd.f32 %v653, %v693
      %v710 = vadd.f32 %v654, %v694
      %v711 = vadd.f32 %v655, %v695
      %v712 = vadd.f32 %v656, %v696
      %v713 = vadd.f32 %v657, %v697
      %v714 = vadd.f32 %v658, %v698
      %v715 = vadd.f32 %v659, %v699
      %v716 = vadd.f32 %v660, %v700
      %v717 = vadd.f32 %v661, %v701
      %v718 = vadd.f32 %v662, %v702
      %v719 = vadd.f32 %v663, %v703
      %v720 = vld [vmem:[%s607 + $0x2] sm:$0xf]
      %v721 = vld [vmem:[%s607 + $0xa] sm:$0xf]
      %v722 = vld [vmem:[%s607 + $0x12] sm:$0xf]
      %v723 = vld [vmem:[%s607 + $0x1a] sm:$0xf]
      %v724 = vld [vmem:[%s607 + $0x42] sm:$0xf]
      %v725 = vld [vmem:[%s607 + $0x4a] sm:$0xf]
      %v726 = vld [vmem:[%s607 + $0x52] sm:$0xf]
      %v727 = vld [vmem:[%s607 + $0x5a] sm:$0xf]
      %v728 = vld [vmem:[%s607 + $0x82] sm:$0xf]
      %v729 = vld [vmem:[%s607 + $0x8a] sm:$0xf]
      %v730 = vld [vmem:[%s607 + $0x92] sm:$0xf]
      %v731 = vld [vmem:[%s607 + $0x9a] sm:$0xf]
      %v732 = vld [vmem:[%s607 + $0xc2] sm:$0xf]
      %v733 = vld [vmem:[%s607 + $0xca] sm:$0xf]
      %v734 = vld [vmem:[%s607 + $0xd2] sm:$0xf]
      %v735 = vld [vmem:[%s607 + $0xda] sm:$0xf]
      %s736 = scalar_lea.vmem %s2, 7
      %v737 = vld [vmem:[%s736] sm:$0x1]
      %v739 = vlaneseq
      %v740 = vshrl.u32 %v739, 7
      %v741 = vsub.s32 0, %v740
      %v742 = vrot.slane %v737, %v741
      %v744 = vmul.f32 %v720, %v742
      %v745 = vmul.f32 %v721, %v742
      %v746 = vmul.f32 %v722, %v742
      %v747 = vmul.f32 %v723, %v742
      %v748 = vmul.f32 %v724, %v742
      %v749 = vmul.f32 %v725, %v742
      %v750 = vmul.f32 %v726, %v742
      %v751 = vmul.f32 %v727, %v742
      %v752 = vmul.f32 %v728, %v742
      %v753 = vmul.f32 %v729, %v742
      %v754 = vmul.f32 %v730, %v742
      %v755 = vmul.f32 %v731, %v742
      %v756 = vmul.f32 %v732, %v742
      %v757 = vmul.f32 %v733, %v742
      %v758 = vmul.f32 %v734, %v742
      %v759 = vmul.f32 %v735, %v742
      %v760 = vadd.f32 %v704, %v744
      %v761 = vadd.f32 %v705, %v745
      %v762 = vadd.f32 %v706, %v746
      %v763 = vadd.f32 %v707, %v747
      %v764 = vadd.f32 %v708, %v748
      %v765 = vadd.f32 %v709, %v749
      %v766 = vadd.f32 %v710, %v750
      %v767 = vadd.f32 %v711, %v751
      %v768 = vadd.f32 %v712, %v752
      %v769 = vadd.f32 %v713, %v753
      %v770 = vadd.f32 %v714, %v754
      %v771 = vadd.f32 %v715, %v755
      %v772 = vadd.f32 %v716, %v756
      %v773 = vadd.f32 %v717, %v757
      %v774 = vadd.f32 %v718, %v758
      %v775 = vadd.f32 %v719, %v759
      %v776 = vld [vmem:[%s607 + $0x3] sm:$0xf]
      %v777 = vld [vmem:[%s607 + $0xb] sm:$0xf]
      %v778 = vld [vmem:[%s607 + $0x13] sm:$0xf]
      %v779 = vld [vmem:[%s607 + $0x1b] sm:$0xf]
      %v780 = vld [vmem:[%s607 + $0x43] sm:$0xf]
      %v781 = vld [vmem:[%s607 + $0x4b] sm:$0xf]
      %v782 = vld [vmem:[%s607 + $0x53] sm:$0xf]
      %v783 = vld [vmem:[%s607 + $0x5b] sm:$0xf]
      %v784 = vld [vmem:[%s607 + $0x83] sm:$0xf]
      %v785 = vld [vmem:[%s607 + $0x8b] sm:$0xf]
      %v786 = vld [vmem:[%s607 + $0x93] sm:$0xf]
      %v787 = vld [vmem:[%s607 + $0x9b] sm:$0xf]
      %v788 = vld [vmem:[%s607 + $0xc3] sm:$0xf]
      %v789 = vld [vmem:[%s607 + $0xcb] sm:$0xf]
      %v790 = vld [vmem:[%s607 + $0xd3] sm:$0xf]
      %v791 = vld [vmem:[%s607 + $0xdb] sm:$0xf]
      %s792 = scalar_lea.vmem %s2, 8
      %v793 = vld [vmem:[%s792] sm:$0x1]
      %v795 = vlaneseq
      %v796 = vshrl.u32 %v795, 7
      %v797 = vsub.s32 0, %v796
      %v798 = vrot.slane %v793, %v797
      %v800 = vmul.f32 %v776, %v798
      %v801 = vmul.f32 %v777, %v798
      %v802 = vmul.f32 %v778, %v798
      %v803 = vmul.f32 %v779, %v798
      %v804 = vmul.f32 %v780, %v798
      %v805 = vmul.f32 %v781, %v798
      %v806 = vmul.f32 %v782, %v798
      %v807 = vmul.f32 %v783, %v798
      %v808 = vmul.f32 %v784, %v798
      %v809 = vmul.f32 %v785, %v798
      %v810 = vmul.f32 %v786, %v798
      %v811 = vmul.f32 %v787, %v798
      %v812 = vmul.f32 %v788, %v798
      %v813 = vmul.f32 %v789, %v798
      %v814 = vmul.f32 %v790, %v798
      %v815 = vmul.f32 %v791, %v798
      %v816 = vadd.f32 %v760, %v800
      %v817 = vadd.f32 %v761, %v801
      %v818 = vadd.f32 %v762, %v802
      %v819 = vadd.f32 %v763, %v803
      %v820 = vadd.f32 %v764, %v804
      %v821 = vadd.f32 %v765, %v805
      %v822 = vadd.f32 %v766, %v806
      %v823 = vadd.f32 %v767, %v807
      %v824 = vadd.f32 %v768, %v808
      %v825 = vadd.f32 %v769, %v809
      %v826 = vadd.f32 %v770, %v810
      %v827 = vadd.f32 %v771, %v811
      %v828 = vadd.f32 %v772, %v812
      %v829 = vadd.f32 %v773, %v813
      %v830 = vadd.f32 %v774, %v814
      %v831 = vadd.f32 %v775, %v815
      %v832 = vld [vmem:[%s607 + $0x4] sm:$0xf]
      %v833 = vld [vmem:[%s607 + $0xc] sm:$0xf]
      %v834 = vld [vmem:[%s607 + $0x14] sm:$0xf]
      %v835 = vld [vmem:[%s607 + $0x1c] sm:$0xf]
      %v836 = vld [vmem:[%s607 + $0x44] sm:$0xf]
      %v837 = vld [vmem:[%s607 + $0x4c] sm:$0xf]
      %v838 = vld [vmem:[%s607 + $0x54] sm:$0xf]
      %v839 = vld [vmem:[%s607 + $0x5c] sm:$0xf]
      %v840 = vld [vmem:[%s607 + $0x84] sm:$0xf]
      %v841 = vld [vmem:[%s607 + $0x8c] sm:$0xf]
      %v842 = vld [vmem:[%s607 + $0x94] sm:$0xf]
      %v843 = vld [vmem:[%s607 + $0x9c] sm:$0xf]
      %v844 = vld [vmem:[%s607 + $0xc4] sm:$0xf]
      %v845 = vld [vmem:[%s607 + $0xcc] sm:$0xf]
      %v846 = vld [vmem:[%s607 + $0xd4] sm:$0xf]
      %v847 = vld [vmem:[%s607 + $0xdc] sm:$0xf]
      %s848 = scalar_lea.vmem %s2, 9
      %v849 = vld [vmem:[%s848] sm:$0x1]
      %v851 = vlaneseq
      %v852 = vshrl.u32 %v851, 7
      %v853 = vsub.s32 0, %v852
      %v854 = vrot.slane %v849, %v853
      %v856 = vmul.f32 %v832, %v854
      %v857 = vmul.f32 %v833, %v854
      %v858 = vmul.f32 %v834, %v854
      %v859 = vmul.f32 %v835, %v854
      %v860 = vmul.f32 %v836, %v854
      %v861 = vmul.f32 %v837, %v854
      %v862 = vmul.f32 %v838, %v854
      %v863 = vmul.f32 %v839, %v854
      %v864 = vmul.f32 %v840, %v854
      %v865 = vmul.f32 %v841, %v854
      %v866 = vmul.f32 %v842, %v854
      %v867 = vmul.f32 %v843, %v854
      %v868 = vmul.f32 %v844, %v854
      %v869 = vmul.f32 %v845, %v854
      %v870 = vmul.f32 %v846, %v854
      %v871 = vmul.f32 %v847, %v854
      %v872 = vadd.f32 %v816, %v856
      %v873 = vadd.f32 %v817, %v857
      %v874 = vadd.f32 %v818, %v858
      %v875 = vadd.f32 %v819, %v859
      %v876 = vadd.f32 %v820, %v860
      %v877 = vadd.f32 %v821, %v861
      %v878 = vadd.f32 %v822, %v862
      %v879 = vadd.f32 %v823, %v863
      %v880 = vadd.f32 %v824, %v864
      %v881 = vadd.f32 %v825, %v865
      %v882 = vadd.f32 %v826, %v866
      %v883 = vadd.f32 %v827, %v867
      %v884 = vadd.f32 %v828, %v868
      %v885 = vadd.f32 %v829, %v869
      %v886 = vadd.f32 %v830, %v870
      %v887 = vadd.f32 %v831, %v871
      %s888 = scalar_lea.vmem %s305, 16
      %v889 = vld [vmem:[%s888] sm:$0xf]
      %v890 = vld [vmem:[%s888 + $0x8] sm:$0xf]
      %v891 = vld [vmem:[%s888 + $0x10] sm:$0xf]
      %v892 = vld [vmem:[%s888 + $0x18] sm:$0xf]
      %v893 = vld [vmem:[%s888 + $0x40] sm:$0xf]
      %v894 = vld [vmem:[%s888 + $0x48] sm:$0xf]
      %v895 = vld [vmem:[%s888 + $0x50] sm:$0xf]
      %v896 = vld [vmem:[%s888 + $0x58] sm:$0xf]
      %v897 = vld [vmem:[%s888 + $0x80] sm:$0xf]
      %v898 = vld [vmem:[%s888 + $0x88] sm:$0xf]
      %v899 = vld [vmem:[%s888 + $0x90] sm:$0xf]
      %v900 = vld [vmem:[%s888 + $0x98] sm:$0xf]
      %v901 = vld [vmem:[%s888 + $0xc0] sm:$0xf]
      %v902 = vld [vmem:[%s888 + $0xc8] sm:$0xf]
      %v903 = vld [vmem:[%s888 + $0xd0] sm:$0xf]
      %v904 = vld [vmem:[%s888 + $0xd8] sm:$0xf]
      %s905 = scalar_lea.vmem %s2, 10
      %v906 = vld [vmem:[%s905] sm:$0x1]
      %v908 = vlaneseq
      %v909 = vshrl.u32 %v908, 7
      %v910 = vsub.s32 0, %v909
      %v911 = vrot.slane %v906, %v910
      %v913 = vmul.f32 %v889, %v911
      %v914 = vmul.f32 %v890, %v911
      %v915 = vmul.f32 %v891, %v911
      %v916 = vmul.f32 %v892, %v911
      %v917 = vmul.f32 %v893, %v911
      %v918 = vmul.f32 %v894, %v911
      %v919 = vmul.f32 %v895, %v911
      %v920 = vmul.f32 %v896, %v911
      %v921 = vmul.f32 %v897, %v911
      %v922 = vmul.f32 %v898, %v911
      %v923 = vmul.f32 %v899, %v911
      %v924 = vmul.f32 %v900, %v911
      %v925 = vmul.f32 %v901, %v911
      %v926 = vmul.f32 %v902, %v911
      %v927 = vmul.f32 %v903, %v911
      %v928 = vmul.f32 %v904, %v911
      %v929 = vadd.f32 %v872, %v913
      %v930 = vadd.f32 %v873, %v914
      %v931 = vadd.f32 %v874, %v915
      %v932 = vadd.f32 %v875, %v916
      %v933 = vadd.f32 %v876, %v917
      %v934 = vadd.f32 %v877, %v918
      %v935 = vadd.f32 %v878, %v919
      %v936 = vadd.f32 %v879, %v920
      %v937 = vadd.f32 %v880, %v921
      %v938 = vadd.f32 %v881, %v922
      %v939 = vadd.f32 %v882, %v923
      %v940 = vadd.f32 %v883, %v924
      %v941 = vadd.f32 %v884, %v925
      %v942 = vadd.f32 %v885, %v926
      %v943 = vadd.f32 %v886, %v927
      %v944 = vadd.f32 %v887, %v928
      %v945 = vld [vmem:[%s888 + $0x1] sm:$0xf]
      %v946 = vld [vmem:[%s888 + $0x9] sm:$0xf]
      %v947 = vld [vmem:[%s888 + $0x11] sm:$0xf]
      %v948 = vld [vmem:[%s888 + $0x19] sm:$0xf]
      %v949 = vld [vmem:[%s888 + $0x41] sm:$0xf]
      %v950 = vld [vmem:[%s888 + $0x49] sm:$0xf]
      %v951 = vld [vmem:[%s888 + $0x51] sm:$0xf]
      %v952 = vld [vmem:[%s888 + $0x59] sm:$0xf]
      %v953 = vld [vmem:[%s888 + $0x81] sm:$0xf]
      %v954 = vld [vmem:[%s888 + $0x89] sm:$0xf]
      %v955 = vld [vmem:[%s888 + $0x91] sm:$0xf]
      %v956 = vld [vmem:[%s888 + $0x99] sm:$0xf]
      %v957 = vld [vmem:[%s888 + $0xc1] sm:$0xf]
      %v958 = vld [vmem:[%s888 + $0xc9] sm:$0xf]
      %v959 = vld [vmem:[%s888 + $0xd1] sm:$0xf]
      %v960 = vld [vmem:[%s888 + $0xd9] sm:$0xf]
      %s961 = scalar_lea.vmem %s2, 11
      %v962 = vld [vmem:[%s961] sm:$0x1]
      %v964 = vlaneseq
      %v965 = vshrl.u32 %v964, 7
      %v966 = vsub.s32 0, %v965
      %v967 = vrot.slane %v962, %v966
      %v969 = vmul.f32 %v945, %v967
      %v970 = vmul.f32 %v946, %v967
      %v971 = vmul.f32 %v947, %v967
      %v972 = vmul.f32 %v948, %v967
      %v973 = vmul.f32 %v949, %v967
      %v974 = vmul.f32 %v950, %v967
      %v975 = vmul.f32 %v951, %v967
      %v976 = vmul.f32 %v952, %v967
      %v977 = vmul.f32 %v953, %v967
      %v978 = vmul.f32 %v954, %v967
      %v979 = vmul.f32 %v955, %v967
      %v980 = vmul.f32 %v956, %v967
      %v981 = vmul.f32 %v957, %v967
      %v982 = vmul.f32 %v958, %v967
      %v983 = vmul.f32 %v959, %v967
      %v984 = vmul.f32 %v960, %v967
      %v985 = vadd.f32 %v929, %v969
      %v986 = vadd.f32 %v930, %v970
      %v987 = vadd.f32 %v931, %v971
      %v988 = vadd.f32 %v932, %v972
      %v989 = vadd.f32 %v933, %v973
      %v990 = vadd.f32 %v934, %v974
      %v991 = vadd.f32 %v935, %v975
      %v992 = vadd.f32 %v936, %v976
      %v993 = vadd.f32 %v937, %v977
      %v994 = vadd.f32 %v938, %v978
      %v995 = vadd.f32 %v939, %v979
      %v996 = vadd.f32 %v940, %v980
      %v997 = vadd.f32 %v941, %v981
      %v998 = vadd.f32 %v942, %v982
      %v999 = vadd.f32 %v943, %v983
      %v1000 = vadd.f32 %v944, %v984
      %v1001 = vld [vmem:[%s888 + $0x2] sm:$0xf]
      %v1002 = vld [vmem:[%s888 + $0xa] sm:$0xf]
      %v1003 = vld [vmem:[%s888 + $0x12] sm:$0xf]
      %v1004 = vld [vmem:[%s888 + $0x1a] sm:$0xf]
      %v1005 = vld [vmem:[%s888 + $0x42] sm:$0xf]
      %v1006 = vld [vmem:[%s888 + $0x4a] sm:$0xf]
      %v1007 = vld [vmem:[%s888 + $0x52] sm:$0xf]
      %v1008 = vld [vmem:[%s888 + $0x5a] sm:$0xf]
      %v1009 = vld [vmem:[%s888 + $0x82] sm:$0xf]
      %v1010 = vld [vmem:[%s888 + $0x8a] sm:$0xf]
      %v1011 = vld [vmem:[%s888 + $0x92] sm:$0xf]
      %v1012 = vld [vmem:[%s888 + $0x9a] sm:$0xf]
      %v1013 = vld [vmem:[%s888 + $0xc2] sm:$0xf]
      %v1014 = vld [vmem:[%s888 + $0xca] sm:$0xf]
      %v1015 = vld [vmem:[%s888 + $0xd2] sm:$0xf]
      %v1016 = vld [vmem:[%s888 + $0xda] sm:$0xf]
      %s1017 = scalar_lea.vmem %s2, 12
      %v1018 = vld [vmem:[%s1017] sm:$0x1]
      %v1020 = vlaneseq
      %v1021 = vshrl.u32 %v1020, 7
      %v1022 = vsub.s32 0, %v1021
      %v1023 = vrot.slane %v1018, %v1022
      %v1025 = vmul.f32 %v1001, %v1023
      %v1026 = vmul.f32 %v1002, %v1023
      %v1027 = vmul.f32 %v1003, %v1023
      %v1028 = vmul.f32 %v1004, %v1023
      %v1029 = vmul.f32 %v1005, %v1023
      %v1030 = vmul.f32 %v1006, %v1023
      %v1031 = vmul.f32 %v1007, %v1023
      %v1032 = vmul.f32 %v1008, %v1023
      %v1033 = vmul.f32 %v1009, %v1023
      %v1034 = vmul.f32 %v1010, %v1023
      %v1035 = vmul.f32 %v1011, %v1023
      %v1036 = vmul.f32 %v1012, %v1023
      %v1037 = vmul.f32 %v1013, %v1023
      %v1038 = vmul.f32 %v1014, %v1023
      %v1039 = vmul.f32 %v1015, %v1023
      %v1040 = vmul.f32 %v1016, %v1023
      %v1041 = vadd.f32 %v985, %v1025
      %v1042 = vadd.f32 %v986, %v1026
      %v1043 = vadd.f32 %v987, %v1027
      %v1044 = vadd.f32 %v988, %v1028
      %v1045 = vadd.f32 %v989, %v1029
      %v1046 = vadd.f32 %v990, %v1030
      %v1047 = vadd.f32 %v991, %v1031
      %v1048 = vadd.f32 %v992, %v1032
      %v1049 = vadd.f32 %v993, %v1033
      %v1050 = vadd.f32 %v994, %v1034
      %v1051 = vadd.f32 %v995, %v1035
      %v1052 = vadd.f32 %v996, %v1036
      %v1053 = vadd.f32 %v997, %v1037
      %v1054 = vadd.f32 %v998, %v1038
      %v1055 = vadd.f32 %v999, %v1039
      %v1056 = vadd.f32 %v1000, %v1040
      %v1057 = vld [vmem:[%s888 + $0x3] sm:$0xf]
      %v1058 = vld [vmem:[%s888 + $0xb] sm:$0xf]
      %v1059 = vld [vmem:[%s888 + $0x13] sm:$0xf]
      %v1060 = vld [vmem:[%s888 + $0x1b] sm:$0xf]
      %v1061 = vld [vmem:[%s888 + $0x43] sm:$0xf]
      %v1062 = vld [vmem:[%s888 + $0x4b] sm:$0xf]
      %v1063 = vld [vmem:[%s888 + $0x53] sm:$0xf]
      %v1064 = vld [vmem:[%s888 + $0x5b] sm:$0xf]
      %v1065 = vld [vmem:[%s888 + $0x83] sm:$0xf]
      %v1066 = vld [vmem:[%s888 + $0x8b] sm:$0xf]
      %v1067 = vld [vmem:[%s888 + $0x93] sm:$0xf]
      %v1068 = vld [vmem:[%s888 + $0x9b] sm:$0xf]
      %v1069 = vld [vmem:[%s888 + $0xc3] sm:$0xf]
      %v1070 = vld [vmem:[%s888 + $0xcb] sm:$0xf]
      %v1071 = vld [vmem:[%s888 + $0xd3] sm:$0xf]
      %v1072 = vld [vmem:[%s888 + $0xdb] sm:$0xf]
      %s1073 = scalar_lea.vmem %s2, 13
      %v1074 = vld [vmem:[%s1073] sm:$0x1]
      %v1076 = vlaneseq
      %v1077 = vshrl.u32 %v1076, 7
      %v1078 = vsub.s32 0, %v1077
      %v1079 = vrot.slane %v1074, %v1078
      %v1081 = vmul.f32 %v1057, %v1079
      %v1082 = vmul.f32 %v1058, %v1079
      %v1083 = vmul.f32 %v1059, %v1079
      %v1084 = vmul.f32 %v1060, %v1079
      %v1085 = vmul.f32 %v1061, %v1079
      %v1086 = vmul.f32 %v1062, %v1079
      %v1087 = vmul.f32 %v1063, %v1079
      %v1088 = vmul.f32 %v1064, %v1079
      %v1089 = vmul.f32 %v1065, %v1079
      %v1090 = vmul.f32 %v1066, %v1079
      %v1091 = vmul.f32 %v1067, %v1079
      %v1092 = vmul.f32 %v1068, %v1079
      %v1093 = vmul.f32 %v1069, %v1079
      %v1094 = vmul.f32 %v1070, %v1079
      %v1095 = vmul.f32 %v1071, %v1079
      %v1096 = vmul.f32 %v1072, %v1079
      %v1097 = vadd.f32 %v1041, %v1081
      %v1098 = vadd.f32 %v1042, %v1082
      %v1099 = vadd.f32 %v1043, %v1083
      %v1100 = vadd.f32 %v1044, %v1084
      %v1101 = vadd.f32 %v1045, %v1085
      %v1102 = vadd.f32 %v1046, %v1086
      %v1103 = vadd.f32 %v1047, %v1087
      %v1104 = vadd.f32 %v1048, %v1088
      %v1105 = vadd.f32 %v1049, %v1089
      %v1106 = vadd.f32 %v1050, %v1090
      %v1107 = vadd.f32 %v1051, %v1091
      %v1108 = vadd.f32 %v1052, %v1092
      %v1109 = vadd.f32 %v1053, %v1093
      %v1110 = vadd.f32 %v1054, %v1094
      %v1111 = vadd.f32 %v1055, %v1095
      %v1112 = vadd.f32 %v1056, %v1096
      %v1113 = vld [vmem:[%s888 + $0x4] sm:$0xf]
      %v1114 = vld [vmem:[%s888 + $0xc] sm:$0xf]
      %v1115 = vld [vmem:[%s888 + $0x14] sm:$0xf]
      %v1116 = vld [vmem:[%s888 + $0x1c] sm:$0xf]
      %v1117 = vld [vmem:[%s888 + $0x44] sm:$0xf]
      %v1118 = vld [vmem:[%s888 + $0x4c] sm:$0xf]
      %v1119 = vld [vmem:[%s888 + $0x54] sm:$0xf]
      %v1120 = vld [vmem:[%s888 + $0x5c] sm:$0xf]
      %v1121 = vld [vmem:[%s888 + $0x84] sm:$0xf]
      %v1122 = vld [vmem:[%s888 + $0x8c] sm:$0xf]
      %v1123 = vld [vmem:[%s888 + $0x94] sm:$0xf]
      %v1124 = vld [vmem:[%s888 + $0x9c] sm:$0xf]
      %v1125 = vld [vmem:[%s888 + $0xc4] sm:$0xf]
      %v1126 = vld [vmem:[%s888 + $0xcc] sm:$0xf]
      %v1127 = vld [vmem:[%s888 + $0xd4] sm:$0xf]
      %v1128 = vld [vmem:[%s888 + $0xdc] sm:$0xf]
      %s1129 = scalar_lea.vmem %s2, 14
      %v1130 = vld [vmem:[%s1129] sm:$0x1]
      %v1132 = vlaneseq
      %v1133 = vshrl.u32 %v1132, 7
      %v1134 = vsub.s32 0, %v1133
      %v1135 = vrot.slane %v1130, %v1134
      %v1137 = vmul.f32 %v1113, %v1135
      %v1138 = vmul.f32 %v1114, %v1135
      %v1139 = vmul.f32 %v1115, %v1135
      %v1140 = vmul.f32 %v1116, %v1135
      %v1141 = vmul.f32 %v1117, %v1135
      %v1142 = vmul.f32 %v1118, %v1135
      %v1143 = vmul.f32 %v1119, %v1135
      %v1144 = vmul.f32 %v1120, %v1135
      %v1145 = vmul.f32 %v1121, %v1135
      %v1146 = vmul.f32 %v1122, %v1135
      %v1147 = vmul.f32 %v1123, %v1135
      %v1148 = vmul.f32 %v1124, %v1135
      %v1149 = vmul.f32 %v1125, %v1135
      %v1150 = vmul.f32 %v1126, %v1135
      %v1151 = vmul.f32 %v1127, %v1135
      %v1152 = vmul.f32 %v1128, %v1135
      %v1153 = vadd.f32 %v1097, %v1137
      %v1154 = vadd.f32 %v1098, %v1138
      %v1155 = vadd.f32 %v1099, %v1139
      %v1156 = vadd.f32 %v1100, %v1140
      %v1157 = vadd.f32 %v1101, %v1141
      %v1158 = vadd.f32 %v1102, %v1142
      %v1159 = vadd.f32 %v1103, %v1143
      %v1160 = vadd.f32 %v1104, %v1144
      %v1161 = vadd.f32 %v1105, %v1145
      %v1162 = vadd.f32 %v1106, %v1146
      %v1163 = vadd.f32 %v1107, %v1147
      %v1164 = vadd.f32 %v1108, %v1148
      %v1165 = vadd.f32 %v1109, %v1149
      %v1166 = vadd.f32 %v1110, %v1150
      %v1167 = vadd.f32 %v1111, %v1151
      %v1168 = vadd.f32 %v1112, %v1152
      %s1169 = scalar_lea.vmem %s305, 24
      %v1170 = vld [vmem:[%s1169] sm:$0xf]
      %v1171 = vld [vmem:[%s1169 + $0x8] sm:$0xf]
      %v1172 = vld [vmem:[%s1169 + $0x10] sm:$0xf]
      %v1173 = vld [vmem:[%s1169 + $0x18] sm:$0xf]
      %v1174 = vld [vmem:[%s1169 + $0x40] sm:$0xf]
      %v1175 = vld [vmem:[%s1169 + $0x48] sm:$0xf]
      %v1176 = vld [vmem:[%s1169 + $0x50] sm:$0xf]
      %v1177 = vld [vmem:[%s1169 + $0x58] sm:$0xf]
      %v1178 = vld [vmem:[%s1169 + $0x80] sm:$0xf]
      %v1179 = vld [vmem:[%s1169 + $0x88] sm:$0xf]
      %v1180 = vld [vmem:[%s1169 + $0x90] sm:$0xf]
      %v1181 = vld [vmem:[%s1169 + $0x98] sm:$0xf]
      %v1182 = vld [vmem:[%s1169 + $0xc0] sm:$0xf]
      %v1183 = vld [vmem:[%s1169 + $0xc8] sm:$0xf]
      %v1184 = vld [vmem:[%s1169 + $0xd0] sm:$0xf]
      %v1185 = vld [vmem:[%s1169 + $0xd8] sm:$0xf]
      %s1186 = scalar_lea.vmem %s2, 15
      %v1187 = vld [vmem:[%s1186] sm:$0x1]
      %v1189 = vlaneseq
      %v1190 = vshrl.u32 %v1189, 7
      %v1191 = vsub.s32 0, %v1190
      %v1192 = vrot.slane %v1187, %v1191
      %v1194 = vmul.f32 %v1170, %v1192
      %v1195 = vmul.f32 %v1171, %v1192
      %v1196 = vmul.f32 %v1172, %v1192
      %v1197 = vmul.f32 %v1173, %v1192
      %v1198 = vmul.f32 %v1174, %v1192
      %v1199 = vmul.f32 %v1175, %v1192
      %v1200 = vmul.f32 %v1176, %v1192
      %v1201 = vmul.f32 %v1177, %v1192
      %v1202 = vmul.f32 %v1178, %v1192
      %v1203 = vmul.f32 %v1179, %v1192
      %v1204 = vmul.f32 %v1180, %v1192
      %v1205 = vmul.f32 %v1181, %v1192
      %v1206 = vmul.f32 %v1182, %v1192
      %v1207 = vmul.f32 %v1183, %v1192
      %v1208 = vmul.f32 %v1184, %v1192
      %v1209 = vmul.f32 %v1185, %v1192
      %v1210 = vadd.f32 %v1153, %v1194
      %v1211 = vadd.f32 %v1154, %v1195
      %v1212 = vadd.f32 %v1155, %v1196
      %v1213 = vadd.f32 %v1156, %v1197
      %v1214 = vadd.f32 %v1157, %v1198
      %v1215 = vadd.f32 %v1158, %v1199
      %v1216 = vadd.f32 %v1159, %v1200
      %v1217 = vadd.f32 %v1160, %v1201
      %v1218 = vadd.f32 %v1161, %v1202
      %v1219 = vadd.f32 %v1162, %v1203
      %v1220 = vadd.f32 %v1163, %v1204
      %v1221 = vadd.f32 %v1164, %v1205
      %v1222 = vadd.f32 %v1165, %v1206
      %v1223 = vadd.f32 %v1166, %v1207
      %v1224 = vadd.f32 %v1167, %v1208
      %v1225 = vadd.f32 %v1168, %v1209
      %v1226 = vld [vmem:[%s1169 + $0x1] sm:$0xf]
      %v1227 = vld [vmem:[%s1169 + $0x9] sm:$0xf]
      %v1228 = vld [vmem:[%s1169 + $0x11] sm:$0xf]
      %v1229 = vld [vmem:[%s1169 + $0x19] sm:$0xf]
      %v1230 = vld [vmem:[%s1169 + $0x41] sm:$0xf]
      %v1231 = vld [vmem:[%s1169 + $0x49] sm:$0xf]
      %v1232 = vld [vmem:[%s1169 + $0x51] sm:$0xf]
      %v1233 = vld [vmem:[%s1169 + $0x59] sm:$0xf]
      %v1234 = vld [vmem:[%s1169 + $0x81] sm:$0xf]
      %v1235 = vld [vmem:[%s1169 + $0x89] sm:$0xf]
      %v1236 = vld [vmem:[%s1169 + $0x91] sm:$0xf]
      %v1237 = vld [vmem:[%s1169 + $0x99] sm:$0xf]
      %v1238 = vld [vmem:[%s1169 + $0xc1] sm:$0xf]
      %v1239 = vld [vmem:[%s1169 + $0xc9] sm:$0xf]
      %v1240 = vld [vmem:[%s1169 + $0xd1] sm:$0xf]
      %v1241 = vld [vmem:[%s1169 + $0xd9] sm:$0xf]
      %s1242 = scalar_lea.vmem %s2, 16
      %v1243 = vld [vmem:[%s1242] sm:$0x1]
      %v1245 = vlaneseq
      %v1246 = vshrl.u32 %v1245, 7
      %v1247 = vsub.s32 0, %v1246
      %v1248 = vrot.slane %v1243, %v1247
      %v1250 = vmul.f32 %v1226, %v1248
      %v1251 = vmul.f32 %v1227, %v1248
      %v1252 = vmul.f32 %v1228, %v1248
      %v1253 = vmul.f32 %v1229, %v1248
      %v1254 = vmul.f32 %v1230, %v1248
      %v1255 = vmul.f32 %v1231, %v1248
      %v1256 = vmul.f32 %v1232, %v1248
      %v1257 = vmul.f32 %v1233, %v1248
      %v1258 = vmul.f32 %v1234, %v1248
      %v1259 = vmul.f32 %v1235, %v1248
      %v1260 = vmul.f32 %v1236, %v1248
      %v1261 = vmul.f32 %v1237, %v1248
      %v1262 = vmul.f32 %v1238, %v1248
      %v1263 = vmul.f32 %v1239, %v1248
      %v1264 = vmul.f32 %v1240, %v1248
      %v1265 = vmul.f32 %v1241, %v1248
      %v1266 = vadd.f32 %v1210, %v1250
      %v1267 = vadd.f32 %v1211, %v1251
      %v1268 = vadd.f32 %v1212, %v1252
      %v1269 = vadd.f32 %v1213, %v1253
      %v1270 = vadd.f32 %v1214, %v1254
      %v1271 = vadd.f32 %v1215, %v1255
      %v1272 = vadd.f32 %v1216, %v1256
      %v1273 = vadd.f32 %v1217, %v1257
      %v1274 = vadd.f32 %v1218, %v1258
      %v1275 = vadd.f32 %v1219, %v1259
      %v1276 = vadd.f32 %v1220, %v1260
      %v1277 = vadd.f32 %v1221, %v1261
      %v1278 = vadd.f32 %v1222, %v1262
      %v1279 = vadd.f32 %v1223, %v1263
      %v1280 = vadd.f32 %v1224, %v1264
      %v1281 = vadd.f32 %v1225, %v1265
      %v1282 = vld [vmem:[%s1169 + $0x2] sm:$0xf]
      %v1283 = vld [vmem:[%s1169 + $0xa] sm:$0xf]
      %v1284 = vld [vmem:[%s1169 + $0x12] sm:$0xf]
      %v1285 = vld [vmem:[%s1169 + $0x1a] sm:$0xf]
      %v1286 = vld [vmem:[%s1169 + $0x42] sm:$0xf]
      %v1287 = vld [vmem:[%s1169 + $0x4a] sm:$0xf]
      %v1288 = vld [vmem:[%s1169 + $0x52] sm:$0xf]
      %v1289 = vld [vmem:[%s1169 + $0x5a] sm:$0xf]
      %v1290 = vld [vmem:[%s1169 + $0x82] sm:$0xf]
      %v1291 = vld [vmem:[%s1169 + $0x8a] sm:$0xf]
      %v1292 = vld [vmem:[%s1169 + $0x92] sm:$0xf]
      %v1293 = vld [vmem:[%s1169 + $0x9a] sm:$0xf]
      %v1294 = vld [vmem:[%s1169 + $0xc2] sm:$0xf]
      %v1295 = vld [vmem:[%s1169 + $0xca] sm:$0xf]
      %v1296 = vld [vmem:[%s1169 + $0xd2] sm:$0xf]
      %v1297 = vld [vmem:[%s1169 + $0xda] sm:$0xf]
      %s1298 = scalar_lea.vmem %s2, 17
      %v1299 = vld [vmem:[%s1298] sm:$0x1]
      %v1301 = vlaneseq
      %v1302 = vshrl.u32 %v1301, 7
      %v1303 = vsub.s32 0, %v1302
      %v1304 = vrot.slane %v1299, %v1303
      %v1306 = vmul.f32 %v1282, %v1304
      %v1307 = vmul.f32 %v1283, %v1304
      %v1308 = vmul.f32 %v1284, %v1304
      %v1309 = vmul.f32 %v1285, %v1304
      %v1310 = vmul.f32 %v1286, %v1304
      %v1311 = vmul.f32 %v1287, %v1304
      %v1312 = vmul.f32 %v1288, %v1304
      %v1313 = vmul.f32 %v1289, %v1304
      %v1314 = vmul.f32 %v1290, %v1304
      %v1315 = vmul.f32 %v1291, %v1304
      %v1316 = vmul.f32 %v1292, %v1304
      %v1317 = vmul.f32 %v1293, %v1304
      %v1318 = vmul.f32 %v1294, %v1304
      %v1319 = vmul.f32 %v1295, %v1304
      %v1320 = vmul.f32 %v1296, %v1304
      %v1321 = vmul.f32 %v1297, %v1304
      %v1322 = vadd.f32 %v1266, %v1306
      %v1323 = vadd.f32 %v1267, %v1307
      %v1324 = vadd.f32 %v1268, %v1308
      %v1325 = vadd.f32 %v1269, %v1309
      %v1326 = vadd.f32 %v1270, %v1310
      %v1327 = vadd.f32 %v1271, %v1311
      %v1328 = vadd.f32 %v1272, %v1312
      %v1329 = vadd.f32 %v1273, %v1313
      %v1330 = vadd.f32 %v1274, %v1314
      %v1331 = vadd.f32 %v1275, %v1315
      %v1332 = vadd.f32 %v1276, %v1316
      %v1333 = vadd.f32 %v1277, %v1317
      %v1334 = vadd.f32 %v1278, %v1318
      %v1335 = vadd.f32 %v1279, %v1319
      %v1336 = vadd.f32 %v1280, %v1320
      %v1337 = vadd.f32 %v1281, %v1321
      %v1338 = vld [vmem:[%s1169 + $0x3] sm:$0xf]
      %v1339 = vld [vmem:[%s1169 + $0xb] sm:$0xf]
      %v1340 = vld [vmem:[%s1169 + $0x13] sm:$0xf]
      %v1341 = vld [vmem:[%s1169 + $0x1b] sm:$0xf]
      %v1342 = vld [vmem:[%s1169 + $0x43] sm:$0xf]
      %v1343 = vld [vmem:[%s1169 + $0x4b] sm:$0xf]
      %v1344 = vld [vmem:[%s1169 + $0x53] sm:$0xf]
      %v1345 = vld [vmem:[%s1169 + $0x5b] sm:$0xf]
      %v1346 = vld [vmem:[%s1169 + $0x83] sm:$0xf]
      %v1347 = vld [vmem:[%s1169 + $0x8b] sm:$0xf]
      %v1348 = vld [vmem:[%s1169 + $0x93] sm:$0xf]
      %v1349 = vld [vmem:[%s1169 + $0x9b] sm:$0xf]
      %v1350 = vld [vmem:[%s1169 + $0xc3] sm:$0xf]
      %v1351 = vld [vmem:[%s1169 + $0xcb] sm:$0xf]
      %v1352 = vld [vmem:[%s1169 + $0xd3] sm:$0xf]
      %v1353 = vld [vmem:[%s1169 + $0xdb] sm:$0xf]
      %s1354 = scalar_lea.vmem %s2, 18
      %v1355 = vld [vmem:[%s1354] sm:$0x1]
      %v1357 = vlaneseq
      %v1358 = vshrl.u32 %v1357, 7
      %v1359 = vsub.s32 0, %v1358
      %v1360 = vrot.slane %v1355, %v1359
      %v1362 = vmul.f32 %v1338, %v1360
      %v1363 = vmul.f32 %v1339, %v1360
      %v1364 = vmul.f32 %v1340, %v1360
      %v1365 = vmul.f32 %v1341, %v1360
      %v1366 = vmul.f32 %v1342, %v1360
      %v1367 = vmul.f32 %v1343, %v1360
      %v1368 = vmul.f32 %v1344, %v1360
      %v1369 = vmul.f32 %v1345, %v1360
      %v1370 = vmul.f32 %v1346, %v1360
      %v1371 = vmul.f32 %v1347, %v1360
      %v1372 = vmul.f32 %v1348, %v1360
      %v1373 = vmul.f32 %v1349, %v1360
      %v1374 = vmul.f32 %v1350, %v1360
      %v1375 = vmul.f32 %v1351, %v1360
      %v1376 = vmul.f32 %v1352, %v1360
      %v1377 = vmul.f32 %v1353, %v1360
      %v1378 = vadd.f32 %v1322, %v1362
      %v1379 = vadd.f32 %v1323, %v1363
      %v1380 = vadd.f32 %v1324, %v1364
      %v1381 = vadd.f32 %v1325, %v1365
      %v1382 = vadd.f32 %v1326, %v1366
      %v1383 = vadd.f32 %v1327, %v1367
      %v1384 = vadd.f32 %v1328, %v1368
      %v1385 = vadd.f32 %v1329, %v1369
      %v1386 = vadd.f32 %v1330, %v1370
      %v1387 = vadd.f32 %v1331, %v1371
      %v1388 = vadd.f32 %v1332, %v1372
      %v1389 = vadd.f32 %v1333, %v1373
      %v1390 = vadd.f32 %v1334, %v1374
      %v1391 = vadd.f32 %v1335, %v1375
      %v1392 = vadd.f32 %v1336, %v1376
      %v1393 = vadd.f32 %v1337, %v1377
      %v1394 = vld [vmem:[%s1169 + $0x4] sm:$0xf]
      %v1395 = vld [vmem:[%s1169 + $0xc] sm:$0xf]
      %v1396 = vld [vmem:[%s1169 + $0x14] sm:$0xf]
      %v1397 = vld [vmem:[%s1169 + $0x1c] sm:$0xf]
      %v1398 = vld [vmem:[%s1169 + $0x44] sm:$0xf]
      %v1399 = vld [vmem:[%s1169 + $0x4c] sm:$0xf]
      %v1400 = vld [vmem:[%s1169 + $0x54] sm:$0xf]
      %v1401 = vld [vmem:[%s1169 + $0x5c] sm:$0xf]
      %v1402 = vld [vmem:[%s1169 + $0x84] sm:$0xf]
      %v1403 = vld [vmem:[%s1169 + $0x8c] sm:$0xf]
      %v1404 = vld [vmem:[%s1169 + $0x94] sm:$0xf]
      %v1405 = vld [vmem:[%s1169 + $0x9c] sm:$0xf]
      %v1406 = vld [vmem:[%s1169 + $0xc4] sm:$0xf]
      %v1407 = vld [vmem:[%s1169 + $0xcc] sm:$0xf]
      %v1408 = vld [vmem:[%s1169 + $0xd4] sm:$0xf]
      %v1409 = vld [vmem:[%s1169 + $0xdc] sm:$0xf]
      %s1410 = scalar_lea.vmem %s2, 19
      %v1411 = vld [vmem:[%s1410] sm:$0x1]
      %v1413 = vlaneseq
      %v1414 = vshrl.u32 %v1413, 7
      %v1415 = vsub.s32 0, %v1414
      %v1416 = vrot.slane %v1411, %v1415
      %v1418 = vmul.f32 %v1394, %v1416
      %v1419 = vmul.f32 %v1395, %v1416
      %v1420 = vmul.f32 %v1396, %v1416
      %v1421 = vmul.f32 %v1397, %v1416
      %v1422 = vmul.f32 %v1398, %v1416
      %v1423 = vmul.f32 %v1399, %v1416
      %v1424 = vmul.f32 %v1400, %v1416
      %v1425 = vmul.f32 %v1401, %v1416
      %v1426 = vmul.f32 %v1402, %v1416
      %v1427 = vmul.f32 %v1403, %v1416
      %v1428 = vmul.f32 %v1404, %v1416
      %v1429 = vmul.f32 %v1405, %v1416
      %v1430 = vmul.f32 %v1406, %v1416
      %v1431 = vmul.f32 %v1407, %v1416
      %v1432 = vmul.f32 %v1408, %v1416
      %v1433 = vmul.f32 %v1409, %v1416
      %v1434 = vadd.f32 %v1378, %v1418
      %v1435 = vadd.f32 %v1379, %v1419
      %v1436 = vadd.f32 %v1380, %v1420
      %v1437 = vadd.f32 %v1381, %v1421
      %v1438 = vadd.f32 %v1382, %v1422
      %v1439 = vadd.f32 %v1383, %v1423
      %v1440 = vadd.f32 %v1384, %v1424
      %v1441 = vadd.f32 %v1385, %v1425
      %v1442 = vadd.f32 %v1386, %v1426
      %v1443 = vadd.f32 %v1387, %v1427
      %v1444 = vadd.f32 %v1388, %v1428
      %v1445 = vadd.f32 %v1389, %v1429
      %v1446 = vadd.f32 %v1390, %v1430
      %v1447 = vadd.f32 %v1391, %v1431
      %v1448 = vadd.f32 %v1392, %v1432
      %v1449 = vadd.f32 %v1393, %v1433
      %s1450 = scalar_lea.vmem %s305, 32
      %v1451 = vld [vmem:[%s1450] sm:$0xf]
      %v1452 = vld [vmem:[%s1450 + $0x8] sm:$0xf]
      %v1453 = vld [vmem:[%s1450 + $0x10] sm:$0xf]
      %v1454 = vld [vmem:[%s1450 + $0x18] sm:$0xf]
      %v1455 = vld [vmem:[%s1450 + $0x40] sm:$0xf]
      %v1456 = vld [vmem:[%s1450 + $0x48] sm:$0xf]
      %v1457 = vld [vmem:[%s1450 + $0x50] sm:$0xf]
      %v1458 = vld [vmem:[%s1450 + $0x58] sm:$0xf]
      %v1459 = vld [vmem:[%s1450 + $0x80] sm:$0xf]
      %v1460 = vld [vmem:[%s1450 + $0x88] sm:$0xf]
      %v1461 = vld [vmem:[%s1450 + $0x90] sm:$0xf]
      %v1462 = vld [vmem:[%s1450 + $0x98] sm:$0xf]
      %v1463 = vld [vmem:[%s1450 + $0xc0] sm:$0xf]
      %v1464 = vld [vmem:[%s1450 + $0xc8] sm:$0xf]
      %v1465 = vld [vmem:[%s1450 + $0xd0] sm:$0xf]
      %v1466 = vld [vmem:[%s1450 + $0xd8] sm:$0xf]
      %s1467 = scalar_lea.vmem %s2, 20
      %v1468 = vld [vmem:[%s1467] sm:$0x1]
      %v1470 = vlaneseq
      %v1471 = vshrl.u32 %v1470, 7
      %v1472 = vsub.s32 0, %v1471
      %v1473 = vrot.slane %v1468, %v1472
      %v1475 = vmul.f32 %v1451, %v1473
      %v1476 = vmul.f32 %v1452, %v1473
      %v1477 = vmul.f32 %v1453, %v1473
      %v1478 = vmul.f32 %v1454, %v1473
      %v1479 = vmul.f32 %v1455, %v1473
      %v1480 = vmul.f32 %v1456, %v1473
      %v1481 = vmul.f32 %v1457, %v1473
      %v1482 = vmul.f32 %v1458, %v1473
      %v1483 = vmul.f32 %v1459, %v1473
      %v1484 = vmul.f32 %v1460, %v1473
      %v1485 = vmul.f32 %v1461, %v1473
      %v1486 = vmul.f32 %v1462, %v1473
      %v1487 = vmul.f32 %v1463, %v1473
      %v1488 = vmul.f32 %v1464, %v1473
      %v1489 = vmul.f32 %v1465, %v1473
      %v1490 = vmul.f32 %v1466, %v1473
      %v1491 = vadd.f32 %v1434, %v1475
      %v1492 = vadd.f32 %v1435, %v1476
      %v1493 = vadd.f32 %v1436, %v1477
      %v1494 = vadd.f32 %v1437, %v1478
      %v1495 = vadd.f32 %v1438, %v1479
      %v1496 = vadd.f32 %v1439, %v1480
      %v1497 = vadd.f32 %v1440, %v1481
      %v1498 = vadd.f32 %v1441, %v1482
      %v1499 = vadd.f32 %v1442, %v1483
      %v1500 = vadd.f32 %v1443, %v1484
      %v1501 = vadd.f32 %v1444, %v1485
      %v1502 = vadd.f32 %v1445, %v1486
      %v1503 = vadd.f32 %v1446, %v1487
      %v1504 = vadd.f32 %v1447, %v1488
      %v1505 = vadd.f32 %v1448, %v1489
      %v1506 = vadd.f32 %v1449, %v1490
      %v1507 = vld [vmem:[%s1450 + $0x1] sm:$0xf]
      %v1508 = vld [vmem:[%s1450 + $0x9] sm:$0xf]
      %v1509 = vld [vmem:[%s1450 + $0x11] sm:$0xf]
      %v1510 = vld [vmem:[%s1450 + $0x19] sm:$0xf]
      %v1511 = vld [vmem:[%s1450 + $0x41] sm:$0xf]
      %v1512 = vld [vmem:[%s1450 + $0x49] sm:$0xf]
      %v1513 = vld [vmem:[%s1450 + $0x51] sm:$0xf]
      %v1514 = vld [vmem:[%s1450 + $0x59] sm:$0xf]
      %v1515 = vld [vmem:[%s1450 + $0x81] sm:$0xf]
      %v1516 = vld [vmem:[%s1450 + $0x89] sm:$0xf]
      %v1517 = vld [vmem:[%s1450 + $0x91] sm:$0xf]
      %v1518 = vld [vmem:[%s1450 + $0x99] sm:$0xf]
      %v1519 = vld [vmem:[%s1450 + $0xc1] sm:$0xf]
      %v1520 = vld [vmem:[%s1450 + $0xc9] sm:$0xf]
      %v1521 = vld [vmem:[%s1450 + $0xd1] sm:$0xf]
      %v1522 = vld [vmem:[%s1450 + $0xd9] sm:$0xf]
      %s1523 = scalar_lea.vmem %s2, 21
      %v1524 = vld [vmem:[%s1523] sm:$0x1]
      %v1526 = vlaneseq
      %v1527 = vshrl.u32 %v1526, 7
      %v1528 = vsub.s32 0, %v1527
      %v1529 = vrot.slane %v1524, %v1528
      %v1531 = vmul.f32 %v1507, %v1529
      %v1532 = vmul.f32 %v1508, %v1529
      %v1533 = vmul.f32 %v1509, %v1529
      %v1534 = vmul.f32 %v1510, %v1529
      %v1535 = vmul.f32 %v1511, %v1529
      %v1536 = vmul.f32 %v1512, %v1529
      %v1537 = vmul.f32 %v1513, %v1529
      %v1538 = vmul.f32 %v1514, %v1529
      %v1539 = vmul.f32 %v1515, %v1529
      %v1540 = vmul.f32 %v1516, %v1529
      %v1541 = vmul.f32 %v1517, %v1529
      %v1542 = vmul.f32 %v1518, %v1529
      %v1543 = vmul.f32 %v1519, %v1529
      %v1544 = vmul.f32 %v1520, %v1529
      %v1545 = vmul.f32 %v1521, %v1529
      %v1546 = vmul.f32 %v1522, %v1529
      %v1547 = vadd.f32 %v1491, %v1531
      %v1548 = vadd.f32 %v1492, %v1532
      %v1549 = vadd.f32 %v1493, %v1533
      %v1550 = vadd.f32 %v1494, %v1534
      %v1551 = vadd.f32 %v1495, %v1535
      %v1552 = vadd.f32 %v1496, %v1536
      %v1553 = vadd.f32 %v1497, %v1537
      %v1554 = vadd.f32 %v1498, %v1538
      %v1555 = vadd.f32 %v1499, %v1539
      %v1556 = vadd.f32 %v1500, %v1540
      %v1557 = vadd.f32 %v1501, %v1541
      %v1558 = vadd.f32 %v1502, %v1542
      %v1559 = vadd.f32 %v1503, %v1543
      %v1560 = vadd.f32 %v1504, %v1544
      %v1561 = vadd.f32 %v1505, %v1545
      %v1562 = vadd.f32 %v1506, %v1546
      %v1563 = vld [vmem:[%s1450 + $0x2] sm:$0xf]
      %v1564 = vld [vmem:[%s1450 + $0xa] sm:$0xf]
      %v1565 = vld [vmem:[%s1450 + $0x12] sm:$0xf]
      %v1566 = vld [vmem:[%s1450 + $0x1a] sm:$0xf]
      %v1567 = vld [vmem:[%s1450 + $0x42] sm:$0xf]
      %v1568 = vld [vmem:[%s1450 + $0x4a] sm:$0xf]
      %v1569 = vld [vmem:[%s1450 + $0x52] sm:$0xf]
      %v1570 = vld [vmem:[%s1450 + $0x5a] sm:$0xf]
      %v1571 = vld [vmem:[%s1450 + $0x82] sm:$0xf]
      %v1572 = vld [vmem:[%s1450 + $0x8a] sm:$0xf]
      %v1573 = vld [vmem:[%s1450 + $0x92] sm:$0xf]
      %v1574 = vld [vmem:[%s1450 + $0x9a] sm:$0xf]
      %v1575 = vld [vmem:[%s1450 + $0xc2] sm:$0xf]
      %v1576 = vld [vmem:[%s1450 + $0xca] sm:$0xf]
      %v1577 = vld [vmem:[%s1450 + $0xd2] sm:$0xf]
      %v1578 = vld [vmem:[%s1450 + $0xda] sm:$0xf]
      %s1579 = scalar_lea.vmem %s2, 22
      %v1580 = vld [vmem:[%s1579] sm:$0x1]
      %v1582 = vlaneseq
      %v1583 = vshrl.u32 %v1582, 7
      %v1584 = vsub.s32 0, %v1583
      %v1585 = vrot.slane %v1580, %v1584
      %v1587 = vmul.f32 %v1563, %v1585
      %v1588 = vmul.f32 %v1564, %v1585
      %v1589 = vmul.f32 %v1565, %v1585
      %v1590 = vmul.f32 %v1566, %v1585
      %v1591 = vmul.f32 %v1567, %v1585
      %v1592 = vmul.f32 %v1568, %v1585
      %v1593 = vmul.f32 %v1569, %v1585
      %v1594 = vmul.f32 %v1570, %v1585
      %v1595 = vmul.f32 %v1571, %v1585
      %v1596 = vmul.f32 %v1572, %v1585
      %v1597 = vmul.f32 %v1573, %v1585
      %v1598 = vmul.f32 %v1574, %v1585
      %v1599 = vmul.f32 %v1575, %v1585
      %v1600 = vmul.f32 %v1576, %v1585
      %v1601 = vmul.f32 %v1577, %v1585
      %v1602 = vmul.f32 %v1578, %v1585
      %v1603 = vadd.f32 %v1547, %v1587
      %v1604 = vadd.f32 %v1548, %v1588
      %v1605 = vadd.f32 %v1549, %v1589
      %v1606 = vadd.f32 %v1550, %v1590
      %v1607 = vadd.f32 %v1551, %v1591
      %v1608 = vadd.f32 %v1552, %v1592
      %v1609 = vadd.f32 %v1553, %v1593
      %v1610 = vadd.f32 %v1554, %v1594
      %v1611 = vadd.f32 %v1555, %v1595
      %v1612 = vadd.f32 %v1556, %v1596
      %v1613 = vadd.f32 %v1557, %v1597
      %v1614 = vadd.f32 %v1558, %v1598
      %v1615 = vadd.f32 %v1559, %v1599
      %v1616 = vadd.f32 %v1560, %v1600
      %v1617 = vadd.f32 %v1561, %v1601
      %v1618 = vadd.f32 %v1562, %v1602
      %v1619 = vld [vmem:[%s1450 + $0x3] sm:$0xf]
      %v1620 = vld [vmem:[%s1450 + $0xb] sm:$0xf]
      %v1621 = vld [vmem:[%s1450 + $0x13] sm:$0xf]
      %v1622 = vld [vmem:[%s1450 + $0x1b] sm:$0xf]
      %v1623 = vld [vmem:[%s1450 + $0x43] sm:$0xf]
      %v1624 = vld [vmem:[%s1450 + $0x4b] sm:$0xf]
      %v1625 = vld [vmem:[%s1450 + $0x53] sm:$0xf]
      %v1626 = vld [vmem:[%s1450 + $0x5b] sm:$0xf]
      %v1627 = vld [vmem:[%s1450 + $0x83] sm:$0xf]
      %v1628 = vld [vmem:[%s1450 + $0x8b] sm:$0xf]
      %v1629 = vld [vmem:[%s1450 + $0x93] sm:$0xf]
      %v1630 = vld [vmem:[%s1450 + $0x9b] sm:$0xf]
      %v1631 = vld [vmem:[%s1450 + $0xc3] sm:$0xf]
      %v1632 = vld [vmem:[%s1450 + $0xcb] sm:$0xf]
      %v1633 = vld [vmem:[%s1450 + $0xd3] sm:$0xf]
      %v1634 = vld [vmem:[%s1450 + $0xdb] sm:$0xf]
      %s1635 = scalar_lea.vmem %s2, 23
      %v1636 = vld [vmem:[%s1635] sm:$0x1]
      %v1638 = vlaneseq
      %v1639 = vshrl.u32 %v1638, 7
      %v1640 = vsub.s32 0, %v1639
      %v1641 = vrot.slane %v1636, %v1640
      %v1643 = vmul.f32 %v1619, %v1641
      %v1644 = vmul.f32 %v1620, %v1641
      %v1645 = vmul.f32 %v1621, %v1641
      %v1646 = vmul.f32 %v1622, %v1641
      %v1647 = vmul.f32 %v1623, %v1641
      %v1648 = vmul.f32 %v1624, %v1641
      %v1649 = vmul.f32 %v1625, %v1641
      %v1650 = vmul.f32 %v1626, %v1641
      %v1651 = vmul.f32 %v1627, %v1641
      %v1652 = vmul.f32 %v1628, %v1641
      %v1653 = vmul.f32 %v1629, %v1641
      %v1654 = vmul.f32 %v1630, %v1641
      %v1655 = vmul.f32 %v1631, %v1641
      %v1656 = vmul.f32 %v1632, %v1641
      %v1657 = vmul.f32 %v1633, %v1641
      %v1658 = vmul.f32 %v1634, %v1641
      %v1659 = vadd.f32 %v1603, %v1643
      %v1660 = vadd.f32 %v1604, %v1644
      %v1661 = vadd.f32 %v1605, %v1645
      %v1662 = vadd.f32 %v1606, %v1646
      %v1663 = vadd.f32 %v1607, %v1647
      %v1664 = vadd.f32 %v1608, %v1648
      %v1665 = vadd.f32 %v1609, %v1649
      %v1666 = vadd.f32 %v1610, %v1650
      %v1667 = vadd.f32 %v1611, %v1651
      %v1668 = vadd.f32 %v1612, %v1652
      %v1669 = vadd.f32 %v1613, %v1653
      %v1670 = vadd.f32 %v1614, %v1654
      %v1671 = vadd.f32 %v1615, %v1655
      %v1672 = vadd.f32 %v1616, %v1656
      %v1673 = vadd.f32 %v1617, %v1657
      %v1674 = vadd.f32 %v1618, %v1658
      %v1675 = vld [vmem:[%s1450 + $0x4] sm:$0xf]
      %v1676 = vld [vmem:[%s1450 + $0xc] sm:$0xf]
      %v1677 = vld [vmem:[%s1450 + $0x14] sm:$0xf]
      %v1678 = vld [vmem:[%s1450 + $0x1c] sm:$0xf]
      %v1679 = vld [vmem:[%s1450 + $0x44] sm:$0xf]
      %v1680 = vld [vmem:[%s1450 + $0x4c] sm:$0xf]
      %v1681 = vld [vmem:[%s1450 + $0x54] sm:$0xf]
      %v1682 = vld [vmem:[%s1450 + $0x5c] sm:$0xf]
      %v1683 = vld [vmem:[%s1450 + $0x84] sm:$0xf]
      %v1684 = vld [vmem:[%s1450 + $0x8c] sm:$0xf]
      %v1685 = vld [vmem:[%s1450 + $0x94] sm:$0xf]
      %v1686 = vld [vmem:[%s1450 + $0x9c] sm:$0xf]
      %v1687 = vld [vmem:[%s1450 + $0xc4] sm:$0xf]
      %v1688 = vld [vmem:[%s1450 + $0xcc] sm:$0xf]
      %v1689 = vld [vmem:[%s1450 + $0xd4] sm:$0xf]
      %v1690 = vld [vmem:[%s1450 + $0xdc] sm:$0xf]
      %s1691 = scalar_lea.vmem %s2, 24
      %v1692 = vld [vmem:[%s1691] sm:$0x1]
      %v1694 = vlaneseq
      %v1695 = vshrl.u32 %v1694, 7
      %v1696 = vsub.s32 0, %v1695
      %v1697 = vrot.slane %v1692, %v1696
      %v1699 = vmul.f32 %v1675, %v1697
      %v1700 = vmul.f32 %v1676, %v1697
      %v1701 = vmul.f32 %v1677, %v1697
      %v1702 = vmul.f32 %v1678, %v1697
      %v1703 = vmul.f32 %v1679, %v1697
      %v1704 = vmul.f32 %v1680, %v1697
      %v1705 = vmul.f32 %v1681, %v1697
      %v1706 = vmul.f32 %v1682, %v1697
      %v1707 = vmul.f32 %v1683, %v1697
      %v1708 = vmul.f32 %v1684, %v1697
      %v1709 = vmul.f32 %v1685, %v1697
      %v1710 = vmul.f32 %v1686, %v1697
      %v1711 = vmul.f32 %v1687, %v1697
      %v1712 = vmul.f32 %v1688, %v1697
      %v1713 = vmul.f32 %v1689, %v1697
      %v1714 = vmul.f32 %v1690, %v1697
      %v1715 = vadd.f32 %v1659, %v1699
      %v1716 = vadd.f32 %v1660, %v1700
      %v1717 = vadd.f32 %v1661, %v1701
      %v1718 = vadd.f32 %v1662, %v1702
      %v1719 = vadd.f32 %v1663, %v1703
      %v1720 = vadd.f32 %v1664, %v1704
      %v1721 = vadd.f32 %v1665, %v1705
      %v1722 = vadd.f32 %v1666, %v1706
      %v1723 = vadd.f32 %v1667, %v1707
      %v1724 = vadd.f32 %v1668, %v1708
      %v1725 = vadd.f32 %v1669, %v1709
      %v1726 = vadd.f32 %v1670, %v1710
      %v1727 = vadd.f32 %v1671, %v1711
      %v1728 = vadd.f32 %v1672, %v1712
      %v1729 = vadd.f32 %v1673, %v1713
      %v1730 = vadd.f32 %v1674, %v1714
      %v1731 = vld [vmem:[%s3] sm:$0x1]
      %v1733 = vlaneseq
      %v1734 = vshrl.u32 %v1733, 7
      %v1735 = vsub.s32 0, %v1734
      %v1736 = vrot.slane %v1731, %v1735
      %v1738 = vadd.f32 %v1715, %v1736
      %v1739 = vadd.f32 %v1716, %v1736
      %v1740 = vadd.f32 %v1717, %v1736
      %v1741 = vadd.f32 %v1718, %v1736
      %v1742 = vadd.f32 %v1719, %v1736
      %v1743 = vadd.f32 %v1720, %v1736
      %v1744 = vadd.f32 %v1721, %v1736
      %v1745 = vadd.f32 %v1722, %v1736
      %v1746 = vadd.f32 %v1723, %v1736
      %v1747 = vadd.f32 %v1724, %v1736
      %v1748 = vadd.f32 %v1725, %v1736
      %v1749 = vadd.f32 %v1726, %v1736
      %v1750 = vadd.f32 %v1727, %v1736
      %v1751 = vadd.f32 %v1728, %v1736
      %v1752 = vadd.f32 %v1729, %v1736
      %v1753 = vadd.f32 %v1730, %v1736
      %vm1754 = vcmask 27648
      %1755 = vst.msk [vmem:[%s319] sm:$0xf] %vm1754, %v1738
      %1756 = vst.msk [vmem:[%s319 + $0x4] sm:$0xf] %vm1754, %v1739
      %1757 = vst.msk [vmem:[%s319 + $0x8] sm:$0xf] %vm1754, %v1740
      %1758 = vst.msk [vmem:[%s319 + $0xc] sm:$0xf] %vm1754, %v1741
      %1759 = vst.msk [vmem:[%s319 + $0x10] sm:$0xf] %vm1754, %v1742
      %1760 = vst.msk [vmem:[%s319 + $0x14] sm:$0xf] %vm1754, %v1743
      %1761 = vst.msk [vmem:[%s319 + $0x18] sm:$0xf] %vm1754, %v1744
      %1762 = vst.msk [vmem:[%s319 + $0x1c] sm:$0xf] %vm1754, %v1745
      %1763 = vst.msk [vmem:[%s319 + $0x20] sm:$0xf] %vm1754, %v1746
      %1764 = vst.msk [vmem:[%s319 + $0x24] sm:$0xf] %vm1754, %v1747
      %1765 = vst.msk [vmem:[%s319 + $0x28] sm:$0xf] %vm1754, %v1748
      %1766 = vst.msk [vmem:[%s319 + $0x2c] sm:$0xf] %vm1754, %v1749
      %1767 = vst.msk [vmem:[%s319 + $0x30] sm:$0xf] %vm1754, %v1750
      %1768 = vst.msk [vmem:[%s319 + $0x34] sm:$0xf] %vm1754, %v1751
      %1769 = vst.msk [vmem:[%s319 + $0x38] sm:$0xf] %vm1754, %v1752
      %1770 = vst.msk [vmem:[%s319 + $0x3c] sm:$0xf] %vm1754, %v1753
      %v1771 = vld [vmem:[%s312] sm:$0xf]
      %v1772 = vld [vmem:[%s312 + $0x8] sm:$0xf]
      %v1773 = vld [vmem:[%s312 + $0x10] sm:$0xf]
      %v1774 = vld [vmem:[%s312 + $0x18] sm:$0xf]
      %v1775 = vld [vmem:[%s312 + $0x40] sm:$0xf]
      %v1776 = vld [vmem:[%s312 + $0x48] sm:$0xf]
      %v1777 = vld [vmem:[%s312 + $0x50] sm:$0xf]
      %v1778 = vld [vmem:[%s312 + $0x58] sm:$0xf]
      %v1779 = vld [vmem:[%s312 + $0x80] sm:$0xf]
      %v1780 = vld [vmem:[%s312 + $0x88] sm:$0xf]
      %v1781 = vld [vmem:[%s312 + $0x90] sm:$0xf]
      %v1782 = vld [vmem:[%s312 + $0x98] sm:$0xf]
      %v1783 = vld [vmem:[%s312 + $0xc0] sm:$0xf]
      %v1784 = vld [vmem:[%s312 + $0xc8] sm:$0xf]
      %v1785 = vld [vmem:[%s312 + $0xd0] sm:$0xf]
      %v1786 = vld [vmem:[%s312 + $0xd8] sm:$0xf]
      %v1787 = vld [vmem:[%s4] sm:$0x1]
      %v1789 = vlaneseq
      %v1790 = vshrl.u32 %v1789, 7
      %v1791 = vsub.s32 0, %v1790
      %v1792 = vrot.slane %v1787, %v1791
      %v1794 = vmul.f32 %v1771, %v1792
      %v1795 = vmul.f32 %v1772, %v1792
      %v1796 = vmul.f32 %v1773, %v1792
      %v1797 = vmul.f32 %v1774, %v1792
      %v1798 = vmul.f32 %v1775, %v1792
      %v1799 = vmul.f32 %v1776, %v1792
      %v1800 = vmul.f32 %v1777, %v1792
      %v1801 = vmul.f32 %v1778, %v1792
      %v1802 = vmul.f32 %v1779, %v1792
      %v1803 = vmul.f32 %v1780, %v1792
      %v1804 = vmul.f32 %v1781, %v1792
      %v1805 = vmul.f32 %v1782, %v1792
      %v1806 = vmul.f32 %v1783, %v1792
      %v1807 = vmul.f32 %v1784, %v1792
      %v1808 = vmul.f32 %v1785, %v1792
      %v1809 = vmul.f32 %v1786, %v1792
      %v1810 = vadd.f32 %v1794, 0.0
      %v1811 = vadd.f32 %v1795, 0.0
      %v1812 = vadd.f32 %v1796, 0.0
      %v1813 = vadd.f32 %v1797, 0.0
      %v1814 = vadd.f32 %v1798, 0.0
      %v1815 = vadd.f32 %v1799, 0.0
      %v1816 = vadd.f32 %v1800, 0.0
      %v1817 = vadd.f32 %v1801, 0.0
      %v1818 = vadd.f32 %v1802, 0.0
      %v1819 = vadd.f32 %v1803, 0.0
      %v1820 = vadd.f32 %v1804, 0.0
      %v1821 = vadd.f32 %v1805, 0.0
      %v1822 = vadd.f32 %v1806, 0.0
      %v1823 = vadd.f32 %v1807, 0.0
      %v1824 = vadd.f32 %v1808, 0.0
      %v1825 = vadd.f32 %v1809, 0.0
      %v1826 = vld [vmem:[%s312 + $0x1] sm:$0xf]
      %v1827 = vld [vmem:[%s312 + $0x9] sm:$0xf]
      %v1828 = vld [vmem:[%s312 + $0x11] sm:$0xf]
      %v1829 = vld [vmem:[%s312 + $0x19] sm:$0xf]
      %v1830 = vld [vmem:[%s312 + $0x41] sm:$0xf]
      %v1831 = vld [vmem:[%s312 + $0x49] sm:$0xf]
      %v1832 = vld [vmem:[%s312 + $0x51] sm:$0xf]
      %v1833 = vld [vmem:[%s312 + $0x59] sm:$0xf]
      %v1834 = vld [vmem:[%s312 + $0x81] sm:$0xf]
      %v1835 = vld [vmem:[%s312 + $0x89] sm:$0xf]
      %v1836 = vld [vmem:[%s312 + $0x91] sm:$0xf]
      %v1837 = vld [vmem:[%s312 + $0x99] sm:$0xf]
      %v1838 = vld [vmem:[%s312 + $0xc1] sm:$0xf]
      %v1839 = vld [vmem:[%s312 + $0xc9] sm:$0xf]
      %v1840 = vld [vmem:[%s312 + $0xd1] sm:$0xf]
      %v1841 = vld [vmem:[%s312 + $0xd9] sm:$0xf]
      %s1842 = scalar_lea.vmem %s4, 1
      %v1843 = vld [vmem:[%s1842] sm:$0x1]
      %v1845 = vlaneseq
      %v1846 = vshrl.u32 %v1845, 7
      %v1847 = vsub.s32 0, %v1846
      %v1848 = vrot.slane %v1843, %v1847
      %v1850 = vmul.f32 %v1826, %v1848
      %v1851 = vmul.f32 %v1827, %v1848
      %v1852 = vmul.f32 %v1828, %v1848
      %v1853 = vmul.f32 %v1829, %v1848
      %v1854 = vmul.f32 %v1830, %v1848
      %v1855 = vmul.f32 %v1831, %v1848
      %v1856 = vmul.f32 %v1832, %v1848
      %v1857 = vmul.f32 %v1833, %v1848
      %v1858 = vmul.f32 %v1834, %v1848
      %v1859 = vmul.f32 %v1835, %v1848
      %v1860 = vmul.f32 %v1836, %v1848
      %v1861 = vmul.f32 %v1837, %v1848
      %v1862 = vmul.f32 %v1838, %v1848
      %v1863 = vmul.f32 %v1839, %v1848
      %v1864 = vmul.f32 %v1840, %v1848
      %v1865 = vmul.f32 %v1841, %v1848
      %v1866 = vadd.f32 %v1810, %v1850
      %v1867 = vadd.f32 %v1811, %v1851
      %v1868 = vadd.f32 %v1812, %v1852
      %v1869 = vadd.f32 %v1813, %v1853
      %v1870 = vadd.f32 %v1814, %v1854
      %v1871 = vadd.f32 %v1815, %v1855
      %v1872 = vadd.f32 %v1816, %v1856
      %v1873 = vadd.f32 %v1817, %v1857
      %v1874 = vadd.f32 %v1818, %v1858
      %v1875 = vadd.f32 %v1819, %v1859
      %v1876 = vadd.f32 %v1820, %v1860
      %v1877 = vadd.f32 %v1821, %v1861
      %v1878 = vadd.f32 %v1822, %v1862
      %v1879 = vadd.f32 %v1823, %v1863
      %v1880 = vadd.f32 %v1824, %v1864
      %v1881 = vadd.f32 %v1825, %v1865
      %v1882 = vld [vmem:[%s312 + $0x2] sm:$0xf]
      %v1883 = vld [vmem:[%s312 + $0xa] sm:$0xf]
      %v1884 = vld [vmem:[%s312 + $0x12] sm:$0xf]
      %v1885 = vld [vmem:[%s312 + $0x1a] sm:$0xf]
      %v1886 = vld [vmem:[%s312 + $0x42] sm:$0xf]
      %v1887 = vld [vmem:[%s312 + $0x4a] sm:$0xf]
      %v1888 = vld [vmem:[%s312 + $0x52] sm:$0xf]
      %v1889 = vld [vmem:[%s312 + $0x5a] sm:$0xf]
      %v1890 = vld [vmem:[%s312 + $0x82] sm:$0xf]
      %v1891 = vld [vmem:[%s312 + $0x8a] sm:$0xf]
      %v1892 = vld [vmem:[%s312 + $0x92] sm:$0xf]
      %v1893 = vld [vmem:[%s312 + $0x9a] sm:$0xf]
      %v1894 = vld [vmem:[%s312 + $0xc2] sm:$0xf]
      %v1895 = vld [vmem:[%s312 + $0xca] sm:$0xf]
      %v1896 = vld [vmem:[%s312 + $0xd2] sm:$0xf]
      %v1897 = vld [vmem:[%s312 + $0xda] sm:$0xf]
      %s1898 = scalar_lea.vmem %s4, 2
      %v1899 = vld [vmem:[%s1898] sm:$0x1]
      %v1901 = vlaneseq
      %v1902 = vshrl.u32 %v1901, 7
      %v1903 = vsub.s32 0, %v1902
      %v1904 = vrot.slane %v1899, %v1903
      %v1906 = vmul.f32 %v1882, %v1904
      %v1907 = vmul.f32 %v1883, %v1904
      %v1908 = vmul.f32 %v1884, %v1904
      %v1909 = vmul.f32 %v1885, %v1904
      %v1910 = vmul.f32 %v1886, %v1904
      %v1911 = vmul.f32 %v1887, %v1904
      %v1912 = vmul.f32 %v1888, %v1904
      %v1913 = vmul.f32 %v1889, %v1904
      %v1914 = vmul.f32 %v1890, %v1904
      %v1915 = vmul.f32 %v1891, %v1904
      %v1916 = vmul.f32 %v1892, %v1904
      %v1917 = vmul.f32 %v1893, %v1904
      %v1918 = vmul.f32 %v1894, %v1904
      %v1919 = vmul.f32 %v1895, %v1904
      %v1920 = vmul.f32 %v1896, %v1904
      %v1921 = vmul.f32 %v1897, %v1904
      %v1922 = vadd.f32 %v1866, %v1906
      %v1923 = vadd.f32 %v1867, %v1907
      %v1924 = vadd.f32 %v1868, %v1908
      %v1925 = vadd.f32 %v1869, %v1909
      %v1926 = vadd.f32 %v1870, %v1910
      %v1927 = vadd.f32 %v1871, %v1911
      %v1928 = vadd.f32 %v1872, %v1912
      %v1929 = vadd.f32 %v1873, %v1913
      %v1930 = vadd.f32 %v1874, %v1914
      %v1931 = vadd.f32 %v1875, %v1915
      %v1932 = vadd.f32 %v1876, %v1916
      %v1933 = vadd.f32 %v1877, %v1917
      %v1934 = vadd.f32 %v1878, %v1918
      %v1935 = vadd.f32 %v1879, %v1919
      %v1936 = vadd.f32 %v1880, %v1920
      %v1937 = vadd.f32 %v1881, %v1921
      %v1938 = vld [vmem:[%s312 + $0x3] sm:$0xf]
      %v1939 = vld [vmem:[%s312 + $0xb] sm:$0xf]
      %v1940 = vld [vmem:[%s312 + $0x13] sm:$0xf]
      %v1941 = vld [vmem:[%s312 + $0x1b] sm:$0xf]
      %v1942 = vld [vmem:[%s312 + $0x43] sm:$0xf]
      %v1943 = vld [vmem:[%s312 + $0x4b] sm:$0xf]
      %v1944 = vld [vmem:[%s312 + $0x53] sm:$0xf]
      %v1945 = vld [vmem:[%s312 + $0x5b] sm:$0xf]
      %v1946 = vld [vmem:[%s312 + $0x83] sm:$0xf]
      %v1947 = vld [vmem:[%s312 + $0x8b] sm:$0xf]
      %v1948 = vld [vmem:[%s312 + $0x93] sm:$0xf]
      %v1949 = vld [vmem:[%s312 + $0x9b] sm:$0xf]
      %v1950 = vld [vmem:[%s312 + $0xc3] sm:$0xf]
      %v1951 = vld [vmem:[%s312 + $0xcb] sm:$0xf]
      %v1952 = vld [vmem:[%s312 + $0xd3] sm:$0xf]
      %v1953 = vld [vmem:[%s312 + $0xdb] sm:$0xf]
      %s1954 = scalar_lea.vmem %s4, 3
      %v1955 = vld [vmem:[%s1954] sm:$0x1]
      %v1957 = vlaneseq
      %v1958 = vshrl.u32 %v1957, 7
      %v1959 = vsub.s32 0, %v1958
      %v1960 = vrot.slane %v1955, %v1959
      %v1962 = vmul.f32 %v1938, %v1960
      %v1963 = vmul.f32 %v1939, %v1960
      %v1964 = vmul.f32 %v1940, %v1960
      %v1965 = vmul.f32 %v1941, %v1960
      %v1966 = vmul.f32 %v1942, %v1960
      %v1967 = vmul.f32 %v1943, %v1960
      %v1968 = vmul.f32 %v1944, %v1960
      %v1969 = vmul.f32 %v1945, %v1960
      %v1970 = vmul.f32 %v1946, %v1960
      %v1971 = vmul.f32 %v1947, %v1960
      %v1972 = vmul.f32 %v1948, %v1960
      %v1973 = vmul.f32 %v1949, %v1960
      %v1974 = vmul.f32 %v1950, %v1960
      %v1975 = vmul.f32 %v1951, %v1960
      %v1976 = vmul.f32 %v1952, %v1960
      %v1977 = vmul.f32 %v1953, %v1960
      %v1978 = vadd.f32 %v1922, %v1962
      %v1979 = vadd.f32 %v1923, %v1963
      %v1980 = vadd.f32 %v1924, %v1964
      %v1981 = vadd.f32 %v1925, %v1965
      %v1982 = vadd.f32 %v1926, %v1966
      %v1983 = vadd.f32 %v1927, %v1967
      %v1984 = vadd.f32 %v1928, %v1968
      %v1985 = vadd.f32 %v1929, %v1969
      %v1986 = vadd.f32 %v1930, %v1970
      %v1987 = vadd.f32 %v1931, %v1971
      %v1988 = vadd.f32 %v1932, %v1972
      %v1989 = vadd.f32 %v1933, %v1973
      %v1990 = vadd.f32 %v1934, %v1974
      %v1991 = vadd.f32 %v1935, %v1975
      %v1992 = vadd.f32 %v1936, %v1976
      %v1993 = vadd.f32 %v1937, %v1977
      %v1994 = vld [vmem:[%s312 + $0x4] sm:$0xf]
      %v1995 = vld [vmem:[%s312 + $0xc] sm:$0xf]
      %v1996 = vld [vmem:[%s312 + $0x14] sm:$0xf]
      %v1997 = vld [vmem:[%s312 + $0x1c] sm:$0xf]
      %v1998 = vld [vmem:[%s312 + $0x44] sm:$0xf]
      %v1999 = vld [vmem:[%s312 + $0x4c] sm:$0xf]
      %v2000 = vld [vmem:[%s312 + $0x54] sm:$0xf]
      %v2001 = vld [vmem:[%s312 + $0x5c] sm:$0xf]
      %v2002 = vld [vmem:[%s312 + $0x84] sm:$0xf]
      %v2003 = vld [vmem:[%s312 + $0x8c] sm:$0xf]
      %v2004 = vld [vmem:[%s312 + $0x94] sm:$0xf]
      %v2005 = vld [vmem:[%s312 + $0x9c] sm:$0xf]
      %v2006 = vld [vmem:[%s312 + $0xc4] sm:$0xf]
      %v2007 = vld [vmem:[%s312 + $0xcc] sm:$0xf]
      %v2008 = vld [vmem:[%s312 + $0xd4] sm:$0xf]
      %v2009 = vld [vmem:[%s312 + $0xdc] sm:$0xf]
      %s2010 = scalar_lea.vmem %s4, 4
      %v2011 = vld [vmem:[%s2010] sm:$0x1]
      %v2013 = vlaneseq
      %v2014 = vshrl.u32 %v2013, 7
      %v2015 = vsub.s32 0, %v2014
      %v2016 = vrot.slane %v2011, %v2015
      %v2018 = vmul.f32 %v1994, %v2016
      %v2019 = vmul.f32 %v1995, %v2016
      %v2020 = vmul.f32 %v1996, %v2016
      %v2021 = vmul.f32 %v1997, %v2016
      %v2022 = vmul.f32 %v1998, %v2016
      %v2023 = vmul.f32 %v1999, %v2016
      %v2024 = vmul.f32 %v2000, %v2016
      %v2025 = vmul.f32 %v2001, %v2016
      %v2026 = vmul.f32 %v2002, %v2016
      %v2027 = vmul.f32 %v2003, %v2016
      %v2028 = vmul.f32 %v2004, %v2016
      %v2029 = vmul.f32 %v2005, %v2016
      %v2030 = vmul.f32 %v2006, %v2016
      %v2031 = vmul.f32 %v2007, %v2016
      %v2032 = vmul.f32 %v2008, %v2016
      %v2033 = vmul.f32 %v2009, %v2016
      %v2034 = vadd.f32 %v1978, %v2018
      %v2035 = vadd.f32 %v1979, %v2019
      %v2036 = vadd.f32 %v1980, %v2020
      %v2037 = vadd.f32 %v1981, %v2021
      %v2038 = vadd.f32 %v1982, %v2022
      %v2039 = vadd.f32 %v1983, %v2023
      %v2040 = vadd.f32 %v1984, %v2024
      %v2041 = vadd.f32 %v1985, %v2025
      %v2042 = vadd.f32 %v1986, %v2026
      %v2043 = vadd.f32 %v1987, %v2027
      %v2044 = vadd.f32 %v1988, %v2028
      %v2045 = vadd.f32 %v1989, %v2029
      %v2046 = vadd.f32 %v1990, %v2030
      %v2047 = vadd.f32 %v1991, %v2031
      %v2048 = vadd.f32 %v1992, %v2032
      %v2049 = vadd.f32 %v1993, %v2033
      %s2050 = scalar_lea.vmem %s312, 8
      %v2051 = vld [vmem:[%s2050] sm:$0xf]
      %v2052 = vld [vmem:[%s2050 + $0x8] sm:$0xf]
      %v2053 = vld [vmem:[%s2050 + $0x10] sm:$0xf]
      %v2054 = vld [vmem:[%s2050 + $0x18] sm:$0xf]
      %v2055 = vld [vmem:[%s2050 + $0x40] sm:$0xf]
      %v2056 = vld [vmem:[%s2050 + $0x48] sm:$0xf]
      %v2057 = vld [vmem:[%s2050 + $0x50] sm:$0xf]
      %v2058 = vld [vmem:[%s2050 + $0x58] sm:$0xf]
      %v2059 = vld [vmem:[%s2050 + $0x80] sm:$0xf]
      %v2060 = vld [vmem:[%s2050 + $0x88] sm:$0xf]
      %v2061 = vld [vmem:[%s2050 + $0x90] sm:$0xf]
      %v2062 = vld [vmem:[%s2050 + $0x98] sm:$0xf]
      %v2063 = vld [vmem:[%s2050 + $0xc0] sm:$0xf]
      %v2064 = vld [vmem:[%s2050 + $0xc8] sm:$0xf]
      %v2065 = vld [vmem:[%s2050 + $0xd0] sm:$0xf]
      %v2066 = vld [vmem:[%s2050 + $0xd8] sm:$0xf]
      %s2067 = scalar_lea.vmem %s4, 5
      %v2068 = vld [vmem:[%s2067] sm:$0x1]
      %v2070 = vlaneseq
      %v2071 = vshrl.u32 %v2070, 7
      %v2072 = vsub.s32 0, %v2071
      %v2073 = vrot.slane %v2068, %v2072
      %v2075 = vmul.f32 %v2051, %v2073
      %v2076 = vmul.f32 %v2052, %v2073
      %v2077 = vmul.f32 %v2053, %v2073
      %v2078 = vmul.f32 %v2054, %v2073
      %v2079 = vmul.f32 %v2055, %v2073
      %v2080 = vmul.f32 %v2056, %v2073
      %v2081 = vmul.f32 %v2057, %v2073
      %v2082 = vmul.f32 %v2058, %v2073
      %v2083 = vmul.f32 %v2059, %v2073
      %v2084 = vmul.f32 %v2060, %v2073
      %v2085 = vmul.f32 %v2061, %v2073
      %v2086 = vmul.f32 %v2062, %v2073
      %v2087 = vmul.f32 %v2063, %v2073
      %v2088 = vmul.f32 %v2064, %v2073
      %v2089 = vmul.f32 %v2065, %v2073
      %v2090 = vmul.f32 %v2066, %v2073
      %v2091 = vadd.f32 %v2034, %v2075
      %v2092 = vadd.f32 %v2035, %v2076
      %v2093 = vadd.f32 %v2036, %v2077
      %v2094 = vadd.f32 %v2037, %v2078
      %v2095 = vadd.f32 %v2038, %v2079
      %v2096 = vadd.f32 %v2039, %v2080
      %v2097 = vadd.f32 %v2040, %v2081
      %v2098 = vadd.f32 %v2041, %v2082
      %v2099 = vadd.f32 %v2042, %v2083
      %v2100 = vadd.f32 %v2043, %v2084
      %v2101 = vadd.f32 %v2044, %v2085
      %v2102 = vadd.f32 %v2045, %v2086
      %v2103 = vadd.f32 %v2046, %v2087
      %v2104 = vadd.f32 %v2047, %v2088
      %v2105 = vadd.f32 %v2048, %v2089
      %v2106 = vadd.f32 %v2049, %v2090
      %v2107 = vld [vmem:[%s2050 + $0x1] sm:$0xf]
      %v2108 = vld [vmem:[%s2050 + $0x9] sm:$0xf]
      %v2109 = vld [vmem:[%s2050 + $0x11] sm:$0xf]
      %v2110 = vld [vmem:[%s2050 + $0x19] sm:$0xf]
      %v2111 = vld [vmem:[%s2050 + $0x41] sm:$0xf]
      %v2112 = vld [vmem:[%s2050 + $0x49] sm:$0xf]
      %v2113 = vld [vmem:[%s2050 + $0x51] sm:$0xf]
      %v2114 = vld [vmem:[%s2050 + $0x59] sm:$0xf]
      %v2115 = vld [vmem:[%s2050 + $0x81] sm:$0xf]
      %v2116 = vld [vmem:[%s2050 + $0x89] sm:$0xf]
      %v2117 = vld [vmem:[%s2050 + $0x91] sm:$0xf]
      %v2118 = vld [vmem:[%s2050 + $0x99] sm:$0xf]
      %v2119 = vld [vmem:[%s2050 + $0xc1] sm:$0xf]
      %v2120 = vld [vmem:[%s2050 + $0xc9] sm:$0xf]
      %v2121 = vld [vmem:[%s2050 + $0xd1] sm:$0xf]
      %v2122 = vld [vmem:[%s2050 + $0xd9] sm:$0xf]
      %s2123 = scalar_lea.vmem %s4, 6
      %v2124 = vld [vmem:[%s2123] sm:$0x1]
      %v2126 = vlaneseq
      %v2127 = vshrl.u32 %v2126, 7
      %v2128 = vsub.s32 0, %v2127
      %v2129 = vrot.slane %v2124, %v2128
      %v2131 = vmul.f32 %v2107, %v2129
      %v2132 = vmul.f32 %v2108, %v2129
      %v2133 = vmul.f32 %v2109, %v2129
      %v2134 = vmul.f32 %v2110, %v2129
      %v2135 = vmul.f32 %v2111, %v2129
      %v2136 = vmul.f32 %v2112, %v2129
      %v2137 = vmul.f32 %v2113, %v2129
      %v2138 = vmul.f32 %v2114, %v2129
      %v2139 = vmul.f32 %v2115, %v2129
      %v2140 = vmul.f32 %v2116, %v2129
      %v2141 = vmul.f32 %v2117, %v2129
      %v2142 = vmul.f32 %v2118, %v2129
      %v2143 = vmul.f32 %v2119, %v2129
      %v2144 = vmul.f32 %v2120, %v2129
      %v2145 = vmul.f32 %v2121, %v2129
      %v2146 = vmul.f32 %v2122, %v2129
      %v2147 = vadd.f32 %v2091, %v2131
      %v2148 = vadd.f32 %v2092, %v2132
      %v2149 = vadd.f32 %v2093, %v2133
      %v2150 = vadd.f32 %v2094, %v2134
      %v2151 = vadd.f32 %v2095, %v2135
      %v2152 = vadd.f32 %v2096, %v2136
      %v2153 = vadd.f32 %v2097, %v2137
      %v2154 = vadd.f32 %v2098, %v2138
      %v2155 = vadd.f32 %v2099, %v2139
      %v2156 = vadd.f32 %v2100, %v2140
      %v2157 = vadd.f32 %v2101, %v2141
      %v2158 = vadd.f32 %v2102, %v2142
      %v2159 = vadd.f32 %v2103, %v2143
      %v2160 = vadd.f32 %v2104, %v2144
      %v2161 = vadd.f32 %v2105, %v2145
      %v2162 = vadd.f32 %v2106, %v2146
      %v2163 = vld [vmem:[%s2050 + $0x2] sm:$0xf]
      %v2164 = vld [vmem:[%s2050 + $0xa] sm:$0xf]
      %v2165 = vld [vmem:[%s2050 + $0x12] sm:$0xf]
      %v2166 = vld [vmem:[%s2050 + $0x1a] sm:$0xf]
      %v2167 = vld [vmem:[%s2050 + $0x42] sm:$0xf]
      %v2168 = vld [vmem:[%s2050 + $0x4a] sm:$0xf]
      %v2169 = vld [vmem:[%s2050 + $0x52] sm:$0xf]
      %v2170 = vld [vmem:[%s2050 + $0x5a] sm:$0xf]
      %v2171 = vld [vmem:[%s2050 + $0x82] sm:$0xf]
      %v2172 = vld [vmem:[%s2050 + $0x8a] sm:$0xf]
      %v2173 = vld [vmem:[%s2050 + $0x92] sm:$0xf]
      %v2174 = vld [vmem:[%s2050 + $0x9a] sm:$0xf]
      %v2175 = vld [vmem:[%s2050 + $0xc2] sm:$0xf]
      %v2176 = vld [vmem:[%s2050 + $0xca] sm:$0xf]
      %v2177 = vld [vmem:[%s2050 + $0xd2] sm:$0xf]
      %v2178 = vld [vmem:[%s2050 + $0xda] sm:$0xf]
      %s2179 = scalar_lea.vmem %s4, 7
      %v2180 = vld [vmem:[%s2179] sm:$0x1]
      %v2182 = vlaneseq
      %v2183 = vshrl.u32 %v2182, 7
      %v2184 = vsub.s32 0, %v2183
      %v2185 = vrot.slane %v2180, %v2184
      %v2187 = vmul.f32 %v2163, %v2185
      %v2188 = vmul.f32 %v2164, %v2185
      %v2189 = vmul.f32 %v2165, %v2185
      %v2190 = vmul.f32 %v2166, %v2185
      %v2191 = vmul.f32 %v2167, %v2185
      %v2192 = vmul.f32 %v2168, %v2185
      %v2193 = vmul.f32 %v2169, %v2185
      %v2194 = vmul.f32 %v2170, %v2185
      %v2195 = vmul.f32 %v2171, %v2185
      %v2196 = vmul.f32 %v2172, %v2185
      %v2197 = vmul.f32 %v2173, %v2185
      %v2198 = vmul.f32 %v2174, %v2185
      %v2199 = vmul.f32 %v2175, %v2185
      %v2200 = vmul.f32 %v2176, %v2185
      %v2201 = vmul.f32 %v2177, %v2185
      %v2202 = vmul.f32 %v2178, %v2185
      %v2203 = vadd.f32 %v2147, %v2187
      %v2204 = vadd.f32 %v2148, %v2188
      %v2205 = vadd.f32 %v2149, %v2189
      %v2206 = vadd.f32 %v2150, %v2190
      %v2207 = vadd.f32 %v2151, %v2191
      %v2208 = vadd.f32 %v2152, %v2192
      %v2209 = vadd.f32 %v2153, %v2193
      %v2210 = vadd.f32 %v2154, %v2194
      %v2211 = vadd.f32 %v2155, %v2195
      %v2212 = vadd.f32 %v2156, %v2196
      %v2213 = vadd.f32 %v2157, %v2197
      %v2214 = vadd.f32 %v2158, %v2198
      %v2215 = vadd.f32 %v2159, %v2199
      %v2216 = vadd.f32 %v2160, %v2200
      %v2217 = vadd.f32 %v2161, %v2201
      %v2218 = vadd.f32 %v2162, %v2202
      %v2219 = vld [vmem:[%s2050 + $0x3] sm:$0xf]
      %v2220 = vld [vmem:[%s2050 + $0xb] sm:$0xf]
      %v2221 = vld [vmem:[%s2050 + $0x13] sm:$0xf]
      %v2222 = vld [vmem:[%s2050 + $0x1b] sm:$0xf]
      %v2223 = vld [vmem:[%s2050 + $0x43] sm:$0xf]
      %v2224 = vld [vmem:[%s2050 + $0x4b] sm:$0xf]
      %v2225 = vld [vmem:[%s2050 + $0x53] sm:$0xf]
      %v2226 = vld [vmem:[%s2050 + $0x5b] sm:$0xf]
      %v2227 = vld [vmem:[%s2050 + $0x83] sm:$0xf]
      %v2228 = vld [vmem:[%s2050 + $0x8b] sm:$0xf]
      %v2229 = vld [vmem:[%s2050 + $0x93] sm:$0xf]
      %v2230 = vld [vmem:[%s2050 + $0x9b] sm:$0xf]
      %v2231 = vld [vmem:[%s2050 + $0xc3] sm:$0xf]
      %v2232 = vld [vmem:[%s2050 + $0xcb] sm:$0xf]
      %v2233 = vld [vmem:[%s2050 + $0xd3] sm:$0xf]
      %v2234 = vld [vmem:[%s2050 + $0xdb] sm:$0xf]
      %s2235 = scalar_lea.vmem %s4, 8
      %v2236 = vld [vmem:[%s2235] sm:$0x1]
      %v2238 = vlaneseq
      %v2239 = vshrl.u32 %v2238, 7
      %v2240 = vsub.s32 0, %v2239
      %v2241 = vrot.slane %v2236, %v2240
      %v2243 = vmul.f32 %v2219, %v2241
      %v2244 = vmul.f32 %v2220, %v2241
      %v2245 = vmul.f32 %v2221, %v2241
      %v2246 = vmul.f32 %v2222, %v2241
      %v2247 = vmul.f32 %v2223, %v2241
      %v2248 = vmul.f32 %v2224, %v2241
      %v2249 = vmul.f32 %v2225, %v2241
      %v2250 = vmul.f32 %v2226, %v2241
      %v2251 = vmul.f32 %v2227, %v2241
      %v2252 = vmul.f32 %v2228, %v2241
      %v2253 = vmul.f32 %v2229, %v2241
      %v2254 = vmul.f32 %v2230, %v2241
      %v2255 = vmul.f32 %v2231, %v2241
      %v2256 = vmul.f32 %v2232, %v2241
      %v2257 = vmul.f32 %v2233, %v2241
      %v2258 = vmul.f32 %v2234, %v2241
      %v2259 = vadd.f32 %v2203, %v2243
      %v2260 = vadd.f32 %v2204, %v2244
      %v2261 = vadd.f32 %v2205, %v2245
      %v2262 = vadd.f32 %v2206, %v2246
      %v2263 = vadd.f32 %v2207, %v2247
      %v2264 = vadd.f32 %v2208, %v2248
      %v2265 = vadd.f32 %v2209, %v2249
      %v2266 = vadd.f32 %v2210, %v2250
      %v2267 = vadd.f32 %v2211, %v2251
      %v2268 = vadd.f32 %v2212, %v2252
      %v2269 = vadd.f32 %v2213, %v2253
      %v2270 = vadd.f32 %v2214, %v2254
      %v2271 = vadd.f32 %v2215, %v2255
      %v2272 = vadd.f32 %v2216, %v2256
      %v2273 = vadd.f32 %v2217, %v2257
      %v2274 = vadd.f32 %v2218, %v2258
      %v2275 = vld [vmem:[%s2050 + $0x4] sm:$0xf]
      %v2276 = vld [vmem:[%s2050 + $0xc] sm:$0xf]
      %v2277 = vld [vmem:[%s2050 + $0x14] sm:$0xf]
      %v2278 = vld [vmem:[%s2050 + $0x1c] sm:$0xf]
      %v2279 = vld [vmem:[%s2050 + $0x44] sm:$0xf]
      %v2280 = vld [vmem:[%s2050 + $0x4c] sm:$0xf]
      %v2281 = vld [vmem:[%s2050 + $0x54] sm:$0xf]
      %v2282 = vld [vmem:[%s2050 + $0x5c] sm:$0xf]
      %v2283 = vld [vmem:[%s2050 + $0x84] sm:$0xf]
      %v2284 = vld [vmem:[%s2050 + $0x8c] sm:$0xf]
      %v2285 = vld [vmem:[%s2050 + $0x94] sm:$0xf]
      %v2286 = vld [vmem:[%s2050 + $0x9c] sm:$0xf]
      %v2287 = vld [vmem:[%s2050 + $0xc4] sm:$0xf]
      %v2288 = vld [vmem:[%s2050 + $0xcc] sm:$0xf]
      %v2289 = vld [vmem:[%s2050 + $0xd4] sm:$0xf]
      %v2290 = vld [vmem:[%s2050 + $0xdc] sm:$0xf]
      %s2291 = scalar_lea.vmem %s4, 9
      %v2292 = vld [vmem:[%s2291] sm:$0x1]
      %v2294 = vlaneseq
      %v2295 = vshrl.u32 %v2294, 7
      %v2296 = vsub.s32 0, %v2295
      %v2297 = vrot.slane %v2292, %v2296
      %v2299 = vmul.f32 %v2275, %v2297
      %v2300 = vmul.f32 %v2276, %v2297
      %v2301 = vmul.f32 %v2277, %v2297
      %v2302 = vmul.f32 %v2278, %v2297
      %v2303 = vmul.f32 %v2279, %v2297
      %v2304 = vmul.f32 %v2280, %v2297
      %v2305 = vmul.f32 %v2281, %v2297
      %v2306 = vmul.f32 %v2282, %v2297
      %v2307 = vmul.f32 %v2283, %v2297
      %v2308 = vmul.f32 %v2284, %v2297
      %v2309 = vmul.f32 %v2285, %v2297
      %v2310 = vmul.f32 %v2286, %v2297
      %v2311 = vmul.f32 %v2287, %v2297
      %v2312 = vmul.f32 %v2288, %v2297
      %v2313 = vmul.f32 %v2289, %v2297
      %v2314 = vmul.f32 %v2290, %v2297
      %v2315 = vadd.f32 %v2259, %v2299
      %v2316 = vadd.f32 %v2260, %v2300
      %v2317 = vadd.f32 %v2261, %v2301
      %v2318 = vadd.f32 %v2262, %v2302
      %v2319 = vadd.f32 %v2263, %v2303
      %v2320 = vadd.f32 %v2264, %v2304
      %v2321 = vadd.f32 %v2265, %v2305
      %v2322 = vadd.f32 %v2266, %v2306
      %v2323 = vadd.f32 %v2267, %v2307
      %v2324 = vadd.f32 %v2268, %v2308
      %v2325 = vadd.f32 %v2269, %v2309
      %v2326 = vadd.f32 %v2270, %v2310
      %v2327 = vadd.f32 %v2271, %v2311
      %v2328 = vadd.f32 %v2272, %v2312
      %v2329 = vadd.f32 %v2273, %v2313
      %v2330 = vadd.f32 %v2274, %v2314
      %s2331 = scalar_lea.vmem %s312, 16
      %v2332 = vld [vmem:[%s2331] sm:$0xf]
      %v2333 = vld [vmem:[%s2331 + $0x8] sm:$0xf]
      %v2334 = vld [vmem:[%s2331 + $0x10] sm:$0xf]
      %v2335 = vld [vmem:[%s2331 + $0x18] sm:$0xf]
      %v2336 = vld [vmem:[%s2331 + $0x40] sm:$0xf]
      %v2337 = vld [vmem:[%s2331 + $0x48] sm:$0xf]
      %v2338 = vld [vmem:[%s2331 + $0x50] sm:$0xf]
      %v2339 = vld [vmem:[%s2331 + $0x58] sm:$0xf]
      %v2340 = vld [vmem:[%s2331 + $0x80] sm:$0xf]
      %v2341 = vld [vmem:[%s2331 + $0x88] sm:$0xf]
      %v2342 = vld [vmem:[%s2331 + $0x90] sm:$0xf]
      %v2343 = vld [vmem:[%s2331 + $0x98] sm:$0xf]
      %v2344 = vld [vmem:[%s2331 + $0xc0] sm:$0xf]
      %v2345 = vld [vmem:[%s2331 + $0xc8] sm:$0xf]
      %v2346 = vld [vmem:[%s2331 + $0xd0] sm:$0xf]
      %v2347 = vld [vmem:[%s2331 + $0xd8] sm:$0xf]
      %s2348 = scalar_lea.vmem %s4, 10
      %v2349 = vld [vmem:[%s2348] sm:$0x1]
      %v2351 = vlaneseq
      %v2352 = vshrl.u32 %v2351, 7
      %v2353 = vsub.s32 0, %v2352
      %v2354 = vrot.slane %v2349, %v2353
      %v2356 = vmul.f32 %v2332, %v2354
      %v2357 = vmul.f32 %v2333, %v2354
      %v2358 = vmul.f32 %v2334, %v2354
      %v2359 = vmul.f32 %v2335, %v2354
      %v2360 = vmul.f32 %v2336, %v2354
      %v2361 = vmul.f32 %v2337, %v2354
      %v2362 = vmul.f32 %v2338, %v2354
      %v2363 = vmul.f32 %v2339, %v2354
      %v2364 = vmul.f32 %v2340, %v2354
      %v2365 = vmul.f32 %v2341, %v2354
      %v2366 = vmul.f32 %v2342, %v2354
      %v2367 = vmul.f32 %v2343, %v2354
      %v2368 = vmul.f32 %v2344, %v2354
      %v2369 = vmul.f32 %v2345, %v2354
      %v2370 = vmul.f32 %v2346, %v2354
      %v2371 = vmul.f32 %v2347, %v2354
      %v2372 = vadd.f32 %v2315, %v2356
      %v2373 = vadd.f32 %v2316, %v2357
      %v2374 = vadd.f32 %v2317, %v2358
      %v2375 = vadd.f32 %v2318, %v2359
      %v2376 = vadd.f32 %v2319, %v2360
      %v2377 = vadd.f32 %v2320, %v2361
      %v2378 = vadd.f32 %v2321, %v2362
      %v2379 = vadd.f32 %v2322, %v2363
      %v2380 = vadd.f32 %v2323, %v2364
      %v2381 = vadd.f32 %v2324, %v2365
      %v2382 = vadd.f32 %v2325, %v2366
      %v2383 = vadd.f32 %v2326, %v2367
      %v2384 = vadd.f32 %v2327, %v2368
      %v2385 = vadd.f32 %v2328, %v2369
      %v2386 = vadd.f32 %v2329, %v2370
      %v2387 = vadd.f32 %v2330, %v2371
      %v2388 = vld [vmem:[%s2331 + $0x1] sm:$0xf]
      %v2389 = vld [vmem:[%s2331 + $0x9] sm:$0xf]
      %v2390 = vld [vmem:[%s2331 + $0x11] sm:$0xf]
      %v2391 = vld [vmem:[%s2331 + $0x19] sm:$0xf]
      %v2392 = vld [vmem:[%s2331 + $0x41] sm:$0xf]
      %v2393 = vld [vmem:[%s2331 + $0x49] sm:$0xf]
      %v2394 = vld [vmem:[%s2331 + $0x51] sm:$0xf]
      %v2395 = vld [vmem:[%s2331 + $0x59] sm:$0xf]
      %v2396 = vld [vmem:[%s2331 + $0x81] sm:$0xf]
      %v2397 = vld [vmem:[%s2331 + $0x89] sm:$0xf]
      %v2398 = vld [vmem:[%s2331 + $0x91] sm:$0xf]
      %v2399 = vld [vmem:[%s2331 + $0x99] sm:$0xf]
      %v2400 = vld [vmem:[%s2331 + $0xc1] sm:$0xf]
      %v2401 = vld [vmem:[%s2331 + $0xc9] sm:$0xf]
      %v2402 = vld [vmem:[%s2331 + $0xd1] sm:$0xf]
      %v2403 = vld [vmem:[%s2331 + $0xd9] sm:$0xf]
      %s2404 = scalar_lea.vmem %s4, 11
      %v2405 = vld [vmem:[%s2404] sm:$0x1]
      %v2407 = vlaneseq
      %v2408 = vshrl.u32 %v2407, 7
      %v2409 = vsub.s32 0, %v2408
      %v2410 = vrot.slane %v2405, %v2409
      %v2412 = vmul.f32 %v2388, %v2410
      %v2413 = vmul.f32 %v2389, %v2410
      %v2414 = vmul.f32 %v2390, %v2410
      %v2415 = vmul.f32 %v2391, %v2410
      %v2416 = vmul.f32 %v2392, %v2410
      %v2417 = vmul.f32 %v2393, %v2410
      %v2418 = vmul.f32 %v2394, %v2410
      %v2419 = vmul.f32 %v2395, %v2410
      %v2420 = vmul.f32 %v2396, %v2410
      %v2421 = vmul.f32 %v2397, %v2410
      %v2422 = vmul.f32 %v2398, %v2410
      %v2423 = vmul.f32 %v2399, %v2410
      %v2424 = vmul.f32 %v2400, %v2410
      %v2425 = vmul.f32 %v2401, %v2410
      %v2426 = vmul.f32 %v2402, %v2410
      %v2427 = vmul.f32 %v2403, %v2410
      %v2428 = vadd.f32 %v2372, %v2412
      %v2429 = vadd.f32 %v2373, %v2413
      %v2430 = vadd.f32 %v2374, %v2414
      %v2431 = vadd.f32 %v2375, %v2415
      %v2432 = vadd.f32 %v2376, %v2416
      %v2433 = vadd.f32 %v2377, %v2417
      %v2434 = vadd.f32 %v2378, %v2418
      %v2435 = vadd.f32 %v2379, %v2419
      %v2436 = vadd.f32 %v2380, %v2420
      %v2437 = vadd.f32 %v2381, %v2421
      %v2438 = vadd.f32 %v2382, %v2422
      %v2439 = vadd.f32 %v2383, %v2423
      %v2440 = vadd.f32 %v2384, %v2424
      %v2441 = vadd.f32 %v2385, %v2425
      %v2442 = vadd.f32 %v2386, %v2426
      %v2443 = vadd.f32 %v2387, %v2427
      %v2444 = vld [vmem:[%s2331 + $0x2] sm:$0xf]
      %v2445 = vld [vmem:[%s2331 + $0xa] sm:$0xf]
      %v2446 = vld [vmem:[%s2331 + $0x12] sm:$0xf]
      %v2447 = vld [vmem:[%s2331 + $0x1a] sm:$0xf]
      %v2448 = vld [vmem:[%s2331 + $0x42] sm:$0xf]
      %v2449 = vld [vmem:[%s2331 + $0x4a] sm:$0xf]
      %v2450 = vld [vmem:[%s2331 + $0x52] sm:$0xf]
      %v2451 = vld [vmem:[%s2331 + $0x5a] sm:$0xf]
      %v2452 = vld [vmem:[%s2331 + $0x82] sm:$0xf]
      %v2453 = vld [vmem:[%s2331 + $0x8a] sm:$0xf]
      %v2454 = vld [vmem:[%s2331 + $0x92] sm:$0xf]
      %v2455 = vld [vmem:[%s2331 + $0x9a] sm:$0xf]
      %v2456 = vld [vmem:[%s2331 + $0xc2] sm:$0xf]
      %v2457 = vld [vmem:[%s2331 + $0xca] sm:$0xf]
      %v2458 = vld [vmem:[%s2331 + $0xd2] sm:$0xf]
      %v2459 = vld [vmem:[%s2331 + $0xda] sm:$0xf]
      %s2460 = scalar_lea.vmem %s4, 12
      %v2461 = vld [vmem:[%s2460] sm:$0x1]
      %v2463 = vlaneseq
      %v2464 = vshrl.u32 %v2463, 7
      %v2465 = vsub.s32 0, %v2464
      %v2466 = vrot.slane %v2461, %v2465
      %v2468 = vmul.f32 %v2444, %v2466
      %v2469 = vmul.f32 %v2445, %v2466
      %v2470 = vmul.f32 %v2446, %v2466
      %v2471 = vmul.f32 %v2447, %v2466
      %v2472 = vmul.f32 %v2448, %v2466
      %v2473 = vmul.f32 %v2449, %v2466
      %v2474 = vmul.f32 %v2450, %v2466
      %v2475 = vmul.f32 %v2451, %v2466
      %v2476 = vmul.f32 %v2452, %v2466
      %v2477 = vmul.f32 %v2453, %v2466
      %v2478 = vmul.f32 %v2454, %v2466
      %v2479 = vmul.f32 %v2455, %v2466
      %v2480 = vmul.f32 %v2456, %v2466
      %v2481 = vmul.f32 %v2457, %v2466
      %v2482 = vmul.f32 %v2458, %v2466
      %v2483 = vmul.f32 %v2459, %v2466
      %v2484 = vadd.f32 %v2428, %v2468
      %v2485 = vadd.f32 %v2429, %v2469
      %v2486 = vadd.f32 %v2430, %v2470
      %v2487 = vadd.f32 %v2431, %v2471
      %v2488 = vadd.f32 %v2432, %v2472
      %v2489 = vadd.f32 %v2433, %v2473
      %v2490 = vadd.f32 %v2434, %v2474
      %v2491 = vadd.f32 %v2435, %v2475
      %v2492 = vadd.f32 %v2436, %v2476
      %v2493 = vadd.f32 %v2437, %v2477
      %v2494 = vadd.f32 %v2438, %v2478
      %v2495 = vadd.f32 %v2439, %v2479
      %v2496 = vadd.f32 %v2440, %v2480
      %v2497 = vadd.f32 %v2441, %v2481
      %v2498 = vadd.f32 %v2442, %v2482
      %v2499 = vadd.f32 %v2443, %v2483
      %v2500 = vld [vmem:[%s2331 + $0x3] sm:$0xf]
      %v2501 = vld [vmem:[%s2331 + $0xb] sm:$0xf]
      %v2502 = vld [vmem:[%s2331 + $0x13] sm:$0xf]
      %v2503 = vld [vmem:[%s2331 + $0x1b] sm:$0xf]
      %v2504 = vld [vmem:[%s2331 + $0x43] sm:$0xf]
      %v2505 = vld [vmem:[%s2331 + $0x4b] sm:$0xf]
      %v2506 = vld [vmem:[%s2331 + $0x53] sm:$0xf]
      %v2507 = vld [vmem:[%s2331 + $0x5b] sm:$0xf]
      %v2508 = vld [vmem:[%s2331 + $0x83] sm:$0xf]
      %v2509 = vld [vmem:[%s2331 + $0x8b] sm:$0xf]
      %v2510 = vld [vmem:[%s2331 + $0x93] sm:$0xf]
      %v2511 = vld [vmem:[%s2331 + $0x9b] sm:$0xf]
      %v2512 = vld [vmem:[%s2331 + $0xc3] sm:$0xf]
      %v2513 = vld [vmem:[%s2331 + $0xcb] sm:$0xf]
      %v2514 = vld [vmem:[%s2331 + $0xd3] sm:$0xf]
      %v2515 = vld [vmem:[%s2331 + $0xdb] sm:$0xf]
      %s2516 = scalar_lea.vmem %s4, 13
      %v2517 = vld [vmem:[%s2516] sm:$0x1]
      %v2519 = vlaneseq
      %v2520 = vshrl.u32 %v2519, 7
      %v2521 = vsub.s32 0, %v2520
      %v2522 = vrot.slane %v2517, %v2521
      %v2524 = vmul.f32 %v2500, %v2522
      %v2525 = vmul.f32 %v2501, %v2522
      %v2526 = vmul.f32 %v2502, %v2522
      %v2527 = vmul.f32 %v2503, %v2522
      %v2528 = vmul.f32 %v2504, %v2522
      %v2529 = vmul.f32 %v2505, %v2522
      %v2530 = vmul.f32 %v2506, %v2522
      %v2531 = vmul.f32 %v2507, %v2522
      %v2532 = vmul.f32 %v2508, %v2522
      %v2533 = vmul.f32 %v2509, %v2522
      %v2534 = vmul.f32 %v2510, %v2522
      %v2535 = vmul.f32 %v2511, %v2522
      %v2536 = vmul.f32 %v2512, %v2522
      %v2537 = vmul.f32 %v2513, %v2522
      %v2538 = vmul.f32 %v2514, %v2522
      %v2539 = vmul.f32 %v2515, %v2522
      %v2540 = vadd.f32 %v2484, %v2524
      %v2541 = vadd.f32 %v2485, %v2525
      %v2542 = vadd.f32 %v2486, %v2526
      %v2543 = vadd.f32 %v2487, %v2527
      %v2544 = vadd.f32 %v2488, %v2528
      %v2545 = vadd.f32 %v2489, %v2529
      %v2546 = vadd.f32 %v2490, %v2530
      %v2547 = vadd.f32 %v2491, %v2531
      %v2548 = vadd.f32 %v2492, %v2532
      %v2549 = vadd.f32 %v2493, %v2533
      %v2550 = vadd.f32 %v2494, %v2534
      %v2551 = vadd.f32 %v2495, %v2535
      %v2552 = vadd.f32 %v2496, %v2536
      %v2553 = vadd.f32 %v2497, %v2537
      %v2554 = vadd.f32 %v2498, %v2538
      %v2555 = vadd.f32 %v2499, %v2539
      %v2556 = vld [vmem:[%s2331 + $0x4] sm:$0xf]
      %v2557 = vld [vmem:[%s2331 + $0xc] sm:$0xf]
      %v2558 = vld [vmem:[%s2331 + $0x14] sm:$0xf]
      %v2559 = vld [vmem:[%s2331 + $0x1c] sm:$0xf]
      %v2560 = vld [vmem:[%s2331 + $0x44] sm:$0xf]
      %v2561 = vld [vmem:[%s2331 + $0x4c] sm:$0xf]
      %v2562 = vld [vmem:[%s2331 + $0x54] sm:$0xf]
      %v2563 = vld [vmem:[%s2331 + $0x5c] sm:$0xf]
      %v2564 = vld [vmem:[%s2331 + $0x84] sm:$0xf]
      %v2565 = vld [vmem:[%s2331 + $0x8c] sm:$0xf]
      %v2566 = vld [vmem:[%s2331 + $0x94] sm:$0xf]
      %v2567 = vld [vmem:[%s2331 + $0x9c] sm:$0xf]
      %v2568 = vld [vmem:[%s2331 + $0xc4] sm:$0xf]
      %v2569 = vld [vmem:[%s2331 + $0xcc] sm:$0xf]
      %v2570 = vld [vmem:[%s2331 + $0xd4] sm:$0xf]
      %v2571 = vld [vmem:[%s2331 + $0xdc] sm:$0xf]
      %s2572 = scalar_lea.vmem %s4, 14
      %v2573 = vld [vmem:[%s2572] sm:$0x1]
      %v2575 = vlaneseq
      %v2576 = vshrl.u32 %v2575, 7
      %v2577 = vsub.s32 0, %v2576
      %v2578 = vrot.slane %v2573, %v2577
      %v2580 = vmul.f32 %v2556, %v2578
      %v2581 = vmul.f32 %v2557, %v2578
      %v2582 = vmul.f32 %v2558, %v2578
      %v2583 = vmul.f32 %v2559, %v2578
      %v2584 = vmul.f32 %v2560, %v2578
      %v2585 = vmul.f32 %v2561, %v2578
      %v2586 = vmul.f32 %v2562, %v2578
      %v2587 = vmul.f32 %v2563, %v2578
      %v2588 = vmul.f32 %v2564, %v2578
      %v2589 = vmul.f32 %v2565, %v2578
      %v2590 = vmul.f32 %v2566, %v2578
      %v2591 = vmul.f32 %v2567, %v2578
      %v2592 = vmul.f32 %v2568, %v2578
      %v2593 = vmul.f32 %v2569, %v2578
      %v2594 = vmul.f32 %v2570, %v2578
      %v2595 = vmul.f32 %v2571, %v2578
      %v2596 = vadd.f32 %v2540, %v2580
      %v2597 = vadd.f32 %v2541, %v2581
      %v2598 = vadd.f32 %v2542, %v2582
      %v2599 = vadd.f32 %v2543, %v2583
      %v2600 = vadd.f32 %v2544, %v2584
      %v2601 = vadd.f32 %v2545, %v2585
      %v2602 = vadd.f32 %v2546, %v2586
      %v2603 = vadd.f32 %v2547, %v2587
      %v2604 = vadd.f32 %v2548, %v2588
      %v2605 = vadd.f32 %v2549, %v2589
      %v2606 = vadd.f32 %v2550, %v2590
      %v2607 = vadd.f32 %v2551, %v2591
      %v2608 = vadd.f32 %v2552, %v2592
      %v2609 = vadd.f32 %v2553, %v2593
      %v2610 = vadd.f32 %v2554, %v2594
      %v2611 = vadd.f32 %v2555, %v2595
      %s2612 = scalar_lea.vmem %s312, 24
      %v2613 = vld [vmem:[%s2612] sm:$0xf]
      %v2614 = vld [vmem:[%s2612 + $0x8] sm:$0xf]
      %v2615 = vld [vmem:[%s2612 + $0x10] sm:$0xf]
      %v2616 = vld [vmem:[%s2612 + $0x18] sm:$0xf]
      %v2617 = vld [vmem:[%s2612 + $0x40] sm:$0xf]
      %v2618 = vld [vmem:[%s2612 + $0x48] sm:$0xf]
      %v2619 = vld [vmem:[%s2612 + $0x50] sm:$0xf]
      %v2620 = vld [vmem:[%s2612 + $0x58] sm:$0xf]
      %v2621 = vld [vmem:[%s2612 + $0x80] sm:$0xf]
      %v2622 = vld [vmem:[%s2612 + $0x88] sm:$0xf]
      %v2623 = vld [vmem:[%s2612 + $0x90] sm:$0xf]
      %v2624 = vld [vmem:[%s2612 + $0x98] sm:$0xf]
      %v2625 = vld [vmem:[%s2612 + $0xc0] sm:$0xf]
      %v2626 = vld [vmem:[%s2612 + $0xc8] sm:$0xf]
      %v2627 = vld [vmem:[%s2612 + $0xd0] sm:$0xf]
      %v2628 = vld [vmem:[%s2612 + $0xd8] sm:$0xf]
      %s2629 = scalar_lea.vmem %s4, 15
      %v2630 = vld [vmem:[%s2629] sm:$0x1]
      %v2632 = vlaneseq
      %v2633 = vshrl.u32 %v2632, 7
      %v2634 = vsub.s32 0, %v2633
      %v2635 = vrot.slane %v2630, %v2634
      %v2637 = vmul.f32 %v2613, %v2635
      %v2638 = vmul.f32 %v2614, %v2635
      %v2639 = vmul.f32 %v2615, %v2635
      %v2640 = vmul.f32 %v2616, %v2635
      %v2641 = vmul.f32 %v2617, %v2635
      %v2642 = vmul.f32 %v2618, %v2635
      %v2643 = vmul.f32 %v2619, %v2635
      %v2644 = vmul.f32 %v2620, %v2635
      %v2645 = vmul.f32 %v2621, %v2635
      %v2646 = vmul.f32 %v2622, %v2635
      %v2647 = vmul.f32 %v2623, %v2635
      %v2648 = vmul.f32 %v2624, %v2635
      %v2649 = vmul.f32 %v2625, %v2635
      %v2650 = vmul.f32 %v2626, %v2635
      %v2651 = vmul.f32 %v2627, %v2635
      %v2652 = vmul.f32 %v2628, %v2635
      %v2653 = vadd.f32 %v2596, %v2637
      %v2654 = vadd.f32 %v2597, %v2638
      %v2655 = vadd.f32 %v2598, %v2639
      %v2656 = vadd.f32 %v2599, %v2640
      %v2657 = vadd.f32 %v2600, %v2641
      %v2658 = vadd.f32 %v2601, %v2642
      %v2659 = vadd.f32 %v2602, %v2643
      %v2660 = vadd.f32 %v2603, %v2644
      %v2661 = vadd.f32 %v2604, %v2645
      %v2662 = vadd.f32 %v2605, %v2646
      %v2663 = vadd.f32 %v2606, %v2647
      %v2664 = vadd.f32 %v2607, %v2648
      %v2665 = vadd.f32 %v2608, %v2649
      %v2666 = vadd.f32 %v2609, %v2650
      %v2667 = vadd.f32 %v2610, %v2651
      %v2668 = vadd.f32 %v2611, %v2652
      %v2669 = vld [vmem:[%s2612 + $0x1] sm:$0xf]
      %v2670 = vld [vmem:[%s2612 + $0x9] sm:$0xf]
      %v2671 = vld [vmem:[%s2612 + $0x11] sm:$0xf]
      %v2672 = vld [vmem:[%s2612 + $0x19] sm:$0xf]
      %v2673 = vld [vmem:[%s2612 + $0x41] sm:$0xf]
      %v2674 = vld [vmem:[%s2612 + $0x49] sm:$0xf]
      %v2675 = vld [vmem:[%s2612 + $0x51] sm:$0xf]
      %v2676 = vld [vmem:[%s2612 + $0x59] sm:$0xf]
      %v2677 = vld [vmem:[%s2612 + $0x81] sm:$0xf]
      %v2678 = vld [vmem:[%s2612 + $0x89] sm:$0xf]
      %v2679 = vld [vmem:[%s2612 + $0x91] sm:$0xf]
      %v2680 = vld [vmem:[%s2612 + $0x99] sm:$0xf]
      %v2681 = vld [vmem:[%s2612 + $0xc1] sm:$0xf]
      %v2682 = vld [vmem:[%s2612 + $0xc9] sm:$0xf]
      %v2683 = vld [vmem:[%s2612 + $0xd1] sm:$0xf]
      %v2684 = vld [vmem:[%s2612 + $0xd9] sm:$0xf]
      %s2685 = scalar_lea.vmem %s4, 16
      %v2686 = vld [vmem:[%s2685] sm:$0x1]
      %v2688 = vlaneseq
      %v2689 = vshrl.u32 %v2688, 7
      %v2690 = vsub.s32 0, %v2689
      %v2691 = vrot.slane %v2686, %v2690
      %v2693 = vmul.f32 %v2669, %v2691
      %v2694 = vmul.f32 %v2670, %v2691
      %v2695 = vmul.f32 %v2671, %v2691
      %v2696 = vmul.f32 %v2672, %v2691
      %v2697 = vmul.f32 %v2673, %v2691
      %v2698 = vmul.f32 %v2674, %v2691
      %v2699 = vmul.f32 %v2675, %v2691
      %v2700 = vmul.f32 %v2676, %v2691
      %v2701 = vmul.f32 %v2677, %v2691
      %v2702 = vmul.f32 %v2678, %v2691
      %v2703 = vmul.f32 %v2679, %v2691
      %v2704 = vmul.f32 %v2680, %v2691
      %v2705 = vmul.f32 %v2681, %v2691
      %v2706 = vmul.f32 %v2682, %v2691
      %v2707 = vmul.f32 %v2683, %v2691
      %v2708 = vmul.f32 %v2684, %v2691
      %v2709 = vadd.f32 %v2653, %v2693
      %v2710 = vadd.f32 %v2654, %v2694
      %v2711 = vadd.f32 %v2655, %v2695
      %v2712 = vadd.f32 %v2656, %v2696
      %v2713 = vadd.f32 %v2657, %v2697
      %v2714 = vadd.f32 %v2658, %v2698
      %v2715 = vadd.f32 %v2659, %v2699
      %v2716 = vadd.f32 %v2660, %v2700
      %v2717 = vadd.f32 %v2661, %v2701
      %v2718 = vadd.f32 %v2662, %v2702
      %v2719 = vadd.f32 %v2663, %v2703
      %v2720 = vadd.f32 %v2664, %v2704
      %v2721 = vadd.f32 %v2665, %v2705
      %v2722 = vadd.f32 %v2666, %v2706
      %v2723 = vadd.f32 %v2667, %v2707
      %v2724 = vadd.f32 %v2668, %v2708
      %v2725 = vld [vmem:[%s2612 + $0x2] sm:$0xf]
      %v2726 = vld [vmem:[%s2612 + $0xa] sm:$0xf]
      %v2727 = vld [vmem:[%s2612 + $0x12] sm:$0xf]
      %v2728 = vld [vmem:[%s2612 + $0x1a] sm:$0xf]
      %v2729 = vld [vmem:[%s2612 + $0x42] sm:$0xf]
      %v2730 = vld [vmem:[%s2612 + $0x4a] sm:$0xf]
      %v2731 = vld [vmem:[%s2612 + $0x52] sm:$0xf]
      %v2732 = vld [vmem:[%s2612 + $0x5a] sm:$0xf]
      %v2733 = vld [vmem:[%s2612 + $0x82] sm:$0xf]
      %v2734 = vld [vmem:[%s2612 + $0x8a] sm:$0xf]
      %v2735 = vld [vmem:[%s2612 + $0x92] sm:$0xf]
      %v2736 = vld [vmem:[%s2612 + $0x9a] sm:$0xf]
      %v2737 = vld [vmem:[%s2612 + $0xc2] sm:$0xf]
      %v2738 = vld [vmem:[%s2612 + $0xca] sm:$0xf]
      %v2739 = vld [vmem:[%s2612 + $0xd2] sm:$0xf]
      %v2740 = vld [vmem:[%s2612 + $0xda] sm:$0xf]
      %s2741 = scalar_lea.vmem %s4, 17
      %v2742 = vld [vmem:[%s2741] sm:$0x1]
      %v2744 = vlaneseq
      %v2745 = vshrl.u32 %v2744, 7
      %v2746 = vsub.s32 0, %v2745
      %v2747 = vrot.slane %v2742, %v2746
      %v2749 = vmul.f32 %v2725, %v2747
      %v2750 = vmul.f32 %v2726, %v2747
      %v2751 = vmul.f32 %v2727, %v2747
      %v2752 = vmul.f32 %v2728, %v2747
      %v2753 = vmul.f32 %v2729, %v2747
      %v2754 = vmul.f32 %v2730, %v2747
      %v2755 = vmul.f32 %v2731, %v2747
      %v2756 = vmul.f32 %v2732, %v2747
      %v2757 = vmul.f32 %v2733, %v2747
      %v2758 = vmul.f32 %v2734, %v2747
      %v2759 = vmul.f32 %v2735, %v2747
      %v2760 = vmul.f32 %v2736, %v2747
      %v2761 = vmul.f32 %v2737, %v2747
      %v2762 = vmul.f32 %v2738, %v2747
      %v2763 = vmul.f32 %v2739, %v2747
      %v2764 = vmul.f32 %v2740, %v2747
      %v2765 = vadd.f32 %v2709, %v2749
      %v2766 = vadd.f32 %v2710, %v2750
      %v2767 = vadd.f32 %v2711, %v2751
      %v2768 = vadd.f32 %v2712, %v2752
      %v2769 = vadd.f32 %v2713, %v2753
      %v2770 = vadd.f32 %v2714, %v2754
      %v2771 = vadd.f32 %v2715, %v2755
      %v2772 = vadd.f32 %v2716, %v2756
      %v2773 = vadd.f32 %v2717, %v2757
      %v2774 = vadd.f32 %v2718, %v2758
      %v2775 = vadd.f32 %v2719, %v2759
      %v2776 = vadd.f32 %v2720, %v2760
      %v2777 = vadd.f32 %v2721, %v2761
      %v2778 = vadd.f32 %v2722, %v2762
      %v2779 = vadd.f32 %v2723, %v2763
      %v2780 = vadd.f32 %v2724, %v2764
      %v2781 = vld [vmem:[%s2612 + $0x3] sm:$0xf]
      %v2782 = vld [vmem:[%s2612 + $0xb] sm:$0xf]
      %v2783 = vld [vmem:[%s2612 + $0x13] sm:$0xf]
      %v2784 = vld [vmem:[%s2612 + $0x1b] sm:$0xf]
      %v2785 = vld [vmem:[%s2612 + $0x43] sm:$0xf]
      %v2786 = vld [vmem:[%s2612 + $0x4b] sm:$0xf]
      %v2787 = vld [vmem:[%s2612 + $0x53] sm:$0xf]
      %v2788 = vld [vmem:[%s2612 + $0x5b] sm:$0xf]
      %v2789 = vld [vmem:[%s2612 + $0x83] sm:$0xf]
      %v2790 = vld [vmem:[%s2612 + $0x8b] sm:$0xf]
      %v2791 = vld [vmem:[%s2612 + $0x93] sm:$0xf]
      %v2792 = vld [vmem:[%s2612 + $0x9b] sm:$0xf]
      %v2793 = vld [vmem:[%s2612 + $0xc3] sm:$0xf]
      %v2794 = vld [vmem:[%s2612 + $0xcb] sm:$0xf]
      %v2795 = vld [vmem:[%s2612 + $0xd3] sm:$0xf]
      %v2796 = vld [vmem:[%s2612 + $0xdb] sm:$0xf]
      %s2797 = scalar_lea.vmem %s4, 18
      %v2798 = vld [vmem:[%s2797] sm:$0x1]
      %v2800 = vlaneseq
      %v2801 = vshrl.u32 %v2800, 7
      %v2802 = vsub.s32 0, %v2801
      %v2803 = vrot.slane %v2798, %v2802
      %v2805 = vmul.f32 %v2781, %v2803
      %v2806 = vmul.f32 %v2782, %v2803
      %v2807 = vmul.f32 %v2783, %v2803
      %v2808 = vmul.f32 %v2784, %v2803
      %v2809 = vmul.f32 %v2785, %v2803
      %v2810 = vmul.f32 %v2786, %v2803
      %v2811 = vmul.f32 %v2787, %v2803
      %v2812 = vmul.f32 %v2788, %v2803
      %v2813 = vmul.f32 %v2789, %v2803
      %v2814 = vmul.f32 %v2790, %v2803
      %v2815 = vmul.f32 %v2791, %v2803
      %v2816 = vmul.f32 %v2792, %v2803
      %v2817 = vmul.f32 %v2793, %v2803
      %v2818 = vmul.f32 %v2794, %v2803
      %v2819 = vmul.f32 %v2795, %v2803
      %v2820 = vmul.f32 %v2796, %v2803
      %v2821 = vadd.f32 %v2765, %v2805
      %v2822 = vadd.f32 %v2766, %v2806
      %v2823 = vadd.f32 %v2767, %v2807
      %v2824 = vadd.f32 %v2768, %v2808
      %v2825 = vadd.f32 %v2769, %v2809
      %v2826 = vadd.f32 %v2770, %v2810
      %v2827 = vadd.f32 %v2771, %v2811
      %v2828 = vadd.f32 %v2772, %v2812
      %v2829 = vadd.f32 %v2773, %v2813
      %v2830 = vadd.f32 %v2774, %v2814
      %v2831 = vadd.f32 %v2775, %v2815
      %v2832 = vadd.f32 %v2776, %v2816
      %v2833 = vadd.f32 %v2777, %v2817
      %v2834 = vadd.f32 %v2778, %v2818
      %v2835 = vadd.f32 %v2779, %v2819
      %v2836 = vadd.f32 %v2780, %v2820
      %v2837 = vld [vmem:[%s2612 + $0x4] sm:$0xf]
      %v2838 = vld [vmem:[%s2612 + $0xc] sm:$0xf]
      %v2839 = vld [vmem:[%s2612 + $0x14] sm:$0xf]
      %v2840 = vld [vmem:[%s2612 + $0x1c] sm:$0xf]
      %v2841 = vld [vmem:[%s2612 + $0x44] sm:$0xf]
      %v2842 = vld [vmem:[%s2612 + $0x4c] sm:$0xf]
      %v2843 = vld [vmem:[%s2612 + $0x54] sm:$0xf]
      %v2844 = vld [vmem:[%s2612 + $0x5c] sm:$0xf]
      %v2845 = vld [vmem:[%s2612 + $0x84] sm:$0xf]
      %v2846 = vld [vmem:[%s2612 + $0x8c] sm:$0xf]
      %v2847 = vld [vmem:[%s2612 + $0x94] sm:$0xf]
      %v2848 = vld [vmem:[%s2612 + $0x9c] sm:$0xf]
      %v2849 = vld [vmem:[%s2612 + $0xc4] sm:$0xf]
      %v2850 = vld [vmem:[%s2612 + $0xcc] sm:$0xf]
      %v2851 = vld [vmem:[%s2612 + $0xd4] sm:$0xf]
      %v2852 = vld [vmem:[%s2612 + $0xdc] sm:$0xf]
      %s2853 = scalar_lea.vmem %s4, 19
      %v2854 = vld [vmem:[%s2853] sm:$0x1]
      %v2856 = vlaneseq
      %v2857 = vshrl.u32 %v2856, 7
      %v2858 = vsub.s32 0, %v2857
      %v2859 = vrot.slane %v2854, %v2858
      %v2861 = vmul.f32 %v2837, %v2859
      %v2862 = vmul.f32 %v2838, %v2859
      %v2863 = vmul.f32 %v2839, %v2859
      %v2864 = vmul.f32 %v2840, %v2859
      %v2865 = vmul.f32 %v2841, %v2859
      %v2866 = vmul.f32 %v2842, %v2859
      %v2867 = vmul.f32 %v2843, %v2859
      %v2868 = vmul.f32 %v2844, %v2859
      %v2869 = vmul.f32 %v2845, %v2859
      %v2870 = vmul.f32 %v2846, %v2859
      %v2871 = vmul.f32 %v2847, %v2859
      %v2872 = vmul.f32 %v2848, %v2859
      %v2873 = vmul.f32 %v2849, %v2859
      %v2874 = vmul.f32 %v2850, %v2859
      %v2875 = vmul.f32 %v2851, %v2859
      %v2876 = vmul.f32 %v2852, %v2859
      %v2877 = vadd.f32 %v2821, %v2861
      %v2878 = vadd.f32 %v2822, %v2862
      %v2879 = vadd.f32 %v2823, %v2863
      %v2880 = vadd.f32 %v2824, %v2864
      %v2881 = vadd.f32 %v2825, %v2865
      %v2882 = vadd.f32 %v2826, %v2866
      %v2883 = vadd.f32 %v2827, %v2867
      %v2884 = vadd.f32 %v2828, %v2868
      %v2885 = vadd.f32 %v2829, %v2869
      %v2886 = vadd.f32 %v2830, %v2870
      %v2887 = vadd.f32 %v2831, %v2871
      %v2888 = vadd.f32 %v2832, %v2872
      %v2889 = vadd.f32 %v2833, %v2873
      %v2890 = vadd.f32 %v2834, %v2874
      %v2891 = vadd.f32 %v2835, %v2875
      %v2892 = vadd.f32 %v2836, %v2876
      %s2893 = scalar_lea.vmem %s312, 32
      %v2894 = vld [vmem:[%s2893] sm:$0xf]
      %v2895 = vld [vmem:[%s2893 + $0x8] sm:$0xf]
      %v2896 = vld [vmem:[%s2893 + $0x10] sm:$0xf]
      %v2897 = vld [vmem:[%s2893 + $0x18] sm:$0xf]
      %v2898 = vld [vmem:[%s2893 + $0x40] sm:$0xf]
      %v2899 = vld [vmem:[%s2893 + $0x48] sm:$0xf]
      %v2900 = vld [vmem:[%s2893 + $0x50] sm:$0xf]
      %v2901 = vld [vmem:[%s2893 + $0x58] sm:$0xf]
      %v2902 = vld [vmem:[%s2893 + $0x80] sm:$0xf]
      %v2903 = vld [vmem:[%s2893 + $0x88] sm:$0xf]
      %v2904 = vld [vmem:[%s2893 + $0x90] sm:$0xf]
      %v2905 = vld [vmem:[%s2893 + $0x98] sm:$0xf]
      %v2906 = vld [vmem:[%s2893 + $0xc0] sm:$0xf]
      %v2907 = vld [vmem:[%s2893 + $0xc8] sm:$0xf]
      %v2908 = vld [vmem:[%s2893 + $0xd0] sm:$0xf]
      %v2909 = vld [vmem:[%s2893 + $0xd8] sm:$0xf]
      %s2910 = scalar_lea.vmem %s4, 20
      %v2911 = vld [vmem:[%s2910] sm:$0x1]
      %v2913 = vlaneseq
      %v2914 = vshrl.u32 %v2913, 7
      %v2915 = vsub.s32 0, %v2914
      %v2916 = vrot.slane %v2911, %v2915
      %v2918 = vmul.f32 %v2894, %v2916
      %v2919 = vmul.f32 %v2895, %v2916
      %v2920 = vmul.f32 %v2896, %v2916
      %v2921 = vmul.f32 %v2897, %v2916
      %v2922 = vmul.f32 %v2898, %v2916
      %v2923 = vmul.f32 %v2899, %v2916
      %v2924 = vmul.f32 %v2900, %v2916
      %v2925 = vmul.f32 %v2901, %v2916
      %v2926 = vmul.f32 %v2902, %v2916
      %v2927 = vmul.f32 %v2903, %v2916
      %v2928 = vmul.f32 %v2904, %v2916
      %v2929 = vmul.f32 %v2905, %v2916
      %v2930 = vmul.f32 %v2906, %v2916
      %v2931 = vmul.f32 %v2907, %v2916
      %v2932 = vmul.f32 %v2908, %v2916
      %v2933 = vmul.f32 %v2909, %v2916
      %v2934 = vadd.f32 %v2877, %v2918
      %v2935 = vadd.f32 %v2878, %v2919
      %v2936 = vadd.f32 %v2879, %v2920
      %v2937 = vadd.f32 %v2880, %v2921
      %v2938 = vadd.f32 %v2881, %v2922
      %v2939 = vadd.f32 %v2882, %v2923
      %v2940 = vadd.f32 %v2883, %v2924
      %v2941 = vadd.f32 %v2884, %v2925
      %v2942 = vadd.f32 %v2885, %v2926
      %v2943 = vadd.f32 %v2886, %v2927
      %v2944 = vadd.f32 %v2887, %v2928
      %v2945 = vadd.f32 %v2888, %v2929
      %v2946 = vadd.f32 %v2889, %v2930
      %v2947 = vadd.f32 %v2890, %v2931
      %v2948 = vadd.f32 %v2891, %v2932
      %v2949 = vadd.f32 %v2892, %v2933
      %v2950 = vld [vmem:[%s2893 + $0x1] sm:$0xf]
      %v2951 = vld [vmem:[%s2893 + $0x9] sm:$0xf]
      %v2952 = vld [vmem:[%s2893 + $0x11] sm:$0xf]
      %v2953 = vld [vmem:[%s2893 + $0x19] sm:$0xf]
      %v2954 = vld [vmem:[%s2893 + $0x41] sm:$0xf]
      %v2955 = vld [vmem:[%s2893 + $0x49] sm:$0xf]
      %v2956 = vld [vmem:[%s2893 + $0x51] sm:$0xf]
      %v2957 = vld [vmem:[%s2893 + $0x59] sm:$0xf]
      %v2958 = vld [vmem:[%s2893 + $0x81] sm:$0xf]
      %v2959 = vld [vmem:[%s2893 + $0x89] sm:$0xf]
      %v2960 = vld [vmem:[%s2893 + $0x91] sm:$0xf]
      %v2961 = vld [vmem:[%s2893 + $0x99] sm:$0xf]
      %v2962 = vld [vmem:[%s2893 + $0xc1] sm:$0xf]
      %v2963 = vld [vmem:[%s2893 + $0xc9] sm:$0xf]
      %v2964 = vld [vmem:[%s2893 + $0xd1] sm:$0xf]
      %v2965 = vld [vmem:[%s2893 + $0xd9] sm:$0xf]
      %s2966 = scalar_lea.vmem %s4, 21
      %v2967 = vld [vmem:[%s2966] sm:$0x1]
      %v2969 = vlaneseq
      %v2970 = vshrl.u32 %v2969, 7
      %v2971 = vsub.s32 0, %v2970
      %v2972 = vrot.slane %v2967, %v2971
      %v2974 = vmul.f32 %v2950, %v2972
      %v2975 = vmul.f32 %v2951, %v2972
      %v2976 = vmul.f32 %v2952, %v2972
      %v2977 = vmul.f32 %v2953, %v2972
      %v2978 = vmul.f32 %v2954, %v2972
      %v2979 = vmul.f32 %v2955, %v2972
      %v2980 = vmul.f32 %v2956, %v2972
      %v2981 = vmul.f32 %v2957, %v2972
      %v2982 = vmul.f32 %v2958, %v2972
      %v2983 = vmul.f32 %v2959, %v2972
      %v2984 = vmul.f32 %v2960, %v2972
      %v2985 = vmul.f32 %v2961, %v2972
      %v2986 = vmul.f32 %v2962, %v2972
      %v2987 = vmul.f32 %v2963, %v2972
      %v2988 = vmul.f32 %v2964, %v2972
      %v2989 = vmul.f32 %v2965, %v2972
      %v2990 = vadd.f32 %v2934, %v2974
      %v2991 = vadd.f32 %v2935, %v2975
      %v2992 = vadd.f32 %v2936, %v2976
      %v2993 = vadd.f32 %v2937, %v2977
      %v2994 = vadd.f32 %v2938, %v2978
      %v2995 = vadd.f32 %v2939, %v2979
      %v2996 = vadd.f32 %v2940, %v2980
      %v2997 = vadd.f32 %v2941, %v2981
      %v2998 = vadd.f32 %v2942, %v2982
      %v2999 = vadd.f32 %v2943, %v2983
      %v3000 = vadd.f32 %v2944, %v2984
      %v3001 = vadd.f32 %v2945, %v2985
      %v3002 = vadd.f32 %v2946, %v2986
      %v3003 = vadd.f32 %v2947, %v2987
      %v3004 = vadd.f32 %v2948, %v2988
      %v3005 = vadd.f32 %v2949, %v2989
      %v3006 = vld [vmem:[%s2893 + $0x2] sm:$0xf]
      %v3007 = vld [vmem:[%s2893 + $0xa] sm:$0xf]
      %v3008 = vld [vmem:[%s2893 + $0x12] sm:$0xf]
      %v3009 = vld [vmem:[%s2893 + $0x1a] sm:$0xf]
      %v3010 = vld [vmem:[%s2893 + $0x42] sm:$0xf]
      %v3011 = vld [vmem:[%s2893 + $0x4a] sm:$0xf]
      %v3012 = vld [vmem:[%s2893 + $0x52] sm:$0xf]
      %v3013 = vld [vmem:[%s2893 + $0x5a] sm:$0xf]
      %v3014 = vld [vmem:[%s2893 + $0x82] sm:$0xf]
      %v3015 = vld [vmem:[%s2893 + $0x8a] sm:$0xf]
      %v3016 = vld [vmem:[%s2893 + $0x92] sm:$0xf]
      %v3017 = vld [vmem:[%s2893 + $0x9a] sm:$0xf]
      %v3018 = vld [vmem:[%s2893 + $0xc2] sm:$0xf]
      %v3019 = vld [vmem:[%s2893 + $0xca] sm:$0xf]
      %v3020 = vld [vmem:[%s2893 + $0xd2] sm:$0xf]
      %v3021 = vld [vmem:[%s2893 + $0xda] sm:$0xf]
      %s3022 = scalar_lea.vmem %s4, 22
      %v3023 = vld [vmem:[%s3022] sm:$0x1]
      %v3025 = vlaneseq
      %v3026 = vshrl.u32 %v3025, 7
      %v3027 = vsub.s32 0, %v3026
      %v3028 = vrot.slane %v3023, %v3027
      %v3030 = vmul.f32 %v3006, %v3028
      %v3031 = vmul.f32 %v3007, %v3028
      %v3032 = vmul.f32 %v3008, %v3028
      %v3033 = vmul.f32 %v3009, %v3028
      %v3034 = vmul.f32 %v3010, %v3028
      %v3035 = vmul.f32 %v3011, %v3028
      %v3036 = vmul.f32 %v3012, %v3028
      %v3037 = vmul.f32 %v3013, %v3028
      %v3038 = vmul.f32 %v3014, %v3028
      %v3039 = vmul.f32 %v3015, %v3028
      %v3040 = vmul.f32 %v3016, %v3028
      %v3041 = vmul.f32 %v3017, %v3028
      %v3042 = vmul.f32 %v3018, %v3028
      %v3043 = vmul.f32 %v3019, %v3028
      %v3044 = vmul.f32 %v3020, %v3028
      %v3045 = vmul.f32 %v3021, %v3028
      %v3046 = vadd.f32 %v2990, %v3030
      %v3047 = vadd.f32 %v2991, %v3031
      %v3048 = vadd.f32 %v2992, %v3032
      %v3049 = vadd.f32 %v2993, %v3033
      %v3050 = vadd.f32 %v2994, %v3034
      %v3051 = vadd.f32 %v2995, %v3035
      %v3052 = vadd.f32 %v2996, %v3036
      %v3053 = vadd.f32 %v2997, %v3037
      %v3054 = vadd.f32 %v2998, %v3038
      %v3055 = vadd.f32 %v2999, %v3039
      %v3056 = vadd.f32 %v3000, %v3040
      %v3057 = vadd.f32 %v3001, %v3041
      %v3058 = vadd.f32 %v3002, %v3042
      %v3059 = vadd.f32 %v3003, %v3043
      %v3060 = vadd.f32 %v3004, %v3044
      %v3061 = vadd.f32 %v3005, %v3045
      %v3062 = vld [vmem:[%s2893 + $0x3] sm:$0xf]
      %v3063 = vld [vmem:[%s2893 + $0xb] sm:$0xf]
      %v3064 = vld [vmem:[%s2893 + $0x13] sm:$0xf]
      %v3065 = vld [vmem:[%s2893 + $0x1b] sm:$0xf]
      %v3066 = vld [vmem:[%s2893 + $0x43] sm:$0xf]
      %v3067 = vld [vmem:[%s2893 + $0x4b] sm:$0xf]
      %v3068 = vld [vmem:[%s2893 + $0x53] sm:$0xf]
      %v3069 = vld [vmem:[%s2893 + $0x5b] sm:$0xf]
      %v3070 = vld [vmem:[%s2893 + $0x83] sm:$0xf]
      %v3071 = vld [vmem:[%s2893 + $0x8b] sm:$0xf]
      %v3072 = vld [vmem:[%s2893 + $0x93] sm:$0xf]
      %v3073 = vld [vmem:[%s2893 + $0x9b] sm:$0xf]
      %v3074 = vld [vmem:[%s2893 + $0xc3] sm:$0xf]
      %v3075 = vld [vmem:[%s2893 + $0xcb] sm:$0xf]
      %v3076 = vld [vmem:[%s2893 + $0xd3] sm:$0xf]
      %v3077 = vld [vmem:[%s2893 + $0xdb] sm:$0xf]
      %s3078 = scalar_lea.vmem %s4, 23
      %v3079 = vld [vmem:[%s3078] sm:$0x1]
      %v3081 = vlaneseq
      %v3082 = vshrl.u32 %v3081, 7
      %v3083 = vsub.s32 0, %v3082
      %v3084 = vrot.slane %v3079, %v3083
      %v3086 = vmul.f32 %v3062, %v3084
      %v3087 = vmul.f32 %v3063, %v3084
      %v3088 = vmul.f32 %v3064, %v3084
      %v3089 = vmul.f32 %v3065, %v3084
      %v3090 = vmul.f32 %v3066, %v3084
      %v3091 = vmul.f32 %v3067, %v3084
      %v3092 = vmul.f32 %v3068, %v3084
      %v3093 = vmul.f32 %v3069, %v3084
      %v3094 = vmul.f32 %v3070, %v3084
      %v3095 = vmul.f32 %v3071, %v3084
      %v3096 = vmul.f32 %v3072, %v3084
      %v3097 = vmul.f32 %v3073, %v3084
      %v3098 = vmul.f32 %v3074, %v3084
      %v3099 = vmul.f32 %v3075, %v3084
      %v3100 = vmul.f32 %v3076, %v3084
      %v3101 = vmul.f32 %v3077, %v3084
      %v3102 = vadd.f32 %v3046, %v3086
      %v3103 = vadd.f32 %v3047, %v3087
      %v3104 = vadd.f32 %v3048, %v3088
      %v3105 = vadd.f32 %v3049, %v3089
      %v3106 = vadd.f32 %v3050, %v3090
      %v3107 = vadd.f32 %v3051, %v3091
      %v3108 = vadd.f32 %v3052, %v3092
      %v3109 = vadd.f32 %v3053, %v3093
      %v3110 = vadd.f32 %v3054, %v3094
      %v3111 = vadd.f32 %v3055, %v3095
      %v3112 = vadd.f32 %v3056, %v3096
      %v3113 = vadd.f32 %v3057, %v3097
      %v3114 = vadd.f32 %v3058, %v3098
      %v3115 = vadd.f32 %v3059, %v3099
      %v3116 = vadd.f32 %v3060, %v3100
      %v3117 = vadd.f32 %v3061, %v3101
      %v3118 = vld [vmem:[%s2893 + $0x4] sm:$0xf]
      %v3119 = vld [vmem:[%s2893 + $0xc] sm:$0xf]
      %v3120 = vld [vmem:[%s2893 + $0x14] sm:$0xf]
      %v3121 = vld [vmem:[%s2893 + $0x1c] sm:$0xf]
      %v3122 = vld [vmem:[%s2893 + $0x44] sm:$0xf]
      %v3123 = vld [vmem:[%s2893 + $0x4c] sm:$0xf]
      %v3124 = vld [vmem:[%s2893 + $0x54] sm:$0xf]
      %v3125 = vld [vmem:[%s2893 + $0x5c] sm:$0xf]
      %v3126 = vld [vmem:[%s2893 + $0x84] sm:$0xf]
      %v3127 = vld [vmem:[%s2893 + $0x8c] sm:$0xf]
      %v3128 = vld [vmem:[%s2893 + $0x94] sm:$0xf]
      %v3129 = vld [vmem:[%s2893 + $0x9c] sm:$0xf]
      %v3130 = vld [vmem:[%s2893 + $0xc4] sm:$0xf]
      %v3131 = vld [vmem:[%s2893 + $0xcc] sm:$0xf]
      %v3132 = vld [vmem:[%s2893 + $0xd4] sm:$0xf]
      %v3133 = vld [vmem:[%s2893 + $0xdc] sm:$0xf]
      %s3134 = scalar_lea.vmem %s4, 24
      %v3135 = vld [vmem:[%s3134] sm:$0x1]
      %v3137 = vlaneseq
      %v3138 = vshrl.u32 %v3137, 7
      %v3139 = vsub.s32 0, %v3138
      %v3140 = vrot.slane %v3135, %v3139
      %v3142 = vmul.f32 %v3118, %v3140
      %v3143 = vmul.f32 %v3119, %v3140
      %v3144 = vmul.f32 %v3120, %v3140
      %v3145 = vmul.f32 %v3121, %v3140
      %v3146 = vmul.f32 %v3122, %v3140
      %v3147 = vmul.f32 %v3123, %v3140
      %v3148 = vmul.f32 %v3124, %v3140
      %v3149 = vmul.f32 %v3125, %v3140
      %v3150 = vmul.f32 %v3126, %v3140
      %v3151 = vmul.f32 %v3127, %v3140
      %v3152 = vmul.f32 %v3128, %v3140
      %v3153 = vmul.f32 %v3129, %v3140
      %v3154 = vmul.f32 %v3130, %v3140
      %v3155 = vmul.f32 %v3131, %v3140
      %v3156 = vmul.f32 %v3132, %v3140
      %v3157 = vmul.f32 %v3133, %v3140
      %v3158 = vadd.f32 %v3102, %v3142
      %v3159 = vadd.f32 %v3103, %v3143
      %v3160 = vadd.f32 %v3104, %v3144
      %v3161 = vadd.f32 %v3105, %v3145
      %v3162 = vadd.f32 %v3106, %v3146
      %v3163 = vadd.f32 %v3107, %v3147
      %v3164 = vadd.f32 %v3108, %v3148
      %v3165 = vadd.f32 %v3109, %v3149
      %v3166 = vadd.f32 %v3110, %v3150
      %v3167 = vadd.f32 %v3111, %v3151
      %v3168 = vadd.f32 %v3112, %v3152
      %v3169 = vadd.f32 %v3113, %v3153
      %v3170 = vadd.f32 %v3114, %v3154
      %v3171 = vadd.f32 %v3115, %v3155
      %v3172 = vadd.f32 %v3116, %v3156
      %v3173 = vadd.f32 %v3117, %v3157
      %v3174 = vld [vmem:[%s5] sm:$0x1]
      %v3176 = vlaneseq
      %v3177 = vshrl.u32 %v3176, 7
      %v3178 = vsub.s32 0, %v3177
      %v3179 = vrot.slane %v3174, %v3178
      %v3181 = vadd.f32 %v3158, %v3179
      %v3182 = vadd.f32 %v3159, %v3179
      %v3183 = vadd.f32 %v3160, %v3179
      %v3184 = vadd.f32 %v3161, %v3179
      %v3185 = vadd.f32 %v3162, %v3179
      %v3186 = vadd.f32 %v3163, %v3179
      %v3187 = vadd.f32 %v3164, %v3179
      %v3188 = vadd.f32 %v3165, %v3179
      %v3189 = vadd.f32 %v3166, %v3179
      %v3190 = vadd.f32 %v3167, %v3179
      %v3191 = vadd.f32 %v3168, %v3179
      %v3192 = vadd.f32 %v3169, %v3179
      %v3193 = vadd.f32 %v3170, %v3179
      %v3194 = vadd.f32 %v3171, %v3179
      %v3195 = vadd.f32 %v3172, %v3179
      %v3196 = vadd.f32 %v3173, %v3179
      %vm3197 = vcmask 125952
      %3198 = vst.msk [vmem:[%s326] sm:$0xf] %vm3197, %v3181
      %3199 = vst.msk [vmem:[%s326 + $0x4] sm:$0xf] %vm3197, %v3182
      %3200 = vst.msk [vmem:[%s326 + $0x8] sm:$0xf] %vm3197, %v3183
      %3201 = vst.msk [vmem:[%s326 + $0xc] sm:$0xf] %vm3197, %v3184
      %3202 = vst.msk [vmem:[%s326 + $0x10] sm:$0xf] %vm3197, %v3185
      %3203 = vst.msk [vmem:[%s326 + $0x14] sm:$0xf] %vm3197, %v3186
      %3204 = vst.msk [vmem:[%s326 + $0x18] sm:$0xf] %vm3197, %v3187
      %3205 = vst.msk [vmem:[%s326 + $0x1c] sm:$0xf] %vm3197, %v3188
      %3206 = vst.msk [vmem:[%s326 + $0x20] sm:$0xf] %vm3197, %v3189
      %3207 = vst.msk [vmem:[%s326 + $0x24] sm:$0xf] %vm3197, %v3190
      %3208 = vst.msk [vmem:[%s326 + $0x28] sm:$0xf] %vm3197, %v3191
      %3209 = vst.msk [vmem:[%s326 + $0x2c] sm:$0xf] %vm3197, %v3192
      %3210 = vst.msk [vmem:[%s326 + $0x30] sm:$0xf] %vm3197, %v3193
      %3211 = vst.msk [vmem:[%s326 + $0x34] sm:$0xf] %vm3197, %v3194
      %3212 = vst.msk [vmem:[%s326 + $0x38] sm:$0xf] %vm3197, %v3195
      %3213 = vst.msk [vmem:[%s326 + $0x3c] sm:$0xf] %vm3197, %v3196
      %s3214 = smul.u32 4, %s19
      %p3215 = scmp.lt.s32.totalorder %s3214, 7
      %s3216 = scalar_select %p3215, %s3214, 7
      %s3217 = smul.addr %s3216, 4
      %s3218 = smul.addr %s3217, 4
      %s3219 = scalar_lea.vmem %s6, %s3218
      %s3220 = smul.u32 4, %s19
      %p3221 = scmp.lt.s32.totalorder %s3220, 7
      %s3222 = scalar_select %p3221, %s3220, 7
      %s3223 = smul.addr %s3222, 4
      %s3224 = smul.addr %s3223, 4
      %s3225 = scalar_lea.vmem %s7, %s3224
      // Predicated region
      $region45: #{_lambda_.5} parent=43 // pred_check
        %p3226 = pneg %p173
      $region46: #{_lambda_.5} parent=43 // pred_check_branch
        %3228 = sbr.rel (%p3226) target = $region48
      $region47: #{_lambda_.5} parent=43 // pred_region
        %s3229 = smul.u32 4, %s19
      $region48: #{_lambda_.5} parent=43 // pred_fallthru
        _
      // Predicated region
      $region49: #{_lambda_.5} parent=43 // pred_check
        %p3230 = pneg %p199
      $region50: #{_lambda_.5} parent=43 // pred_check_branch
        %3232 = sbr.rel (%p3230) target = $region52
      $region51: #{_lambda_.5} parent=43 // pred_region
        %s3233 = smul.u32 4, %s19
      $region52: #{_lambda_.5} parent=43 // pred_fallthru
        _
    $region44: #{_lambda_.5} parent=5 // pred_fallthru
      _
    %p3234 = scmp.le.s32.totalorder 2, %s14
    // Predicated region
    $region53: #{_lambda_.5} parent=5 // pred_check
      %p3235 = pneg %p3234
    $region54: #{_lambda_.5} parent=5 // pred_check_branch
      %3237 = sbr.rel (%p3235) target = $region56
    $region55: #{_lambda_.5} parent=5 // pred_region
      %s3238 = ssub.s32 %s14, 2
      // Predicated region
      $region57: #{_lambda_.5} parent=55 // pred_check
        %p3239 = pneg %p179
      $region58: #{_lambda_.5} parent=55 // pred_check_branch
        %3241 = sbr.rel (%p3239) target = $region60
      $region59: #{_lambda_.5} parent=55 // pred_region
        %s3242 = smul.u32 4, %s20
        %p3243 = scmp.lt.s32.totalorder %s3242, 7
        %s3244 = scalar_select %p3243, %s3242, 7
        %s3245 = smul.addr %s3244, 4
        %s3246 = smul.addr %s3245, 4
        %s3247 = scalar_lea.vmem %s6, %s3246
      $region60: #{_lambda_.5} parent=55 // pred_fallthru
        _
      // Predicated region
      $region61: #{_lambda_.5} parent=55 // pred_check
        %p3248 = pneg %p205
      $region62: #{_lambda_.5} parent=55 // pred_check_branch
        %3250 = sbr.rel (%p3248) target = $region64
      $region63: #{_lambda_.5} parent=55 // pred_region
        %s3251 = smul.u32 4, %s20
        %p3252 = scmp.lt.s32.totalorder %s3251, 7
        %s3253 = scalar_select %p3252, %s3251, 7
        %s3254 = smul.addr %s3253, 4
        %s3255 = smul.addr %s3254, 4
        %s3256 = scalar_lea.vmem %s7, %s3255
      $region64: #{_lambda_.5} parent=55 // pred_fallthru
        _
    $region56: #{_lambda_.5} parent=5 // pred_fallthru
      _
  $region6: #{_lambda_.5} parent=0 // loop_footer
    %s18 = sadd.s32 1, %s14
  $region7: #{_lambda_.5} parent=0 // loop_footer_branch
    %13 = sbr.rel target = $region3
  $region8: #{_lambda_.5} parent=0 // loop_exit
    _

</llo_original>
